<compile_context>
chip_gen: v6e
topology: v6e:2x2x1
jax: 0.10.0
libtpu: 0.0.40
codegen_flags: <defaults>
</compile_context>

<pallas_src>
import numpy as np

import jax
import jax.numpy as jnp
from jax import lax
from jax.experimental import pallas as pl
from jax.experimental.pallas import tpu as pltpu


def _round_up(x, m):
    return ((x + m - 1) // m) * m


def _sigmoid_tanh(x):
    # EUP-native logistic: one tanh per gate instead of exp + full-width divide.
    return 0.5 * jnp.tanh(0.5 * x) + 0.5


# ----------------------------------------------------------------------------
# Pallas LSTM kernel: grid over time CHUNKS ("arbitrary" axis), layer-outer /
# time-inner inside each chunk.  h/c carried across chunks in the
# grid-invariant hn_ref / cn_ref output blocks (VMEM-resident).
# ----------------------------------------------------------------------------
def _make_lstm_kernel(n_layers, B_pad, P, Tc):
    def kernel(x_ref, len_ref, wih_ref, whh_ref, b_ref,
               out_ref, hn_ref, cn_ref, xproj_scr):
        ci = pl.program_id(0)

        @pl.when(ci == 0)
        def _():
            hn_ref[...] = jnp.zeros_like(hn_ref)
            cn_ref[...] = jnp.zeros_like(cn_ref)

        lens = len_ref[...]                       # (B_pad, 1) int32
        t0 = ci * Tc

        for l in range(n_layers):                 # static layer loop (outer)
            # Batched input projection for the whole chunk: one MXU-friendly
            # (Tc*Bp, P) @ (P, 4P) matmul with the bias folded in.  Layer l>0
            # reads layer l-1's per-chunk outputs from the out block.
            src = x_ref if l == 0 else out_ref
            x_chunk = src[...].reshape(Tc * B_pad, P)
            xproj = jnp.dot(x_chunk, wih_ref[l],
                            preferred_element_type=jnp.float32) + b_ref[l]
            xproj_scr[...] = xproj.reshape(Tc, B_pad, 4 * P)

            def step(t, carry):
                h_prev, c_prev = carry
                # (Bp, 1) predicate; jnp.where broadcasts along lanes.
                mask = (t0 + t) < lens
                # Recurrent projection only: K = P = 128.  Weight is indexed
                # at the dot site (pipelined VMEM read, not a register value).
                gates = xproj_scr[t] + jnp.dot(
                    h_prev, whh_ref[l], preferred_element_type=jnp.float32)
                # PyTorch gate order i, f, g, o; each slot is 128-aligned.
                i_g = _sigmoid_tanh(gates[:, 0 * P:1 * P])
                f_g = _sigmoid_tanh(gates[:, 1 * P:2 * P])
                g_g = jnp.tanh(gates[:, 2 * P:3 * P])
                o_g = _sigmoid_tanh(gates[:, 3 * P:4 * P])
                c_new = f_g * c_prev + i_g * g_g
                h_new = o_g * jnp.tanh(c_new)
                # Lane-dense store, zeros past each sequence's length.  Layer
                # l+1 ignores masked steps (its state is frozen there), so the
                # zeroed buffer is also a valid inter-layer input.
                out_ref[t] = jnp.where(mask, h_new, 0.0)
                # Packed-sequence semantics: freeze finished sequences' state.
                return (jnp.where(mask, h_new, h_prev),
                        jnp.where(mask, c_new, c_prev))

            h_fin, c_fin = lax.fori_loop(
                0, Tc, step, (hn_ref[l], cn_ref[l]), unroll=min(8, Tc))
            hn_ref[l] = h_fin
            cn_ref[l] = c_fin

    return kernel


def lstm_pallas(x_tb, lens_col, wih_all, whh_all, b_all, n_layers, P, Tc):
    """x_tb: (T_pad, B_pad, P) f32 time-major; lens_col: (B_pad, 1) int32."""
    Tp, Bp, _ = x_tb.shape
    n_chunks = Tp // Tc
    kernel = _make_lstm_kernel(n_layers, Bp, P, Tc)

    out_shape = (
        jax.ShapeDtypeStruct((Tp, Bp, P), jnp.float32),          # padded outputs
        jax.ShapeDtypeStruct((n_layers, Bp, P), jnp.float32),    # h_n (carry)
        jax.ShapeDtypeStruct((n_layers, Bp, P), jnp.float32),    # c_n (carry)
    )
    return pl.pallas_call(
        kernel,
        grid=(n_chunks,),
        in_specs=[
            pl.BlockSpec((Tc, Bp, P), lambda c: (c, 0, 0)),      # x chunk
            pl.BlockSpec((Bp, 1), lambda c: (0, 0)),             # lengths (resident)
            pl.BlockSpec(wih_all.shape, lambda c: (0, 0, 0)),    # W_ih per layer
            pl.BlockSpec(whh_all.shape, lambda c: (0, 0, 0)),    # W_hh per layer
            pl.BlockSpec(b_all.shape, lambda c: (0, 0, 0)),      # biases
        ],
        out_specs=(
            pl.BlockSpec((Tc, Bp, P), lambda c: (c, 0, 0)),
            pl.BlockSpec((n_layers, Bp, P), lambda c: (0, 0, 0)),
            pl.BlockSpec((n_layers, Bp, P), lambda c: (0, 0, 0)),
        ),
        out_shape=out_shape,
        scratch_shapes=[
            pltpu.VMEM((Tc, Bp, 4 * P), jnp.float32),            # X_proj per chunk
        ],
        compiler_params=pltpu.CompilerParams(
            dimension_semantics=("arbitrary",)),                 # sequential recurrence
    )(x_tb, lens_col, wih_all, whh_all, b_all)


# ----------------------------------------------------------------------------
# Weight packing: per layer, zero-pad each gate to a 128-lane slot.  W_ih and
# W_hh stay separate so the input projection can be batched over the chunk and
# the per-step dot keeps K = P = 128.
# ----------------------------------------------------------------------------
def _pack_layer_params(layer_params, H, P):
    Wih, Whh, Bs = [], [], []
    for (w_ih, w_hh, b) in layer_params:
        in_dim = w_ih.shape[0]
        wi = jnp.zeros((P, 4 * P), jnp.float32)
        wh = jnp.zeros((P, 4 * P), jnp.float32)
        bp = jnp.zeros((1, 4 * P), jnp.float32)
        for k in range(4):
            wi = wi.at[:in_dim, k * P:k * P + H].set(w_ih[:, k * H:(k + 1) * H])
            wh = wh.at[:H, k * P:k * P + H].set(w_hh[:, k * H:(k + 1) * H])
            bp = bp.at[:, k * P:k * P + H].set(b[:, k * H:(k + 1) * H])
        Wih.append(wi)
        Whh.append(wh)
        Bs.append(bp)
    # (L, P, 4P), (L, P, 4P), (L, 1, 4P)
    return jnp.stack(Wih), jnp.stack(Whh), jnp.stack(Bs)
    # TODO(synk): optional bf16 weight storage (f32 accumulation) for real
    #             workloads; loosen test tolerance accordingly.


# ----------------------------------------------------------------------------
# AttEncoder forward (embedding gather is XLA glue; LSTM recurrence = kernel).
# Output is time-major (T, B, H) — the natural layout of a PackedSequence.
# ----------------------------------------------------------------------------
def att_encoder_forward(tokens, lengths, emb_table, layer_params, n_layers, H,
                        time_chunk=128):
    B, T = tokens.shape
    vocab, D = emb_table.shape

    P = _round_up(max(D, H), 128)            # common lane pad (gate slots aligned)
    Bp = _round_up(B, 8)                     # sublane pad
    Tc = min(_round_up(T, 8), time_chunk)    # time steps per grid iteration
    Tp = _round_up(T, Tc)

    # Pad the (tiny) embedding table's feature dim so the gather emits
    # lane-dense activations directly in the time-major layout the kernel
    # wants — no transpose / re-pad pass over the activation tensor.
    emb_p = jnp.zeros((vocab, P), jnp.float32).at[:, :D].set(emb_table)
    tok_p = jnp.zeros((Bp, Tp), tokens.dtype).at[:B, :T].set(tokens)
    x_tb = jnp.take(emb_p, tok_p.T, axis=0)                     # (Tp, Bp, P)
    lens_col = jnp.zeros((Bp, 1), jnp.int32).at[:B, 0].set(lengths.astype(jnp.int32))

    wih_all, whh_all, b_all = _pack_layer_params(layer_params, H, P)

    out_tb_p, hn_p, cn_p = lstm_pallas(x_tb, lens_col, wih_all, whh_all, b_all,
                                       n_layers, P, Tc)
    out_tb = out_tb_p[:T, :B, :H]            # (T, B, H) padded output, time-major
    h_n = hn_p[:, :B, :H]                    # (n_layers, B, H)
    c_n = cn_p[:, :B, :H]
    return out_tb, h_n, c_n


def pack_padded_output(padded_tb, lengths):
    """Rebuild PackedSequence fields from the time-major padded output."""
    padded_tb = np.asarray(padded_tb)
    lengths = np.asarray(lengths)
    sorted_idx = np.argsort(-lengths, kind="stable")
    unsorted_idx = np.argsort(sorted_idx, kind="stable")
    max_len = int(lengths.max())
    batch_sizes = np.array([(lengths > t).sum() for t in range(max_len)],
                           dtype=np.int64)
    chunks = [padded_tb[t, sorted_idx[:batch_sizes[t]]] for t in range(max_len)]
    data = np.concatenate(chunks, axis=0)
    return data, batch_sizes, sorted_idx, unsorted_idx


# ----------------------------------------------------------------------------
# Pure-JAX reference (batch-first) for correctness checking.
# ----------------------------------------------------------------------------
def lstm_ref(embeds, lengths, layer_params, n_layers, H):
    B, T, D = embeds.shape
    h = jnp.zeros((n_layers, B, H), jnp.float32)
    c = jnp.zeros((n_layers, B, H), jnp.float32)
    outs = []
    for t in range(T):
        mask = (t < lengths).astype(jnp.float32)[:, None]
        inp = embeds[:, t]
        new_h, new_c = [], []
        for l in range(n_layers):
            w_ih, w_hh, b = layer_params[l]
            gates = inp @ w_ih + h[l] @ w_hh + b
            i_g = jax.nn.sigmoid(gates[:, :H])
            f_g = jax.nn.sigmoid(gates[:, H:2 * H])
            g_g = jnp.tanh(gates[:, 2 * H:3 * H])
            o_g = jax.nn.sigmoid(gates[:, 3 * H:])
            cn = f_g * c[l] + i_g * g_g
            hn = o_g * jnp.tanh(cn)
            hn = mask * hn + (1 - mask) * h[l]
            cn = mask * cn + (1 - mask) * c[l]
            new_h.append(hn)
            new_c.append(cn)
            inp = hn
        h = jnp.stack(new_h)
        c = jnp.stack(new_c)
        outs.append(inp * mask)
    return jnp.stack(outs, axis=1), h, c


# ----------------------------------------------------------------------------
if __name__ == "__main__":
    vocab_size, embedding_dim, hidden_dim, n_layers = 16, 32, 32, 2
    B, T = 4, 8
    H = hidden_dim

    key = jax.random.PRNGKey(0)
    keys = jax.random.split(key, 2 + 4 * n_layers)

    # Embedding table, padding_idx=0 -> zero row.
    emb_table = jax.random.normal(keys[0], (vocab_size, embedding_dim),
                                  jnp.float32) * 0.1
    emb_table = emb_table.at[0].set(0.0)

    # LSTM parameters (PyTorch-style uniform init, deterministic).
    k = 1.0 / np.sqrt(hidden_dim)
    layer_params = []
    for l in range(n_layers):
        in_dim = embedding_dim if l == 0 else hidden_dim
        w_ih = jax.random.uniform(keys[2 + 4 * l], (in_dim, 4 * H),
                                  jnp.float32, -k, k)
        w_hh = jax.random.uniform(keys[3 + 4 * l], (H, 4 * H),
                                  jnp.float32, -k, k)
        b_ih = jax.random.uniform(keys[4 + 4 * l], (1, 4 * H), jnp.float32, -k, k)
        b_hh = jax.random.uniform(keys[5 + 4 * l], (1, 4 * H), jnp.float32, -k, k)
        layer_params.append((w_ih, w_hh, b_ih + b_hh))

    # Inputs: token ids (B, T) and per-sequence lengths (x_length).
    tokens = jax.random.randint(keys[1], (B, T), 1, vocab_size, dtype=jnp.int32)
    lengths = jnp.array([8, 5, 3, 6], dtype=jnp.int32)
    tokens = jnp.where(jnp.arange(T)[None, :] < lengths[:, None], tokens, 0)

    out_tb, h_n, c_n = att_encoder_forward(
        tokens, lengths, emb_table, layer_params, n_layers, H)
    jax.block_until_ready((out_tb, h_n, c_n))

    # Rebuild the PackedSequence contents of `lstm_out` (host-side numpy glue).
    packed_data, batch_sizes, sorted_idx, unsorted_idx = pack_padded_output(
        out_tb, lengths)

    # Correctness check against a pure-JAX reference.
    embeds = jnp.take(emb_table, tokens, axis=0)
    ref_out, ref_h, ref_c = lstm_ref(embeds, lengths, layer_params, n_layers, H)
    out_bt = np.transpose(np.asarray(out_tb), (1, 0, 2))   # test-only view
    np.testing.assert_allclose(out_bt, np.asarray(ref_out), rtol=1e-4, atol=1e-4)
    np.testing.assert_allclose(np.asarray(h_n), np.asarray(ref_h),
                               rtol=1e-4, atol=1e-4)
    np.testing.assert_allclose(np.asarray(c_n), np.asarray(ref_c),
                               rtol=1e-4, atol=1e-4)

    assert out_tb.shape == (T, B, H)
    assert h_n.shape == (n_layers, B, H) and c_n.shape == (n_layers, B, H)
    assert packed_data.shape == (int(np.sum(np.asarray(lengths))), H)

    print("KERNEL_OK")
</pallas_src>

<mosaic_0001>
module attributes {stable_mosaic.version = 11 : i64} {
  func.func @kernel(%arg0: i32, %arg1: memref<8x8x128xf32, #tpu.memory_space<vmem>>, %arg2: memref<8x1xi32, #tpu.memory_space<vmem>>, %arg3: memref<2x128x512xf32, #tpu.memory_space<vmem>>, %arg4: memref<2x128x512xf32, #tpu.memory_space<vmem>>, %arg5: memref<2x1x512xf32, #tpu.memory_space<vmem>>, %arg6: memref<8x8x128xf32, #tpu.memory_space<vmem>>, %arg7: memref<2x8x128xf32, #tpu.memory_space<vmem>>, %arg8: memref<2x8x128xf32, #tpu.memory_space<vmem>>, %arg9: memref<8x8x512xf32, #tpu.memory_space<vmem>>) attributes {dimension_semantics = [#tpu.dimension_semantics<arbitrary>], iteration_bounds = array<i64: 1>, scalar_prefetch = 0 : i64, scratch_operands = 1 : i64, tpu.core_type = #tpu.core_type<tc>, window_params = [{transform_indices = @transform_0, window_bounds = array<i64: 8, 8, 128>}, {pipeline_mode = #tpu.pipeline_mode<synchronous>, transform_indices = @transform_1, window_bounds = array<i64: 8, 1>}, {pipeline_mode = #tpu.pipeline_mode<synchronous>, transform_indices = @transform_2, window_bounds = array<i64: 2, 128, 512>}, {pipeline_mode = #tpu.pipeline_mode<synchronous>, transform_indices = @transform_3, window_bounds = array<i64: 2, 128, 512>}, {pipeline_mode = #tpu.pipeline_mode<synchronous>, transform_indices = @transform_4, window_bounds = array<i64: 2, 1, 512>}, {transform_indices = @transform_5, window_bounds = array<i64: 8, 8, 128>}, {pipeline_mode = #tpu.pipeline_mode<synchronous>, transform_indices = @transform_6, window_bounds = array<i64: 2, 8, 128>}, {pipeline_mode = #tpu.pipeline_mode<synchronous>, transform_indices = @transform_7, window_bounds = array<i64: 2, 8, 128>}]} {
    %c0_i32 = arith.constant 0 : i32
    %0 = arith.cmpi eq, %arg0, %c0_i32 : i32
    %1 = arith.extui %0 : i1 to i32
    %c0_i32_0 = arith.constant 0 : i32
    %2 = arith.cmpi ne, %1, %c0_i32_0 : i32
    scf.if %2 {
      %cst_349 = arith.constant 0.000000e+00 : f32
      %927 = vector.broadcast %cst_349 : f32 to vector<2x8x128xf32>
      %c0_350 = arith.constant 0 : index
      %c0_351 = arith.constant 0 : index
      %c0_352 = arith.constant 0 : index
      %928 = vector.load %arg7[%c0_350, %c0_351, %c0_352] : memref<2x8x128xf32, #tpu.memory_space<vmem>>, vector<2x8x128xf32>
      tpu.vector_store %arg7[%c0_350, %c0_351, %c0_352], %927 {strides = array<i32>} : memref<2x8x128xf32, #tpu.memory_space<vmem>>, vector<2x8x128xf32>,
      %cst_353 = arith.constant 0.000000e+00 : f32
      %929 = vector.broadcast %cst_353 : f32 to vector<2x8x128xf32>
      %c0_354 = arith.constant 0 : index
      %c0_355 = arith.constant 0 : index
      %c0_356 = arith.constant 0 : index
      %930 = vector.load %arg8[%c0_354, %c0_355, %c0_356] : memref<2x8x128xf32, #tpu.memory_space<vmem>>, vector<2x8x128xf32>
      tpu.vector_store %arg8[%c0_354, %c0_355, %c0_356], %929 {strides = array<i32>} : memref<2x8x128xf32, #tpu.memory_space<vmem>>, vector<2x8x128xf32>,
    } else {
    }
    %c0 = arith.constant 0 : index
    %c0_1 = arith.constant 0 : index
    %3 = vector.load %arg2[%c0, %c0_1] : memref<8x1xi32, #tpu.memory_space<vmem>>, vector<8x1xi32>
    %c8_i32 = arith.constant 8 : i32
    %4 = arith.muli %arg0, %c8_i32 : i32
    %c0_2 = arith.constant 0 : index
    %c0_3 = arith.constant 0 : index
    %c0_4 = arith.constant 0 : index
    %5 = vector.load %arg1[%c0_2, %c0_3, %c0_4] : memref<8x8x128xf32, #tpu.memory_space<vmem>>, vector<8x8x128xf32>
    %6 = vector.shape_cast %5 : vector<8x8x128xf32> to vector<64x128xf32>
    %c0_5 = arith.constant 0 : index
    %c0_6 = arith.constant 0 : index
    %c0_7 = arith.constant 0 : index
    %7 = vector.load %arg3[%c0_5, %c0_6, %c0_7] : memref<2x128x512xf32, #tpu.memory_space<vmem>>, vector<1x128x512xf32>
    %8 = vector.shape_cast %7 : vector<1x128x512xf32> to vector<128x512xf32>
    %cst = arith.constant dense<0.000000e+00> : vector<64x512xf32>
    %9 = tpu.matmul %6, %8, %cst {dimension_numbers = #tpu.dot_dimension_numbers<[1], [0], [0], [1], [0, 0, 1, 1], [], []>} : vector<64x128xf32>, vector<128x512xf32>, vector<64x512xf32> -> vector<64x512xf32>
    %c0_8 = arith.constant 0 : index
    %c0_9 = arith.constant 0 : index
    %c0_10 = arith.constant 0 : index
    %10 = vector.load %arg5[%c0_8, %c0_9, %c0_10] : memref<2x1x512xf32, #tpu.memory_space<vmem>>, vector<1x1x512xf32>
    %11 = vector.shape_cast %10 : vector<1x1x512xf32> to vector<1x512xf32>
    %12 = vector.broadcast %11 : vector<1x512xf32> to vector<64x512xf32>
    %13 = arith.addf %9, %12 : vector<64x512xf32>
    %14 = vector.shape_cast %13 : vector<64x512xf32> to vector<8x8x512xf32>
    %c0_11 = arith.constant 0 : index
    %c0_12 = arith.constant 0 : index
    %c0_13 = arith.constant 0 : index
    %15 = vector.load %arg9[%c0_11, %c0_12, %c0_13] : memref<8x8x512xf32, #tpu.memory_space<vmem>>, vector<8x8x512xf32>
    tpu.vector_store %arg9[%c0_11, %c0_12, %c0_13], %14 {strides = array<i32>} : memref<8x8x512xf32, #tpu.memory_space<vmem>>, vector<8x8x512xf32>,
    %c0_14 = arith.constant 0 : index
    %c0_15 = arith.constant 0 : index
    %c0_16 = arith.constant 0 : index
    %16 = vector.load %arg7[%c0_14, %c0_15, %c0_16] : memref<2x8x128xf32, #tpu.memory_space<vmem>>, vector<1x8x128xf32>
    %17 = vector.shape_cast %16 : vector<1x8x128xf32> to vector<8x128xf32>
    %c0_17 = arith.constant 0 : index
    %c0_18 = arith.constant 0 : index
    %c0_19 = arith.constant 0 : index
    %18 = vector.load %arg8[%c0_17, %c0_18, %c0_19] : memref<2x8x128xf32, #tpu.memory_space<vmem>>, vector<1x8x128xf32>
    %19 = vector.shape_cast %18 : vector<1x8x128xf32> to vector<8x128xf32>
    %c0_i32_20 = arith.constant 0 : i32
    %20 = arith.addi %4, %c0_i32_20 : i32
    %21 = vector.broadcast %20 : i32 to vector<8x1xi32>
    %22 = arith.cmpi slt, %21, %3 : vector<8x1xi32>
    %23 = arith.index_cast %c0_i32_20 : i32 to index
    %c0_21 = arith.constant 0 : index
    %c0_22 = arith.constant 0 : index
    %24 = vector.load %arg9[%23, %c0_21, %c0_22] : memref<8x8x512xf32, #tpu.memory_space<vmem>>, vector<1x8x512xf32>
    %25 = vector.shape_cast %24 : vector<1x8x512xf32> to vector<8x512xf32>
    %c0_23 = arith.constant 0 : index
    %c0_24 = arith.constant 0 : index
    %c0_25 = arith.constant 0 : index
    %26 = vector.load %arg4[%c0_23, %c0_24, %c0_25] : memref<2x128x512xf32, #tpu.memory_space<vmem>>, vector<1x128x512xf32>
    %27 = vector.shape_cast %26 : vector<1x128x512xf32> to vector<128x512xf32>
    %cst_26 = arith.constant dense<0.000000e+00> : vector<8x512xf32>
    %28 = tpu.matmul %17, %27, %cst_26 {dimension_numbers = #tpu.dot_dimension_numbers<[1], [0], [0], [1], [0, 0, 1, 1], [], []>} : vector<8x128xf32>, vector<128x512xf32>, vector<8x512xf32> -> vector<8x512xf32>
    %29 = arith.addf %25, %28 : vector<8x512xf32>
    %30 = vector.extract_strided_slice %29 {offsets = [0, 0], sizes = [8, 128], strides = [1, 1]} : vector<8x512xf32> to vector<8x128xf32>
    %cst_27 = arith.constant 5.000000e-01 : f32
    %31 = vector.broadcast %cst_27 : f32 to vector<8x128xf32>
    %32 = arith.mulf %31, %30 : vector<8x128xf32>
    %33 = math.tanh %32 : vector<8x128xf32>
    %cst_28 = arith.constant 5.000000e-01 : f32
    %34 = vector.broadcast %cst_28 : f32 to vector<8x128xf32>
    %35 = arith.mulf %34, %33 : vector<8x128xf32>
    %cst_29 = arith.constant 5.000000e-01 : f32
    %36 = vector.broadcast %cst_29 : f32 to vector<8x128xf32>
    %37 = arith.addf %35, %36 : vector<8x128xf32>
    %38 = vector.extract_strided_slice %29 {offsets = [0, 128], sizes = [8, 128], strides = [1, 1]} : vector<8x512xf32> to vector<8x128xf32>
    %cst_30 = arith.constant 5.000000e-01 : f32
    %39 = vector.broadcast %cst_30 : f32 to vector<8x128xf32>
    %40 = arith.mulf %39, %38 : vector<8x128xf32>
    %41 = math.tanh %40 : vector<8x128xf32>
    %cst_31 = arith.constant 5.000000e-01 : f32
    %42 = vector.broadcast %cst_31 : f32 to vector<8x128xf32>
    %43 = arith.mulf %42, %41 : vector<8x128xf32>
    %cst_32 = arith.constant 5.000000e-01 : f32
    %44 = vector.broadcast %cst_32 : f32 to vector<8x128xf32>
    %45 = arith.addf %43, %44 : vector<8x128xf32>
    %46 = vector.extract_strided_slice %29 {offsets = [0, 256], sizes = [8, 128], strides = [1, 1]} : vector<8x512xf32> to vector<8x128xf32>
    %47 = math.tanh %46 : vector<8x128xf32>
    %48 = vector.extract_strided_slice %29 {offsets = [0, 384], sizes = [8, 128], strides = [1, 1]} : vector<8x512xf32> to vector<8x128xf32>
    %cst_33 = arith.constant 5.000000e-01 : f32
    %49 = vector.broadcast %cst_33 : f32 to vector<8x128xf32>
    %50 = arith.mulf %49, %48 : vector<8x128xf32>
    %51 = math.tanh %50 : vector<8x128xf32>
    %cst_34 = arith.constant 5.000000e-01 : f32
    %52 = vector.broadcast %cst_34 : f32 to vector<8x128xf32>
    %53 = arith.mulf %52, %51 : vector<8x128xf32>
    %cst_35 = arith.constant 5.000000e-01 : f32
    %54 = vector.broadcast %cst_35 : f32 to vector<8x128xf32>
    %55 = arith.addf %53, %54 : vector<8x128xf32>
    %56 = arith.mulf %45, %19 : vector<8x128xf32>
    %57 = arith.mulf %37, %47 : vector<8x128xf32>
    %58 = arith.addf %56, %57 : vector<8x128xf32>
    %59 = math.tanh %58 : vector<8x128xf32>
    %60 = arith.mulf %55, %59 : vector<8x128xf32>
    %cst_36 = arith.constant 0.000000e+00 : f32
    %61 = vector.shape_cast %22 : vector<8x1xi1> to vector<8x1xi1>
    %62 = vector.broadcast %61 : vector<8x1xi1> to vector<8x128xi1>
    %63 = vector.broadcast %cst_36 : f32 to vector<8x128xf32>
    %64 = arith.select %62, %60, %63 : vector<8x128xi1>, vector<8x128xf32>
    %65 = arith.index_cast %c0_i32_20 : i32 to index
    %c0_37 = arith.constant 0 : index
    %c0_38 = arith.constant 0 : index
    %66 = vector.load %arg6[%65, %c0_37, %c0_38] : memref<8x8x128xf32, #tpu.memory_space<vmem>>, vector<1x8x128xf32>
    %67 = vector.shape_cast %66 : vector<1x8x128xf32> to vector<8x128xf32>
    %68 = vector.shape_cast %64 : vector<8x128xf32> to vector<1x8x128xf32>
    tpu.vector_store %arg6[%65, %c0_37, %c0_38], %68 {strides = array<i32>} : memref<8x8x128xf32, #tpu.memory_space<vmem>>, vector<1x8x128xf32>,
    %69 = vector.shape_cast %22 : vector<8x1xi1> to vector<8x1xi1>
    %70 = vector.broadcast %69 : vector<8x1xi1> to vector<8x128xi1>
    %71 = arith.select %70, %60, %17 : vector<8x128xi1>, vector<8x128xf32>
    %72 = vector.shape_cast %22 : vector<8x1xi1> to vector<8x1xi1>
    %73 = vector.broadcast %72 : vector<8x1xi1> to vector<8x128xi1>
    %74 = arith.select %73, %58, %19 : vector<8x128xi1>, vector<8x128xf32>
    %c1_i32 = arith.constant 1 : i32
    %75 = arith.addi %4, %c1_i32 : i32
    %76 = vector.broadcast %75 : i32 to vector<8x1xi32>
    %77 = arith.cmpi slt, %76, %3 : vector<8x1xi32>
    %78 = arith.index_cast %c1_i32 : i32 to index
    %c0_39 = arith.constant 0 : index
    %c0_40 = arith.constant 0 : index
    %79 = vector.load %arg9[%78, %c0_39, %c0_40] : memref<8x8x512xf32, #tpu.memory_space<vmem>>, vector<1x8x512xf32>
    %80 = vector.shape_cast %79 : vector<1x8x512xf32> to vector<8x512xf32>
    %c0_41 = arith.constant 0 : index
    %c0_42 = arith.constant 0 : index
    %c0_43 = arith.constant 0 : index
    %81 = vector.load %arg4[%c0_41, %c0_42, %c0_43] : memref<2x128x512xf32, #tpu.memory_space<vmem>>, vector<1x128x512xf32>
    %82 = vector.shape_cast %81 : vector<1x128x512xf32> to vector<128x512xf32>
    %cst_44 = arith.constant dense<0.000000e+00> : vector<8x512xf32>
    %83 = tpu.matmul %71, %82, %cst_44 {dimension_numbers = #tpu.dot_dimension_numbers<[1], [0], [0], [1], [0, 0, 1, 1], [], []>} : vector<8x128xf32>, vector<128x512xf32>, vector<8x512xf32> -> vector<8x512xf32>
    %84 = arith.addf %80, %83 : vector<8x512xf32>
    %85 = vector.extract_strided_slice %84 {offsets = [0, 0], sizes = [8, 128], strides = [1, 1]} : vector<8x512xf32> to vector<8x128xf32>
    %cst_45 = arith.constant 5.000000e-01 : f32
    %86 = vector.broadcast %cst_45 : f32 to vector<8x128xf32>
    %87 = arith.mulf %86, %85 : vector<8x128xf32>
    %88 = math.tanh %87 : vector<8x128xf32>
    %cst_46 = arith.constant 5.000000e-01 : f32
    %89 = vector.broadcast %cst_46 : f32 to vector<8x128xf32>
    %90 = arith.mulf %89, %88 : vector<8x128xf32>
    %cst_47 = arith.constant 5.000000e-01 : f32
    %91 = vector.broadcast %cst_47 : f32 to vector<8x128xf32>
    %92 = arith.addf %90, %91 : vector<8x128xf32>
    %93 = vector.extract_strided_slice %84 {offsets = [0, 128], sizes = [8, 128], strides = [1, 1]} : vector<8x512xf32> to vector<8x128xf32>
    %cst_48 = arith.constant 5.000000e-01 : f32
    %94 = vector.broadcast %cst_48 : f32 to vector<8x128xf32>
    %95 = arith.mulf %94, %93 : vector<8x128xf32>
    %96 = math.tanh %95 : vector<8x128xf32>
    %cst_49 = arith.constant 5.000000e-01 : f32
    %97 = vector.broadcast %cst_49 : f32 to vector<8x128xf32>
    %98 = arith.mulf %97, %96 : vector<8x128xf32>
    %cst_50 = arith.constant 5.000000e-01 : f32
    %99 = vector.broadcast %cst_50 : f32 to vector<8x128xf32>
    %100 = arith.addf %98, %99 : vector<8x128xf32>
    %101 = vector.extract_strided_slice %84 {offsets = [0, 256], sizes = [8, 128], strides = [1, 1]} : vector<8x512xf32> to vector<8x128xf32>
    %102 = math.tanh %101 : vector<8x128xf32>
    %103 = vector.extract_strided_slice %84 {offsets = [0, 384], sizes = [8, 128], strides = [1, 1]} : vector<8x512xf32> to vector<8x128xf32>
    %cst_51 = arith.constant 5.000000e-01 : f32
    %104 = vector.broadcast %cst_51 : f32 to vector<8x128xf32>
    %105 = arith.mulf %104, %103 : vector<8x128xf32>
    %106 = math.tanh %105 : vector<8x128xf32>
    %cst_52 = arith.constant 5.000000e-01 : f32
    %107 = vector.broadcast %cst_52 : f32 to vector<8x128xf32>
    %108 = arith.mulf %107, %106 : vector<8x128xf32>
    %cst_53 = arith.constant 5.000000e-01 : f32
    %109 = vector.broadcast %cst_53 : f32 to vector<8x128xf32>
    %110 = arith.addf %108, %109 : vector<8x128xf32>
    %111 = arith.mulf %100, %74 : vector<8x128xf32>
    %112 = arith.mulf %92, %102 : vector<8x128xf32>
    %113 = arith.addf %111, %112 : vector<8x128xf32>
    %114 = math.tanh %113 : vector<8x128xf32>
    %115 = arith.mulf %110, %114 : vector<8x128xf32>
    %cst_54 = arith.constant 0.000000e+00 : f32
    %116 = vector.shape_cast %77 : vector<8x1xi1> to vector<8x1xi1>
    %117 = vector.broadcast %116 : vector<8x1xi1> to vector<8x128xi1>
    %118 = vector.broadcast %cst_54 : f32 to vector<8x128xf32>
    %119 = arith.select %117, %115, %118 : vector<8x128xi1>, vector<8x128xf32>
    %120 = arith.index_cast %c1_i32 : i32 to index
    %c0_55 = arith.constant 0 : index
    %c0_56 = arith.constant 0 : index
    %121 = vector.load %arg6[%120, %c0_55, %c0_56] : memref<8x8x128xf32, #tpu.memory_space<vmem>>, vector<1x8x128xf32>
    %122 = vector.shape_cast %121 : vector<1x8x128xf32> to vector<8x128xf32>
    %123 = vector.shape_cast %119 : vector<8x128xf32> to vector<1x8x128xf32>
    tpu.vector_store %arg6[%120, %c0_55, %c0_56], %123 {strides = array<i32>} : memref<8x8x128xf32, #tpu.memory_space<vmem>>, vector<1x8x128xf32>,
    %124 = vector.shape_cast %77 : vector<8x1xi1> to vector<8x1xi1>
    %125 = vector.broadcast %124 : vector<8x1xi1> to vector<8x128xi1>
    %126 = arith.select %125, %115, %71 : vector<8x128xi1>, vector<8x128xf32>
    %127 = vector.shape_cast %77 : vector<8x1xi1> to vector<8x1xi1>
    %128 = vector.broadcast %127 : vector<8x1xi1> to vector<8x128xi1>
    %129 = arith.select %128, %113, %74 : vector<8x128xi1>, vector<8x128xf32>
    %c2_i32 = arith.constant 2 : i32
    %130 = arith.addi %4, %c2_i32 : i32
    %131 = vector.broadcast %130 : i32 to vector<8x1xi32>
    %132 = arith.cmpi slt, %131, %3 : vector<8x1xi32>
    %133 = arith.index_cast %c2_i32 : i32 to index
    %c0_57 = arith.constant 0 : index
    %c0_58 = arith.constant 0 : index
    %134 = vector.load %arg9[%133, %c0_57, %c0_58] : memref<8x8x512xf32, #tpu.memory_space<vmem>>, vector<1x8x512xf32>
    %135 = vector.shape_cast %134 : vector<1x8x512xf32> to vector<8x512xf32>
    %c0_59 = arith.constant 0 : index
    %c0_60 = arith.constant 0 : index
    %c0_61 = arith.constant 0 : index
    %136 = vector.load %arg4[%c0_59, %c0_60, %c0_61] : memref<2x128x512xf32, #tpu.memory_space<vmem>>, vector<1x128x512xf32>
    %137 = vector.shape_cast %136 : vector<1x128x512xf32> to vector<128x512xf32>
    %cst_62 = arith.constant dense<0.000000e+00> : vector<8x512xf32>
    %138 = tpu.matmul %126, %137, %cst_62 {dimension_numbers = #tpu.dot_dimension_numbers<[1], [0], [0], [1], [0, 0, 1, 1], [], []>} : vector<8x128xf32>, vector<128x512xf32>, vector<8x512xf32> -> vector<8x512xf32>
    %139 = arith.addf %135, %138 : vector<8x512xf32>
    %140 = vector.extract_strided_slice %139 {offsets = [0, 0], sizes = [8, 128], strides = [1, 1]} : vector<8x512xf32> to vector<8x128xf32>
    %cst_63 = arith.constant 5.000000e-01 : f32
    %141 = vector.broadcast %cst_63 : f32 to vector<8x128xf32>
    %142 = arith.mulf %141, %140 : vector<8x128xf32>
    %143 = math.tanh %142 : vector<8x128xf32>
    %cst_64 = arith.constant 5.000000e-01 : f32
    %144 = vector.broadcast %cst_64 : f32 to vector<8x128xf32>
    %145 = arith.mulf %144, %143 : vector<8x128xf32>
    %cst_65 = arith.constant 5.000000e-01 : f32
    %146 = vector.broadcast %cst_65 : f32 to vector<8x128xf32>
    %147 = arith.addf %145, %146 : vector<8x128xf32>
    %148 = vector.extract_strided_slice %139 {offsets = [0, 128], sizes = [8, 128], strides = [1, 1]} : vector<8x512xf32> to vector<8x128xf32>
    %cst_66 = arith.constant 5.000000e-01 : f32
    %149 = vector.broadcast %cst_66 : f32 to vector<8x128xf32>
    %150 = arith.mulf %149, %148 : vector<8x128xf32>
    %151 = math.tanh %150 : vector<8x128xf32>
    %cst_67 = arith.constant 5.000000e-01 : f32
    %152 = vector.broadcast %cst_67 : f32 to vector<8x128xf32>
    %153 = arith.mulf %152, %151 : vector<8x128xf32>
    %cst_68 = arith.constant 5.000000e-01 : f32
    %154 = vector.broadcast %cst_68 : f32 to vector<8x128xf32>
    %155 = arith.addf %153, %154 : vector<8x128xf32>
    %156 = vector.extract_strided_slice %139 {offsets = [0, 256], sizes = [8, 128], strides = [1, 1]} : vector<8x512xf32> to vector<8x128xf32>
    %157 = math.tanh %156 : vector<8x128xf32>
    %158 = vector.extract_strided_slice %139 {offsets = [0, 384], sizes = [8, 128], strides = [1, 1]} : vector<8x512xf32> to vector<8x128xf32>
    %cst_69 = arith.constant 5.000000e-01 : f32
    %159 = vector.broadcast %cst_69 : f32 to vector<8x128xf32>
    %160 = arith.mulf %159, %158 : vector<8x128xf32>
    %161 = math.tanh %160 : vector<8x128xf32>
    %cst_70 = arith.constant 5.000000e-01 : f32
    %162 = vector.broadcast %cst_70 : f32 to vector<8x128xf32>
    %163 = arith.mulf %162, %161 : vector<8x128xf32>
    %cst_71 = arith.constant 5.000000e-01 : f32
    %164 = vector.broadcast %cst_71 : f32 to vector<8x128xf32>
    %165 = arith.addf %163, %164 : vector<8x128xf32>
    %166 = arith.mulf %155, %129 : vector<8x128xf32>
    %167 = arith.mulf %147, %157 : vector<8x128xf32>
    %168 = arith.addf %166, %167 : vector<8x128xf32>
    %169 = math.tanh %168 : vector<8x128xf32>
    %170 = arith.mulf %165, %169 : vector<8x128xf32>
    %cst_72 = arith.constant 0.000000e+00 : f32
    %171 = vector.shape_cast %132 : vector<8x1xi1> to vector<8x1xi1>
    %172 = vector.broadcast %171 : vector<8x1xi1> to vector<8x128xi1>
    %173 = vector.broadcast %cst_72 : f32 to vector<8x128xf32>
    %174 = arith.select %172, %170, %173 : vector<8x128xi1>, vector<8x128xf32>
    %175 = arith.index_cast %c2_i32 : i32 to index
    %c0_73 = arith.constant 0 : index
    %c0_74 = arith.constant 0 : index
    %176 = vector.load %arg6[%175, %c0_73, %c0_74] : memref<8x8x128xf32, #tpu.memory_space<vmem>>, vector<1x8x128xf32>
    %177 = vector.shape_cast %176 : vector<1x8x128xf32> to vector<8x128xf32>
    %178 = vector.shape_cast %174 : vector<8x128xf32> to vector<1x8x128xf32>
    tpu.vector_store %arg6[%175, %c0_73, %c0_74], %178 {strides = array<i32>} : memref<8x8x128xf32, #tpu.memory_space<vmem>>, vector<1x8x128xf32>,
    %179 = vector.shape_cast %132 : vector<8x1xi1> to vector<8x1xi1>
    %180 = vector.broadcast %179 : vector<8x1xi1> to vector<8x128xi1>
    %181 = arith.select %180, %170, %126 : vector<8x128xi1>, vector<8x128xf32>
    %182 = vector.shape_cast %132 : vector<8x1xi1> to vector<8x1xi1>
    %183 = vector.broadcast %182 : vector<8x1xi1> to vector<8x128xi1>
    %184 = arith.select %183, %168, %129 : vector<8x128xi1>, vector<8x128xf32>
    %c3_i32 = arith.constant 3 : i32
    %185 = arith.addi %4, %c3_i32 : i32
    %186 = vector.broadcast %185 : i32 to vector<8x1xi32>
    %187 = arith.cmpi slt, %186, %3 : vector<8x1xi32>
    %188 = arith.index_cast %c3_i32 : i32 to index
    %c0_75 = arith.constant 0 : index
    %c0_76 = arith.constant 0 : index
    %189 = vector.load %arg9[%188, %c0_75, %c0_76] : memref<8x8x512xf32, #tpu.memory_space<vmem>>, vector<1x8x512xf32>
    %190 = vector.shape_cast %189 : vector<1x8x512xf32> to vector<8x512xf32>
    %c0_77 = arith.constant 0 : index
    %c0_78 = arith.constant 0 : index
    %c0_79 = arith.constant 0 : index
    %191 = vector.load %arg4[%c0_77, %c0_78, %c0_79] : memref<2x128x512xf32, #tpu.memory_space<vmem>>, vector<1x128x512xf32>
    %192 = vector.shape_cast %191 : vector<1x128x512xf32> to vector<128x512xf32>
    %cst_80 = arith.constant dense<0.000000e+00> : vector<8x512xf32>
    %193 = tpu.matmul %181, %192, %cst_80 {dimension_numbers = #tpu.dot_dimension_numbers<[1], [0], [0], [1], [0, 0, 1, 1], [], []>} : vector<8x128xf32>, vector<128x512xf32>, vector<8x512xf32> -> vector<8x512xf32>
    %194 = arith.addf %190, %193 : vector<8x512xf32>
    %195 = vector.extract_strided_slice %194 {offsets = [0, 0], sizes = [8, 128], strides = [1, 1]} : vector<8x512xf32> to vector<8x128xf32>
    %cst_81 = arith.constant 5.000000e-01 : f32
    %196 = vector.broadcast %cst_81 : f32 to vector<8x128xf32>
    %197 = arith.mulf %196, %195 : vector<8x128xf32>
    %198 = math.tanh %197 : vector<8x128xf32>
    %cst_82 = arith.constant 5.000000e-01 : f32
    %199 = vector.broadcast %cst_82 : f32 to vector<8x128xf32>
    %200 = arith.mulf %199, %198 : vector<8x128xf32>
    %cst_83 = arith.constant 5.000000e-01 : f32
    %201 = vector.broadcast %cst_83 : f32 to vector<8x128xf32>
    %202 = arith.addf %200, %201 : vector<8x128xf32>
    %203 = vector.extract_strided_slice %194 {offsets = [0, 128], sizes = [8, 128], strides = [1, 1]} : vector<8x512xf32> to vector<8x128xf32>
    %cst_84 = arith.constant 5.000000e-01 : f32
    %204 = vector.broadcast %cst_84 : f32 to vector<8x128xf32>
    %205 = arith.mulf %204, %203 : vector<8x128xf32>
    %206 = math.tanh %205 : vector<8x128xf32>
    %cst_85 = arith.constant 5.000000e-01 : f32
    %207 = vector.broadcast %cst_85 : f32 to vector<8x128xf32>
    %208 = arith.mulf %207, %206 : vector<8x128xf32>
    %cst_86 = arith.constant 5.000000e-01 : f32
    %209 = vector.broadcast %cst_86 : f32 to vector<8x128xf32>
    %210 = arith.addf %208, %209 : vector<8x128xf32>
    %211 = vector.extract_strided_slice %194 {offsets = [0, 256], sizes = [8, 128], strides = [1, 1]} : vector<8x512xf32> to vector<8x128xf32>
    %212 = math.tanh %211 : vector<8x128xf32>
    %213 = vector.extract_strided_slice %194 {offsets = [0, 384], sizes = [8, 128], strides = [1, 1]} : vector<8x512xf32> to vector<8x128xf32>
    %cst_87 = arith.constant 5.000000e-01 : f32
    %214 = vector.broadcast %cst_87 : f32 to vector<8x128xf32>
    %215 = arith.mulf %214, %213 : vector<8x128xf32>
    %216 = math.tanh %215 : vector<8x128xf32>
    %cst_88 = arith.constant 5.000000e-01 : f32
    %217 = vector.broadcast %cst_88 : f32 to vector<8x128xf32>
    %218 = arith.mulf %217, %216 : vector<8x128xf32>
    %cst_89 = arith.constant 5.000000e-01 : f32
    %219 = vector.broadcast %cst_89 : f32 to vector<8x128xf32>
    %220 = arith.addf %218, %219 : vector<8x128xf32>
    %221 = arith.mulf %210, %184 : vector<8x128xf32>
    %222 = arith.mulf %202, %212 : vector<8x128xf32>
    %223 = arith.addf %221, %222 : vector<8x128xf32>
    %224 = math.tanh %223 : vector<8x128xf32>
    %225 = arith.mulf %220, %224 : vector<8x128xf32>
    %cst_90 = arith.constant 0.000000e+00 : f32
    %226 = vector.shape_cast %187 : vector<8x1xi1> to vector<8x1xi1>
    %227 = vector.broadcast %226 : vector<8x1xi1> to vector<8x128xi1>
    %228 = vector.broadcast %cst_90 : f32 to vector<8x128xf32>
    %229 = arith.select %227, %225, %228 : vector<8x128xi1>, vector<8x128xf32>
    %230 = arith.index_cast %c3_i32 : i32 to index
    %c0_91 = arith.constant 0 : index
    %c0_92 = arith.constant 0 : index
    %231 = vector.load %arg6[%230, %c0_91, %c0_92] : memref<8x8x128xf32, #tpu.memory_space<vmem>>, vector<1x8x128xf32>
    %232 = vector.shape_cast %231 : vector<1x8x128xf32> to vector<8x128xf32>
    %233 = vector.shape_cast %229 : vector<8x128xf32> to vector<1x8x128xf32>
    tpu.vector_store %arg6[%230, %c0_91, %c0_92], %233 {strides = array<i32>} : memref<8x8x128xf32, #tpu.memory_space<vmem>>, vector<1x8x128xf32>,
    %234 = vector.shape_cast %187 : vector<8x1xi1> to vector<8x1xi1>
    %235 = vector.broadcast %234 : vector<8x1xi1> to vector<8x128xi1>
    %236 = arith.select %235, %225, %181 : vector<8x128xi1>, vector<8x128xf32>
    %237 = vector.shape_cast %187 : vector<8x1xi1> to vector<8x1xi1>
    %238 = vector.broadcast %237 : vector<8x1xi1> to vector<8x128xi1>
    %239 = arith.select %238, %223, %184 : vector<8x128xi1>, vector<8x128xf32>
    %c4_i32 = arith.constant 4 : i32
    %240 = arith.addi %4, %c4_i32 : i32
    %241 = vector.broadcast %240 : i32 to vector<8x1xi32>
    %242 = arith.cmpi slt, %241, %3 : vector<8x1xi32>
    %243 = arith.index_cast %c4_i32 : i32 to index
    %c0_93 = arith.constant 0 : index
    %c0_94 = arith.constant 0 : index
    %244 = vector.load %arg9[%243, %c0_93, %c0_94] : memref<8x8x512xf32, #tpu.memory_space<vmem>>, vector<1x8x512xf32>
    %245 = vector.shape_cast %244 : vector<1x8x512xf32> to vector<8x512xf32>
    %c0_95 = arith.constant 0 : index
    %c0_96 = arith.constant 0 : index
    %c0_97 = arith.constant 0 : index
    %246 = vector.load %arg4[%c0_95, %c0_96, %c0_97] : memref<2x128x512xf32, #tpu.memory_space<vmem>>, vector<1x128x512xf32>
    %247 = vector.shape_cast %246 : vector<1x128x512xf32> to vector<128x512xf32>
    %cst_98 = arith.constant dense<0.000000e+00> : vector<8x512xf32>
    %248 = tpu.matmul %236, %247, %cst_98 {dimension_numbers = #tpu.dot_dimension_numbers<[1], [0], [0], [1], [0, 0, 1, 1], [], []>} : vector<8x128xf32>, vector<128x512xf32>, vector<8x512xf32> -> vector<8x512xf32>
    %249 = arith.addf %245, %248 : vector<8x512xf32>
    %250 = vector.extract_strided_slice %249 {offsets = [0, 0], sizes = [8, 128], strides = [1, 1]} : vector<8x512xf32> to vector<8x128xf32>
    %cst_99 = arith.constant 5.000000e-01 : f32
    %251 = vector.broadcast %cst_99 : f32 to vector<8x128xf32>
    %252 = arith.mulf %251, %250 : vector<8x128xf32>
    %253 = math.tanh %252 : vector<8x128xf32>
    %cst_100 = arith.constant 5.000000e-01 : f32
    %254 = vector.broadcast %cst_100 : f32 to vector<8x128xf32>
    %255 = arith.mulf %254, %253 : vector<8x128xf32>
    %cst_101 = arith.constant 5.000000e-01 : f32
    %256 = vector.broadcast %cst_101 : f32 to vector<8x128xf32>
    %257 = arith.addf %255, %256 : vector<8x128xf32>
    %258 = vector.extract_strided_slice %249 {offsets = [0, 128], sizes = [8, 128], strides = [1, 1]} : vector<8x512xf32> to vector<8x128xf32>
    %cst_102 = arith.constant 5.000000e-01 : f32
    %259 = vector.broadcast %cst_102 : f32 to vector<8x128xf32>
    %260 = arith.mulf %259, %258 : vector<8x128xf32>
    %261 = math.tanh %260 : vector<8x128xf32>
    %cst_103 = arith.constant 5.000000e-01 : f32
    %262 = vector.broadcast %cst_103 : f32 to vector<8x128xf32>
    %263 = arith.mulf %262, %261 : vector<8x128xf32>
    %cst_104 = arith.constant 5.000000e-01 : f32
    %264 = vector.broadcast %cst_104 : f32 to vector<8x128xf32>
    %265 = arith.addf %263, %264 : vector<8x128xf32>
    %266 = vector.extract_strided_slice %249 {offsets = [0, 256], sizes = [8, 128], strides = [1, 1]} : vector<8x512xf32> to vector<8x128xf32>
    %267 = math.tanh %266 : vector<8x128xf32>
    %268 = vector.extract_strided_slice %249 {offsets = [0, 384], sizes = [8, 128], strides = [1, 1]} : vector<8x512xf32> to vector<8x128xf32>
    %cst_105 = arith.constant 5.000000e-01 : f32
    %269 = vector.broadcast %cst_105 : f32 to vector<8x128xf32>
    %270 = arith.mulf %269, %268 : vector<8x128xf32>
    %271 = math.tanh %270 : vector<8x128xf32>
    %cst_106 = arith.constant 5.000000e-01 : f32
    %272 = vector.broadcast %cst_106 : f32 to vector<8x128xf32>
    %273 = arith.mulf %272, %271 : vector<8x128xf32>
    %cst_107 = arith.constant 5.000000e-01 : f32
    %274 = vector.broadcast %cst_107 : f32 to vector<8x128xf32>
    %275 = arith.addf %273, %274 : vector<8x128xf32>
    %276 = arith.mulf %265, %239 : vector<8x128xf32>
    %277 = arith.mulf %257, %267 : vector<8x128xf32>
    %278 = arith.addf %276, %277 : vector<8x128xf32>
    %279 = math.tanh %278 : vector<8x128xf32>
    %280 = arith.mulf %275, %279 : vector<8x128xf32>
    %cst_108 = arith.constant 0.000000e+00 : f32
    %281 = vector.shape_cast %242 : vector<8x1xi1> to vector<8x1xi1>
    %282 = vector.broadcast %281 : vector<8x1xi1> to vector<8x128xi1>
    %283 = vector.broadcast %cst_108 : f32 to vector<8x128xf32>
    %284 = arith.select %282, %280, %283 : vector<8x128xi1>, vector<8x128xf32>
    %285 = arith.index_cast %c4_i32 : i32 to index
    %c0_109 = arith.constant 0 : index
    %c0_110 = arith.constant 0 : index
    %286 = vector.load %arg6[%285, %c0_109, %c0_110] : memref<8x8x128xf32, #tpu.memory_space<vmem>>, vector<1x8x128xf32>
    %287 = vector.shape_cast %286 : vector<1x8x128xf32> to vector<8x128xf32>
    %288 = vector.shape_cast %284 : vector<8x128xf32> to vector<1x8x128xf32>
    tpu.vector_store %arg6[%285, %c0_109, %c0_110], %288 {strides = array<i32>} : memref<8x8x128xf32, #tpu.memory_space<vmem>>, vector<1x8x128xf32>,
    %289 = vector.shape_cast %242 : vector<8x1xi1> to vector<8x1xi1>
    %290 = vector.broadcast %289 : vector<8x1xi1> to vector<8x128xi1>
    %291 = arith.select %290, %280, %236 : vector<8x128xi1>, vector<8x128xf32>
    %292 = vector.shape_cast %242 : vector<8x1xi1> to vector<8x1xi1>
    %293 = vector.broadcast %292 : vector<8x1xi1> to vector<8x128xi1>
    %294 = arith.select %293, %278, %239 : vector<8x128xi1>, vector<8x128xf32>
    %c5_i32 = arith.constant 5 : i32
    %295 = arith.addi %4, %c5_i32 : i32
    %296 = vector.broadcast %295 : i32 to vector<8x1xi32>
    %297 = arith.cmpi slt, %296, %3 : vector<8x1xi32>
    %298 = arith.index_cast %c5_i32 : i32 to index
    %c0_111 = arith.constant 0 : index
    %c0_112 = arith.constant 0 : index
    %299 = vector.load %arg9[%298, %c0_111, %c0_112] : memref<8x8x512xf32, #tpu.memory_space<vmem>>, vector<1x8x512xf32>
    %300 = vector.shape_cast %299 : vector<1x8x512xf32> to vector<8x512xf32>
    %c0_113 = arith.constant 0 : index
    %c0_114 = arith.constant 0 : index
    %c0_115 = arith.constant 0 : index
    %301 = vector.load %arg4[%c0_113, %c0_114, %c0_115] : memref<2x128x512xf32, #tpu.memory_space<vmem>>, vector<1x128x512xf32>
    %302 = vector.shape_cast %301 : vector<1x128x512xf32> to vector<128x512xf32>
    %cst_116 = arith.constant dense<0.000000e+00> : vector<8x512xf32>
    %303 = tpu.matmul %291, %302, %cst_116 {dimension_numbers = #tpu.dot_dimension_numbers<[1], [0], [0], [1], [0, 0, 1, 1], [], []>} : vector<8x128xf32>, vector<128x512xf32>, vector<8x512xf32> -> vector<8x512xf32>
    %304 = arith.addf %300, %303 : vector<8x512xf32>
    %305 = vector.extract_strided_slice %304 {offsets = [0, 0], sizes = [8, 128], strides = [1, 1]} : vector<8x512xf32> to vector<8x128xf32>
    %cst_117 = arith.constant 5.000000e-01 : f32
    %306 = vector.broadcast %cst_117 : f32 to vector<8x128xf32>
    %307 = arith.mulf %306, %305 : vector<8x128xf32>
    %308 = math.tanh %307 : vector<8x128xf32>
    %cst_118 = arith.constant 5.000000e-01 : f32
    %309 = vector.broadcast %cst_118 : f32 to vector<8x128xf32>
    %310 = arith.mulf %309, %308 : vector<8x128xf32>
    %cst_119 = arith.constant 5.000000e-01 : f32
    %311 = vector.broadcast %cst_119 : f32 to vector<8x128xf32>
    %312 = arith.addf %310, %311 : vector<8x128xf32>
    %313 = vector.extract_strided_slice %304 {offsets = [0, 128], sizes = [8, 128], strides = [1, 1]} : vector<8x512xf32> to vector<8x128xf32>
    %cst_120 = arith.constant 5.000000e-01 : f32
    %314 = vector.broadcast %cst_120 : f32 to vector<8x128xf32>
    %315 = arith.mulf %314, %313 : vector<8x128xf32>
    %316 = math.tanh %315 : vector<8x128xf32>
    %cst_121 = arith.constant 5.000000e-01 : f32
    %317 = vector.broadcast %cst_121 : f32 to vector<8x128xf32>
    %318 = arith.mulf %317, %316 : vector<8x128xf32>
    %cst_122 = arith.constant 5.000000e-01 : f32
    %319 = vector.broadcast %cst_122 : f32 to vector<8x128xf32>
    %320 = arith.addf %318, %319 : vector<8x128xf32>
    %321 = vector.extract_strided_slice %304 {offsets = [0, 256], sizes = [8, 128], strides = [1, 1]} : vector<8x512xf32> to vector<8x128xf32>
    %322 = math.tanh %321 : vector<8x128xf32>
    %323 = vector.extract_strided_slice %304 {offsets = [0, 384], sizes = [8, 128], strides = [1, 1]} : vector<8x512xf32> to vector<8x128xf32>
    %cst_123 = arith.constant 5.000000e-01 : f32
    %324 = vector.broadcast %cst_123 : f32 to vector<8x128xf32>
    %325 = arith.mulf %324, %323 : vector<8x128xf32>
    %326 = math.tanh %325 : vector<8x128xf32>
    %cst_124 = arith.constant 5.000000e-01 : f32
    %327 = vector.broadcast %cst_124 : f32 to vector<8x128xf32>
    %328 = arith.mulf %327, %326 : vector<8x128xf32>
    %cst_125 = arith.constant 5.000000e-01 : f32
    %329 = vector.broadcast %cst_125 : f32 to vector<8x128xf32>
    %330 = arith.addf %328, %329 : vector<8x128xf32>
    %331 = arith.mulf %320, %294 : vector<8x128xf32>
    %332 = arith.mulf %312, %322 : vector<8x128xf32>
    %333 = arith.addf %331, %332 : vector<8x128xf32>
    %334 = math.tanh %333 : vector<8x128xf32>
    %335 = arith.mulf %330, %334 : vector<8x128xf32>
    %cst_126 = arith.constant 0.000000e+00 : f32
    %336 = vector.shape_cast %297 : vector<8x1xi1> to vector<8x1xi1>
    %337 = vector.broadcast %336 : vector<8x1xi1> to vector<8x128xi1>
    %338 = vector.broadcast %cst_126 : f32 to vector<8x128xf32>
    %339 = arith.select %337, %335, %338 : vector<8x128xi1>, vector<8x128xf32>
    %340 = arith.index_cast %c5_i32 : i32 to index
    %c0_127 = arith.constant 0 : index
    %c0_128 = arith.constant 0 : index
    %341 = vector.load %arg6[%340, %c0_127, %c0_128] : memref<8x8x128xf32, #tpu.memory_space<vmem>>, vector<1x8x128xf32>
    %342 = vector.shape_cast %341 : vector<1x8x128xf32> to vector<8x128xf32>
    %343 = vector.shape_cast %339 : vector<8x128xf32> to vector<1x8x128xf32>
    tpu.vector_store %arg6[%340, %c0_127, %c0_128], %343 {strides = array<i32>} : memref<8x8x128xf32, #tpu.memory_space<vmem>>, vector<1x8x128xf32>,
    %344 = vector.shape_cast %297 : vector<8x1xi1> to vector<8x1xi1>
    %345 = vector.broadcast %344 : vector<8x1xi1> to vector<8x128xi1>
    %346 = arith.select %345, %335, %291 : vector<8x128xi1>, vector<8x128xf32>
    %347 = vector.shape_cast %297 : vector<8x1xi1> to vector<8x1xi1>
    %348 = vector.broadcast %347 : vector<8x1xi1> to vector<8x128xi1>
    %349 = arith.select %348, %333, %294 : vector<8x128xi1>, vector<8x128xf32>
    %c6_i32 = arith.constant 6 : i32
    %350 = arith.addi %4, %c6_i32 : i32
    %351 = vector.broadcast %350 : i32 to vector<8x1xi32>
    %352 = arith.cmpi slt, %351, %3 : vector<8x1xi32>
    %353 = arith.index_cast %c6_i32 : i32 to index
    %c0_129 = arith.constant 0 : index
    %c0_130 = arith.constant 0 : index
    %354 = vector.load %arg9[%353, %c0_129, %c0_130] : memref<8x8x512xf32, #tpu.memory_space<vmem>>, vector<1x8x512xf32>
    %355 = vector.shape_cast %354 : vector<1x8x512xf32> to vector<8x512xf32>
    %c0_131 = arith.constant 0 : index
    %c0_132 = arith.constant 0 : index
    %c0_133 = arith.constant 0 : index
    %356 = vector.load %arg4[%c0_131, %c0_132, %c0_133] : memref<2x128x512xf32, #tpu.memory_space<vmem>>, vector<1x128x512xf32>
    %357 = vector.shape_cast %356 : vector<1x128x512xf32> to vector<128x512xf32>
    %cst_134 = arith.constant dense<0.000000e+00> : vector<8x512xf32>
    %358 = tpu.matmul %346, %357, %cst_134 {dimension_numbers = #tpu.dot_dimension_numbers<[1], [0], [0], [1], [0, 0, 1, 1], [], []>} : vector<8x128xf32>, vector<128x512xf32>, vector<8x512xf32> -> vector<8x512xf32>
    %359 = arith.addf %355, %358 : vector<8x512xf32>
    %360 = vector.extract_strided_slice %359 {offsets = [0, 0], sizes = [8, 128], strides = [1, 1]} : vector<8x512xf32> to vector<8x128xf32>
    %cst_135 = arith.constant 5.000000e-01 : f32
    %361 = vector.broadcast %cst_135 : f32 to vector<8x128xf32>
    %362 = arith.mulf %361, %360 : vector<8x128xf32>
    %363 = math.tanh %362 : vector<8x128xf32>
    %cst_136 = arith.constant 5.000000e-01 : f32
    %364 = vector.broadcast %cst_136 : f32 to vector<8x128xf32>
    %365 = arith.mulf %364, %363 : vector<8x128xf32>
    %cst_137 = arith.constant 5.000000e-01 : f32
    %366 = vector.broadcast %cst_137 : f32 to vector<8x128xf32>
    %367 = arith.addf %365, %366 : vector<8x128xf32>
    %368 = vector.extract_strided_slice %359 {offsets = [0, 128], sizes = [8, 128], strides = [1, 1]} : vector<8x512xf32> to vector<8x128xf32>
    %cst_138 = arith.constant 5.000000e-01 : f32
    %369 = vector.broadcast %cst_138 : f32 to vector<8x128xf32>
    %370 = arith.mulf %369, %368 : vector<8x128xf32>
    %371 = math.tanh %370 : vector<8x128xf32>
    %cst_139 = arith.constant 5.000000e-01 : f32
    %372 = vector.broadcast %cst_139 : f32 to vector<8x128xf32>
    %373 = arith.mulf %372, %371 : vector<8x128xf32>
    %cst_140 = arith.constant 5.000000e-01 : f32
    %374 = vector.broadcast %cst_140 : f32 to vector<8x128xf32>
    %375 = arith.addf %373, %374 : vector<8x128xf32>
    %376 = vector.extract_strided_slice %359 {offsets = [0, 256], sizes = [8, 128], strides = [1, 1]} : vector<8x512xf32> to vector<8x128xf32>
    %377 = math.tanh %376 : vector<8x128xf32>
    %378 = vector.extract_strided_slice %359 {offsets = [0, 384], sizes = [8, 128], strides = [1, 1]} : vector<8x512xf32> to vector<8x128xf32>
    %cst_141 = arith.constant 5.000000e-01 : f32
    %379 = vector.broadcast %cst_141 : f32 to vector<8x128xf32>
    %380 = arith.mulf %379, %378 : vector<8x128xf32>
    %381 = math.tanh %380 : vector<8x128xf32>
    %cst_142 = arith.constant 5.000000e-01 : f32
    %382 = vector.broadcast %cst_142 : f32 to vector<8x128xf32>
    %383 = arith.mulf %382, %381 : vector<8x128xf32>
    %cst_143 = arith.constant 5.000000e-01 : f32
    %384 = vector.broadcast %cst_143 : f32 to vector<8x128xf32>
    %385 = arith.addf %383, %384 : vector<8x128xf32>
    %386 = arith.mulf %375, %349 : vector<8x128xf32>
    %387 = arith.mulf %367, %377 : vector<8x128xf32>
    %388 = arith.addf %386, %387 : vector<8x128xf32>
    %389 = math.tanh %388 : vector<8x128xf32>
    %390 = arith.mulf %385, %389 : vector<8x128xf32>
    %cst_144 = arith.constant 0.000000e+00 : f32
    %391 = vector.shape_cast %352 : vector<8x1xi1> to vector<8x1xi1>
    %392 = vector.broadcast %391 : vector<8x1xi1> to vector<8x128xi1>
    %393 = vector.broadcast %cst_144 : f32 to vector<8x128xf32>
    %394 = arith.select %392, %390, %393 : vector<8x128xi1>, vector<8x128xf32>
    %395 = arith.index_cast %c6_i32 : i32 to index
    %c0_145 = arith.constant 0 : index
    %c0_146 = arith.constant 0 : index
    %396 = vector.load %arg6[%395, %c0_145, %c0_146] : memref<8x8x128xf32, #tpu.memory_space<vmem>>, vector<1x8x128xf32>
    %397 = vector.shape_cast %396 : vector<1x8x128xf32> to vector<8x128xf32>
    %398 = vector.shape_cast %394 : vector<8x128xf32> to vector<1x8x128xf32>
    tpu.vector_store %arg6[%395, %c0_145, %c0_146], %398 {strides = array<i32>} : memref<8x8x128xf32, #tpu.memory_space<vmem>>, vector<1x8x128xf32>,
    %399 = vector.shape_cast %352 : vector<8x1xi1> to vector<8x1xi1>
    %400 = vector.broadcast %399 : vector<8x1xi1> to vector<8x128xi1>
    %401 = arith.select %400, %390, %346 : vector<8x128xi1>, vector<8x128xf32>
    %402 = vector.shape_cast %352 : vector<8x1xi1> to vector<8x1xi1>
    %403 = vector.broadcast %402 : vector<8x1xi1> to vector<8x128xi1>
    %404 = arith.select %403, %388, %349 : vector<8x128xi1>, vector<8x128xf32>
    %c7_i32 = arith.constant 7 : i32
    %405 = arith.addi %4, %c7_i32 : i32
    %406 = vector.broadcast %405 : i32 to vector<8x1xi32>
    %407 = arith.cmpi slt, %406, %3 : vector<8x1xi32>
    %408 = arith.index_cast %c7_i32 : i32 to index
    %c0_147 = arith.constant 0 : index
    %c0_148 = arith.constant 0 : index
    %409 = vector.load %arg9[%408, %c0_147, %c0_148] : memref<8x8x512xf32, #tpu.memory_space<vmem>>, vector<1x8x512xf32>
    %410 = vector.shape_cast %409 : vector<1x8x512xf32> to vector<8x512xf32>
    %c0_149 = arith.constant 0 : index
    %c0_150 = arith.constant 0 : index
    %c0_151 = arith.constant 0 : index
    %411 = vector.load %arg4[%c0_149, %c0_150, %c0_151] : memref<2x128x512xf32, #tpu.memory_space<vmem>>, vector<1x128x512xf32>
    %412 = vector.shape_cast %411 : vector<1x128x512xf32> to vector<128x512xf32>
    %cst_152 = arith.constant dense<0.000000e+00> : vector<8x512xf32>
    %413 = tpu.matmul %401, %412, %cst_152 {dimension_numbers = #tpu.dot_dimension_numbers<[1], [0], [0], [1], [0, 0, 1, 1], [], []>} : vector<8x128xf32>, vector<128x512xf32>, vector<8x512xf32> -> vector<8x512xf32>
    %414 = arith.addf %410, %413 : vector<8x512xf32>
    %415 = vector.extract_strided_slice %414 {offsets = [0, 0], sizes = [8, 128], strides = [1, 1]} : vector<8x512xf32> to vector<8x128xf32>
    %cst_153 = arith.constant 5.000000e-01 : f32
    %416 = vector.broadcast %cst_153 : f32 to vector<8x128xf32>
    %417 = arith.mulf %416, %415 : vector<8x128xf32>
    %418 = math.tanh %417 : vector<8x128xf32>
    %cst_154 = arith.constant 5.000000e-01 : f32
    %419 = vector.broadcast %cst_154 : f32 to vector<8x128xf32>
    %420 = arith.mulf %419, %418 : vector<8x128xf32>
    %cst_155 = arith.constant 5.000000e-01 : f32
    %421 = vector.broadcast %cst_155 : f32 to vector<8x128xf32>
    %422 = arith.addf %420, %421 : vector<8x128xf32>
    %423 = vector.extract_strided_slice %414 {offsets = [0, 128], sizes = [8, 128], strides = [1, 1]} : vector<8x512xf32> to vector<8x128xf32>
    %cst_156 = arith.constant 5.000000e-01 : f32
    %424 = vector.broadcast %cst_156 : f32 to vector<8x128xf32>
    %425 = arith.mulf %424, %423 : vector<8x128xf32>
    %426 = math.tanh %425 : vector<8x128xf32>
    %cst_157 = arith.constant 5.000000e-01 : f32
    %427 = vector.broadcast %cst_157 : f32 to vector<8x128xf32>
    %428 = arith.mulf %427, %426 : vector<8x128xf32>
    %cst_158 = arith.constant 5.000000e-01 : f32
    %429 = vector.broadcast %cst_158 : f32 to vector<8x128xf32>
    %430 = arith.addf %428, %429 : vector<8x128xf32>
    %431 = vector.extract_strided_slice %414 {offsets = [0, 256], sizes = [8, 128], strides = [1, 1]} : vector<8x512xf32> to vector<8x128xf32>
    %432 = math.tanh %431 : vector<8x128xf32>
    %433 = vector.extract_strided_slice %414 {offsets = [0, 384], sizes = [8, 128], strides = [1, 1]} : vector<8x512xf32> to vector<8x128xf32>
    %cst_159 = arith.constant 5.000000e-01 : f32
    %434 = vector.broadcast %cst_159 : f32 to vector<8x128xf32>
    %435 = arith.mulf %434, %433 : vector<8x128xf32>
    %436 = math.tanh %435 : vector<8x128xf32>
    %cst_160 = arith.constant 5.000000e-01 : f32
    %437 = vector.broadcast %cst_160 : f32 to vector<8x128xf32>
    %438 = arith.mulf %437, %436 : vector<8x128xf32>
    %cst_161 = arith.constant 5.000000e-01 : f32
    %439 = vector.broadcast %cst_161 : f32 to vector<8x128xf32>
    %440 = arith.addf %438, %439 : vector<8x128xf32>
    %441 = arith.mulf %430, %404 : vector<8x128xf32>
    %442 = arith.mulf %422, %432 : vector<8x128xf32>
    %443 = arith.addf %441, %442 : vector<8x128xf32>
    %444 = math.tanh %443 : vector<8x128xf32>
    %445 = arith.mulf %440, %444 : vector<8x128xf32>
    %cst_162 = arith.constant 0.000000e+00 : f32
    %446 = vector.shape_cast %407 : vector<8x1xi1> to vector<8x1xi1>
    %447 = vector.broadcast %446 : vector<8x1xi1> to vector<8x128xi1>
    %448 = vector.broadcast %cst_162 : f32 to vector<8x128xf32>
    %449 = arith.select %447, %445, %448 : vector<8x128xi1>, vector<8x128xf32>
    %450 = arith.index_cast %c7_i32 : i32 to index
    %c0_163 = arith.constant 0 : index
    %c0_164 = arith.constant 0 : index
    %451 = vector.load %arg6[%450, %c0_163, %c0_164] : memref<8x8x128xf32, #tpu.memory_space<vmem>>, vector<1x8x128xf32>
    %452 = vector.shape_cast %451 : vector<1x8x128xf32> to vector<8x128xf32>
    %453 = vector.shape_cast %449 : vector<8x128xf32> to vector<1x8x128xf32>
    tpu.vector_store %arg6[%450, %c0_163, %c0_164], %453 {strides = array<i32>} : memref<8x8x128xf32, #tpu.memory_space<vmem>>, vector<1x8x128xf32>,
    %454 = vector.shape_cast %407 : vector<8x1xi1> to vector<8x1xi1>
    %455 = vector.broadcast %454 : vector<8x1xi1> to vector<8x128xi1>
    %456 = arith.select %455, %445, %401 : vector<8x128xi1>, vector<8x128xf32>
    %457 = vector.shape_cast %407 : vector<8x1xi1> to vector<8x1xi1>
    %458 = vector.broadcast %457 : vector<8x1xi1> to vector<8x128xi1>
    %459 = arith.select %458, %443, %404 : vector<8x128xi1>, vector<8x128xf32>
    %c8_i32_165 = arith.constant 8 : i32
    %c0_166 = arith.constant 0 : index
    %c0_167 = arith.constant 0 : index
    %c0_168 = arith.constant 0 : index
    %460 = vector.load %arg7[%c0_166, %c0_167, %c0_168] : memref<2x8x128xf32, #tpu.memory_space<vmem>>, vector<1x8x128xf32>
    %461 = vector.shape_cast %460 : vector<1x8x128xf32> to vector<8x128xf32>
    %462 = vector.shape_cast %456 : vector<8x128xf32> to vector<1x8x128xf32>
    tpu.vector_store %arg7[%c0_166, %c0_167, %c0_168], %462 {strides = array<i32>} : memref<2x8x128xf32, #tpu.memory_space<vmem>>, vector<1x8x128xf32>,
    %c0_169 = arith.constant 0 : index
    %c0_170 = arith.constant 0 : index
    %c0_171 = arith.constant 0 : index
    %463 = vector.load %arg8[%c0_169, %c0_170, %c0_171] : memref<2x8x128xf32, #tpu.memory_space<vmem>>, vector<1x8x128xf32>
    %464 = vector.shape_cast %463 : vector<1x8x128xf32> to vector<8x128xf32>
    %465 = vector.shape_cast %459 : vector<8x128xf32> to vector<1x8x128xf32>
    tpu.vector_store %arg8[%c0_169, %c0_170, %c0_171], %465 {strides = array<i32>} : memref<2x8x128xf32, #tpu.memory_space<vmem>>, vector<1x8x128xf32>,
    %c0_172 = arith.constant 0 : index
    %c0_173 = arith.constant 0 : index
    %c0_174 = arith.constant 0 : index
    %466 = vector.load %arg6[%c0_172, %c0_173, %c0_174] : memref<8x8x128xf32, #tpu.memory_space<vmem>>, vector<8x8x128xf32>
    %467 = vector.shape_cast %466 : vector<8x8x128xf32> to vector<64x128xf32>
    %c1 = arith.constant 1 : index
    %c0_175 = arith.constant 0 : index
    %c0_176 = arith.constant 0 : index
    %468 = vector.load %arg3[%c1, %c0_175, %c0_176] : memref<2x128x512xf32, #tpu.memory_space<vmem>>, vector<1x128x512xf32>
    %469 = vector.shape_cast %468 : vector<1x128x512xf32> to vector<128x512xf32>
    %cst_177 = arith.constant dense<0.000000e+00> : vector<64x512xf32>
    %470 = tpu.matmul %467, %469, %cst_177 {dimension_numbers = #tpu.dot_dimension_numbers<[1], [0], [0], [1], [0, 0, 1, 1], [], []>} : vector<64x128xf32>, vector<128x512xf32>, vector<64x512xf32> -> vector<64x512xf32>
    %c1_178 = arith.constant 1 : index
    %c0_179 = arith.constant 0 : index
    %c0_180 = arith.constant 0 : index
    %471 = vector.load %arg5[%c1_178, %c0_179, %c0_180] : memref<2x1x512xf32, #tpu.memory_space<vmem>>, vector<1x1x512xf32>
    %472 = vector.shape_cast %471 : vector<1x1x512xf32> to vector<1x512xf32>
    %473 = vector.broadcast %472 : vector<1x512xf32> to vector<64x512xf32>
    %474 = arith.addf %470, %473 : vector<64x512xf32>
    %475 = vector.shape_cast %474 : vector<64x512xf32> to vector<8x8x512xf32>
    %c0_181 = arith.constant 0 : index
    %c0_182 = arith.constant 0 : index
    %c0_183 = arith.constant 0 : index
    %476 = vector.load %arg9[%c0_181, %c0_182, %c0_183] : memref<8x8x512xf32, #tpu.memory_space<vmem>>, vector<8x8x512xf32>
    tpu.vector_store %arg9[%c0_181, %c0_182, %c0_183], %475 {strides = array<i32>} : memref<8x8x512xf32, #tpu.memory_space<vmem>>, vector<8x8x512xf32>,
    %c1_184 = arith.constant 1 : index
    %c0_185 = arith.constant 0 : index
    %c0_186 = arith.constant 0 : index
    %477 = vector.load %arg7[%c1_184, %c0_185, %c0_186] : memref<2x8x128xf32, #tpu.memory_space<vmem>>, vector<1x8x128xf32>
    %478 = vector.shape_cast %477 : vector<1x8x128xf32> to vector<8x128xf32>
    %c1_187 = arith.constant 1 : index
    %c0_188 = arith.constant 0 : index
    %c0_189 = arith.constant 0 : index
    %479 = vector.load %arg8[%c1_187, %c0_188, %c0_189] : memref<2x8x128xf32, #tpu.memory_space<vmem>>, vector<1x8x128xf32>
    %480 = vector.shape_cast %479 : vector<1x8x128xf32> to vector<8x128xf32>
    %c0_i32_190 = arith.constant 0 : i32
    %481 = arith.addi %4, %c0_i32_190 : i32
    %482 = vector.broadcast %481 : i32 to vector<8x1xi32>
    %483 = arith.cmpi slt, %482, %3 : vector<8x1xi32>
    %484 = arith.index_cast %c0_i32_190 : i32 to index
    %c0_191 = arith.constant 0 : index
    %c0_192 = arith.constant 0 : index
    %485 = vector.load %arg9[%484, %c0_191, %c0_192] : memref<8x8x512xf32, #tpu.memory_space<vmem>>, vector<1x8x512xf32>
    %486 = vector.shape_cast %485 : vector<1x8x512xf32> to vector<8x512xf32>
    %c1_193 = arith.constant 1 : index
    %c0_194 = arith.constant 0 : index
    %c0_195 = arith.constant 0 : index
    %487 = vector.load %arg4[%c1_193, %c0_194, %c0_195] : memref<2x128x512xf32, #tpu.memory_space<vmem>>, vector<1x128x512xf32>
    %488 = vector.shape_cast %487 : vector<1x128x512xf32> to vector<128x512xf32>
    %cst_196 = arith.constant dense<0.000000e+00> : vector<8x512xf32>
    %489 = tpu.matmul %478, %488, %cst_196 {dimension_numbers = #tpu.dot_dimension_numbers<[1], [0], [0], [1], [0, 0, 1, 1], [], []>} : vector<8x128xf32>, vector<128x512xf32>, vector<8x512xf32> -> vector<8x512xf32>
    %490 = arith.addf %486, %489 : vector<8x512xf32>
    %491 = vector.extract_strided_slice %490 {offsets = [0, 0], sizes = [8, 128], strides = [1, 1]} : vector<8x512xf32> to vector<8x128xf32>
    %cst_197 = arith.constant 5.000000e-01 : f32
    %492 = vector.broadcast %cst_197 : f32 to vector<8x128xf32>
    %493 = arith.mulf %492, %491 : vector<8x128xf32>
    %494 = math.tanh %493 : vector<8x128xf32>
    %cst_198 = arith.constant 5.000000e-01 : f32
    %495 = vector.broadcast %cst_198 : f32 to vector<8x128xf32>
    %496 = arith.mulf %495, %494 : vector<8x128xf32>
    %cst_199 = arith.constant 5.000000e-01 : f32
    %497 = vector.broadcast %cst_199 : f32 to vector<8x128xf32>
    %498 = arith.addf %496, %497 : vector<8x128xf32>
    %499 = vector.extract_strided_slice %490 {offsets = [0, 128], sizes = [8, 128], strides = [1, 1]} : vector<8x512xf32> to vector<8x128xf32>
    %cst_200 = arith.constant 5.000000e-01 : f32
    %500 = vector.broadcast %cst_200 : f32 to vector<8x128xf32>
    %501 = arith.mulf %500, %499 : vector<8x128xf32>
    %502 = math.tanh %501 : vector<8x128xf32>
    %cst_201 = arith.constant 5.000000e-01 : f32
    %503 = vector.broadcast %cst_201 : f32 to vector<8x128xf32>
    %504 = arith.mulf %503, %502 : vector<8x128xf32>
    %cst_202 = arith.constant 5.000000e-01 : f32
    %505 = vector.broadcast %cst_202 : f32 to vector<8x128xf32>
    %506 = arith.addf %504, %505 : vector<8x128xf32>
    %507 = vector.extract_strided_slice %490 {offsets = [0, 256], sizes = [8, 128], strides = [1, 1]} : vector<8x512xf32> to vector<8x128xf32>
    %508 = math.tanh %507 : vector<8x128xf32>
    %509 = vector.extract_strided_slice %490 {offsets = [0, 384], sizes = [8, 128], strides = [1, 1]} : vector<8x512xf32> to vector<8x128xf32>
    %cst_203 = arith.constant 5.000000e-01 : f32
    %510 = vector.broadcast %cst_203 : f32 to vector<8x128xf32>
    %511 = arith.mulf %510, %509 : vector<8x128xf32>
    %512 = math.tanh %511 : vector<8x128xf32>
    %cst_204 = arith.constant 5.000000e-01 : f32
    %513 = vector.broadcast %cst_204 : f32 to vector<8x128xf32>
    %514 = arith.mulf %513, %512 : vector<8x128xf32>
    %cst_205 = arith.constant 5.000000e-01 : f32
    %515 = vector.broadcast %cst_205 : f32 to vector<8x128xf32>
    %516 = arith.addf %514, %515 : vector<8x128xf32>
    %517 = arith.mulf %506, %480 : vector<8x128xf32>
    %518 = arith.mulf %498, %508 : vector<8x128xf32>
    %519 = arith.addf %517, %518 : vector<8x128xf32>
    %520 = math.tanh %519 : vector<8x128xf32>
    %521 = arith.mulf %516, %520 : vector<8x128xf32>
    %cst_206 = arith.constant 0.000000e+00 : f32
    %522 = vector.shape_cast %483 : vector<8x1xi1> to vector<8x1xi1>
    %523 = vector.broadcast %522 : vector<8x1xi1> to vector<8x128xi1>
    %524 = vector.broadcast %cst_206 : f32 to vector<8x128xf32>
    %525 = arith.select %523, %521, %524 : vector<8x128xi1>, vector<8x128xf32>
    %526 = arith.index_cast %c0_i32_190 : i32 to index
    %c0_207 = arith.constant 0 : index
    %c0_208 = arith.constant 0 : index
    %527 = vector.load %arg6[%526, %c0_207, %c0_208] : memref<8x8x128xf32, #tpu.memory_space<vmem>>, vector<1x8x128xf32>
    %528 = vector.shape_cast %527 : vector<1x8x128xf32> to vector<8x128xf32>
    %529 = vector.shape_cast %525 : vector<8x128xf32> to vector<1x8x128xf32>
    tpu.vector_store %arg6[%526, %c0_207, %c0_208], %529 {strides = array<i32>} : memref<8x8x128xf32, #tpu.memory_space<vmem>>, vector<1x8x128xf32>,
    %530 = vector.shape_cast %483 : vector<8x1xi1> to vector<8x1xi1>
    %531 = vector.broadcast %530 : vector<8x1xi1> to vector<8x128xi1>
    %532 = arith.select %531, %521, %478 : vector<8x128xi1>, vector<8x128xf32>
    %533 = vector.shape_cast %483 : vector<8x1xi1> to vector<8x1xi1>
    %534 = vector.broadcast %533 : vector<8x1xi1> to vector<8x128xi1>
    %535 = arith.select %534, %519, %480 : vector<8x128xi1>, vector<8x128xf32>
    %c1_i32_209 = arith.constant 1 : i32
    %536 = arith.addi %4, %c1_i32_209 : i32
    %537 = vector.broadcast %536 : i32 to vector<8x1xi32>
    %538 = arith.cmpi slt, %537, %3 : vector<8x1xi32>
    %539 = arith.index_cast %c1_i32_209 : i32 to index
    %c0_210 = arith.constant 0 : index
    %c0_211 = arith.constant 0 : index
    %540 = vector.load %arg9[%539, %c0_210, %c0_211] : memref<8x8x512xf32, #tpu.memory_space<vmem>>, vector<1x8x512xf32>
    %541 = vector.shape_cast %540 : vector<1x8x512xf32> to vector<8x512xf32>
    %c1_212 = arith.constant 1 : index
    %c0_213 = arith.constant 0 : index
    %c0_214 = arith.constant 0 : index
    %542 = vector.load %arg4[%c1_212, %c0_213, %c0_214] : memref<2x128x512xf32, #tpu.memory_space<vmem>>, vector<1x128x512xf32>
    %543 = vector.shape_cast %542 : vector<1x128x512xf32> to vector<128x512xf32>
    %cst_215 = arith.constant dense<0.000000e+00> : vector<8x512xf32>
    %544 = tpu.matmul %532, %543, %cst_215 {dimension_numbers = #tpu.dot_dimension_numbers<[1], [0], [0], [1], [0, 0, 1, 1], [], []>} : vector<8x128xf32>, vector<128x512xf32>, vector<8x512xf32> -> vector<8x512xf32>
    %545 = arith.addf %541, %544 : vector<8x512xf32>
    %546 = vector.extract_strided_slice %545 {offsets = [0, 0], sizes = [8, 128], strides = [1, 1]} : vector<8x512xf32> to vector<8x128xf32>
    %cst_216 = arith.constant 5.000000e-01 : f32
    %547 = vector.broadcast %cst_216 : f32 to vector<8x128xf32>
    %548 = arith.mulf %547, %546 : vector<8x128xf32>
    %549 = math.tanh %548 : vector<8x128xf32>
    %cst_217 = arith.constant 5.000000e-01 : f32
    %550 = vector.broadcast %cst_217 : f32 to vector<8x128xf32>
    %551 = arith.mulf %550, %549 : vector<8x128xf32>
    %cst_218 = arith.constant 5.000000e-01 : f32
    %552 = vector.broadcast %cst_218 : f32 to vector<8x128xf32>
    %553 = arith.addf %551, %552 : vector<8x128xf32>
    %554 = vector.extract_strided_slice %545 {offsets = [0, 128], sizes = [8, 128], strides = [1, 1]} : vector<8x512xf32> to vector<8x128xf32>
    %cst_219 = arith.constant 5.000000e-01 : f32
    %555 = vector.broadcast %cst_219 : f32 to vector<8x128xf32>
    %556 = arith.mulf %555, %554 : vector<8x128xf32>
    %557 = math.tanh %556 : vector<8x128xf32>
    %cst_220 = arith.constant 5.000000e-01 : f32
    %558 = vector.broadcast %cst_220 : f32 to vector<8x128xf32>
    %559 = arith.mulf %558, %557 : vector<8x128xf32>
    %cst_221 = arith.constant 5.000000e-01 : f32
    %560 = vector.broadcast %cst_221 : f32 to vector<8x128xf32>
    %561 = arith.addf %559, %560 : vector<8x128xf32>
    %562 = vector.extract_strided_slice %545 {offsets = [0, 256], sizes = [8, 128], strides = [1, 1]} : vector<8x512xf32> to vector<8x128xf32>
    %563 = math.tanh %562 : vector<8x128xf32>
    %564 = vector.extract_strided_slice %545 {offsets = [0, 384], sizes = [8, 128], strides = [1, 1]} : vector<8x512xf32> to vector<8x128xf32>
    %cst_222 = arith.constant 5.000000e-01 : f32
    %565 = vector.broadcast %cst_222 : f32 to vector<8x128xf32>
    %566 = arith.mulf %565, %564 : vector<8x128xf32>
    %567 = math.tanh %566 : vector<8x128xf32>
    %cst_223 = arith.constant 5.000000e-01 : f32
    %568 = vector.broadcast %cst_223 : f32 to vector<8x128xf32>
    %569 = arith.mulf %568, %567 : vector<8x128xf32>
    %cst_224 = arith.constant 5.000000e-01 : f32
    %570 = vector.broadcast %cst_224 : f32 to vector<8x128xf32>
    %571 = arith.addf %569, %570 : vector<8x128xf32>
    %572 = arith.mulf %561, %535 : vector<8x128xf32>
    %573 = arith.mulf %553, %563 : vector<8x128xf32>
    %574 = arith.addf %572, %573 : vector<8x128xf32>
    %575 = math.tanh %574 : vector<8x128xf32>
    %576 = arith.mulf %571, %575 : vector<8x128xf32>
    %cst_225 = arith.constant 0.000000e+00 : f32
    %577 = vector.shape_cast %538 : vector<8x1xi1> to vector<8x1xi1>
    %578 = vector.broadcast %577 : vector<8x1xi1> to vector<8x128xi1>
    %579 = vector.broadcast %cst_225 : f32 to vector<8x128xf32>
    %580 = arith.select %578, %576, %579 : vector<8x128xi1>, vector<8x128xf32>
    %581 = arith.index_cast %c1_i32_209 : i32 to index
    %c0_226 = arith.constant 0 : index
    %c0_227 = arith.constant 0 : index
    %582 = vector.load %arg6[%581, %c0_226, %c0_227] : memref<8x8x128xf32, #tpu.memory_space<vmem>>, vector<1x8x128xf32>
    %583 = vector.shape_cast %582 : vector<1x8x128xf32> to vector<8x128xf32>
    %584 = vector.shape_cast %580 : vector<8x128xf32> to vector<1x8x128xf32>
    tpu.vector_store %arg6[%581, %c0_226, %c0_227], %584 {strides = array<i32>} : memref<8x8x128xf32, #tpu.memory_space<vmem>>, vector<1x8x128xf32>,
    %585 = vector.shape_cast %538 : vector<8x1xi1> to vector<8x1xi1>
    %586 = vector.broadcast %585 : vector<8x1xi1> to vector<8x128xi1>
    %587 = arith.select %586, %576, %532 : vector<8x128xi1>, vector<8x128xf32>
    %588 = vector.shape_cast %538 : vector<8x1xi1> to vector<8x1xi1>
    %589 = vector.broadcast %588 : vector<8x1xi1> to vector<8x128xi1>
    %590 = arith.select %589, %574, %535 : vector<8x128xi1>, vector<8x128xf32>
    %c2_i32_228 = arith.constant 2 : i32
    %591 = arith.addi %4, %c2_i32_228 : i32
    %592 = vector.broadcast %591 : i32 to vector<8x1xi32>
    %593 = arith.cmpi slt, %592, %3 : vector<8x1xi32>
    %594 = arith.index_cast %c2_i32_228 : i32 to index
    %c0_229 = arith.constant 0 : index
    %c0_230 = arith.constant 0 : index
    %595 = vector.load %arg9[%594, %c0_229, %c0_230] : memref<8x8x512xf32, #tpu.memory_space<vmem>>, vector<1x8x512xf32>
    %596 = vector.shape_cast %595 : vector<1x8x512xf32> to vector<8x512xf32>
    %c1_231 = arith.constant 1 : index
    %c0_232 = arith.constant 0 : index
    %c0_233 = arith.constant 0 : index
    %597 = vector.load %arg4[%c1_231, %c0_232, %c0_233] : memref<2x128x512xf32, #tpu.memory_space<vmem>>, vector<1x128x512xf32>
    %598 = vector.shape_cast %597 : vector<1x128x512xf32> to vector<128x512xf32>
    %cst_234 = arith.constant dense<0.000000e+00> : vector<8x512xf32>
    %599 = tpu.matmul %587, %598, %cst_234 {dimension_numbers = #tpu.dot_dimension_numbers<[1], [0], [0], [1], [0, 0, 1, 1], [], []>} : vector<8x128xf32>, vector<128x512xf32>, vector<8x512xf32> -> vector<8x512xf32>
    %600 = arith.addf %596, %599 : vector<8x512xf32>
    %601 = vector.extract_strided_slice %600 {offsets = [0, 0], sizes = [8, 128], strides = [1, 1]} : vector<8x512xf32> to vector<8x128xf32>
    %cst_235 = arith.constant 5.000000e-01 : f32
    %602 = vector.broadcast %cst_235 : f32 to vector<8x128xf32>
    %603 = arith.mulf %602, %601 : vector<8x128xf32>
    %604 = math.tanh %603 : vector<8x128xf32>
    %cst_236 = arith.constant 5.000000e-01 : f32
    %605 = vector.broadcast %cst_236 : f32 to vector<8x128xf32>
    %606 = arith.mulf %605, %604 : vector<8x128xf32>
    %cst_237 = arith.constant 5.000000e-01 : f32
    %607 = vector.broadcast %cst_237 : f32 to vector<8x128xf32>
    %608 = arith.addf %606, %607 : vector<8x128xf32>
    %609 = vector.extract_strided_slice %600 {offsets = [0, 128], sizes = [8, 128], strides = [1, 1]} : vector<8x512xf32> to vector<8x128xf32>
    %cst_238 = arith.constant 5.000000e-01 : f32
    %610 = vector.broadcast %cst_238 : f32 to vector<8x128xf32>
    %611 = arith.mulf %610, %609 : vector<8x128xf32>
    %612 = math.tanh %611 : vector<8x128xf32>
    %cst_239 = arith.constant 5.000000e-01 : f32
    %613 = vector.broadcast %cst_239 : f32 to vector<8x128xf32>
    %614 = arith.mulf %613, %612 : vector<8x128xf32>
    %cst_240 = arith.constant 5.000000e-01 : f32
    %615 = vector.broadcast %cst_240 : f32 to vector<8x128xf32>
    %616 = arith.addf %614, %615 : vector<8x128xf32>
    %617 = vector.extract_strided_slice %600 {offsets = [0, 256], sizes = [8, 128], strides = [1, 1]} : vector<8x512xf32> to vector<8x128xf32>
    %618 = math.tanh %617 : vector<8x128xf32>
    %619 = vector.extract_strided_slice %600 {offsets = [0, 384], sizes = [8, 128], strides = [1, 1]} : vector<8x512xf32> to vector<8x128xf32>
    %cst_241 = arith.constant 5.000000e-01 : f32
    %620 = vector.broadcast %cst_241 : f32 to vector<8x128xf32>
    %621 = arith.mulf %620, %619 : vector<8x128xf32>
    %622 = math.tanh %621 : vector<8x128xf32>
    %cst_242 = arith.constant 5.000000e-01 : f32
    %623 = vector.broadcast %cst_242 : f32 to vector<8x128xf32>
    %624 = arith.mulf %623, %622 : vector<8x128xf32>
    %cst_243 = arith.constant 5.000000e-01 : f32
    %625 = vector.broadcast %cst_243 : f32 to vector<8x128xf32>
    %626 = arith.addf %624, %625 : vector<8x128xf32>
    %627 = arith.mulf %616, %590 : vector<8x128xf32>
    %628 = arith.mulf %608, %618 : vector<8x128xf32>
    %629 = arith.addf %627, %628 : vector<8x128xf32>
    %630 = math.tanh %629 : vector<8x128xf32>
    %631 = arith.mulf %626, %630 : vector<8x128xf32>
    %cst_244 = arith.constant 0.000000e+00 : f32
    %632 = vector.shape_cast %593 : vector<8x1xi1> to vector<8x1xi1>
    %633 = vector.broadcast %632 : vector<8x1xi1> to vector<8x128xi1>
    %634 = vector.broadcast %cst_244 : f32 to vector<8x128xf32>
    %635 = arith.select %633, %631, %634 : vector<8x128xi1>, vector<8x128xf32>
    %636 = arith.index_cast %c2_i32_228 : i32 to index
    %c0_245 = arith.constant 0 : index
    %c0_246 = arith.constant 0 : index
    %637 = vector.load %arg6[%636, %c0_245, %c0_246] : memref<8x8x128xf32, #tpu.memory_space<vmem>>, vector<1x8x128xf32>
    %638 = vector.shape_cast %637 : vector<1x8x128xf32> to vector<8x128xf32>
    %639 = vector.shape_cast %635 : vector<8x128xf32> to vector<1x8x128xf32>
    tpu.vector_store %arg6[%636, %c0_245, %c0_246], %639 {strides = array<i32>} : memref<8x8x128xf32, #tpu.memory_space<vmem>>, vector<1x8x128xf32>,
    %640 = vector.shape_cast %593 : vector<8x1xi1> to vector<8x1xi1>
    %641 = vector.broadcast %640 : vector<8x1xi1> to vector<8x128xi1>
    %642 = arith.select %641, %631, %587 : vector<8x128xi1>, vector<8x128xf32>
    %643 = vector.shape_cast %593 : vector<8x1xi1> to vector<8x1xi1>
    %644 = vector.broadcast %643 : vector<8x1xi1> to vector<8x128xi1>
    %645 = arith.select %644, %629, %590 : vector<8x128xi1>, vector<8x128xf32>
    %c3_i32_247 = arith.constant 3 : i32
    %646 = arith.addi %4, %c3_i32_247 : i32
    %647 = vector.broadcast %646 : i32 to vector<8x1xi32>
    %648 = arith.cmpi slt, %647, %3 : vector<8x1xi32>
    %649 = arith.index_cast %c3_i32_247 : i32 to index
    %c0_248 = arith.constant 0 : index
    %c0_249 = arith.constant 0 : index
    %650 = vector.load %arg9[%649, %c0_248, %c0_249] : memref<8x8x512xf32, #tpu.memory_space<vmem>>, vector<1x8x512xf32>
    %651 = vector.shape_cast %650 : vector<1x8x512xf32> to vector<8x512xf32>
    %c1_250 = arith.constant 1 : index
    %c0_251 = arith.constant 0 : index
    %c0_252 = arith.constant 0 : index
    %652 = vector.load %arg4[%c1_250, %c0_251, %c0_252] : memref<2x128x512xf32, #tpu.memory_space<vmem>>, vector<1x128x512xf32>
    %653 = vector.shape_cast %652 : vector<1x128x512xf32> to vector<128x512xf32>
    %cst_253 = arith.constant dense<0.000000e+00> : vector<8x512xf32>
    %654 = tpu.matmul %642, %653, %cst_253 {dimension_numbers = #tpu.dot_dimension_numbers<[1], [0], [0], [1], [0, 0, 1, 1], [], []>} : vector<8x128xf32>, vector<128x512xf32>, vector<8x512xf32> -> vector<8x512xf32>
    %655 = arith.addf %651, %654 : vector<8x512xf32>
    %656 = vector.extract_strided_slice %655 {offsets = [0, 0], sizes = [8, 128], strides = [1, 1]} : vector<8x512xf32> to vector<8x128xf32>
    %cst_254 = arith.constant 5.000000e-01 : f32
    %657 = vector.broadcast %cst_254 : f32 to vector<8x128xf32>
    %658 = arith.mulf %657, %656 : vector<8x128xf32>
    %659 = math.tanh %658 : vector<8x128xf32>
    %cst_255 = arith.constant 5.000000e-01 : f32
    %660 = vector.broadcast %cst_255 : f32 to vector<8x128xf32>
    %661 = arith.mulf %660, %659 : vector<8x128xf32>
    %cst_256 = arith.constant 5.000000e-01 : f32
    %662 = vector.broadcast %cst_256 : f32 to vector<8x128xf32>
    %663 = arith.addf %661, %662 : vector<8x128xf32>
    %664 = vector.extract_strided_slice %655 {offsets = [0, 128], sizes = [8, 128], strides = [1, 1]} : vector<8x512xf32> to vector<8x128xf32>
    %cst_257 = arith.constant 5.000000e-01 : f32
    %665 = vector.broadcast %cst_257 : f32 to vector<8x128xf32>
    %666 = arith.mulf %665, %664 : vector<8x128xf32>
    %667 = math.tanh %666 : vector<8x128xf32>
    %cst_258 = arith.constant 5.000000e-01 : f32
    %668 = vector.broadcast %cst_258 : f32 to vector<8x128xf32>
    %669 = arith.mulf %668, %667 : vector<8x128xf32>
    %cst_259 = arith.constant 5.000000e-01 : f32
    %670 = vector.broadcast %cst_259 : f32 to vector<8x128xf32>
    %671 = arith.addf %669, %670 : vector<8x128xf32>
    %672 = vector.extract_strided_slice %655 {offsets = [0, 256], sizes = [8, 128], strides = [1, 1]} : vector<8x512xf32> to vector<8x128xf32>
    %673 = math.tanh %672 : vector<8x128xf32>
    %674 = vector.extract_strided_slice %655 {offsets = [0, 384], sizes = [8, 128], strides = [1, 1]} : vector<8x512xf32> to vector<8x128xf32>
    %cst_260 = arith.constant 5.000000e-01 : f32
    %675 = vector.broadcast %cst_260 : f32 to vector<8x128xf32>
    %676 = arith.mulf %675, %674 : vector<8x128xf32>
    %677 = math.tanh %676 : vector<8x128xf32>
    %cst_261 = arith.constant 5.000000e-01 : f32
    %678 = vector.broadcast %cst_261 : f32 to vector<8x128xf32>
    %679 = arith.mulf %678, %677 : vector<8x128xf32>
    %cst_262 = arith.constant 5.000000e-01 : f32
    %680 = vector.broadcast %cst_262 : f32 to vector<8x128xf32>
    %681 = arith.addf %679, %680 : vector<8x128xf32>
    %682 = arith.mulf %671, %645 : vector<8x128xf32>
    %683 = arith.mulf %663, %673 : vector<8x128xf32>
    %684 = arith.addf %682, %683 : vector<8x128xf32>
    %685 = math.tanh %684 : vector<8x128xf32>
    %686 = arith.mulf %681, %685 : vector<8x128xf32>
    %cst_263 = arith.constant 0.000000e+00 : f32
    %687 = vector.shape_cast %648 : vector<8x1xi1> to vector<8x1xi1>
    %688 = vector.broadcast %687 : vector<8x1xi1> to vector<8x128xi1>
    %689 = vector.broadcast %cst_263 : f32 to vector<8x128xf32>
    %690 = arith.select %688, %686, %689 : vector<8x128xi1>, vector<8x128xf32>
    %691 = arith.index_cast %c3_i32_247 : i32 to index
    %c0_264 = arith.constant 0 : index
    %c0_265 = arith.constant 0 : index
    %692 = vector.load %arg6[%691, %c0_264, %c0_265] : memref<8x8x128xf32, #tpu.memory_space<vmem>>, vector<1x8x128xf32>
    %693 = vector.shape_cast %692 : vector<1x8x128xf32> to vector<8x128xf32>
    %694 = vector.shape_cast %690 : vector<8x128xf32> to vector<1x8x128xf32>
    tpu.vector_store %arg6[%691, %c0_264, %c0_265], %694 {strides = array<i32>} : memref<8x8x128xf32, #tpu.memory_space<vmem>>, vector<1x8x128xf32>,
    %695 = vector.shape_cast %648 : vector<8x1xi1> to vector<8x1xi1>
    %696 = vector.broadcast %695 : vector<8x1xi1> to vector<8x128xi1>
    %697 = arith.select %696, %686, %642 : vector<8x128xi1>, vector<8x128xf32>
    %698 = vector.shape_cast %648 : vector<8x1xi1> to vector<8x1xi1>
    %699 = vector.broadcast %698 : vector<8x1xi1> to vector<8x128xi1>
    %700 = arith.select %699, %684, %645 : vector<8x128xi1>, vector<8x128xf32>
    %c4_i32_266 = arith.constant 4 : i32
    %701 = arith.addi %4, %c4_i32_266 : i32
    %702 = vector.broadcast %701 : i32 to vector<8x1xi32>
    %703 = arith.cmpi slt, %702, %3 : vector<8x1xi32>
    %704 = arith.index_cast %c4_i32_266 : i32 to index
    %c0_267 = arith.constant 0 : index
    %c0_268 = arith.constant 0 : index
    %705 = vector.load %arg9[%704, %c0_267, %c0_268] : memref<8x8x512xf32, #tpu.memory_space<vmem>>, vector<1x8x512xf32>
    %706 = vector.shape_cast %705 : vector<1x8x512xf32> to vector<8x512xf32>
    %c1_269 = arith.constant 1 : index
    %c0_270 = arith.constant 0 : index
    %c0_271 = arith.constant 0 : index
    %707 = vector.load %arg4[%c1_269, %c0_270, %c0_271] : memref<2x128x512xf32, #tpu.memory_space<vmem>>, vector<1x128x512xf32>
    %708 = vector.shape_cast %707 : vector<1x128x512xf32> to vector<128x512xf32>
    %cst_272 = arith.constant dense<0.000000e+00> : vector<8x512xf32>
    %709 = tpu.matmul %697, %708, %cst_272 {dimension_numbers = #tpu.dot_dimension_numbers<[1], [0], [0], [1], [0, 0, 1, 1], [], []>} : vector<8x128xf32>, vector<128x512xf32>, vector<8x512xf32> -> vector<8x512xf32>
    %710 = arith.addf %706, %709 : vector<8x512xf32>
    %711 = vector.extract_strided_slice %710 {offsets = [0, 0], sizes = [8, 128], strides = [1, 1]} : vector<8x512xf32> to vector<8x128xf32>
    %cst_273 = arith.constant 5.000000e-01 : f32
    %712 = vector.broadcast %cst_273 : f32 to vector<8x128xf32>
    %713 = arith.mulf %712, %711 : vector<8x128xf32>
    %714 = math.tanh %713 : vector<8x128xf32>
    %cst_274 = arith.constant 5.000000e-01 : f32
    %715 = vector.broadcast %cst_274 : f32 to vector<8x128xf32>
    %716 = arith.mulf %715, %714 : vector<8x128xf32>
    %cst_275 = arith.constant 5.000000e-01 : f32
    %717 = vector.broadcast %cst_275 : f32 to vector<8x128xf32>
    %718 = arith.addf %716, %717 : vector<8x128xf32>
    %719 = vector.extract_strided_slice %710 {offsets = [0, 128], sizes = [8, 128], strides = [1, 1]} : vector<8x512xf32> to vector<8x128xf32>
    %cst_276 = arith.constant 5.000000e-01 : f32
    %720 = vector.broadcast %cst_276 : f32 to vector<8x128xf32>
    %721 = arith.mulf %720, %719 : vector<8x128xf32>
    %722 = math.tanh %721 : vector<8x128xf32>
    %cst_277 = arith.constant 5.000000e-01 : f32
    %723 = vector.broadcast %cst_277 : f32 to vector<8x128xf32>
    %724 = arith.mulf %723, %722 : vector<8x128xf32>
    %cst_278 = arith.constant 5.000000e-01 : f32
    %725 = vector.broadcast %cst_278 : f32 to vector<8x128xf32>
    %726 = arith.addf %724, %725 : vector<8x128xf32>
    %727 = vector.extract_strided_slice %710 {offsets = [0, 256], sizes = [8, 128], strides = [1, 1]} : vector<8x512xf32> to vector<8x128xf32>
    %728 = math.tanh %727 : vector<8x128xf32>
    %729 = vector.extract_strided_slice %710 {offsets = [0, 384], sizes = [8, 128], strides = [1, 1]} : vector<8x512xf32> to vector<8x128xf32>
    %cst_279 = arith.constant 5.000000e-01 : f32
    %730 = vector.broadcast %cst_279 : f32 to vector<8x128xf32>
    %731 = arith.mulf %730, %729 : vector<8x128xf32>
    %732 = math.tanh %731 : vector<8x128xf32>
    %cst_280 = arith.constant 5.000000e-01 : f32
    %733 = vector.broadcast %cst_280 : f32 to vector<8x128xf32>
    %734 = arith.mulf %733, %732 : vector<8x128xf32>
    %cst_281 = arith.constant 5.000000e-01 : f32
    %735 = vector.broadcast %cst_281 : f32 to vector<8x128xf32>
    %736 = arith.addf %734, %735 : vector<8x128xf32>
    %737 = arith.mulf %726, %700 : vector<8x128xf32>
    %738 = arith.mulf %718, %728 : vector<8x128xf32>
    %739 = arith.addf %737, %738 : vector<8x128xf32>
    %740 = math.tanh %739 : vector<8x128xf32>
    %741 = arith.mulf %736, %740 : vector<8x128xf32>
    %cst_282 = arith.constant 0.000000e+00 : f32
    %742 = vector.shape_cast %703 : vector<8x1xi1> to vector<8x1xi1>
    %743 = vector.broadcast %742 : vector<8x1xi1> to vector<8x128xi1>
    %744 = vector.broadcast %cst_282 : f32 to vector<8x128xf32>
    %745 = arith.select %743, %741, %744 : vector<8x128xi1>, vector<8x128xf32>
    %746 = arith.index_cast %c4_i32_266 : i32 to index
    %c0_283 = arith.constant 0 : index
    %c0_284 = arith.constant 0 : index
    %747 = vector.load %arg6[%746, %c0_283, %c0_284] : memref<8x8x128xf32, #tpu.memory_space<vmem>>, vector<1x8x128xf32>
    %748 = vector.shape_cast %747 : vector<1x8x128xf32> to vector<8x128xf32>
    %749 = vector.shape_cast %745 : vector<8x128xf32> to vector<1x8x128xf32>
    tpu.vector_store %arg6[%746, %c0_283, %c0_284], %749 {strides = array<i32>} : memref<8x8x128xf32, #tpu.memory_space<vmem>>, vector<1x8x128xf32>,
    %750 = vector.shape_cast %703 : vector<8x1xi1> to vector<8x1xi1>
    %751 = vector.broadcast %750 : vector<8x1xi1> to vector<8x128xi1>
    %752 = arith.select %751, %741, %697 : vector<8x128xi1>, vector<8x128xf32>
    %753 = vector.shape_cast %703 : vector<8x1xi1> to vector<8x1xi1>
    %754 = vector.broadcast %753 : vector<8x1xi1> to vector<8x128xi1>
    %755 = arith.select %754, %739, %700 : vector<8x128xi1>, vector<8x128xf32>
    %c5_i32_285 = arith.constant 5 : i32
    %756 = arith.addi %4, %c5_i32_285 : i32
    %757 = vector.broadcast %756 : i32 to vector<8x1xi32>
    %758 = arith.cmpi slt, %757, %3 : vector<8x1xi32>
    %759 = arith.index_cast %c5_i32_285 : i32 to index
    %c0_286 = arith.constant 0 : index
    %c0_287 = arith.constant 0 : index
    %760 = vector.load %arg9[%759, %c0_286, %c0_287] : memref<8x8x512xf32, #tpu.memory_space<vmem>>, vector<1x8x512xf32>
    %761 = vector.shape_cast %760 : vector<1x8x512xf32> to vector<8x512xf32>
    %c1_288 = arith.constant 1 : index
    %c0_289 = arith.constant 0 : index
    %c0_290 = arith.constant 0 : index
    %762 = vector.load %arg4[%c1_288, %c0_289, %c0_290] : memref<2x128x512xf32, #tpu.memory_space<vmem>>, vector<1x128x512xf32>
    %763 = vector.shape_cast %762 : vector<1x128x512xf32> to vector<128x512xf32>
    %cst_291 = arith.constant dense<0.000000e+00> : vector<8x512xf32>
    %764 = tpu.matmul %752, %763, %cst_291 {dimension_numbers = #tpu.dot_dimension_numbers<[1], [0], [0], [1], [0, 0, 1, 1], [], []>} : vector<8x128xf32>, vector<128x512xf32>, vector<8x512xf32> -> vector<8x512xf32>
    %765 = arith.addf %761, %764 : vector<8x512xf32>
    %766 = vector.extract_strided_slice %765 {offsets = [0, 0], sizes = [8, 128], strides = [1, 1]} : vector<8x512xf32> to vector<8x128xf32>
    %cst_292 = arith.constant 5.000000e-01 : f32
    %767 = vector.broadcast %cst_292 : f32 to vector<8x128xf32>
    %768 = arith.mulf %767, %766 : vector<8x128xf32>
    %769 = math.tanh %768 : vector<8x128xf32>
    %cst_293 = arith.constant 5.000000e-01 : f32
    %770 = vector.broadcast %cst_293 : f32 to vector<8x128xf32>
    %771 = arith.mulf %770, %769 : vector<8x128xf32>
    %cst_294 = arith.constant 5.000000e-01 : f32
    %772 = vector.broadcast %cst_294 : f32 to vector<8x128xf32>
    %773 = arith.addf %771, %772 : vector<8x128xf32>
    %774 = vector.extract_strided_slice %765 {offsets = [0, 128], sizes = [8, 128], strides = [1, 1]} : vector<8x512xf32> to vector<8x128xf32>
    %cst_295 = arith.constant 5.000000e-01 : f32
    %775 = vector.broadcast %cst_295 : f32 to vector<8x128xf32>
    %776 = arith.mulf %775, %774 : vector<8x128xf32>
    %777 = math.tanh %776 : vector<8x128xf32>
    %cst_296 = arith.constant 5.000000e-01 : f32
    %778 = vector.broadcast %cst_296 : f32 to vector<8x128xf32>
    %779 = arith.mulf %778, %777 : vector<8x128xf32>
    %cst_297 = arith.constant 5.000000e-01 : f32
    %780 = vector.broadcast %cst_297 : f32 to vector<8x128xf32>
    %781 = arith.addf %779, %780 : vector<8x128xf32>
    %782 = vector.extract_strided_slice %765 {offsets = [0, 256], sizes = [8, 128], strides = [1, 1]} : vector<8x512xf32> to vector<8x128xf32>
    %783 = math.tanh %782 : vector<8x128xf32>
    %784 = vector.extract_strided_slice %765 {offsets = [0, 384], sizes = [8, 128], strides = [1, 1]} : vector<8x512xf32> to vector<8x128xf32>
    %cst_298 = arith.constant 5.000000e-01 : f32
    %785 = vector.broadcast %cst_298 : f32 to vector<8x128xf32>
    %786 = arith.mulf %785, %784 : vector<8x128xf32>
    %787 = math.tanh %786 : vector<8x128xf32>
    %cst_299 = arith.constant 5.000000e-01 : f32
    %788 = vector.broadcast %cst_299 : f32 to vector<8x128xf32>
    %789 = arith.mulf %788, %787 : vector<8x128xf32>
    %cst_300 = arith.constant 5.000000e-01 : f32
    %790 = vector.broadcast %cst_300 : f32 to vector<8x128xf32>
    %791 = arith.addf %789, %790 : vector<8x128xf32>
    %792 = arith.mulf %781, %755 : vector<8x128xf32>
    %793 = arith.mulf %773, %783 : vector<8x128xf32>
    %794 = arith.addf %792, %793 : vector<8x128xf32>
    %795 = math.tanh %794 : vector<8x128xf32>
    %796 = arith.mulf %791, %795 : vector<8x128xf32>
    %cst_301 = arith.constant 0.000000e+00 : f32
    %797 = vector.shape_cast %758 : vector<8x1xi1> to vector<8x1xi1>
    %798 = vector.broadcast %797 : vector<8x1xi1> to vector<8x128xi1>
    %799 = vector.broadcast %cst_301 : f32 to vector<8x128xf32>
    %800 = arith.select %798, %796, %799 : vector<8x128xi1>, vector<8x128xf32>
    %801 = arith.index_cast %c5_i32_285 : i32 to index
    %c0_302 = arith.constant 0 : index
    %c0_303 = arith.constant 0 : index
    %802 = vector.load %arg6[%801, %c0_302, %c0_303] : memref<8x8x128xf32, #tpu.memory_space<vmem>>, vector<1x8x128xf32>
    %803 = vector.shape_cast %802 : vector<1x8x128xf32> to vector<8x128xf32>
    %804 = vector.shape_cast %800 : vector<8x128xf32> to vector<1x8x128xf32>
    tpu.vector_store %arg6[%801, %c0_302, %c0_303], %804 {strides = array<i32>} : memref<8x8x128xf32, #tpu.memory_space<vmem>>, vector<1x8x128xf32>,
    %805 = vector.shape_cast %758 : vector<8x1xi1> to vector<8x1xi1>
    %806 = vector.broadcast %805 : vector<8x1xi1> to vector<8x128xi1>
    %807 = arith.select %806, %796, %752 : vector<8x128xi1>, vector<8x128xf32>
    %808 = vector.shape_cast %758 : vector<8x1xi1> to vector<8x1xi1>
    %809 = vector.broadcast %808 : vector<8x1xi1> to vector<8x128xi1>
    %810 = arith.select %809, %794, %755 : vector<8x128xi1>, vector<8x128xf32>
    %c6_i32_304 = arith.constant 6 : i32
    %811 = arith.addi %4, %c6_i32_304 : i32
    %812 = vector.broadcast %811 : i32 to vector<8x1xi32>
    %813 = arith.cmpi slt, %812, %3 : vector<8x1xi32>
    %814 = arith.index_cast %c6_i32_304 : i32 to index
    %c0_305 = arith.constant 0 : index
    %c0_306 = arith.constant 0 : index
    %815 = vector.load %arg9[%814, %c0_305, %c0_306] : memref<8x8x512xf32, #tpu.memory_space<vmem>>, vector<1x8x512xf32>
    %816 = vector.shape_cast %815 : vector<1x8x512xf32> to vector<8x512xf32>
    %c1_307 = arith.constant 1 : index
    %c0_308 = arith.constant 0 : index
    %c0_309 = arith.constant 0 : index
    %817 = vector.load %arg4[%c1_307, %c0_308, %c0_309] : memref<2x128x512xf32, #tpu.memory_space<vmem>>, vector<1x128x512xf32>
    %818 = vector.shape_cast %817 : vector<1x128x512xf32> to vector<128x512xf32>
    %cst_310 = arith.constant dense<0.000000e+00> : vector<8x512xf32>
    %819 = tpu.matmul %807, %818, %cst_310 {dimension_numbers = #tpu.dot_dimension_numbers<[1], [0], [0], [1], [0, 0, 1, 1], [], []>} : vector<8x128xf32>, vector<128x512xf32>, vector<8x512xf32> -> vector<8x512xf32>
    %820 = arith.addf %816, %819 : vector<8x512xf32>
    %821 = vector.extract_strided_slice %820 {offsets = [0, 0], sizes = [8, 128], strides = [1, 1]} : vector<8x512xf32> to vector<8x128xf32>
    %cst_311 = arith.constant 5.000000e-01 : f32
    %822 = vector.broadcast %cst_311 : f32 to vector<8x128xf32>
    %823 = arith.mulf %822, %821 : vector<8x128xf32>
    %824 = math.tanh %823 : vector<8x128xf32>
    %cst_312 = arith.constant 5.000000e-01 : f32
    %825 = vector.broadcast %cst_312 : f32 to vector<8x128xf32>
    %826 = arith.mulf %825, %824 : vector<8x128xf32>
    %cst_313 = arith.constant 5.000000e-01 : f32
    %827 = vector.broadcast %cst_313 : f32 to vector<8x128xf32>
    %828 = arith.addf %826, %827 : vector<8x128xf32>
    %829 = vector.extract_strided_slice %820 {offsets = [0, 128], sizes = [8, 128], strides = [1, 1]} : vector<8x512xf32> to vector<8x128xf32>
    %cst_314 = arith.constant 5.000000e-01 : f32
    %830 = vector.broadcast %cst_314 : f32 to vector<8x128xf32>
    %831 = arith.mulf %830, %829 : vector<8x128xf32>
    %832 = math.tanh %831 : vector<8x128xf32>
    %cst_315 = arith.constant 5.000000e-01 : f32
    %833 = vector.broadcast %cst_315 : f32 to vector<8x128xf32>
    %834 = arith.mulf %833, %832 : vector<8x128xf32>
    %cst_316 = arith.constant 5.000000e-01 : f32
    %835 = vector.broadcast %cst_316 : f32 to vector<8x128xf32>
    %836 = arith.addf %834, %835 : vector<8x128xf32>
    %837 = vector.extract_strided_slice %820 {offsets = [0, 256], sizes = [8, 128], strides = [1, 1]} : vector<8x512xf32> to vector<8x128xf32>
    %838 = math.tanh %837 : vector<8x128xf32>
    %839 = vector.extract_strided_slice %820 {offsets = [0, 384], sizes = [8, 128], strides = [1, 1]} : vector<8x512xf32> to vector<8x128xf32>
    %cst_317 = arith.constant 5.000000e-01 : f32
    %840 = vector.broadcast %cst_317 : f32 to vector<8x128xf32>
    %841 = arith.mulf %840, %839 : vector<8x128xf32>
    %842 = math.tanh %841 : vector<8x128xf32>
    %cst_318 = arith.constant 5.000000e-01 : f32
    %843 = vector.broadcast %cst_318 : f32 to vector<8x128xf32>
    %844 = arith.mulf %843, %842 : vector<8x128xf32>
    %cst_319 = arith.constant 5.000000e-01 : f32
    %845 = vector.broadcast %cst_319 : f32 to vector<8x128xf32>
    %846 = arith.addf %844, %845 : vector<8x128xf32>
    %847 = arith.mulf %836, %810 : vector<8x128xf32>
    %848 = arith.mulf %828, %838 : vector<8x128xf32>
    %849 = arith.addf %847, %848 : vector<8x128xf32>
    %850 = math.tanh %849 : vector<8x128xf32>
    %851 = arith.mulf %846, %850 : vector<8x128xf32>
    %cst_320 = arith.constant 0.000000e+00 : f32
    %852 = vector.shape_cast %813 : vector<8x1xi1> to vector<8x1xi1>
    %853 = vector.broadcast %852 : vector<8x1xi1> to vector<8x128xi1>
    %854 = vector.broadcast %cst_320 : f32 to vector<8x128xf32>
    %855 = arith.select %853, %851, %854 : vector<8x128xi1>, vector<8x128xf32>
    %856 = arith.index_cast %c6_i32_304 : i32 to index
    %c0_321 = arith.constant 0 : index
    %c0_322 = arith.constant 0 : index
    %857 = vector.load %arg6[%856, %c0_321, %c0_322] : memref<8x8x128xf32, #tpu.memory_space<vmem>>, vector<1x8x128xf32>
    %858 = vector.shape_cast %857 : vector<1x8x128xf32> to vector<8x128xf32>
    %859 = vector.shape_cast %855 : vector<8x128xf32> to vector<1x8x128xf32>
    tpu.vector_store %arg6[%856, %c0_321, %c0_322], %859 {strides = array<i32>} : memref<8x8x128xf32, #tpu.memory_space<vmem>>, vector<1x8x128xf32>,
    %860 = vector.shape_cast %813 : vector<8x1xi1> to vector<8x1xi1>
    %861 = vector.broadcast %860 : vector<8x1xi1> to vector<8x128xi1>
    %862 = arith.select %861, %851, %807 : vector<8x128xi1>, vector<8x128xf32>
    %863 = vector.shape_cast %813 : vector<8x1xi1> to vector<8x1xi1>
    %864 = vector.broadcast %863 : vector<8x1xi1> to vector<8x128xi1>
    %865 = arith.select %864, %849, %810 : vector<8x128xi1>, vector<8x128xf32>
    %c7_i32_323 = arith.constant 7 : i32
    %866 = arith.addi %4, %c7_i32_323 : i32
    %867 = vector.broadcast %866 : i32 to vector<8x1xi32>
    %868 = arith.cmpi slt, %867, %3 : vector<8x1xi32>
    %869 = arith.index_cast %c7_i32_323 : i32 to index
    %c0_324 = arith.constant 0 : index
    %c0_325 = arith.constant 0 : index
    %870 = vector.load %arg9[%869, %c0_324, %c0_325] : memref<8x8x512xf32, #tpu.memory_space<vmem>>, vector<1x8x512xf32>
    %871 = vector.shape_cast %870 : vector<1x8x512xf32> to vector<8x512xf32>
    %c1_326 = arith.constant 1 : index
    %c0_327 = arith.constant 0 : index
    %c0_328 = arith.constant 0 : index
    %872 = vector.load %arg4[%c1_326, %c0_327, %c0_328] : memref<2x128x512xf32, #tpu.memory_space<vmem>>, vector<1x128x512xf32>
    %873 = vector.shape_cast %872 : vector<1x128x512xf32> to vector<128x512xf32>
    %cst_329 = arith.constant dense<0.000000e+00> : vector<8x512xf32>
    %874 = tpu.matmul %862, %873, %cst_329 {dimension_numbers = #tpu.dot_dimension_numbers<[1], [0], [0], [1], [0, 0, 1, 1], [], []>} : vector<8x128xf32>, vector<128x512xf32>, vector<8x512xf32> -> vector<8x512xf32>
    %875 = arith.addf %871, %874 : vector<8x512xf32>
    %876 = vector.extract_strided_slice %875 {offsets = [0, 0], sizes = [8, 128], strides = [1, 1]} : vector<8x512xf32> to vector<8x128xf32>
    %cst_330 = arith.constant 5.000000e-01 : f32
    %877 = vector.broadcast %cst_330 : f32 to vector<8x128xf32>
    %878 = arith.mulf %877, %876 : vector<8x128xf32>
    %879 = math.tanh %878 : vector<8x128xf32>
    %cst_331 = arith.constant 5.000000e-01 : f32
    %880 = vector.broadcast %cst_331 : f32 to vector<8x128xf32>
    %881 = arith.mulf %880, %879 : vector<8x128xf32>
    %cst_332 = arith.constant 5.000000e-01 : f32
    %882 = vector.broadcast %cst_332 : f32 to vector<8x128xf32>
    %883 = arith.addf %881, %882 : vector<8x128xf32>
    %884 = vector.extract_strided_slice %875 {offsets = [0, 128], sizes = [8, 128], strides = [1, 1]} : vector<8x512xf32> to vector<8x128xf32>
    %cst_333 = arith.constant 5.000000e-01 : f32
    %885 = vector.broadcast %cst_333 : f32 to vector<8x128xf32>
    %886 = arith.mulf %885, %884 : vector<8x128xf32>
    %887 = math.tanh %886 : vector<8x128xf32>
    %cst_334 = arith.constant 5.000000e-01 : f32
    %888 = vector.broadcast %cst_334 : f32 to vector<8x128xf32>
    %889 = arith.mulf %888, %887 : vector<8x128xf32>
    %cst_335 = arith.constant 5.000000e-01 : f32
    %890 = vector.broadcast %cst_335 : f32 to vector<8x128xf32>
    %891 = arith.addf %889, %890 : vector<8x128xf32>
    %892 = vector.extract_strided_slice %875 {offsets = [0, 256], sizes = [8, 128], strides = [1, 1]} : vector<8x512xf32> to vector<8x128xf32>
    %893 = math.tanh %892 : vector<8x128xf32>
    %894 = vector.extract_strided_slice %875 {offsets = [0, 384], sizes = [8, 128], strides = [1, 1]} : vector<8x512xf32> to vector<8x128xf32>
    %cst_336 = arith.constant 5.000000e-01 : f32
    %895 = vector.broadcast %cst_336 : f32 to vector<8x128xf32>
    %896 = arith.mulf %895, %894 : vector<8x128xf32>
    %897 = math.tanh %896 : vector<8x128xf32>
    %cst_337 = arith.constant 5.000000e-01 : f32
    %898 = vector.broadcast %cst_337 : f32 to vector<8x128xf32>
    %899 = arith.mulf %898, %897 : vector<8x128xf32>
    %cst_338 = arith.constant 5.000000e-01 : f32
    %900 = vector.broadcast %cst_338 : f32 to vector<8x128xf32>
    %901 = arith.addf %899, %900 : vector<8x128xf32>
    %902 = arith.mulf %891, %865 : vector<8x128xf32>
    %903 = arith.mulf %883, %893 : vector<8x128xf32>
    %904 = arith.addf %902, %903 : vector<8x128xf32>
    %905 = math.tanh %904 : vector<8x128xf32>
    %906 = arith.mulf %901, %905 : vector<8x128xf32>
    %cst_339 = arith.constant 0.000000e+00 : f32
    %907 = vector.shape_cast %868 : vector<8x1xi1> to vector<8x1xi1>
    %908 = vector.broadcast %907 : vector<8x1xi1> to vector<8x128xi1>
    %909 = vector.broadcast %cst_339 : f32 to vector<8x128xf32>
    %910 = arith.select %908, %906, %909 : vector<8x128xi1>, vector<8x128xf32>
    %911 = arith.index_cast %c7_i32_323 : i32 to index
    %c0_340 = arith.constant 0 : index
    %c0_341 = arith.constant 0 : index
    %912 = vector.load %arg6[%911, %c0_340, %c0_341] : memref<8x8x128xf32, #tpu.memory_space<vmem>>, vector<1x8x128xf32>
    %913 = vector.shape_cast %912 : vector<1x8x128xf32> to vector<8x128xf32>
    %914 = vector.shape_cast %910 : vector<8x128xf32> to vector<1x8x128xf32>
    tpu.vector_store %arg6[%911, %c0_340, %c0_341], %914 {strides = array<i32>} : memref<8x8x128xf32, #tpu.memory_space<vmem>>, vector<1x8x128xf32>,
    %915 = vector.shape_cast %868 : vector<8x1xi1> to vector<8x1xi1>
    %916 = vector.broadcast %915 : vector<8x1xi1> to vector<8x128xi1>
    %917 = arith.select %916, %906, %862 : vector<8x128xi1>, vector<8x128xf32>
    %918 = vector.shape_cast %868 : vector<8x1xi1> to vector<8x1xi1>
    %919 = vector.broadcast %918 : vector<8x1xi1> to vector<8x128xi1>
    %920 = arith.select %919, %904, %865 : vector<8x128xi1>, vector<8x128xf32>
    %c8_i32_342 = arith.constant 8 : i32
    %c1_343 = arith.constant 1 : index
    %c0_344 = arith.constant 0 : index
    %c0_345 = arith.constant 0 : index
    %921 = vector.load %arg7[%c1_343, %c0_344, %c0_345] : memref<2x8x128xf32, #tpu.memory_space<vmem>>, vector<1x8x128xf32>
    %922 = vector.shape_cast %921 : vector<1x8x128xf32> to vector<8x128xf32>
    %923 = vector.shape_cast %917 : vector<8x128xf32> to vector<1x8x128xf32>
    tpu.vector_store %arg7[%c1_343, %c0_344, %c0_345], %923 {strides = array<i32>} : memref<2x8x128xf32, #tpu.memory_space<vmem>>, vector<1x8x128xf32>,
    %c1_346 = arith.constant 1 : index
    %c0_347 = arith.constant 0 : index
    %c0_348 = arith.constant 0 : index
    %924 = vector.load %arg8[%c1_346, %c0_347, %c0_348] : memref<2x8x128xf32, #tpu.memory_space<vmem>>, vector<1x8x128xf32>
    %925 = vector.shape_cast %924 : vector<1x8x128xf32> to vector<8x128xf32>
    %926 = vector.shape_cast %920 : vector<8x128xf32> to vector<1x8x128xf32>
    tpu.vector_store %arg8[%c1_346, %c0_347, %c0_348], %926 {strides = array<i32>} : memref<2x8x128xf32, #tpu.memory_space<vmem>>, vector<1x8x128xf32>,
    return
  }
  func.func @transform_0(%arg0: i32) -> (i32, i32, i32) {
    %c0_i32 = arith.constant 0 : i32
    %c0_i32_0 = arith.constant 0 : i32
    %c0_i32_1 = arith.constant 0 : i32
    return %arg0, %c0_i32, %c0_i32_0 : i32, i32, i32
  }
  func.func @transform_1(%arg0: i32) -> (i32, i32) {
    %c0_i32 = arith.constant 0 : i32
    %c0_i32_0 = arith.constant 0 : i32
    %c0_i32_1 = arith.constant 0 : i32
    return %c0_i32, %c0_i32_0 : i32, i32
  }
  func.func @transform_2(%arg0: i32) -> (i32, i32, i32) {
    %c0_i32 = arith.constant 0 : i32
    %c0_i32_0 = arith.constant 0 : i32
    %c0_i32_1 = arith.constant 0 : i32
    %c0_i32_2 = arith.constant 0 : i32
    return %c0_i32, %c0_i32_0, %c0_i32_1 : i32, i32, i32
  }
  func.func @transform_3(%arg0: i32) -> (i32, i32, i32) {
    %c0_i32 = arith.constant 0 : i32
    %c0_i32_0 = arith.constant 0 : i32
    %c0_i32_1 = arith.constant 0 : i32
    %c0_i32_2 = arith.constant 0 : i32
    return %c0_i32, %c0_i32_0, %c0_i32_1 : i32, i32, i32
  }
  func.func @transform_4(%arg0: i32) -> (i32, i32, i32) {
    %c0_i32 = arith.constant 0 : i32
    %c0_i32_0 = arith.constant 0 : i32
    %c0_i32_1 = arith.constant 0 : i32
    %c0_i32_2 = arith.constant 0 : i32
    return %c0_i32, %c0_i32_0, %c0_i32_1 : i32, i32, i32
  }
  func.func @transform_5(%arg0: i32) -> (i32, i32, i32) {
    %c0_i32 = arith.constant 0 : i32
    %c0_i32_0 = arith.constant 0 : i32
    %c0_i32_1 = arith.constant 0 : i32
    return %arg0, %c0_i32, %c0_i32_0 : i32, i32, i32
  }
  func.func @transform_6(%arg0: i32) -> (i32, i32, i32) {
    %c0_i32 = arith.constant 0 : i32
    %c0_i32_0 = arith.constant 0 : i32
    %c0_i32_1 = arith.constant 0 : i32
    %c0_i32_2 = arith.constant 0 : i32
    return %c0_i32, %c0_i32_0, %c0_i32_1 : i32, i32, i32
  }
  func.func @transform_7(%arg0: i32) -> (i32, i32, i32) {
    %c0_i32 = arith.constant 0 : i32
    %c0_i32_0 = arith.constant 0 : i32
    %c0_i32_1 = arith.constant 0 : i32
    %c0_i32_2 = arith.constant 0 : i32
    return %c0_i32, %c0_i32_0, %c0_i32_1 : i32, i32, i32
  }
}

</mosaic_0001>

<llo_original>
// kernel: tpu_custom_call.1
$region0: #{tpu_custom_call.1}
  #allocation0 [shape = 'u32[]', space=smem, size = 0x4, offset = 0x4, fixed_abs, tag = 'smem constant byte address 0x4 - core index']
  #allocation1 [shape = 'u32[144,128]{1,0:T(1,128)}', space=vmem, size = 0x12000, scoped, tag = 'internal scratch']
  #allocation2 [shape = 'f32[8,8,512]{2,1,0:T(8,128)}', space=vmem, size = 0x20000, scoped, tag = 'scratch operand']
  %s0 = inlined_call_operand.hbm [shape: f32[8,8,128], index: 0, kind: input, shape index: {}]
  %s1 = inlined_call_operand.vmem [shape: s32[8,1], index: 1, kind: input, shape index: {}]
  %s2 = inlined_call_operand.hbm [shape: f32[2,128,512], index: 2, kind: input, shape index: {}]
  %s3 = inlined_call_operand.hbm [shape: f32[2,128,512], index: 3, kind: input, shape index: {}]
  %s4 = inlined_call_operand.vmem [shape: f32[2,1,512], index: 4, kind: input, shape index: {}]
  %s5 = inlined_call_operand.hbm [shape: f32[8,8,128], index: 5, kind: output, shape index: {0}]
  %s6 = inlined_call_operand.hbm [shape: f32[2,8,128], index: 6, kind: output, shape index: {1}]
  %s7 = inlined_call_operand.hbm [shape: f32[2,8,128], index: 7, kind: output, shape index: {2}]
  %8 = xla_tuple %s5, %s6, %s7
  %s9 = sld [smem:[#allocation0]]
  $region62: #{tpu_custom_call.1} parent=0
    _
  %s11 = ssub.s32 1, %s9
  %s12 = scalar_select 0, %s11, %s9
  $region1: #{tpu_custom_call.1} parent=0
    #allocation3 [shape = 'u8[32768]{0}', space=vmem, size = 0x8000, scoped, tag = 'input window, operand 0, single buffered']
    #allocation4 [shape = 's32[1]{0}', space=sflag, size = 0x4, scoped, tag = 'scoped memory for tpu_custom_call.1']
    #allocation5 [shape = 's32[1]{0}', space=sflag, size = 0x4, scoped, tag = 'scoped memory for tpu_custom_call.1']
    #allocation6 [shape = 'u8[524288]{0}', space=vmem, size = 0x80000, scoped, tag = 'input window, operand 2, single buffered']
    #allocation7 [shape = 's32[1]{0}', space=sflag, size = 0x4, scoped, tag = 'scoped memory for tpu_custom_call.1']
    #allocation8 [shape = 'u8[524288]{0}', space=vmem, size = 0x80000, scoped, tag = 'input window, operand 3, single buffered']
    #allocation9 [shape = 'u8[32768]{0}', space=vmem, size = 0x8000, scoped, tag = 'output window, operand 0, single buffered']
    #allocation10 [shape = 'u8[8192]{0}', space=vmem, size = 0x2000, scoped, tag = 'output window, operand 1, single buffered']
    #allocation11 [shape = 's32[1]{0}', space=sflag, size = 0x4, scoped, tag = 'scoped memory for tpu_custom_call.1']
    #allocation12 [shape = 'u8[8192]{0}', space=vmem, size = 0x2000, scoped, tag = 'output window, operand 2, single buffered']
    %13 = vsyncpa [#allocation4], 0
    %14 = vsyncpa [#allocation7], 0
    %15 = vsyncpa [#allocation5], 0
    %16 = vsyncpa [#allocation11], 0
    // Predicated region
    $region2: #{tpu_custom_call.1} parent=1 // pred_check
      _
    $region3: #{tpu_custom_call.1} parent=1 // pred_check_branch
      %18 = sbr.rel (0) target = $region5
    $region4: #{tpu_custom_call.1} parent=1 // pred_region
      %s20 = ssub.s32 1024, 1024
      %21 = vsyncadd [#allocation4], %s20
      %s22 = sshll.u32 [#allocation3], 4
      %s23 = int_to_ptr.vmem [resolvable:$true] %s22
      %28 = dma.hbm_to_vmem [thread:$0]  %s0, 1024, %s23, [#allocation4], 128, 128, 8
    $region5: #{tpu_custom_call.1} parent=1 // pred_fallthru
      _
    // Predicated region
    $region6: #{tpu_custom_call.1} parent=1 // pred_check
      _
    $region7: #{tpu_custom_call.1} parent=1 // pred_check_branch
      %30 = sbr.rel (0) target = $region9
    $region8: #{tpu_custom_call.1} parent=1 // pred_region
      _
    $region9: #{tpu_custom_call.1} parent=1 // pred_fallthru
      _
    // Predicated region
    $region10: #{tpu_custom_call.1} parent=1 // pred_check
      _
    $region11: #{tpu_custom_call.1} parent=1 // pred_check_branch
      %32 = sbr.rel (0) target = $region13
    $region12: #{tpu_custom_call.1} parent=1 // pred_region
      %s34 = ssub.s32 16384, 16384
      %35 = vsyncadd [#allocation7], %s34
      %s36 = sshll.u32 [#allocation6], 4
      %s37 = int_to_ptr.vmem [resolvable:$true] %s36
      %42 = dma.hbm_to_vmem [thread:$0]  %s2, 16384, %s37, [#allocation7], 512, 512, 32
    $region13: #{tpu_custom_call.1} parent=1 // pred_fallthru
      _
    // Predicated region
    $region14: #{tpu_custom_call.1} parent=1 // pred_check
      _
    $region15: #{tpu_custom_call.1} parent=1 // pred_check_branch
      %44 = sbr.rel (0) target = $region17
    $region16: #{tpu_custom_call.1} parent=1 // pred_region
      %s46 = ssub.s32 16384, 16384
      %47 = vsyncadd [#allocation7], %s46
      %s48 = sshll.u32 [#allocation8], 4
      %s49 = int_to_ptr.vmem [resolvable:$true] %s48
      %54 = dma.hbm_to_vmem [thread:$0]  %s3, 16384, %s49, [#allocation7], 512, 512, 32
    $region17: #{tpu_custom_call.1} parent=1 // pred_fallthru
      _
    // Predicated region
    $region18: #{tpu_custom_call.1} parent=1 // pred_check
      _
    $region19: #{tpu_custom_call.1} parent=1 // pred_check_branch
      %56 = sbr.rel (0) target = $region21
    $region20: #{tpu_custom_call.1} parent=1 // pred_region
      _
    $region21: #{tpu_custom_call.1} parent=1 // pred_fallthru
      _
    // Predicated region
    $region22: #{tpu_custom_call.1} parent=1 // pred_check
      _
    $region23: #{tpu_custom_call.1} parent=1 // pred_check_branch
      %58 = sbr.rel (0) target = $region25
    $region24: #{tpu_custom_call.1} parent=1 // pred_region
      %59 = dma.done [#allocation4], 1024
    $region25: #{tpu_custom_call.1} parent=1 // pred_fallthru
      _
    // Predicated region
    $region26: #{tpu_custom_call.1} parent=1 // pred_check
      _
    $region27: #{tpu_custom_call.1} parent=1 // pred_check_branch
      %61 = sbr.rel (0) target = $region29
    $region28: #{tpu_custom_call.1} parent=1 // pred_region
      %62 = dma.done [#allocation7], 16384
    $region29: #{tpu_custom_call.1} parent=1 // pred_fallthru
      _
    // Predicated region
    $region30: #{tpu_custom_call.1} parent=1 // pred_check
      _
    $region31: #{tpu_custom_call.1} parent=1 // pred_check_branch
      %64 = sbr.rel (0) target = $region33
    $region32: #{tpu_custom_call.1} parent=1 // pred_region
      %65 = dma.done [#allocation7], 16384
    $region33: #{tpu_custom_call.1} parent=1 // pred_fallthru
      _
    %p66 = scmp.eq.s32.totalorder 0, 0
    // Predicated region
    $region34: #{tpu_custom_call.1} parent=1 // pred_check
      %p67 = pneg %p66
    $region35: #{tpu_custom_call.1} parent=1 // pred_check_branch
      %69 = sbr.rel (%p67) target = $region37
    $region36: #{tpu_custom_call.1} parent=1 // pred_region
      %70 = vst [vmem:[#allocation10] sm:$0xff] 0.0
      %71 = vst [vmem:[#allocation10 + $0x8] sm:$0xff] 0.0
      %72 = vst [vmem:[#allocation12] sm:$0xff] 0.0
      %73 = vst [vmem:[#allocation12 + $0x8] sm:$0xff] 0.0
    $region37: #{tpu_custom_call.1} parent=1 // pred_fallthru
      _
    %v74 = vld [vmem:[%s1] sm:$0xff]
    %s75 = smul.u32 0, 8
    %v76 = vld [vmem:[#allocation3] sm:$0xff]
    %v77 = vld [vmem:[#allocation3 + $0x8] sm:$0xff]
    %v78 = vld [vmem:[#allocation3 + $0x10] sm:$0xff]
    %v79 = vld [vmem:[#allocation3 + $0x18] sm:$0xff]
    %v80 = vld [vmem:[#allocation3 + $0x20] sm:$0xff]
    %v81 = vld [vmem:[#allocation3 + $0x28] sm:$0xff]
    %v82 = vld [vmem:[#allocation3 + $0x30] sm:$0xff]
    %v83 = vld [vmem:[#allocation3 + $0x38] sm:$0xff]
    %v84 = vld [vmem:[#allocation6] sm:$0xff]
    %v85 = vld [vmem:[#allocation6 + $0x8] sm:$0xff]
    %v86 = vld [vmem:[#allocation6 + $0x10] sm:$0xff]
    %v87 = vld [vmem:[#allocation6 + $0x18] sm:$0xff]
    %v88 = vld [vmem:[#allocation6 + $0x20] sm:$0xff]
    %v89 = vld [vmem:[#allocation6 + $0x28] sm:$0xff]
    %v90 = vld [vmem:[#allocation6 + $0x30] sm:$0xff]
    %v91 = vld [vmem:[#allocation6 + $0x38] sm:$0xff]
    %v92 = vld [vmem:[#allocation6 + $0x40] sm:$0xff]
    %v93 = vld [vmem:[#allocation6 + $0x48] sm:$0xff]
    %v94 = vld [vmem:[#allocation6 + $0x50] sm:$0xff]
    %v95 = vld [vmem:[#allocation6 + $0x58] sm:$0xff]
    %v96 = vld [vmem:[#allocation6 + $0x60] sm:$0xff]
    %v97 = vld [vmem:[#allocation6 + $0x68] sm:$0xff]
    %v98 = vld [vmem:[#allocation6 + $0x70] sm:$0xff]
    %v99 = vld [vmem:[#allocation6 + $0x78] sm:$0xff]
    %v100 = vld [vmem:[#allocation6 + $0x80] sm:$0xff]
    %v101 = vld [vmem:[#allocation6 + $0x88] sm:$0xff]
    %v102 = vld [vmem:[#allocation6 + $0x90] sm:$0xff]
    %v103 = vld [vmem:[#allocation6 + $0x98] sm:$0xff]
    %v104 = vld [vmem:[#allocation6 + $0xa0] sm:$0xff]
    %v105 = vld [vmem:[#allocation6 + $0xa8] sm:$0xff]
    %v106 = vld [vmem:[#allocation6 + $0xb0] sm:$0xff]
    %v107 = vld [vmem:[#allocation6 + $0xb8] sm:$0xff]
    %v108 = vld [vmem:[#allocation6 + $0xc0] sm:$0xff]
    %v109 = vld [vmem:[#allocation6 + $0xc8] sm:$0xff]
    %v110 = vld [vmem:[#allocation6 + $0xd0] sm:$0xff]
    %v111 = vld [vmem:[#allocation6 + $0xd8] sm:$0xff]
    %v112 = vld [vmem:[#allocation6 + $0xe0] sm:$0xff]
    %v113 = vld [vmem:[#allocation6 + $0xe8] sm:$0xff]
    %v114 = vld [vmem:[#allocation6 + $0xf0] sm:$0xff]
    %v115 = vld [vmem:[#allocation6 + $0xf8] sm:$0xff]
    %v116 = vld [vmem:[#allocation6 + $0x100] sm:$0xff]
    %v117 = vld [vmem:[#allocation6 + $0x108] sm:$0xff]
    %v118 = vld [vmem:[#allocation6 + $0x110] sm:$0xff]
    %v119 = vld [vmem:[#allocation6 + $0x118] sm:$0xff]
    %v120 = vld [vmem:[#allocation6 + $0x120] sm:$0xff]
    %v121 = vld [vmem:[#allocation6 + $0x128] sm:$0xff]
    %v122 = vld [vmem:[#allocation6 + $0x130] sm:$0xff]
    %v123 = vld [vmem:[#allocation6 + $0x138] sm:$0xff]
    %v124 = vld [vmem:[#allocation6 + $0x140] sm:$0xff]
    %v125 = vld [vmem:[#allocation6 + $0x148] sm:$0xff]
    %v126 = vld [vmem:[#allocation6 + $0x150] sm:$0xff]
    %v127 = vld [vmem:[#allocation6 + $0x158] sm:$0xff]
    %v128 = vld [vmem:[#allocation6 + $0x160] sm:$0xff]
    %v129 = vld [vmem:[#allocation6 + $0x168] sm:$0xff]
    %v130 = vld [vmem:[#allocation6 + $0x170] sm:$0xff]
    %v131 = vld [vmem:[#allocation6 + $0x178] sm:$0xff]
    %v132 = vld [vmem:[#allocation6 + $0x180] sm:$0xff]
    %v133 = vld [vmem:[#allocation6 + $0x188] sm:$0xff]
    %v134 = vld [vmem:[#allocation6 + $0x190] sm:$0xff]
    %v135 = vld [vmem:[#allocation6 + $0x198] sm:$0xff]
    %v136 = vld [vmem:[#allocation6 + $0x1a0] sm:$0xff]
    %v137 = vld [vmem:[#allocation6 + $0x1a8] sm:$0xff]
    %v138 = vld [vmem:[#allocation6 + $0x1b0] sm:$0xff]
    %v139 = vld [vmem:[#allocation6 + $0x1b8] sm:$0xff]
    %v140 = vld [vmem:[#allocation6 + $0x1c0] sm:$0xff]
    %v141 = vld [vmem:[#allocation6 + $0x1c8] sm:$0xff]
    %v142 = vld [vmem:[#allocation6 + $0x1d0] sm:$0xff]
    %v143 = vld [vmem:[#allocation6 + $0x1d8] sm:$0xff]
    %v144 = vld [vmem:[#allocation6 + $0x1e0] sm:$0xff]
    %v145 = vld [vmem:[#allocation6 + $0x1e8] sm:$0xff]
    %v146 = vld [vmem:[#allocation6 + $0x1f0] sm:$0xff]
    %v147 = vld [vmem:[#allocation6 + $0x1f8] sm:$0xff]
    %v148 = vld [vmem:[%s4] sm:$0xf]
    %v150 = vlaneseq
    %v151 = vshrl.u32 %v150, 7
    %v152 = vsub.s32 0, %v151
    %v153 = vrot.slane %v148, %v152
    %v154 = vlaneseq
    %v155 = vshrl.u32 %v154, 7
    %v156 = vsub.s32 1, %v155
    %v157 = vrot.slane %v148, %v156
    %v158 = vlaneseq
    %v159 = vshrl.u32 %v158, 7
    %v160 = vsub.s32 2, %v159
    %v161 = vrot.slane %v148, %v160
    %v162 = vlaneseq
    %v163 = vshrl.u32 %v162, 7
    %v164 = vsub.s32 3, %v163
    %v165 = vrot.slane %v148, %v164
    %170 = vmatprep.subr.mxu0 %v145
    %171 = vmatpush1.msra.mxu0 %v144
    %172 = vmatprep.subr.mxu0 %v141
    %173 = vmatpush1.msra.mxu0 %v140
    %174 = vmatprep.subr.mxu0 %v137
    %175 = vmatpush1.msra.mxu0 %v136
    %176 = vmatprep.subr.mxu0 %v133
    %177 = vmatpush1.msra.mxu0 %v132
    %178 = vmatprep.subr.mxu0 %v129
    %179 = vmatpush1.msra.mxu0 %v128
    %180 = vmatprep.subr.mxu0 %v125
    %181 = vmatpush1.msra.mxu0 %v124
    %182 = vmatprep.subr.mxu0 %v121
    %183 = vmatpush1.msra.mxu0 %v120
    %184 = vmatprep.subr.mxu0 %v117
    %185 = vmatpush1.msra.mxu0 %v116
    %186 = vmatprep.subr.mxu0 %v113
    %187 = vmatpush1.msra.mxu0 %v112
    %188 = vmatprep.subr.mxu0 %v109
    %189 = vmatpush1.msra.mxu0 %v108
    %190 = vmatprep.subr.mxu0 %v105
    %191 = vmatpush1.msra.mxu0 %v104
    %192 = vmatprep.subr.mxu0 %v101
    %193 = vmatpush1.msra.mxu0 %v100
    %194 = vmatprep.subr.mxu0 %v97
    %195 = vmatpush1.msra.mxu0 %v96
    %196 = vmatprep.subr.mxu0 %v93
    %197 = vmatpush1.msra.mxu0 %v92
    %198 = vmatprep.subr.mxu0 %v89
    %199 = vmatpush1.msra.mxu0 %v88
    %200 = vmatprep.subr.mxu0 %v85
    %201 = vmatpush1.msra.mxu0 %v84
    %202 = vmatprep.subr.mxu0 0.0
    %203 = vmatpush2.msra.mxu0 0.0
    %204 = vmatprep.subr.mxu0 0.0
    %205 = vmatpush2.msra.mxu0 0.0
    %206 = vmatprep.subr.mxu0 0.0
    %207 = vmatpush2.msra.mxu0 0.0
    %208 = vmatprep.subr.mxu0 0.0
    %209 = vmatpush2.msra.mxu0 0.0
    %210 = vmatprep.subr.mxu0 0.0
    %211 = vmatpush2.msra.mxu0 0.0
    %212 = vmatprep.subr.mxu0 0.0
    %213 = vmatpush2.msra.mxu0 0.0
    %214 = vmatprep.subr.mxu0 0.0
    %215 = vmatpush2.msra.mxu0 0.0
    %216 = vmatprep.subr.mxu0 0.0
    %217 = vmatpush2.msra.mxu0 0.0
    %218 = vmatprep.subr.mxu0 0.0
    %219 = vmatpush2.msra.mxu0 0.0
    %220 = vmatprep.subr.mxu0 0.0
    %221 = vmatpush2.msra.mxu0 0.0
    %222 = vmatprep.subr.mxu0 0.0
    %223 = vmatpush2.msra.mxu0 0.0
    %224 = vmatprep.subr.mxu0 0.0
    %225 = vmatpush2.msra.mxu0 0.0
    %226 = vmatprep.subr.mxu0 0.0
    %227 = vmatpush2.msra.mxu0 0.0
    %228 = vmatprep.subr.mxu0 0.0
    %229 = vmatpush2.msra.mxu0 0.0
    %230 = vmatprep.subr.mxu0 0.0
    %231 = vmatpush2.msra.mxu0 0.0
    %232 = vmatprep.subr.mxu0 0.0
    %233 = vmatpush2.msra.mxu0 0.0
    %234 = vmatprep.mubr.f32.mxu0 0.0
    %235 = vmatmul.mubr.f32.gmra.mxu0 %v76
    %v236 = vpop.f32.mrf.mxu0
    %v237 = vadd.f32 %v153, %v236
    %v238 = vpop.f32.mrf.mxu0
    %v239 = vadd.f32 %v157, %v238
    %240 = vmatprep.mubr.f32.mxu0 0.0
    %241 = vmatmul.mubr.f32.gmra.mxu0 %v77
    %v242 = vpop.f32.mrf.mxu0
    %v243 = vadd.f32 %v153, %v242
    %v244 = vpop.f32.mrf.mxu0
    %v245 = vadd.f32 %v157, %v244
    %246 = vmatprep.mubr.f32.mxu0 0.0
    %247 = vmatmul.mubr.f32.gmra.mxu0 %v78
    %v248 = vpop.f32.mrf.mxu0
    %v249 = vadd.f32 %v153, %v248
    %v250 = vpop.f32.mrf.mxu0
    %v251 = vadd.f32 %v157, %v250
    %252 = vmatprep.mubr.f32.mxu0 0.0
    %253 = vmatmul.mubr.f32.gmra.mxu0 %v79
    %v254 = vpop.f32.mrf.mxu0
    %v255 = vadd.f32 %v153, %v254
    %v256 = vpop.f32.mrf.mxu0
    %v257 = vadd.f32 %v157, %v256
    %258 = vmatprep.mubr.f32.mxu0 0.0
    %259 = vmatmul.mubr.f32.gmra.mxu0 %v80
    %v260 = vpop.f32.mrf.mxu0
    %v261 = vadd.f32 %v153, %v260
    %v262 = vpop.f32.mrf.mxu0
    %v263 = vadd.f32 %v157, %v262
    %264 = vmatprep.mubr.f32.mxu0 0.0
    %265 = vmatmul.mubr.f32.gmra.mxu0 %v81
    %v266 = vpop.f32.mrf.mxu0
    %v267 = vadd.f32 %v153, %v266
    %v268 = vpop.f32.mrf.mxu0
    %v269 = vadd.f32 %v157, %v268
    %270 = vmatprep.mubr.f32.mxu0 0.0
    %271 = vmatmul.mubr.f32.gmra.mxu0 %v82
    %v272 = vpop.f32.mrf.mxu0
    %v273 = vadd.f32 %v153, %v272
    %v274 = vpop.f32.mrf.mxu0
    %v275 = vadd.f32 %v157, %v274
    %276 = vmatprep.mubr.f32.mxu0 0.0
    %277 = vmatmul.mubr.f32.gmra.mxu0 %v83
    %v278 = vpop.f32.mrf.mxu0
    %v279 = vadd.f32 %v153, %v278
    %v280 = vpop.f32.mrf.mxu0
    %v281 = vadd.f32 %v157, %v280
    %282 = vdwg.mxu0
    %283 = vmatprep.subr.mxu0 %v147
    %284 = vmatpush1.msra.mxu0 %v146
    %285 = vmatprep.subr.mxu0 %v143
    %286 = vmatpush1.msra.mxu0 %v142
    %287 = vmatprep.subr.mxu0 %v139
    %288 = vmatpush1.msra.mxu0 %v138
    %289 = vmatprep.subr.mxu0 %v135
    %290 = vmatpush1.msra.mxu0 %v134
    %291 = vmatprep.subr.mxu0 %v131
    %292 = vmatpush1.msra.mxu0 %v130
    %293 = vmatprep.subr.mxu0 %v127
    %294 = vmatpush1.msra.mxu0 %v126
    %295 = vmatprep.subr.mxu0 %v123
    %296 = vmatpush1.msra.mxu0 %v122
    %297 = vmatprep.subr.mxu0 %v119
    %298 = vmatpush1.msra.mxu0 %v118
    %299 = vmatprep.subr.mxu0 %v115
    %300 = vmatpush1.msra.mxu0 %v114
    %301 = vmatprep.subr.mxu0 %v111
    %302 = vmatpush1.msra.mxu0 %v110
    %303 = vmatprep.subr.mxu0 %v107
    %304 = vmatpush1.msra.mxu0 %v106
    %305 = vmatprep.subr.mxu0 %v103
    %306 = vmatpush1.msra.mxu0 %v102
    %307 = vmatprep.subr.mxu0 %v99
    %308 = vmatpush1.msra.mxu0 %v98
    %309 = vmatprep.subr.mxu0 %v95
    %310 = vmatpush1.msra.mxu0 %v94
    %311 = vmatprep.subr.mxu0 %v91
    %312 = vmatpush1.msra.mxu0 %v90
    %313 = vmatprep.subr.mxu0 %v87
    %314 = vmatpush1.msra.mxu0 %v86
    %315 = vmatprep.subr.mxu0 0.0
    %316 = vmatpush2.msra.mxu0 0.0
    %317 = vmatprep.subr.mxu0 0.0
    %318 = vmatpush2.msra.mxu0 0.0
    %319 = vmatprep.subr.mxu0 0.0
    %320 = vmatpush2.msra.mxu0 0.0
    %321 = vmatprep.subr.mxu0 0.0
    %322 = vmatpush2.msra.mxu0 0.0
    %323 = vmatprep.subr.mxu0 0.0
    %324 = vmatpush2.msra.mxu0 0.0
    %325 = vmatprep.subr.mxu0 0.0
    %326 = vmatpush2.msra.mxu0 0.0
    %327 = vmatprep.subr.mxu0 0.0
    %328 = vmatpush2.msra.mxu0 0.0
    %329 = vmatprep.subr.mxu0 0.0
    %330 = vmatpush2.msra.mxu0 0.0
    %331 = vmatprep.subr.mxu0 0.0
    %332 = vmatpush2.msra.mxu0 0.0
    %333 = vmatprep.subr.mxu0 0.0
    %334 = vmatpush2.msra.mxu0 0.0
    %335 = vmatprep.subr.mxu0 0.0
    %336 = vmatpush2.msra.mxu0 0.0
    %337 = vmatprep.subr.mxu0 0.0
    %338 = vmatpush2.msra.mxu0 0.0
    %339 = vmatprep.subr.mxu0 0.0
    %340 = vmatpush2.msra.mxu0 0.0
    %341 = vmatprep.subr.mxu0 0.0
    %342 = vmatpush2.msra.mxu0 0.0
    %343 = vmatprep.subr.mxu0 0.0
    %344 = vmatpush2.msra.mxu0 0.0
    %345 = vmatprep.subr.mxu0 0.0
    %346 = vmatpush2.msra.mxu0 0.0
    %347 = vmatprep.mubr.f32.mxu0 0.0
    %348 = vmatmul.mubr.f32.gmra.mxu0 %v76
    %v349 = vpop.f32.mrf.mxu0
    %v350 = vadd.f32 %v161, %v349
    %v351 = vpop.f32.mrf.mxu0
    %v352 = vadd.f32 %v165, %v351
    %353 = vmatprep.mubr.f32.mxu0 0.0
    %354 = vmatmul.mubr.f32.gmra.mxu0 %v77
    %v355 = vpop.f32.mrf.mxu0
    %v356 = vadd.f32 %v161, %v355
    %v357 = vpop.f32.mrf.mxu0
    %v358 = vadd.f32 %v165, %v357
    %359 = vmatprep.mubr.f32.mxu0 0.0
    %360 = vmatmul.mubr.f32.gmra.mxu0 %v78
    %v361 = vpop.f32.mrf.mxu0
    %v362 = vadd.f32 %v161, %v361
    %v363 = vpop.f32.mrf.mxu0
    %v364 = vadd.f32 %v165, %v363
    %365 = vmatprep.mubr.f32.mxu0 0.0
    %366 = vmatmul.mubr.f32.gmra.mxu0 %v79
    %v367 = vpop.f32.mrf.mxu0
    %v368 = vadd.f32 %v161, %v367
    %v369 = vpop.f32.mrf.mxu0
    %v370 = vadd.f32 %v165, %v369
    %371 = vmatprep.mubr.f32.mxu0 0.0
    %372 = vmatmul.mubr.f32.gmra.mxu0 %v80
    %v373 = vpop.f32.mrf.mxu0
    %v374 = vadd.f32 %v161, %v373
    %v375 = vpop.f32.mrf.mxu0
    %v376 = vadd.f32 %v165, %v375
    %377 = vmatprep.mubr.f32.mxu0 0.0
    %378 = vmatmul.mubr.f32.gmra.mxu0 %v81
    %v379 = vpop.f32.mrf.mxu0
    %v380 = vadd.f32 %v161, %v379
    %v381 = vpop.f32.mrf.mxu0
    %v382 = vadd.f32 %v165, %v381
    %383 = vmatprep.mubr.f32.mxu0 0.0
    %384 = vmatmul.mubr.f32.gmra.mxu0 %v82
    %v385 = vpop.f32.mrf.mxu0
    %v386 = vadd.f32 %v161, %v385
    %v387 = vpop.f32.mrf.mxu0
    %v388 = vadd.f32 %v165, %v387
    %389 = vmatprep.mubr.f32.mxu0 0.0
    %390 = vmatmul.mubr.f32.gmra.mxu0 %v83
    %v391 = vpop.f32.mrf.mxu0
    %v392 = vadd.f32 %v161, %v391
    %v393 = vpop.f32.mrf.mxu0
    %v394 = vadd.f32 %v165, %v393
    %395 = vdwg.mxu0
    %396 = vst [vmem:[#allocation2] sm:$0xff] %v237
    %397 = vst [vmem:[#allocation2 + $0x8] sm:$0xff] %v239
    %398 = vst [vmem:[#allocation2 + $0x10] sm:$0xff] %v350
    %399 = vst [vmem:[#allocation2 + $0x18] sm:$0xff] %v352
    %400 = vst [vmem:[#allocation2 + $0x20] sm:$0xff] %v243
    %401 = vst [vmem:[#allocation2 + $0x28] sm:$0xff] %v245
    %402 = vst [vmem:[#allocation2 + $0x30] sm:$0xff] %v356
    %403 = vst [vmem:[#allocation2 + $0x38] sm:$0xff] %v358
    %404 = vst [vmem:[#allocation2 + $0x40] sm:$0xff] %v249
    %405 = vst [vmem:[#allocation2 + $0x48] sm:$0xff] %v251
    %406 = vst [vmem:[#allocation2 + $0x50] sm:$0xff] %v362
    %407 = vst [vmem:[#allocation2 + $0x58] sm:$0xff] %v364
    %408 = vst [vmem:[#allocation2 + $0x60] sm:$0xff] %v255
    %409 = vst [vmem:[#allocation2 + $0x68] sm:$0xff] %v257
    %410 = vst [vmem:[#allocation2 + $0x70] sm:$0xff] %v368
    %411 = vst [vmem:[#allocation2 + $0x78] sm:$0xff] %v370
    %412 = vst [vmem:[#allocation2 + $0x80] sm:$0xff] %v261
    %413 = vst [vmem:[#allocation2 + $0x88] sm:$0xff] %v263
    %414 = vst [vmem:[#allocation2 + $0x90] sm:$0xff] %v374
    %415 = vst [vmem:[#allocation2 + $0x98] sm:$0xff] %v376
    %416 = vst [vmem:[#allocation2 + $0xa0] sm:$0xff] %v267
    %417 = vst [vmem:[#allocation2 + $0xa8] sm:$0xff] %v269
    %418 = vst [vmem:[#allocation2 + $0xb0] sm:$0xff] %v380
    %419 = vst [vmem:[#allocation2 + $0xb8] sm:$0xff] %v382
    %420 = vst [vmem:[#allocation2 + $0xc0] sm:$0xff] %v273
    %421 = vst [vmem:[#allocation2 + $0xc8] sm:$0xff] %v275
    %422 = vst [vmem:[#allocation2 + $0xd0] sm:$0xff] %v386
    %423 = vst [vmem:[#allocation2 + $0xd8] sm:$0xff] %v388
    %424 = vst [vmem:[#allocation2 + $0xe0] sm:$0xff] %v279
    %425 = vst [vmem:[#allocation2 + $0xe8] sm:$0xff] %v281
    %426 = vst [vmem:[#allocation2 + $0xf0] sm:$0xff] %v392
    %427 = vst [vmem:[#allocation2 + $0xf8] sm:$0xff] %v394
    %v428 = vld [vmem:[#allocation10] sm:$0xff]
    %v429 = vld [vmem:[#allocation12] sm:$0xff]
    %v430 = vstv %s75
    %vm431 = vcmp.lt.s32.totalorder %v430, %v74
    %v432 = vld [vmem:[#allocation2] sm:$0xff]
    %v433 = vld [vmem:[#allocation2 + $0x8] sm:$0xff]
    %v434 = vld [vmem:[#allocation2 + $0x10] sm:$0xff]
    %v435 = vld [vmem:[#allocation2 + $0x18] sm:$0xff]
    %v436 = vld [vmem:[#allocation8] sm:$0xff]
    %v437 = vld [vmem:[#allocation8 + $0x8] sm:$0xff]
    %v438 = vld [vmem:[#allocation8 + $0x10] sm:$0xff]
    %v439 = vld [vmem:[#allocation8 + $0x18] sm:$0xff]
    %v440 = vld [vmem:[#allocation8 + $0x20] sm:$0xff]
    %v441 = vld [vmem:[#allocation8 + $0x28] sm:$0xff]
    %v442 = vld [vmem:[#allocation8 + $0x30] sm:$0xff]
    %v443 = vld [vmem:[#allocation8 + $0x38] sm:$0xff]
    %v444 = vld [vmem:[#allocation8 + $0x40] sm:$0xff]
    %v445 = vld [vmem:[#allocation8 + $0x48] sm:$0xff]
    %v446 = vld [vmem:[#allocation8 + $0x50] sm:$0xff]
    %v447 = vld [vmem:[#allocation8 + $0x58] sm:$0xff]
    %v448 = vld [vmem:[#allocation8 + $0x60] sm:$0xff]
    %v449 = vld [vmem:[#allocation8 + $0x68] sm:$0xff]
    %v450 = vld [vmem:[#allocation8 + $0x70] sm:$0xff]
    %v451 = vld [vmem:[#allocation8 + $0x78] sm:$0xff]
    %v452 = vld [vmem:[#allocation8 + $0x80] sm:$0xff]
    %v453 = vld [vmem:[#allocation8 + $0x88] sm:$0xff]
    %v454 = vld [vmem:[#allocation8 + $0x90] sm:$0xff]
    %v455 = vld [vmem:[#allocation8 + $0x98] sm:$0xff]
    %v456 = vld [vmem:[#allocation8 + $0xa0] sm:$0xff]
    %v457 = vld [vmem:[#allocation8 + $0xa8] sm:$0xff]
    %v458 = vld [vmem:[#allocation8 + $0xb0] sm:$0xff]
    %v459 = vld [vmem:[#allocation8 + $0xb8] sm:$0xff]
    %v460 = vld [vmem:[#allocation8 + $0xc0] sm:$0xff]
    %v461 = vld [vmem:[#allocation8 + $0xc8] sm:$0xff]
    %v462 = vld [vmem:[#allocation8 + $0xd0] sm:$0xff]
    %v463 = vld [vmem:[#allocation8 + $0xd8] sm:$0xff]
    %v464 = vld [vmem:[#allocation8 + $0xe0] sm:$0xff]
    %v465 = vld [vmem:[#allocation8 + $0xe8] sm:$0xff]
    %v466 = vld [vmem:[#allocation8 + $0xf0] sm:$0xff]
    %v467 = vld [vmem:[#allocation8 + $0xf8] sm:$0xff]
    %v468 = vld [vmem:[#allocation8 + $0x100] sm:$0xff]
    %v469 = vld [vmem:[#allocation8 + $0x108] sm:$0xff]
    %v470 = vld [vmem:[#allocation8 + $0x110] sm:$0xff]
    %v471 = vld [vmem:[#allocation8 + $0x118] sm:$0xff]
    %v472 = vld [vmem:[#allocation8 + $0x120] sm:$0xff]
    %v473 = vld [vmem:[#allocation8 + $0x128] sm:$0xff]
    %v474 = vld [vmem:[#allocation8 + $0x130] sm:$0xff]
    %v475 = vld [vmem:[#allocation8 + $0x138] sm:$0xff]
    %v476 = vld [vmem:[#allocation8 + $0x140] sm:$0xff]
    %v477 = vld [vmem:[#allocation8 + $0x148] sm:$0xff]
    %v478 = vld [vmem:[#allocation8 + $0x150] sm:$0xff]
    %v479 = vld [vmem:[#allocation8 + $0x158] sm:$0xff]
    %v480 = vld [vmem:[#allocation8 + $0x160] sm:$0xff]
    %v481 = vld [vmem:[#allocation8 + $0x168] sm:$0xff]
    %v482 = vld [vmem:[#allocation8 + $0x170] sm:$0xff]
    %v483 = vld [vmem:[#allocation8 + $0x178] sm:$0xff]
    %v484 = vld [vmem:[#allocation8 + $0x180] sm:$0xff]
    %v485 = vld [vmem:[#allocation8 + $0x188] sm:$0xff]
    %v486 = vld [vmem:[#allocation8 + $0x190] sm:$0xff]
    %v487 = vld [vmem:[#allocation8 + $0x198] sm:$0xff]
    %v488 = vld [vmem:[#allocation8 + $0x1a0] sm:$0xff]
    %v489 = vld [vmem:[#allocation8 + $0x1a8] sm:$0xff]
    %v490 = vld [vmem:[#allocation8 + $0x1b0] sm:$0xff]
    %v491 = vld [vmem:[#allocation8 + $0x1b8] sm:$0xff]
    %v492 = vld [vmem:[#allocation8 + $0x1c0] sm:$0xff]
    %v493 = vld [vmem:[#allocation8 + $0x1c8] sm:$0xff]
    %v494 = vld [vmem:[#allocation8 + $0x1d0] sm:$0xff]
    %v495 = vld [vmem:[#allocation8 + $0x1d8] sm:$0xff]
    %v496 = vld [vmem:[#allocation8 + $0x1e0] sm:$0xff]
    %v497 = vld [vmem:[#allocation8 + $0x1e8] sm:$0xff]
    %v498 = vld [vmem:[#allocation8 + $0x1f0] sm:$0xff]
    %v499 = vld [vmem:[#allocation8 + $0x1f8] sm:$0xff]
    %500 = vmatprep.subr.mxu0 %v497
    %501 = vmatpush1.msra.mxu0 %v496
    %502 = vmatprep.subr.mxu0 %v493
    %503 = vmatpush1.msra.mxu0 %v492
    %504 = vmatprep.subr.mxu0 %v489
    %505 = vmatpush1.msra.mxu0 %v488
    %506 = vmatprep.subr.mxu0 %v485
    %507 = vmatpush1.msra.mxu0 %v484
    %508 = vmatprep.subr.mxu0 %v481
    %509 = vmatpush1.msra.mxu0 %v480
    %510 = vmatprep.subr.mxu0 %v477
    %511 = vmatpush1.msra.mxu0 %v476
    %512 = vmatprep.subr.mxu0 %v473
    %513 = vmatpush1.msra.mxu0 %v472
    %514 = vmatprep.subr.mxu0 %v469
    %515 = vmatpush1.msra.mxu0 %v468
    %516 = vmatprep.subr.mxu0 %v465
    %517 = vmatpush1.msra.mxu0 %v464
    %518 = vmatprep.subr.mxu0 %v461
    %519 = vmatpush1.msra.mxu0 %v460
    %520 = vmatprep.subr.mxu0 %v457
    %521 = vmatpush1.msra.mxu0 %v456
    %522 = vmatprep.subr.mxu0 %v453
    %523 = vmatpush1.msra.mxu0 %v452
    %524 = vmatprep.subr.mxu0 %v449
    %525 = vmatpush1.msra.mxu0 %v448
    %526 = vmatprep.subr.mxu0 %v445
    %527 = vmatpush1.msra.mxu0 %v444
    %528 = vmatprep.subr.mxu0 %v441
    %529 = vmatpush1.msra.mxu0 %v440
    %530 = vmatprep.subr.mxu0 %v437
    %531 = vmatpush1.msra.mxu0 %v436
    %532 = vmatprep.subr.mxu0 0.0
    %533 = vmatpush2.msra.mxu0 0.0
    %534 = vmatprep.subr.mxu0 0.0
    %535 = vmatpush2.msra.mxu0 0.0
    %536 = vmatprep.subr.mxu0 0.0
    %537 = vmatpush2.msra.mxu0 0.0
    %538 = vmatprep.subr.mxu0 0.0
    %539 = vmatpush2.msra.mxu0 0.0
    %540 = vmatprep.subr.mxu0 0.0
    %541 = vmatpush2.msra.mxu0 0.0
    %542 = vmatprep.subr.mxu0 0.0
    %543 = vmatpush2.msra.mxu0 0.0
    %544 = vmatprep.subr.mxu0 0.0
    %545 = vmatpush2.msra.mxu0 0.0
    %546 = vmatprep.subr.mxu0 0.0
    %547 = vmatpush2.msra.mxu0 0.0
    %548 = vmatprep.subr.mxu0 0.0
    %549 = vmatpush2.msra.mxu0 0.0
    %550 = vmatprep.subr.mxu0 0.0
    %551 = vmatpush2.msra.mxu0 0.0
    %552 = vmatprep.subr.mxu0 0.0
    %553 = vmatpush2.msra.mxu0 0.0
    %554 = vmatprep.subr.mxu0 0.0
    %555 = vmatpush2.msra.mxu0 0.0
    %556 = vmatprep.subr.mxu0 0.0
    %557 = vmatpush2.msra.mxu0 0.0
    %558 = vmatprep.subr.mxu0 0.0
    %559 = vmatpush2.msra.mxu0 0.0
    %560 = vmatprep.subr.mxu0 0.0
    %561 = vmatpush2.msra.mxu0 0.0
    %562 = vmatprep.subr.mxu0 0.0
    %563 = vmatpush2.msra.mxu0 0.0
    %564 = vmatprep.mubr.f32.mxu0 0.0
    %565 = vmatmul.mubr.f32.gmra.mxu0 %v428
    %v566 = vpop.f32.mrf.mxu0
    %v567 = vadd.f32 0.0, %v566
    %v568 = vpop.f32.mrf.mxu0
    %v569 = vadd.f32 0.0, %v568
    %570 = vdwg.mxu0
    %571 = vmatprep.subr.mxu0 %v499
    %572 = vmatpush1.msra.mxu0 %v498
    %573 = vmatprep.subr.mxu0 %v495
    %574 = vmatpush1.msra.mxu0 %v494
    %575 = vmatprep.subr.mxu0 %v491
    %576 = vmatpush1.msra.mxu0 %v490
    %577 = vmatprep.subr.mxu0 %v487
    %578 = vmatpush1.msra.mxu0 %v486
    %579 = vmatprep.subr.mxu0 %v483
    %580 = vmatpush1.msra.mxu0 %v482
    %581 = vmatprep.subr.mxu0 %v479
    %582 = vmatpush1.msra.mxu0 %v478
    %583 = vmatprep.subr.mxu0 %v475
    %584 = vmatpush1.msra.mxu0 %v474
    %585 = vmatprep.subr.mxu0 %v471
    %586 = vmatpush1.msra.mxu0 %v470
    %587 = vmatprep.subr.mxu0 %v467
    %588 = vmatpush1.msra.mxu0 %v466
    %589 = vmatprep.subr.mxu0 %v463
    %590 = vmatpush1.msra.mxu0 %v462
    %591 = vmatprep.subr.mxu0 %v459
    %592 = vmatpush1.msra.mxu0 %v458
    %593 = vmatprep.subr.mxu0 %v455
    %594 = vmatpush1.msra.mxu0 %v454
    %595 = vmatprep.subr.mxu0 %v451
    %596 = vmatpush1.msra.mxu0 %v450
    %597 = vmatprep.subr.mxu0 %v447
    %598 = vmatpush1.msra.mxu0 %v446
    %599 = vmatprep.subr.mxu0 %v443
    %600 = vmatpush1.msra.mxu0 %v442
    %601 = vmatprep.subr.mxu0 %v439
    %602 = vmatpush1.msra.mxu0 %v438
    %603 = vmatprep.subr.mxu0 0.0
    %604 = vmatpush2.msra.mxu0 0.0
    %605 = vmatprep.subr.mxu0 0.0
    %606 = vmatpush2.msra.mxu0 0.0
    %607 = vmatprep.subr.mxu0 0.0
    %608 = vmatpush2.msra.mxu0 0.0
    %609 = vmatprep.subr.mxu0 0.0
    %610 = vmatpush2.msra.mxu0 0.0
    %611 = vmatprep.subr.mxu0 0.0
    %612 = vmatpush2.msra.mxu0 0.0
    %613 = vmatprep.subr.mxu0 0.0
    %614 = vmatpush2.msra.mxu0 0.0
    %615 = vmatprep.subr.mxu0 0.0
    %616 = vmatpush2.msra.mxu0 0.0
    %617 = vmatprep.subr.mxu0 0.0
    %618 = vmatpush2.msra.mxu0 0.0
    %619 = vmatprep.subr.mxu0 0.0
    %620 = vmatpush2.msra.mxu0 0.0
    %621 = vmatprep.subr.mxu0 0.0
    %622 = vmatpush2.msra.mxu0 0.0
    %623 = vmatprep.subr.mxu0 0.0
    %624 = vmatpush2.msra.mxu0 0.0
    %625 = vmatprep.subr.mxu0 0.0
    %626 = vmatpush2.msra.mxu0 0.0
    %627 = vmatprep.subr.mxu0 0.0
    %628 = vmatpush2.msra.mxu0 0.0
    %629 = vmatprep.subr.mxu0 0.0
    %630 = vmatpush2.msra.mxu0 0.0
    %631 = vmatprep.subr.mxu0 0.0
    %632 = vmatpush2.msra.mxu0 0.0
    %633 = vmatprep.subr.mxu0 0.0
    %634 = vmatpush2.msra.mxu0 0.0
    %635 = vmatprep.mubr.f32.mxu0 0.0
    %636 = vmatmul.mubr.f32.gmra.mxu0 %v428
    %v637 = vpop.f32.mrf.mxu0
    %v638 = vadd.f32 0.0, %v637
    %v639 = vpop.f32.mrf.mxu0
    %v640 = vadd.f32 0.0, %v639
    %641 = vdwg.mxu0
    %v642 = vadd.f32 %v432, %v567
    %v643 = vadd.f32 %v433, %v569
    %v644 = vadd.f32 %v434, %v638
    %v645 = vadd.f32 %v435, %v640
    %v646 = vmul.f32 %v642, 0.5
    %v647 = vtanh.pop %v646
    %v648 = vmul.f32 %v647, 0.5
    %v649 = vadd.f32 %v648, 0.5
    %v650 = vmul.f32 %v643, 0.5
    %v651 = vtanh.pop %v650
    %v652 = vmul.f32 %v651, 0.5
    %v653 = vadd.f32 %v652, 0.5
    %v654 = vtanh.pop %v644
    %v655 = vmul.f32 %v645, 0.5
    %v656 = vtanh.pop %v655
    %v657 = vmul.f32 %v656, 0.5
    %v658 = vadd.f32 %v657, 0.5
    %v659 = vmul.f32 %v653, %v429
    %v660 = vmul.f32 %v649, %v654
    %v661 = vadd.f32 %v659, %v660
    %v662 = vtanh.pop %v661
    %v663 = vmul.f32 %v658, %v662
    %v664 = vsel %vm431, 1, 0
    %665 = vset.pattern.permute.xlu0 0
    %666 = vperm.xlu0 %665, %v664
    %v667 = vpop.permute.xlu0 %666
    %vm668 = vcmp.eq.s32.totalorder %v667, 1
    %v669 = vsel %vm668, %v663, 0.0
    %670 = vst [vmem:[#allocation9] sm:$0xff] %v669
    %v671 = vsel %vm668, %v663, %v428
    %v672 = vsel %vm668, %v661, %v429
    %s673 = sadd.s32 %s75, 1
    %v674 = vstv %s673
    %vm675 = vcmp.lt.s32.totalorder %v674, %v74
    %s676 = scalar_lea.vmem [#allocation2], 32
    %v677 = vld [vmem:[%s676] sm:$0xff]
    %v678 = vld [vmem:[%s676 + $0x8] sm:$0xff]
    %v679 = vld [vmem:[%s676 + $0x10] sm:$0xff]
    %v680 = vld [vmem:[%s676 + $0x18] sm:$0xff]
    %v681 = vld [vmem:[#allocation8] sm:$0xff]
    %v682 = vld [vmem:[#allocation8 + $0x8] sm:$0xff]
    %v683 = vld [vmem:[#allocation8 + $0x10] sm:$0xff]
    %v684 = vld [vmem:[#allocation8 + $0x18] sm:$0xff]
    %v685 = vld [vmem:[#allocation8 + $0x20] sm:$0xff]
    %v686 = vld [vmem:[#allocation8 + $0x28] sm:$0xff]
    %v687 = vld [vmem:[#allocation8 + $0x30] sm:$0xff]
    %v688 = vld [vmem:[#allocation8 + $0x38] sm:$0xff]
    %v689 = vld [vmem:[#allocation8 + $0x40] sm:$0xff]
    %v690 = vld [vmem:[#allocation8 + $0x48] sm:$0xff]
    %v691 = vld [vmem:[#allocation8 + $0x50] sm:$0xff]
    %v692 = vld [vmem:[#allocation8 + $0x58] sm:$0xff]
    %v693 = vld [vmem:[#allocation8 + $0x60] sm:$0xff]
    %v694 = vld [vmem:[#allocation8 + $0x68] sm:$0xff]
    %v695 = vld [vmem:[#allocation8 + $0x70] sm:$0xff]
    %v696 = vld [vmem:[#allocation8 + $0x78] sm:$0xff]
    %v697 = vld [vmem:[#allocation8 + $0x80] sm:$0xff]
    %v698 = vld [vmem:[#allocation8 + $0x88] sm:$0xff]
    %v699 = vld [vmem:[#allocation8 + $0x90] sm:$0xff]
    %v700 = vld [vmem:[#allocation8 + $0x98] sm:$0xff]
    %v701 = vld [vmem:[#allocation8 + $0xa0] sm:$0xff]
    %v702 = vld [vmem:[#allocation8 + $0xa8] sm:$0xff]
    %v703 = vld [vmem:[#allocation8 + $0xb0] sm:$0xff]
    %v704 = vld [vmem:[#allocation8 + $0xb8] sm:$0xff]
    %v705 = vld [vmem:[#allocation8 + $0xc0] sm:$0xff]
    %v706 = vld [vmem:[#allocation8 + $0xc8] sm:$0xff]
    %v707 = vld [vmem:[#allocation8 + $0xd0] sm:$0xff]
    %v708 = vld [vmem:[#allocation8 + $0xd8] sm:$0xff]
    %v709 = vld [vmem:[#allocation8 + $0xe0] sm:$0xff]
    %v710 = vld [vmem:[#allocation8 + $0xe8] sm:$0xff]
    %v711 = vld [vmem:[#allocation8 + $0xf0] sm:$0xff]
    %v712 = vld [vmem:[#allocation8 + $0xf8] sm:$0xff]
    %v713 = vld [vmem:[#allocation8 + $0x100] sm:$0xff]
    %v714 = vld [vmem:[#allocation8 + $0x108] sm:$0xff]
    %v715 = vld [vmem:[#allocation8 + $0x110] sm:$0xff]
    %v716 = vld [vmem:[#allocation8 + $0x118] sm:$0xff]
    %v717 = vld [vmem:[#allocation8 + $0x120] sm:$0xff]
    %v718 = vld [vmem:[#allocation8 + $0x128] sm:$0xff]
    %v719 = vld [vmem:[#allocation8 + $0x130] sm:$0xff]
    %v720 = vld [vmem:[#allocation8 + $0x138] sm:$0xff]
    %v721 = vld [vmem:[#allocation8 + $0x140] sm:$0xff]
    %v722 = vld [vmem:[#allocation8 + $0x148] sm:$0xff]
    %v723 = vld [vmem:[#allocation8 + $0x150] sm:$0xff]
    %v724 = vld [vmem:[#allocation8 + $0x158] sm:$0xff]
    %v725 = vld [vmem:[#allocation8 + $0x160] sm:$0xff]
    %v726 = vld [vmem:[#allocation8 + $0x168] sm:$0xff]
    %v727 = vld [vmem:[#allocation8 + $0x170] sm:$0xff]
    %v728 = vld [vmem:[#allocation8 + $0x178] sm:$0xff]
    %v729 = vld [vmem:[#allocation8 + $0x180] sm:$0xff]
    %v730 = vld [vmem:[#allocation8 + $0x188] sm:$0xff]
    %v731 = vld [vmem:[#allocation8 + $0x190] sm:$0xff]
    %v732 = vld [vmem:[#allocation8 + $0x198] sm:$0xff]
    %v733 = vld [vmem:[#allocation8 + $0x1a0] sm:$0xff]
    %v734 = vld [vmem:[#allocation8 + $0x1a8] sm:$0xff]
    %v735 = vld [vmem:[#allocation8 + $0x1b0] sm:$0xff]
    %v736 = vld [vmem:[#allocation8 + $0x1b8] sm:$0xff]
    %v737 = vld [vmem:[#allocation8 + $0x1c0] sm:$0xff]
    %v738 = vld [vmem:[#allocation8 + $0x1c8] sm:$0xff]
    %v739 = vld [vmem:[#allocation8 + $0x1d0] sm:$0xff]
    %v740 = vld [vmem:[#allocation8 + $0x1d8] sm:$0xff]
    %v741 = vld [vmem:[#allocation8 + $0x1e0] sm:$0xff]
    %v742 = vld [vmem:[#allocation8 + $0x1e8] sm:$0xff]
    %v743 = vld [vmem:[#allocation8 + $0x1f0] sm:$0xff]
    %v744 = vld [vmem:[#allocation8 + $0x1f8] sm:$0xff]
    %745 = vmatprep.subr.mxu0 %v742
    %746 = vmatpush1.msra.mxu0 %v741
    %747 = vmatprep.subr.mxu0 %v738
    %748 = vmatpush1.msra.mxu0 %v737
    %749 = vmatprep.subr.mxu0 %v734
    %750 = vmatpush1.msra.mxu0 %v733
    %751 = vmatprep.subr.mxu0 %v730
    %752 = vmatpush1.msra.mxu0 %v729
    %753 = vmatprep.subr.mxu0 %v726
    %754 = vmatpush1.msra.mxu0 %v725
    %755 = vmatprep.subr.mxu0 %v722
    %756 = vmatpush1.msra.mxu0 %v721
    %757 = vmatprep.subr.mxu0 %v718
    %758 = vmatpush1.msra.mxu0 %v717
    %759 = vmatprep.subr.mxu0 %v714
    %760 = vmatpush1.msra.mxu0 %v713
    %761 = vmatprep.subr.mxu0 %v710
    %762 = vmatpush1.msra.mxu0 %v709
    %763 = vmatprep.subr.mxu0 %v706
    %764 = vmatpush1.msra.mxu0 %v705
    %765 = vmatprep.subr.mxu0 %v702
    %766 = vmatpush1.msra.mxu0 %v701
    %767 = vmatprep.subr.mxu0 %v698
    %768 = vmatpush1.msra.mxu0 %v697
    %769 = vmatprep.subr.mxu0 %v694
    %770 = vmatpush1.msra.mxu0 %v693
    %771 = vmatprep.subr.mxu0 %v690
    %772 = vmatpush1.msra.mxu0 %v689
    %773 = vmatprep.subr.mxu0 %v686
    %774 = vmatpush1.msra.mxu0 %v685
    %775 = vmatprep.subr.mxu0 %v682
    %776 = vmatpush1.msra.mxu0 %v681
    %777 = vmatprep.subr.mxu0 0.0
    %778 = vmatpush2.msra.mxu0 0.0
    %779 = vmatprep.subr.mxu0 0.0
    %780 = vmatpush2.msra.mxu0 0.0
    %781 = vmatprep.subr.mxu0 0.0
    %782 = vmatpush2.msra.mxu0 0.0
    %783 = vmatprep.subr.mxu0 0.0
    %784 = vmatpush2.msra.mxu0 0.0
    %785 = vmatprep.subr.mxu0 0.0
    %786 = vmatpush2.msra.mxu0 0.0
    %787 = vmatprep.subr.mxu0 0.0
    %788 = vmatpush2.msra.mxu0 0.0
    %789 = vmatprep.subr.mxu0 0.0
    %790 = vmatpush2.msra.mxu0 0.0
    %791 = vmatprep.subr.mxu0 0.0
    %792 = vmatpush2.msra.mxu0 0.0
    %793 = vmatprep.subr.mxu0 0.0
    %794 = vmatpush2.msra.mxu0 0.0
    %795 = vmatprep.subr.mxu0 0.0
    %796 = vmatpush2.msra.mxu0 0.0
    %797 = vmatprep.subr.mxu0 0.0
    %798 = vmatpush2.msra.mxu0 0.0
    %799 = vmatprep.subr.mxu0 0.0
    %800 = vmatpush2.msra.mxu0 0.0
    %801 = vmatprep.subr.mxu0 0.0
    %802 = vmatpush2.msra.mxu0 0.0
    %803 = vmatprep.subr.mxu0 0.0
    %804 = vmatpush2.msra.mxu0 0.0
    %805 = vmatprep.subr.mxu0 0.0
    %806 = vmatpush2.msra.mxu0 0.0
    %807 = vmatprep.subr.mxu0 0.0
    %808 = vmatpush2.msra.mxu0 0.0
    %809 = vmatprep.mubr.f32.mxu0 0.0
    %810 = vmatmul.mubr.f32.gmra.mxu0 %v671
    %v811 = vpop.f32.mrf.mxu0
    %v812 = vadd.f32 0.0, %v811
    %v813 = vpop.f32.mrf.mxu0
    %v814 = vadd.f32 0.0, %v813
    %815 = vdwg.mxu0
    %816 = vmatprep.subr.mxu0 %v744
    %817 = vmatpush1.msra.mxu0 %v743
    %818 = vmatprep.subr.mxu0 %v740
    %819 = vmatpush1.msra.mxu0 %v739
    %820 = vmatprep.subr.mxu0 %v736
    %821 = vmatpush1.msra.mxu0 %v735
    %822 = vmatprep.subr.mxu0 %v732
    %823 = vmatpush1.msra.mxu0 %v731
    %824 = vmatprep.subr.mxu0 %v728
    %825 = vmatpush1.msra.mxu0 %v727
    %826 = vmatprep.subr.mxu0 %v724
    %827 = vmatpush1.msra.mxu0 %v723
    %828 = vmatprep.subr.mxu0 %v720
    %829 = vmatpush1.msra.mxu0 %v719
    %830 = vmatprep.subr.mxu0 %v716
    %831 = vmatpush1.msra.mxu0 %v715
    %832 = vmatprep.subr.mxu0 %v712
    %833 = vmatpush1.msra.mxu0 %v711
    %834 = vmatprep.subr.mxu0 %v708
    %835 = vmatpush1.msra.mxu0 %v707
    %836 = vmatprep.subr.mxu0 %v704
    %837 = vmatpush1.msra.mxu0 %v703
    %838 = vmatprep.subr.mxu0 %v700
    %839 = vmatpush1.msra.mxu0 %v699
    %840 = vmatprep.subr.mxu0 %v696
    %841 = vmatpush1.msra.mxu0 %v695
    %842 = vmatprep.subr.mxu0 %v692
    %843 = vmatpush1.msra.mxu0 %v691
    %844 = vmatprep.subr.mxu0 %v688
    %845 = vmatpush1.msra.mxu0 %v687
    %846 = vmatprep.subr.mxu0 %v684
    %847 = vmatpush1.msra.mxu0 %v683
    %848 = vmatprep.subr.mxu0 0.0
    %849 = vmatpush2.msra.mxu0 0.0
    %850 = vmatprep.subr.mxu0 0.0
    %851 = vmatpush2.msra.mxu0 0.0
    %852 = vmatprep.subr.mxu0 0.0
    %853 = vmatpush2.msra.mxu0 0.0
    %854 = vmatprep.subr.mxu0 0.0
    %855 = vmatpush2.msra.mxu0 0.0
    %856 = vmatprep.subr.mxu0 0.0
    %857 = vmatpush2.msra.mxu0 0.0
    %858 = vmatprep.subr.mxu0 0.0
    %859 = vmatpush2.msra.mxu0 0.0
    %860 = vmatprep.subr.mxu0 0.0
    %861 = vmatpush2.msra.mxu0 0.0
    %862 = vmatprep.subr.mxu0 0.0
    %863 = vmatpush2.msra.mxu0 0.0
    %864 = vmatprep.subr.mxu0 0.0
    %865 = vmatpush2.msra.mxu0 0.0
    %866 = vmatprep.subr.mxu0 0.0
    %867 = vmatpush2.msra.mxu0 0.0
    %868 = vmatprep.subr.mxu0 0.0
    %869 = vmatpush2.msra.mxu0 0.0
    %870 = vmatprep.subr.mxu0 0.0
    %871 = vmatpush2.msra.mxu0 0.0
    %872 = vmatprep.subr.mxu0 0.0
    %873 = vmatpush2.msra.mxu0 0.0
    %874 = vmatprep.subr.mxu0 0.0
    %875 = vmatpush2.msra.mxu0 0.0
    %876 = vmatprep.subr.mxu0 0.0
    %877 = vmatpush2.msra.mxu0 0.0
    %878 = vmatprep.subr.mxu0 0.0
    %879 = vmatpush2.msra.mxu0 0.0
    %880 = vmatprep.mubr.f32.mxu0 0.0
    %881 = vmatmul.mubr.f32.gmra.mxu0 %v671
    %v882 = vpop.f32.mrf.mxu0
    %v883 = vadd.f32 0.0, %v882
    %v884 = vpop.f32.mrf.mxu0
    %v885 = vadd.f32 0.0, %v884
    %886 = vdwg.mxu0
    %v887 = vadd.f32 %v677, %v812
    %v888 = vadd.f32 %v678, %v814
    %v889 = vadd.f32 %v679, %v883
    %v890 = vadd.f32 %v680, %v885
    %v891 = vmul.f32 %v887, 0.5
    %v892 = vtanh.pop %v891
    %v893 = vmul.f32 %v892, 0.5
    %v894 = vadd.f32 %v893, 0.5
    %v895 = vmul.f32 %v888, 0.5
    %v896 = vtanh.pop %v895
    %v897 = vmul.f32 %v896, 0.5
    %v898 = vadd.f32 %v897, 0.5
    %v899 = vtanh.pop %v889
    %v900 = vmul.f32 %v890, 0.5
    %v901 = vtanh.pop %v900
    %v902 = vmul.f32 %v901, 0.5
    %v903 = vadd.f32 %v902, 0.5
    %v904 = vmul.f32 %v898, %v672
    %v905 = vmul.f32 %v894, %v899
    %v906 = vadd.f32 %v904, %v905
    %v907 = vtanh.pop %v906
    %v908 = vmul.f32 %v903, %v907
    %v909 = vsel %vm675, 1, 0
    %910 = vset.pattern.permute.xlu0 0
    %911 = vperm.xlu0 %910, %v909
    %v912 = vpop.permute.xlu0 %911
    %vm913 = vcmp.eq.s32.totalorder %v912, 1
    %v914 = vsel %vm913, %v908, 0.0
    %s915 = scalar_lea.vmem [#allocation9], 8
    %916 = vst [vmem:[%s915] sm:$0xff] %v914
    %v917 = vsel %vm913, %v908, %v671
    %v918 = vsel %vm913, %v906, %v672
    %s919 = sadd.s32 %s75, 2
    %v920 = vstv %s919
    %vm921 = vcmp.lt.s32.totalorder %v920, %v74
    %s922 = scalar_lea.vmem [#allocation2], 64
    %v923 = vld [vmem:[%s922] sm:$0xff]
    %v924 = vld [vmem:[%s922 + $0x8] sm:$0xff]
    %v925 = vld [vmem:[%s922 + $0x10] sm:$0xff]
    %v926 = vld [vmem:[%s922 + $0x18] sm:$0xff]
    %v927 = vld [vmem:[#allocation8] sm:$0xff]
    %v928 = vld [vmem:[#allocation8 + $0x8] sm:$0xff]
    %v929 = vld [vmem:[#allocation8 + $0x10] sm:$0xff]
    %v930 = vld [vmem:[#allocation8 + $0x18] sm:$0xff]
    %v931 = vld [vmem:[#allocation8 + $0x20] sm:$0xff]
    %v932 = vld [vmem:[#allocation8 + $0x28] sm:$0xff]
    %v933 = vld [vmem:[#allocation8 + $0x30] sm:$0xff]
    %v934 = vld [vmem:[#allocation8 + $0x38] sm:$0xff]
    %v935 = vld [vmem:[#allocation8 + $0x40] sm:$0xff]
    %v936 = vld [vmem:[#allocation8 + $0x48] sm:$0xff]
    %v937 = vld [vmem:[#allocation8 + $0x50] sm:$0xff]
    %v938 = vld [vmem:[#allocation8 + $0x58] sm:$0xff]
    %v939 = vld [vmem:[#allocation8 + $0x60] sm:$0xff]
    %v940 = vld [vmem:[#allocation8 + $0x68] sm:$0xff]
    %v941 = vld [vmem:[#allocation8 + $0x70] sm:$0xff]
    %v942 = vld [vmem:[#allocation8 + $0x78] sm:$0xff]
    %v943 = vld [vmem:[#allocation8 + $0x80] sm:$0xff]
    %v944 = vld [vmem:[#allocation8 + $0x88] sm:$0xff]
    %v945 = vld [vmem:[#allocation8 + $0x90] sm:$0xff]
    %v946 = vld [vmem:[#allocation8 + $0x98] sm:$0xff]
    %v947 = vld [vmem:[#allocation8 + $0xa0] sm:$0xff]
    %v948 = vld [vmem:[#allocation8 + $0xa8] sm:$0xff]
    %v949 = vld [vmem:[#allocation8 + $0xb0] sm:$0xff]
    %v950 = vld [vmem:[#allocation8 + $0xb8] sm:$0xff]
    %v951 = vld [vmem:[#allocation8 + $0xc0] sm:$0xff]
    %v952 = vld [vmem:[#allocation8 + $0xc8] sm:$0xff]
    %v953 = vld [vmem:[#allocation8 + $0xd0] sm:$0xff]
    %v954 = vld [vmem:[#allocation8 + $0xd8] sm:$0xff]
    %v955 = vld [vmem:[#allocation8 + $0xe0] sm:$0xff]
    %v956 = vld [vmem:[#allocation8 + $0xe8] sm:$0xff]
    %v957 = vld [vmem:[#allocation8 + $0xf0] sm:$0xff]
    %v958 = vld [vmem:[#allocation8 + $0xf8] sm:$0xff]
    %v959 = vld [vmem:[#allocation8 + $0x100] sm:$0xff]
    %v960 = vld [vmem:[#allocation8 + $0x108] sm:$0xff]
    %v961 = vld [vmem:[#allocation8 + $0x110] sm:$0xff]
    %v962 = vld [vmem:[#allocation8 + $0x118] sm:$0xff]
    %v963 = vld [vmem:[#allocation8 + $0x120] sm:$0xff]
    %v964 = vld [vmem:[#allocation8 + $0x128] sm:$0xff]
    %v965 = vld [vmem:[#allocation8 + $0x130] sm:$0xff]
    %v966 = vld [vmem:[#allocation8 + $0x138] sm:$0xff]
    %v967 = vld [vmem:[#allocation8 + $0x140] sm:$0xff]
    %v968 = vld [vmem:[#allocation8 + $0x148] sm:$0xff]
    %v969 = vld [vmem:[#allocation8 + $0x150] sm:$0xff]
    %v970 = vld [vmem:[#allocation8 + $0x158] sm:$0xff]
    %v971 = vld [vmem:[#allocation8 + $0x160] sm:$0xff]
    %v972 = vld [vmem:[#allocation8 + $0x168] sm:$0xff]
    %v973 = vld [vmem:[#allocation8 + $0x170] sm:$0xff]
    %v974 = vld [vmem:[#allocation8 + $0x178] sm:$0xff]
    %v975 = vld [vmem:[#allocation8 + $0x180] sm:$0xff]
    %v976 = vld [vmem:[#allocation8 + $0x188] sm:$0xff]
    %v977 = vld [vmem:[#allocation8 + $0x190] sm:$0xff]
    %v978 = vld [vmem:[#allocation8 + $0x198] sm:$0xff]
    %v979 = vld [vmem:[#allocation8 + $0x1a0] sm:$0xff]
    %v980 = vld [vmem:[#allocation8 + $0x1a8] sm:$0xff]
    %v981 = vld [vmem:[#allocation8 + $0x1b0] sm:$0xff]
    %v982 = vld [vmem:[#allocation8 + $0x1b8] sm:$0xff]
    %v983 = vld [vmem:[#allocation8 + $0x1c0] sm:$0xff]
    %v984 = vld [vmem:[#allocation8 + $0x1c8] sm:$0xff]
    %v985 = vld [vmem:[#allocation8 + $0x1d0] sm:$0xff]
    %v986 = vld [vmem:[#allocation8 + $0x1d8] sm:$0xff]
    %v987 = vld [vmem:[#allocation8 + $0x1e0] sm:$0xff]
    %v988 = vld [vmem:[#allocation8 + $0x1e8] sm:$0xff]
    %v989 = vld [vmem:[#allocation8 + $0x1f0] sm:$0xff]
    %v990 = vld [vmem:[#allocation8 + $0x1f8] sm:$0xff]
    %991 = vmatprep.subr.mxu0 %v988
    %992 = vmatpush1.msra.mxu0 %v987
    %993 = vmatprep.subr.mxu0 %v984
    %994 = vmatpush1.msra.mxu0 %v983
    %995 = vmatprep.subr.mxu0 %v980
    %996 = vmatpush1.msra.mxu0 %v979
    %997 = vmatprep.subr.mxu0 %v976
    %998 = vmatpush1.msra.mxu0 %v975
    %999 = vmatprep.subr.mxu0 %v972
    %1000 = vmatpush1.msra.mxu0 %v971
    %1001 = vmatprep.subr.mxu0 %v968
    %1002 = vmatpush1.msra.mxu0 %v967
    %1003 = vmatprep.subr.mxu0 %v964
    %1004 = vmatpush1.msra.mxu0 %v963
    %1005 = vmatprep.subr.mxu0 %v960
    %1006 = vmatpush1.msra.mxu0 %v959
    %1007 = vmatprep.subr.mxu0 %v956
    %1008 = vmatpush1.msra.mxu0 %v955
    %1009 = vmatprep.subr.mxu0 %v952
    %1010 = vmatpush1.msra.mxu0 %v951
    %1011 = vmatprep.subr.mxu0 %v948
    %1012 = vmatpush1.msra.mxu0 %v947
    %1013 = vmatprep.subr.mxu0 %v944
    %1014 = vmatpush1.msra.mxu0 %v943
    %1015 = vmatprep.subr.mxu0 %v940
    %1016 = vmatpush1.msra.mxu0 %v939
    %1017 = vmatprep.subr.mxu0 %v936
    %1018 = vmatpush1.msra.mxu0 %v935
    %1019 = vmatprep.subr.mxu0 %v932
    %1020 = vmatpush1.msra.mxu0 %v931
    %1021 = vmatprep.subr.mxu0 %v928
    %1022 = vmatpush1.msra.mxu0 %v927
    %1023 = vmatprep.subr.mxu0 0.0
    %1024 = vmatpush2.msra.mxu0 0.0
    %1025 = vmatprep.subr.mxu0 0.0
    %1026 = vmatpush2.msra.mxu0 0.0
    %1027 = vmatprep.subr.mxu0 0.0
    %1028 = vmatpush2.msra.mxu0 0.0
    %1029 = vmatprep.subr.mxu0 0.0
    %1030 = vmatpush2.msra.mxu0 0.0
    %1031 = vmatprep.subr.mxu0 0.0
    %1032 = vmatpush2.msra.mxu0 0.0
    %1033 = vmatprep.subr.mxu0 0.0
    %1034 = vmatpush2.msra.mxu0 0.0
    %1035 = vmatprep.subr.mxu0 0.0
    %1036 = vmatpush2.msra.mxu0 0.0
    %1037 = vmatprep.subr.mxu0 0.0
    %1038 = vmatpush2.msra.mxu0 0.0
    %1039 = vmatprep.subr.mxu0 0.0
    %1040 = vmatpush2.msra.mxu0 0.0
    %1041 = vmatprep.subr.mxu0 0.0
    %1042 = vmatpush2.msra.mxu0 0.0
    %1043 = vmatprep.subr.mxu0 0.0
    %1044 = vmatpush2.msra.mxu0 0.0
    %1045 = vmatprep.subr.mxu0 0.0
    %1046 = vmatpush2.msra.mxu0 0.0
    %1047 = vmatprep.subr.mxu0 0.0
    %1048 = vmatpush2.msra.mxu0 0.0
    %1049 = vmatprep.subr.mxu0 0.0
    %1050 = vmatpush2.msra.mxu0 0.0
    %1051 = vmatprep.subr.mxu0 0.0
    %1052 = vmatpush2.msra.mxu0 0.0
    %1053 = vmatprep.subr.mxu0 0.0
    %1054 = vmatpush2.msra.mxu0 0.0
    %1055 = vmatprep.mubr.f32.mxu0 0.0
    %1056 = vmatmul.mubr.f32.gmra.mxu0 %v917
    %v1057 = vpop.f32.mrf.mxu0
    %v1058 = vadd.f32 0.0, %v1057
    %v1059 = vpop.f32.mrf.mxu0
    %v1060 = vadd.f32 0.0, %v1059
    %1061 = vdwg.mxu0
    %1062 = vmatprep.subr.mxu0 %v990
    %1063 = vmatpush1.msra.mxu0 %v989
    %1064 = vmatprep.subr.mxu0 %v986
    %1065 = vmatpush1.msra.mxu0 %v985
    %1066 = vmatprep.subr.mxu0 %v982
    %1067 = vmatpush1.msra.mxu0 %v981
    %1068 = vmatprep.subr.mxu0 %v978
    %1069 = vmatpush1.msra.mxu0 %v977
    %1070 = vmatprep.subr.mxu0 %v974
    %1071 = vmatpush1.msra.mxu0 %v973
    %1072 = vmatprep.subr.mxu0 %v970
    %1073 = vmatpush1.msra.mxu0 %v969
    %1074 = vmatprep.subr.mxu0 %v966
    %1075 = vmatpush1.msra.mxu0 %v965
    %1076 = vmatprep.subr.mxu0 %v962
    %1077 = vmatpush1.msra.mxu0 %v961
    %1078 = vmatprep.subr.mxu0 %v958
    %1079 = vmatpush1.msra.mxu0 %v957
    %1080 = vmatprep.subr.mxu0 %v954
    %1081 = vmatpush1.msra.mxu0 %v953
    %1082 = vmatprep.subr.mxu0 %v950
    %1083 = vmatpush1.msra.mxu0 %v949
    %1084 = vmatprep.subr.mxu0 %v946
    %1085 = vmatpush1.msra.mxu0 %v945
    %1086 = vmatprep.subr.mxu0 %v942
    %1087 = vmatpush1.msra.mxu0 %v941
    %1088 = vmatprep.subr.mxu0 %v938
    %1089 = vmatpush1.msra.mxu0 %v937
    %1090 = vmatprep.subr.mxu0 %v934
    %1091 = vmatpush1.msra.mxu0 %v933
    %1092 = vmatprep.subr.mxu0 %v930
    %1093 = vmatpush1.msra.mxu0 %v929
    %1094 = vmatprep.subr.mxu0 0.0
    %1095 = vmatpush2.msra.mxu0 0.0
    %1096 = vmatprep.subr.mxu0 0.0
    %1097 = vmatpush2.msra.mxu0 0.0
    %1098 = vmatprep.subr.mxu0 0.0
    %1099 = vmatpush2.msra.mxu0 0.0
    %1100 = vmatprep.subr.mxu0 0.0
    %1101 = vmatpush2.msra.mxu0 0.0
    %1102 = vmatprep.subr.mxu0 0.0
    %1103 = vmatpush2.msra.mxu0 0.0
    %1104 = vmatprep.subr.mxu0 0.0
    %1105 = vmatpush2.msra.mxu0 0.0
    %1106 = vmatprep.subr.mxu0 0.0
    %1107 = vmatpush2.msra.mxu0 0.0
    %1108 = vmatprep.subr.mxu0 0.0
    %1109 = vmatpush2.msra.mxu0 0.0
    %1110 = vmatprep.subr.mxu0 0.0
    %1111 = vmatpush2.msra.mxu0 0.0
    %1112 = vmatprep.subr.mxu0 0.0
    %1113 = vmatpush2.msra.mxu0 0.0
    %1114 = vmatprep.subr.mxu0 0.0
    %1115 = vmatpush2.msra.mxu0 0.0
    %1116 = vmatprep.subr.mxu0 0.0
    %1117 = vmatpush2.msra.mxu0 0.0
    %1118 = vmatprep.subr.mxu0 0.0
    %1119 = vmatpush2.msra.mxu0 0.0
    %1120 = vmatprep.subr.mxu0 0.0
    %1121 = vmatpush2.msra.mxu0 0.0
    %1122 = vmatprep.subr.mxu0 0.0
    %1123 = vmatpush2.msra.mxu0 0.0
    %1124 = vmatprep.subr.mxu0 0.0
    %1125 = vmatpush2.msra.mxu0 0.0
    %1126 = vmatprep.mubr.f32.mxu0 0.0
    %1127 = vmatmul.mubr.f32.gmra.mxu0 %v917
    %v1128 = vpop.f32.mrf.mxu0
    %v1129 = vadd.f32 0.0, %v1128
    %v1130 = vpop.f32.mrf.mxu0
    %v1131 = vadd.f32 0.0, %v1130
    %1132 = vdwg.mxu0
    %v1133 = vadd.f32 %v923, %v1058
    %v1134 = vadd.f32 %v924, %v1060
    %v1135 = vadd.f32 %v925, %v1129
    %v1136 = vadd.f32 %v926, %v1131
    %v1137 = vmul.f32 %v1133, 0.5
    %v1138 = vtanh.pop %v1137
    %v1139 = vmul.f32 %v1138, 0.5
    %v1140 = vadd.f32 %v1139, 0.5
    %v1141 = vmul.f32 %v1134, 0.5
    %v1142 = vtanh.pop %v1141
    %v1143 = vmul.f32 %v1142, 0.5
    %v1144 = vadd.f32 %v1143, 0.5
    %v1145 = vtanh.pop %v1135
    %v1146 = vmul.f32 %v1136, 0.5
    %v1147 = vtanh.pop %v1146
    %v1148 = vmul.f32 %v1147, 0.5
    %v1149 = vadd.f32 %v1148, 0.5
    %v1150 = vmul.f32 %v1144, %v918
    %v1151 = vmul.f32 %v1140, %v1145
    %v1152 = vadd.f32 %v1150, %v1151
    %v1153 = vtanh.pop %v1152
    %v1154 = vmul.f32 %v1149, %v1153
    %v1155 = vsel %vm921, 1, 0
    %1156 = vset.pattern.permute.xlu0 0
    %1157 = vperm.xlu0 %1156, %v1155
    %v1158 = vpop.permute.xlu0 %1157
    %vm1159 = vcmp.eq.s32.totalorder %v1158, 1
    %v1160 = vsel %vm1159, %v1154, 0.0
    %s1161 = scalar_lea.vmem [#allocation9], 16
    %1162 = vst [vmem:[%s1161] sm:$0xff] %v1160
    %v1163 = vsel %vm1159, %v1154, %v917
    %v1164 = vsel %vm1159, %v1152, %v918
    %s1165 = sadd.s32 %s75, 3
    %v1166 = vstv %s1165
    %vm1167 = vcmp.lt.s32.totalorder %v1166, %v74
    %s1168 = scalar_lea.vmem [#allocation2], 96
    %v1169 = vld [vmem:[%s1168] sm:$0xff]
    %v1170 = vld [vmem:[%s1168 + $0x8] sm:$0xff]
    %v1171 = vld [vmem:[%s1168 + $0x10] sm:$0xff]
    %v1172 = vld [vmem:[%s1168 + $0x18] sm:$0xff]
    %v1173 = vld [vmem:[#allocation8] sm:$0xff]
    %v1174 = vld [vmem:[#allocation8 + $0x8] sm:$0xff]
    %v1175 = vld [vmem:[#allocation8 + $0x10] sm:$0xff]
    %v1176 = vld [vmem:[#allocation8 + $0x18] sm:$0xff]
    %v1177 = vld [vmem:[#allocation8 + $0x20] sm:$0xff]
    %v1178 = vld [vmem:[#allocation8 + $0x28] sm:$0xff]
    %v1179 = vld [vmem:[#allocation8 + $0x30] sm:$0xff]
    %v1180 = vld [vmem:[#allocation8 + $0x38] sm:$0xff]
    %v1181 = vld [vmem:[#allocation8 + $0x40] sm:$0xff]
    %v1182 = vld [vmem:[#allocation8 + $0x48] sm:$0xff]
    %v1183 = vld [vmem:[#allocation8 + $0x50] sm:$0xff]
    %v1184 = vld [vmem:[#allocation8 + $0x58] sm:$0xff]
    %v1185 = vld [vmem:[#allocation8 + $0x60] sm:$0xff]
    %v1186 = vld [vmem:[#allocation8 + $0x68] sm:$0xff]
    %v1187 = vld [vmem:[#allocation8 + $0x70] sm:$0xff]
    %v1188 = vld [vmem:[#allocation8 + $0x78] sm:$0xff]
    %v1189 = vld [vmem:[#allocation8 + $0x80] sm:$0xff]
    %v1190 = vld [vmem:[#allocation8 + $0x88] sm:$0xff]
    %v1191 = vld [vmem:[#allocation8 + $0x90] sm:$0xff]
    %v1192 = vld [vmem:[#allocation8 + $0x98] sm:$0xff]
    %v1193 = vld [vmem:[#allocation8 + $0xa0] sm:$0xff]
    %v1194 = vld [vmem:[#allocation8 + $0xa8] sm:$0xff]
    %v1195 = vld [vmem:[#allocation8 + $0xb0] sm:$0xff]
    %v1196 = vld [vmem:[#allocation8 + $0xb8] sm:$0xff]
    %v1197 = vld [vmem:[#allocation8 + $0xc0] sm:$0xff]
    %v1198 = vld [vmem:[#allocation8 + $0xc8] sm:$0xff]
    %v1199 = vld [vmem:[#allocation8 + $0xd0] sm:$0xff]
    %v1200 = vld [vmem:[#allocation8 + $0xd8] sm:$0xff]
    %v1201 = vld [vmem:[#allocation8 + $0xe0] sm:$0xff]
    %v1202 = vld [vmem:[#allocation8 + $0xe8] sm:$0xff]
    %v1203 = vld [vmem:[#allocation8 + $0xf0] sm:$0xff]
    %v1204 = vld [vmem:[#allocation8 + $0xf8] sm:$0xff]
    %v1205 = vld [vmem:[#allocation8 + $0x100] sm:$0xff]
    %v1206 = vld [vmem:[#allocation8 + $0x108] sm:$0xff]
    %v1207 = vld [vmem:[#allocation8 + $0x110] sm:$0xff]
    %v1208 = vld [vmem:[#allocation8 + $0x118] sm:$0xff]
    %v1209 = vld [vmem:[#allocation8 + $0x120] sm:$0xff]
    %v1210 = vld [vmem:[#allocation8 + $0x128] sm:$0xff]
    %v1211 = vld [vmem:[#allocation8 + $0x130] sm:$0xff]
    %v1212 = vld [vmem:[#allocation8 + $0x138] sm:$0xff]
    %v1213 = vld [vmem:[#allocation8 + $0x140] sm:$0xff]
    %v1214 = vld [vmem:[#allocation8 + $0x148] sm:$0xff]
    %v1215 = vld [vmem:[#allocation8 + $0x150] sm:$0xff]
    %v1216 = vld [vmem:[#allocation8 + $0x158] sm:$0xff]
    %v1217 = vld [vmem:[#allocation8 + $0x160] sm:$0xff]
    %v1218 = vld [vmem:[#allocation8 + $0x168] sm:$0xff]
    %v1219 = vld [vmem:[#allocation8 + $0x170] sm:$0xff]
    %v1220 = vld [vmem:[#allocation8 + $0x178] sm:$0xff]
    %v1221 = vld [vmem:[#allocation8 + $0x180] sm:$0xff]
    %v1222 = vld [vmem:[#allocation8 + $0x188] sm:$0xff]
    %v1223 = vld [vmem:[#allocation8 + $0x190] sm:$0xff]
    %v1224 = vld [vmem:[#allocation8 + $0x198] sm:$0xff]
    %v1225 = vld [vmem:[#allocation8 + $0x1a0] sm:$0xff]
    %v1226 = vld [vmem:[#allocation8 + $0x1a8] sm:$0xff]
    %v1227 = vld [vmem:[#allocation8 + $0x1b0] sm:$0xff]
    %v1228 = vld [vmem:[#allocation8 + $0x1b8] sm:$0xff]
    %v1229 = vld [vmem:[#allocation8 + $0x1c0] sm:$0xff]
    %v1230 = vld [vmem:[#allocation8 + $0x1c8] sm:$0xff]
    %v1231 = vld [vmem:[#allocation8 + $0x1d0] sm:$0xff]
    %v1232 = vld [vmem:[#allocation8 + $0x1d8] sm:$0xff]
    %v1233 = vld [vmem:[#allocation8 + $0x1e0] sm:$0xff]
    %v1234 = vld [vmem:[#allocation8 + $0x1e8] sm:$0xff]
    %v1235 = vld [vmem:[#allocation8 + $0x1f0] sm:$0xff]
    %v1236 = vld [vmem:[#allocation8 + $0x1f8] sm:$0xff]
    %1237 = vmatprep.subr.mxu0 %v1234
    %1238 = vmatpush1.msra.mxu0 %v1233
    %1239 = vmatprep.subr.mxu0 %v1230
    %1240 = vmatpush1.msra.mxu0 %v1229
    %1241 = vmatprep.subr.mxu0 %v1226
    %1242 = vmatpush1.msra.mxu0 %v1225
    %1243 = vmatprep.subr.mxu0 %v1222
    %1244 = vmatpush1.msra.mxu0 %v1221
    %1245 = vmatprep.subr.mxu0 %v1218
    %1246 = vmatpush1.msra.mxu0 %v1217
    %1247 = vmatprep.subr.mxu0 %v1214
    %1248 = vmatpush1.msra.mxu0 %v1213
    %1249 = vmatprep.subr.mxu0 %v1210
    %1250 = vmatpush1.msra.mxu0 %v1209
    %1251 = vmatprep.subr.mxu0 %v1206
    %1252 = vmatpush1.msra.mxu0 %v1205
    %1253 = vmatprep.subr.mxu0 %v1202
    %1254 = vmatpush1.msra.mxu0 %v1201
    %1255 = vmatprep.subr.mxu0 %v1198
    %1256 = vmatpush1.msra.mxu0 %v1197
    %1257 = vmatprep.subr.mxu0 %v1194
    %1258 = vmatpush1.msra.mxu0 %v1193
    %1259 = vmatprep.subr.mxu0 %v1190
    %1260 = vmatpush1.msra.mxu0 %v1189
    %1261 = vmatprep.subr.mxu0 %v1186
    %1262 = vmatpush1.msra.mxu0 %v1185
    %1263 = vmatprep.subr.mxu0 %v1182
    %1264 = vmatpush1.msra.mxu0 %v1181
    %1265 = vmatprep.subr.mxu0 %v1178
    %1266 = vmatpush1.msra.mxu0 %v1177
    %1267 = vmatprep.subr.mxu0 %v1174
    %1268 = vmatpush1.msra.mxu0 %v1173
    %1269 = vmatprep.subr.mxu0 0.0
    %1270 = vmatpush2.msra.mxu0 0.0
    %1271 = vmatprep.subr.mxu0 0.0
    %1272 = vmatpush2.msra.mxu0 0.0
    %1273 = vmatprep.subr.mxu0 0.0
    %1274 = vmatpush2.msra.mxu0 0.0
    %1275 = vmatprep.subr.mxu0 0.0
    %1276 = vmatpush2.msra.mxu0 0.0
    %1277 = vmatprep.subr.mxu0 0.0
    %1278 = vmatpush2.msra.mxu0 0.0
    %1279 = vmatprep.subr.mxu0 0.0
    %1280 = vmatpush2.msra.mxu0 0.0
    %1281 = vmatprep.subr.mxu0 0.0
    %1282 = vmatpush2.msra.mxu0 0.0
    %1283 = vmatprep.subr.mxu0 0.0
    %1284 = vmatpush2.msra.mxu0 0.0
    %1285 = vmatprep.subr.mxu0 0.0
    %1286 = vmatpush2.msra.mxu0 0.0
    %1287 = vmatprep.subr.mxu0 0.0
    %1288 = vmatpush2.msra.mxu0 0.0
    %1289 = vmatprep.subr.mxu0 0.0
    %1290 = vmatpush2.msra.mxu0 0.0
    %1291 = vmatprep.subr.mxu0 0.0
    %1292 = vmatpush2.msra.mxu0 0.0
    %1293 = vmatprep.subr.mxu0 0.0
    %1294 = vmatpush2.msra.mxu0 0.0
    %1295 = vmatprep.subr.mxu0 0.0
    %1296 = vmatpush2.msra.mxu0 0.0
    %1297 = vmatprep.subr.mxu0 0.0
    %1298 = vmatpush2.msra.mxu0 0.0
    %1299 = vmatprep.subr.mxu0 0.0
    %1300 = vmatpush2.msra.mxu0 0.0
    %1301 = vmatprep.mubr.f32.mxu0 0.0
    %1302 = vmatmul.mubr.f32.gmra.mxu0 %v1163
    %v1303 = vpop.f32.mrf.mxu0
    %v1304 = vadd.f32 0.0, %v1303
    %v1305 = vpop.f32.mrf.mxu0
    %v1306 = vadd.f32 0.0, %v1305
    %1307 = vdwg.mxu0
    %1308 = vmatprep.subr.mxu0 %v1236
    %1309 = vmatpush1.msra.mxu0 %v1235
    %1310 = vmatprep.subr.mxu0 %v1232
    %1311 = vmatpush1.msra.mxu0 %v1231
    %1312 = vmatprep.subr.mxu0 %v1228
    %1313 = vmatpush1.msra.mxu0 %v1227
    %1314 = vmatprep.subr.mxu0 %v1224
    %1315 = vmatpush1.msra.mxu0 %v1223
    %1316 = vmatprep.subr.mxu0 %v1220
    %1317 = vmatpush1.msra.mxu0 %v1219
    %1318 = vmatprep.subr.mxu0 %v1216
    %1319 = vmatpush1.msra.mxu0 %v1215
    %1320 = vmatprep.subr.mxu0 %v1212
    %1321 = vmatpush1.msra.mxu0 %v1211
    %1322 = vmatprep.subr.mxu0 %v1208
    %1323 = vmatpush1.msra.mxu0 %v1207
    %1324 = vmatprep.subr.mxu0 %v1204
    %1325 = vmatpush1.msra.mxu0 %v1203
    %1326 = vmatprep.subr.mxu0 %v1200
    %1327 = vmatpush1.msra.mxu0 %v1199
    %1328 = vmatprep.subr.mxu0 %v1196
    %1329 = vmatpush1.msra.mxu0 %v1195
    %1330 = vmatprep.subr.mxu0 %v1192
    %1331 = vmatpush1.msra.mxu0 %v1191
    %1332 = vmatprep.subr.mxu0 %v1188
    %1333 = vmatpush1.msra.mxu0 %v1187
    %1334 = vmatprep.subr.mxu0 %v1184
    %1335 = vmatpush1.msra.mxu0 %v1183
    %1336 = vmatprep.subr.mxu0 %v1180
    %1337 = vmatpush1.msra.mxu0 %v1179
    %1338 = vmatprep.subr.mxu0 %v1176
    %1339 = vmatpush1.msra.mxu0 %v1175
    %1340 = vmatprep.subr.mxu0 0.0
    %1341 = vmatpush2.msra.mxu0 0.0
    %1342 = vmatprep.subr.mxu0 0.0
    %1343 = vmatpush2.msra.mxu0 0.0
    %1344 = vmatprep.subr.mxu0 0.0
    %1345 = vmatpush2.msra.mxu0 0.0
    %1346 = vmatprep.subr.mxu0 0.0
    %1347 = vmatpush2.msra.mxu0 0.0
    %1348 = vmatprep.subr.mxu0 0.0
    %1349 = vmatpush2.msra.mxu0 0.0
    %1350 = vmatprep.subr.mxu0 0.0
    %1351 = vmatpush2.msra.mxu0 0.0
    %1352 = vmatprep.subr.mxu0 0.0
    %1353 = vmatpush2.msra.mxu0 0.0
    %1354 = vmatprep.subr.mxu0 0.0
    %1355 = vmatpush2.msra.mxu0 0.0
    %1356 = vmatprep.subr.mxu0 0.0
    %1357 = vmatpush2.msra.mxu0 0.0
    %1358 = vmatprep.subr.mxu0 0.0
    %1359 = vmatpush2.msra.mxu0 0.0
    %1360 = vmatprep.subr.mxu0 0.0
    %1361 = vmatpush2.msra.mxu0 0.0
    %1362 = vmatprep.subr.mxu0 0.0
    %1363 = vmatpush2.msra.mxu0 0.0
    %1364 = vmatprep.subr.mxu0 0.0
    %1365 = vmatpush2.msra.mxu0 0.0
    %1366 = vmatprep.subr.mxu0 0.0
    %1367 = vmatpush2.msra.mxu0 0.0
    %1368 = vmatprep.subr.mxu0 0.0
    %1369 = vmatpush2.msra.mxu0 0.0
    %1370 = vmatprep.subr.mxu0 0.0
    %1371 = vmatpush2.msra.mxu0 0.0
    %1372 = vmatprep.mubr.f32.mxu0 0.0
    %1373 = vmatmul.mubr.f32.gmra.mxu0 %v1163
    %v1374 = vpop.f32.mrf.mxu0
    %v1375 = vadd.f32 0.0, %v1374
    %v1376 = vpop.f32.mrf.mxu0
    %v1377 = vadd.f32 0.0, %v1376
    %1378 = vdwg.mxu0
    %v1379 = vadd.f32 %v1169, %v1304
    %v1380 = vadd.f32 %v1170, %v1306
    %v1381 = vadd.f32 %v1171, %v1375
    %v1382 = vadd.f32 %v1172, %v1377
    %v1383 = vmul.f32 %v1379, 0.5
    %v1384 = vtanh.pop %v1383
    %v1385 = vmul.f32 %v1384, 0.5
    %v1386 = vadd.f32 %v1385, 0.5
    %v1387 = vmul.f32 %v1380, 0.5
    %v1388 = vtanh.pop %v1387
    %v1389 = vmul.f32 %v1388, 0.5
    %v1390 = vadd.f32 %v1389, 0.5
    %v1391 = vtanh.pop %v1381
    %v1392 = vmul.f32 %v1382, 0.5
    %v1393 = vtanh.pop %v1392
    %v1394 = vmul.f32 %v1393, 0.5
    %v1395 = vadd.f32 %v1394, 0.5
    %v1396 = vmul.f32 %v1390, %v1164
    %v1397 = vmul.f32 %v1386, %v1391
    %v1398 = vadd.f32 %v1396, %v1397
    %v1399 = vtanh.pop %v1398
    %v1400 = vmul.f32 %v1395, %v1399
    %v1401 = vsel %vm1167, 1, 0
    %1402 = vset.pattern.permute.xlu0 0
    %1403 = vperm.xlu0 %1402, %v1401
    %v1404 = vpop.permute.xlu0 %1403
    %vm1405 = vcmp.eq.s32.totalorder %v1404, 1
    %v1406 = vsel %vm1405, %v1400, 0.0
    %s1407 = scalar_lea.vmem [#allocation9], 24
    %1408 = vst [vmem:[%s1407] sm:$0xff] %v1406
    %v1409 = vsel %vm1405, %v1400, %v1163
    %v1410 = vsel %vm1405, %v1398, %v1164
    %s1411 = sadd.s32 %s75, 4
    %v1412 = vstv %s1411
    %vm1413 = vcmp.lt.s32.totalorder %v1412, %v74
    %s1414 = scalar_lea.vmem [#allocation2], 128
    %v1415 = vld [vmem:[%s1414] sm:$0xff]
    %v1416 = vld [vmem:[%s1414 + $0x8] sm:$0xff]
    %v1417 = vld [vmem:[%s1414 + $0x10] sm:$0xff]
    %v1418 = vld [vmem:[%s1414 + $0x18] sm:$0xff]
    %v1419 = vld [vmem:[#allocation8] sm:$0xff]
    %v1420 = vld [vmem:[#allocation8 + $0x8] sm:$0xff]
    %v1421 = vld [vmem:[#allocation8 + $0x10] sm:$0xff]
    %v1422 = vld [vmem:[#allocation8 + $0x18] sm:$0xff]
    %v1423 = vld [vmem:[#allocation8 + $0x20] sm:$0xff]
    %v1424 = vld [vmem:[#allocation8 + $0x28] sm:$0xff]
    %v1425 = vld [vmem:[#allocation8 + $0x30] sm:$0xff]
    %v1426 = vld [vmem:[#allocation8 + $0x38] sm:$0xff]
    %v1427 = vld [vmem:[#allocation8 + $0x40] sm:$0xff]
    %v1428 = vld [vmem:[#allocation8 + $0x48] sm:$0xff]
    %v1429 = vld [vmem:[#allocation8 + $0x50] sm:$0xff]
    %v1430 = vld [vmem:[#allocation8 + $0x58] sm:$0xff]
    %v1431 = vld [vmem:[#allocation8 + $0x60] sm:$0xff]
    %v1432 = vld [vmem:[#allocation8 + $0x68] sm:$0xff]
    %v1433 = vld [vmem:[#allocation8 + $0x70] sm:$0xff]
    %v1434 = vld [vmem:[#allocation8 + $0x78] sm:$0xff]
    %v1435 = vld [vmem:[#allocation8 + $0x80] sm:$0xff]
    %v1436 = vld [vmem:[#allocation8 + $0x88] sm:$0xff]
    %v1437 = vld [vmem:[#allocation8 + $0x90] sm:$0xff]
    %v1438 = vld [vmem:[#allocation8 + $0x98] sm:$0xff]
    %v1439 = vld [vmem:[#allocation8 + $0xa0] sm:$0xff]
    %v1440 = vld [vmem:[#allocation8 + $0xa8] sm:$0xff]
    %v1441 = vld [vmem:[#allocation8 + $0xb0] sm:$0xff]
    %v1442 = vld [vmem:[#allocation8 + $0xb8] sm:$0xff]
    %v1443 = vld [vmem:[#allocation8 + $0xc0] sm:$0xff]
    %v1444 = vld [vmem:[#allocation8 + $0xc8] sm:$0xff]
    %v1445 = vld [vmem:[#allocation8 + $0xd0] sm:$0xff]
    %v1446 = vld [vmem:[#allocation8 + $0xd8] sm:$0xff]
    %v1447 = vld [vmem:[#allocation8 + $0xe0] sm:$0xff]
    %v1448 = vld [vmem:[#allocation8 + $0xe8] sm:$0xff]
    %v1449 = vld [vmem:[#allocation8 + $0xf0] sm:$0xff]
    %v1450 = vld [vmem:[#allocation8 + $0xf8] sm:$0xff]
    %v1451 = vld [vmem:[#allocation8 + $0x100] sm:$0xff]
    %v1452 = vld [vmem:[#allocation8 + $0x108] sm:$0xff]
    %v1453 = vld [vmem:[#allocation8 + $0x110] sm:$0xff]
    %v1454 = vld [vmem:[#allocation8 + $0x118] sm:$0xff]
    %v1455 = vld [vmem:[#allocation8 + $0x120] sm:$0xff]
    %v1456 = vld [vmem:[#allocation8 + $0x128] sm:$0xff]
    %v1457 = vld [vmem:[#allocation8 + $0x130] sm:$0xff]
    %v1458 = vld [vmem:[#allocation8 + $0x138] sm:$0xff]
    %v1459 = vld [vmem:[#allocation8 + $0x140] sm:$0xff]
    %v1460 = vld [vmem:[#allocation8 + $0x148] sm:$0xff]
    %v1461 = vld [vmem:[#allocation8 + $0x150] sm:$0xff]
    %v1462 = vld [vmem:[#allocation8 + $0x158] sm:$0xff]
    %v1463 = vld [vmem:[#allocation8 + $0x160] sm:$0xff]
    %v1464 = vld [vmem:[#allocation8 + $0x168] sm:$0xff]
    %v1465 = vld [vmem:[#allocation8 + $0x170] sm:$0xff]
    %v1466 = vld [vmem:[#allocation8 + $0x178] sm:$0xff]
    %v1467 = vld [vmem:[#allocation8 + $0x180] sm:$0xff]
    %v1468 = vld [vmem:[#allocation8 + $0x188] sm:$0xff]
    %v1469 = vld [vmem:[#allocation8 + $0x190] sm:$0xff]
    %v1470 = vld [vmem:[#allocation8 + $0x198] sm:$0xff]
    %v1471 = vld [vmem:[#allocation8 + $0x1a0] sm:$0xff]
    %v1472 = vld [vmem:[#allocation8 + $0x1a8] sm:$0xff]
    %v1473 = vld [vmem:[#allocation8 + $0x1b0] sm:$0xff]
    %v1474 = vld [vmem:[#allocation8 + $0x1b8] sm:$0xff]
    %v1475 = vld [vmem:[#allocation8 + $0x1c0] sm:$0xff]
    %v1476 = vld [vmem:[#allocation8 + $0x1c8] sm:$0xff]
    %v1477 = vld [vmem:[#allocation8 + $0x1d0] sm:$0xff]
    %v1478 = vld [vmem:[#allocation8 + $0x1d8] sm:$0xff]
    %v1479 = vld [vmem:[#allocation8 + $0x1e0] sm:$0xff]
    %v1480 = vld [vmem:[#allocation8 + $0x1e8] sm:$0xff]
    %v1481 = vld [vmem:[#allocation8 + $0x1f0] sm:$0xff]
    %v1482 = vld [vmem:[#allocation8 + $0x1f8] sm:$0xff]
    %1483 = vmatprep.subr.mxu0 %v1480
    %1484 = vmatpush1.msra.mxu0 %v1479
    %1485 = vmatprep.subr.mxu0 %v1476
    %1486 = vmatpush1.msra.mxu0 %v1475
    %1487 = vmatprep.subr.mxu0 %v1472
    %1488 = vmatpush1.msra.mxu0 %v1471
    %1489 = vmatprep.subr.mxu0 %v1468
    %1490 = vmatpush1.msra.mxu0 %v1467
    %1491 = vmatprep.subr.mxu0 %v1464
    %1492 = vmatpush1.msra.mxu0 %v1463
    %1493 = vmatprep.subr.mxu0 %v1460
    %1494 = vmatpush1.msra.mxu0 %v1459
    %1495 = vmatprep.subr.mxu0 %v1456
    %1496 = vmatpush1.msra.mxu0 %v1455
    %1497 = vmatprep.subr.mxu0 %v1452
    %1498 = vmatpush1.msra.mxu0 %v1451
    %1499 = vmatprep.subr.mxu0 %v1448
    %1500 = vmatpush1.msra.mxu0 %v1447
    %1501 = vmatprep.subr.mxu0 %v1444
    %1502 = vmatpush1.msra.mxu0 %v1443
    %1503 = vmatprep.subr.mxu0 %v1440
    %1504 = vmatpush1.msra.mxu0 %v1439
    %1505 = vmatprep.subr.mxu0 %v1436
    %1506 = vmatpush1.msra.mxu0 %v1435
    %1507 = vmatprep.subr.mxu0 %v1432
    %1508 = vmatpush1.msra.mxu0 %v1431
    %1509 = vmatprep.subr.mxu0 %v1428
    %1510 = vmatpush1.msra.mxu0 %v1427
    %1511 = vmatprep.subr.mxu0 %v1424
    %1512 = vmatpush1.msra.mxu0 %v1423
    %1513 = vmatprep.subr.mxu0 %v1420
    %1514 = vmatpush1.msra.mxu0 %v1419
    %1515 = vmatprep.subr.mxu0 0.0
    %1516 = vmatpush2.msra.mxu0 0.0
    %1517 = vmatprep.subr.mxu0 0.0
    %1518 = vmatpush2.msra.mxu0 0.0
    %1519 = vmatprep.subr.mxu0 0.0
    %1520 = vmatpush2.msra.mxu0 0.0
    %1521 = vmatprep.subr.mxu0 0.0
    %1522 = vmatpush2.msra.mxu0 0.0
    %1523 = vmatprep.subr.mxu0 0.0
    %1524 = vmatpush2.msra.mxu0 0.0
    %1525 = vmatprep.subr.mxu0 0.0
    %1526 = vmatpush2.msra.mxu0 0.0
    %1527 = vmatprep.subr.mxu0 0.0
    %1528 = vmatpush2.msra.mxu0 0.0
    %1529 = vmatprep.subr.mxu0 0.0
    %1530 = vmatpush2.msra.mxu0 0.0
    %1531 = vmatprep.subr.mxu0 0.0
    %1532 = vmatpush2.msra.mxu0 0.0
    %1533 = vmatprep.subr.mxu0 0.0
    %1534 = vmatpush2.msra.mxu0 0.0
    %1535 = vmatprep.subr.mxu0 0.0
    %1536 = vmatpush2.msra.mxu0 0.0
    %1537 = vmatprep.subr.mxu0 0.0
    %1538 = vmatpush2.msra.mxu0 0.0
    %1539 = vmatprep.subr.mxu0 0.0
    %1540 = vmatpush2.msra.mxu0 0.0
    %1541 = vmatprep.subr.mxu0 0.0
    %1542 = vmatpush2.msra.mxu0 0.0
    %1543 = vmatprep.subr.mxu0 0.0
    %1544 = vmatpush2.msra.mxu0 0.0
    %1545 = vmatprep.subr.mxu0 0.0
    %1546 = vmatpush2.msra.mxu0 0.0
    %1547 = vmatprep.mubr.f32.mxu0 0.0
    %1548 = vmatmul.mubr.f32.gmra.mxu0 %v1409
    %v1549 = vpop.f32.mrf.mxu0
    %v1550 = vadd.f32 0.0, %v1549
    %v1551 = vpop.f32.mrf.mxu0
    %v1552 = vadd.f32 0.0, %v1551
    %1553 = vdwg.mxu0
    %1554 = vmatprep.subr.mxu0 %v1482
    %1555 = vmatpush1.msra.mxu0 %v1481
    %1556 = vmatprep.subr.mxu0 %v1478
    %1557 = vmatpush1.msra.mxu0 %v1477
    %1558 = vmatprep.subr.mxu0 %v1474
    %1559 = vmatpush1.msra.mxu0 %v1473
    %1560 = vmatprep.subr.mxu0 %v1470
    %1561 = vmatpush1.msra.mxu0 %v1469
    %1562 = vmatprep.subr.mxu0 %v1466
    %1563 = vmatpush1.msra.mxu0 %v1465
    %1564 = vmatprep.subr.mxu0 %v1462
    %1565 = vmatpush1.msra.mxu0 %v1461
    %1566 = vmatprep.subr.mxu0 %v1458
    %1567 = vmatpush1.msra.mxu0 %v1457
    %1568 = vmatprep.subr.mxu0 %v1454
    %1569 = vmatpush1.msra.mxu0 %v1453
    %1570 = vmatprep.subr.mxu0 %v1450
    %1571 = vmatpush1.msra.mxu0 %v1449
    %1572 = vmatprep.subr.mxu0 %v1446
    %1573 = vmatpush1.msra.mxu0 %v1445
    %1574 = vmatprep.subr.mxu0 %v1442
    %1575 = vmatpush1.msra.mxu0 %v1441
    %1576 = vmatprep.subr.mxu0 %v1438
    %1577 = vmatpush1.msra.mxu0 %v1437
    %1578 = vmatprep.subr.mxu0 %v1434
    %1579 = vmatpush1.msra.mxu0 %v1433
    %1580 = vmatprep.subr.mxu0 %v1430
    %1581 = vmatpush1.msra.mxu0 %v1429
    %1582 = vmatprep.subr.mxu0 %v1426
    %1583 = vmatpush1.msra.mxu0 %v1425
    %1584 = vmatprep.subr.mxu0 %v1422
    %1585 = vmatpush1.msra.mxu0 %v1421
    %1586 = vmatprep.subr.mxu0 0.0
    %1587 = vmatpush2.msra.mxu0 0.0
    %1588 = vmatprep.subr.mxu0 0.0
    %1589 = vmatpush2.msra.mxu0 0.0
    %1590 = vmatprep.subr.mxu0 0.0
    %1591 = vmatpush2.msra.mxu0 0.0
    %1592 = vmatprep.subr.mxu0 0.0
    %1593 = vmatpush2.msra.mxu0 0.0
    %1594 = vmatprep.subr.mxu0 0.0
    %1595 = vmatpush2.msra.mxu0 0.0
    %1596 = vmatprep.subr.mxu0 0.0
    %1597 = vmatpush2.msra.mxu0 0.0
    %1598 = vmatprep.subr.mxu0 0.0
    %1599 = vmatpush2.msra.mxu0 0.0
    %1600 = vmatprep.subr.mxu0 0.0
    %1601 = vmatpush2.msra.mxu0 0.0
    %1602 = vmatprep.subr.mxu0 0.0
    %1603 = vmatpush2.msra.mxu0 0.0
    %1604 = vmatprep.subr.mxu0 0.0
    %1605 = vmatpush2.msra.mxu0 0.0
    %1606 = vmatprep.subr.mxu0 0.0
    %1607 = vmatpush2.msra.mxu0 0.0
    %1608 = vmatprep.subr.mxu0 0.0
    %1609 = vmatpush2.msra.mxu0 0.0
    %1610 = vmatprep.subr.mxu0 0.0
    %1611 = vmatpush2.msra.mxu0 0.0
    %1612 = vmatprep.subr.mxu0 0.0
    %1613 = vmatpush2.msra.mxu0 0.0
    %1614 = vmatprep.subr.mxu0 0.0
    %1615 = vmatpush2.msra.mxu0 0.0
    %1616 = vmatprep.subr.mxu0 0.0
    %1617 = vmatpush2.msra.mxu0 0.0
    %1618 = vmatprep.mubr.f32.mxu0 0.0
    %1619 = vmatmul.mubr.f32.gmra.mxu0 %v1409
    %v1620 = vpop.f32.mrf.mxu0
    %v1621 = vadd.f32 0.0, %v1620
    %v1622 = vpop.f32.mrf.mxu0
    %v1623 = vadd.f32 0.0, %v1622
    %1624 = vdwg.mxu0
    %v1625 = vadd.f32 %v1415, %v1550
    %v1626 = vadd.f32 %v1416, %v1552
    %v1627 = vadd.f32 %v1417, %v1621
    %v1628 = vadd.f32 %v1418, %v1623
    %v1629 = vmul.f32 %v1625, 0.5
    %v1630 = vtanh.pop %v1629
    %v1631 = vmul.f32 %v1630, 0.5
    %v1632 = vadd.f32 %v1631, 0.5
    %v1633 = vmul.f32 %v1626, 0.5
    %v1634 = vtanh.pop %v1633
    %v1635 = vmul.f32 %v1634, 0.5
    %v1636 = vadd.f32 %v1635, 0.5
    %v1637 = vtanh.pop %v1627
    %v1638 = vmul.f32 %v1628, 0.5
    %v1639 = vtanh.pop %v1638
    %v1640 = vmul.f32 %v1639, 0.5
    %v1641 = vadd.f32 %v1640, 0.5
    %v1642 = vmul.f32 %v1636, %v1410
    %v1643 = vmul.f32 %v1632, %v1637
    %v1644 = vadd.f32 %v1642, %v1643
    %v1645 = vtanh.pop %v1644
    %v1646 = vmul.f32 %v1641, %v1645
    %v1647 = vsel %vm1413, 1, 0
    %1648 = vset.pattern.permute.xlu0 0
    %1649 = vperm.xlu0 %1648, %v1647
    %v1650 = vpop.permute.xlu0 %1649
    %vm1651 = vcmp.eq.s32.totalorder %v1650, 1
    %v1652 = vsel %vm1651, %v1646, 0.0
    %s1653 = scalar_lea.vmem [#allocation9], 32
    %1654 = vst [vmem:[%s1653] sm:$0xff] %v1652
    %v1655 = vsel %vm1651, %v1646, %v1409
    %v1656 = vsel %vm1651, %v1644, %v1410
    %s1657 = sadd.s32 %s75, 5
    %v1658 = vstv %s1657
    %vm1659 = vcmp.lt.s32.totalorder %v1658, %v74
    %s1660 = scalar_lea.vmem [#allocation2], 160
    %v1661 = vld [vmem:[%s1660] sm:$0xff]
    %v1662 = vld [vmem:[%s1660 + $0x8] sm:$0xff]
    %v1663 = vld [vmem:[%s1660 + $0x10] sm:$0xff]
    %v1664 = vld [vmem:[%s1660 + $0x18] sm:$0xff]
    %v1665 = vld [vmem:[#allocation8] sm:$0xff]
    %v1666 = vld [vmem:[#allocation8 + $0x8] sm:$0xff]
    %v1667 = vld [vmem:[#allocation8 + $0x10] sm:$0xff]
    %v1668 = vld [vmem:[#allocation8 + $0x18] sm:$0xff]
    %v1669 = vld [vmem:[#allocation8 + $0x20] sm:$0xff]
    %v1670 = vld [vmem:[#allocation8 + $0x28] sm:$0xff]
    %v1671 = vld [vmem:[#allocation8 + $0x30] sm:$0xff]
    %v1672 = vld [vmem:[#allocation8 + $0x38] sm:$0xff]
    %v1673 = vld [vmem:[#allocation8 + $0x40] sm:$0xff]
    %v1674 = vld [vmem:[#allocation8 + $0x48] sm:$0xff]
    %v1675 = vld [vmem:[#allocation8 + $0x50] sm:$0xff]
    %v1676 = vld [vmem:[#allocation8 + $0x58] sm:$0xff]
    %v1677 = vld [vmem:[#allocation8 + $0x60] sm:$0xff]
    %v1678 = vld [vmem:[#allocation8 + $0x68] sm:$0xff]
    %v1679 = vld [vmem:[#allocation8 + $0x70] sm:$0xff]
    %v1680 = vld [vmem:[#allocation8 + $0x78] sm:$0xff]
    %v1681 = vld [vmem:[#allocation8 + $0x80] sm:$0xff]
    %v1682 = vld [vmem:[#allocation8 + $0x88] sm:$0xff]
    %v1683 = vld [vmem:[#allocation8 + $0x90] sm:$0xff]
    %v1684 = vld [vmem:[#allocation8 + $0x98] sm:$0xff]
    %v1685 = vld [vmem:[#allocation8 + $0xa0] sm:$0xff]
    %v1686 = vld [vmem:[#allocation8 + $0xa8] sm:$0xff]
    %v1687 = vld [vmem:[#allocation8 + $0xb0] sm:$0xff]
    %v1688 = vld [vmem:[#allocation8 + $0xb8] sm:$0xff]
    %v1689 = vld [vmem:[#allocation8 + $0xc0] sm:$0xff]
    %v1690 = vld [vmem:[#allocation8 + $0xc8] sm:$0xff]
    %v1691 = vld [vmem:[#allocation8 + $0xd0] sm:$0xff]
    %v1692 = vld [vmem:[#allocation8 + $0xd8] sm:$0xff]
    %v1693 = vld [vmem:[#allocation8 + $0xe0] sm:$0xff]
    %v1694 = vld [vmem:[#allocation8 + $0xe8] sm:$0xff]
    %v1695 = vld [vmem:[#allocation8 + $0xf0] sm:$0xff]
    %v1696 = vld [vmem:[#allocation8 + $0xf8] sm:$0xff]
    %v1697 = vld [vmem:[#allocation8 + $0x100] sm:$0xff]
    %v1698 = vld [vmem:[#allocation8 + $0x108] sm:$0xff]
    %v1699 = vld [vmem:[#allocation8 + $0x110] sm:$0xff]
    %v1700 = vld [vmem:[#allocation8 + $0x118] sm:$0xff]
    %v1701 = vld [vmem:[#allocation8 + $0x120] sm:$0xff]
    %v1702 = vld [vmem:[#allocation8 + $0x128] sm:$0xff]
    %v1703 = vld [vmem:[#allocation8 + $0x130] sm:$0xff]
    %v1704 = vld [vmem:[#allocation8 + $0x138] sm:$0xff]
    %v1705 = vld [vmem:[#allocation8 + $0x140] sm:$0xff]
    %v1706 = vld [vmem:[#allocation8 + $0x148] sm:$0xff]
    %v1707 = vld [vmem:[#allocation8 + $0x150] sm:$0xff]
    %v1708 = vld [vmem:[#allocation8 + $0x158] sm:$0xff]
    %v1709 = vld [vmem:[#allocation8 + $0x160] sm:$0xff]
    %v1710 = vld [vmem:[#allocation8 + $0x168] sm:$0xff]
    %v1711 = vld [vmem:[#allocation8 + $0x170] sm:$0xff]
    %v1712 = vld [vmem:[#allocation8 + $0x178] sm:$0xff]
    %v1713 = vld [vmem:[#allocation8 + $0x180] sm:$0xff]
    %v1714 = vld [vmem:[#allocation8 + $0x188] sm:$0xff]
    %v1715 = vld [vmem:[#allocation8 + $0x190] sm:$0xff]
    %v1716 = vld [vmem:[#allocation8 + $0x198] sm:$0xff]
    %v1717 = vld [vmem:[#allocation8 + $0x1a0] sm:$0xff]
    %v1718 = vld [vmem:[#allocation8 + $0x1a8] sm:$0xff]
    %v1719 = vld [vmem:[#allocation8 + $0x1b0] sm:$0xff]
    %v1720 = vld [vmem:[#allocation8 + $0x1b8] sm:$0xff]
    %v1721 = vld [vmem:[#allocation8 + $0x1c0] sm:$0xff]
    %v1722 = vld [vmem:[#allocation8 + $0x1c8] sm:$0xff]
    %v1723 = vld [vmem:[#allocation8 + $0x1d0] sm:$0xff]
    %v1724 = vld [vmem:[#allocation8 + $0x1d8] sm:$0xff]
    %v1725 = vld [vmem:[#allocation8 + $0x1e0] sm:$0xff]
    %v1726 = vld [vmem:[#allocation8 + $0x1e8] sm:$0xff]
    %v1727 = vld [vmem:[#allocation8 + $0x1f0] sm:$0xff]
    %v1728 = vld [vmem:[#allocation8 + $0x1f8] sm:$0xff]
    %1729 = vmatprep.subr.mxu0 %v1726
    %1730 = vmatpush1.msra.mxu0 %v1725
    %1731 = vmatprep.subr.mxu0 %v1722
    %1732 = vmatpush1.msra.mxu0 %v1721
    %1733 = vmatprep.subr.mxu0 %v1718
    %1734 = vmatpush1.msra.mxu0 %v1717
    %1735 = vmatprep.subr.mxu0 %v1714
    %1736 = vmatpush1.msra.mxu0 %v1713
    %1737 = vmatprep.subr.mxu0 %v1710
    %1738 = vmatpush1.msra.mxu0 %v1709
    %1739 = vmatprep.subr.mxu0 %v1706
    %1740 = vmatpush1.msra.mxu0 %v1705
    %1741 = vmatprep.subr.mxu0 %v1702
    %1742 = vmatpush1.msra.mxu0 %v1701
    %1743 = vmatprep.subr.mxu0 %v1698
    %1744 = vmatpush1.msra.mxu0 %v1697
    %1745 = vmatprep.subr.mxu0 %v1694
    %1746 = vmatpush1.msra.mxu0 %v1693
    %1747 = vmatprep.subr.mxu0 %v1690
    %1748 = vmatpush1.msra.mxu0 %v1689
    %1749 = vmatprep.subr.mxu0 %v1686
    %1750 = vmatpush1.msra.mxu0 %v1685
    %1751 = vmatprep.subr.mxu0 %v1682
    %1752 = vmatpush1.msra.mxu0 %v1681
    %1753 = vmatprep.subr.mxu0 %v1678
    %1754 = vmatpush1.msra.mxu0 %v1677
    %1755 = vmatprep.subr.mxu0 %v1674
    %1756 = vmatpush1.msra.mxu0 %v1673
    %1757 = vmatprep.subr.mxu0 %v1670
    %1758 = vmatpush1.msra.mxu0 %v1669
    %1759 = vmatprep.subr.mxu0 %v1666
    %1760 = vmatpush1.msra.mxu0 %v1665
    %1761 = vmatprep.subr.mxu0 0.0
    %1762 = vmatpush2.msra.mxu0 0.0
    %1763 = vmatprep.subr.mxu0 0.0
    %1764 = vmatpush2.msra.mxu0 0.0
    %1765 = vmatprep.subr.mxu0 0.0
    %1766 = vmatpush2.msra.mxu0 0.0
    %1767 = vmatprep.subr.mxu0 0.0
    %1768 = vmatpush2.msra.mxu0 0.0
    %1769 = vmatprep.subr.mxu0 0.0
    %1770 = vmatpush2.msra.mxu0 0.0
    %1771 = vmatprep.subr.mxu0 0.0
    %1772 = vmatpush2.msra.mxu0 0.0
    %1773 = vmatprep.subr.mxu0 0.0
    %1774 = vmatpush2.msra.mxu0 0.0
    %1775 = vmatprep.subr.mxu0 0.0
    %1776 = vmatpush2.msra.mxu0 0.0
    %1777 = vmatprep.subr.mxu0 0.0
    %1778 = vmatpush2.msra.mxu0 0.0
    %1779 = vmatprep.subr.mxu0 0.0
    %1780 = vmatpush2.msra.mxu0 0.0
    %1781 = vmatprep.subr.mxu0 0.0
    %1782 = vmatpush2.msra.mxu0 0.0
    %1783 = vmatprep.subr.mxu0 0.0
    %1784 = vmatpush2.msra.mxu0 0.0
    %1785 = vmatprep.subr.mxu0 0.0
    %1786 = vmatpush2.msra.mxu0 0.0
    %1787 = vmatprep.subr.mxu0 0.0
    %1788 = vmatpush2.msra.mxu0 0.0
    %1789 = vmatprep.subr.mxu0 0.0
    %1790 = vmatpush2.msra.mxu0 0.0
    %1791 = vmatprep.subr.mxu0 0.0
    %1792 = vmatpush2.msra.mxu0 0.0
    %1793 = vmatprep.mubr.f32.mxu0 0.0
    %1794 = vmatmul.mubr.f32.gmra.mxu0 %v1655
    %v1795 = vpop.f32.mrf.mxu0
    %v1796 = vadd.f32 0.0, %v1795
    %v1797 = vpop.f32.mrf.mxu0
    %v1798 = vadd.f32 0.0, %v1797
    %1799 = vdwg.mxu0
    %1800 = vmatprep.subr.mxu0 %v1728
    %1801 = vmatpush1.msra.mxu0 %v1727
    %1802 = vmatprep.subr.mxu0 %v1724
    %1803 = vmatpush1.msra.mxu0 %v1723
    %1804 = vmatprep.subr.mxu0 %v1720
    %1805 = vmatpush1.msra.mxu0 %v1719
    %1806 = vmatprep.subr.mxu0 %v1716
    %1807 = vmatpush1.msra.mxu0 %v1715
    %1808 = vmatprep.subr.mxu0 %v1712
    %1809 = vmatpush1.msra.mxu0 %v1711
    %1810 = vmatprep.subr.mxu0 %v1708
    %1811 = vmatpush1.msra.mxu0 %v1707
    %1812 = vmatprep.subr.mxu0 %v1704
    %1813 = vmatpush1.msra.mxu0 %v1703
    %1814 = vmatprep.subr.mxu0 %v1700
    %1815 = vmatpush1.msra.mxu0 %v1699
    %1816 = vmatprep.subr.mxu0 %v1696
    %1817 = vmatpush1.msra.mxu0 %v1695
    %1818 = vmatprep.subr.mxu0 %v1692
    %1819 = vmatpush1.msra.mxu0 %v1691
    %1820 = vmatprep.subr.mxu0 %v1688
    %1821 = vmatpush1.msra.mxu0 %v1687
    %1822 = vmatprep.subr.mxu0 %v1684
    %1823 = vmatpush1.msra.mxu0 %v1683
    %1824 = vmatprep.subr.mxu0 %v1680
    %1825 = vmatpush1.msra.mxu0 %v1679
    %1826 = vmatprep.subr.mxu0 %v1676
    %1827 = vmatpush1.msra.mxu0 %v1675
    %1828 = vmatprep.subr.mxu0 %v1672
    %1829 = vmatpush1.msra.mxu0 %v1671
    %1830 = vmatprep.subr.mxu0 %v1668
    %1831 = vmatpush1.msra.mxu0 %v1667
    %1832 = vmatprep.subr.mxu0 0.0
    %1833 = vmatpush2.msra.mxu0 0.0
    %1834 = vmatprep.subr.mxu0 0.0
    %1835 = vmatpush2.msra.mxu0 0.0
    %1836 = vmatprep.subr.mxu0 0.0
    %1837 = vmatpush2.msra.mxu0 0.0
    %1838 = vmatprep.subr.mxu0 0.0
    %1839 = vmatpush2.msra.mxu0 0.0
    %1840 = vmatprep.subr.mxu0 0.0
    %1841 = vmatpush2.msra.mxu0 0.0
    %1842 = vmatprep.subr.mxu0 0.0
    %1843 = vmatpush2.msra.mxu0 0.0
    %1844 = vmatprep.subr.mxu0 0.0
    %1845 = vmatpush2.msra.mxu0 0.0
    %1846 = vmatprep.subr.mxu0 0.0
    %1847 = vmatpush2.msra.mxu0 0.0
    %1848 = vmatprep.subr.mxu0 0.0
    %1849 = vmatpush2.msra.mxu0 0.0
    %1850 = vmatprep.subr.mxu0 0.0
    %1851 = vmatpush2.msra.mxu0 0.0
    %1852 = vmatprep.subr.mxu0 0.0
    %1853 = vmatpush2.msra.mxu0 0.0
    %1854 = vmatprep.subr.mxu0 0.0
    %1855 = vmatpush2.msra.mxu0 0.0
    %1856 = vmatprep.subr.mxu0 0.0
    %1857 = vmatpush2.msra.mxu0 0.0
    %1858 = vmatprep.subr.mxu0 0.0
    %1859 = vmatpush2.msra.mxu0 0.0
    %1860 = vmatprep.subr.mxu0 0.0
    %1861 = vmatpush2.msra.mxu0 0.0
    %1862 = vmatprep.subr.mxu0 0.0
    %1863 = vmatpush2.msra.mxu0 0.0
    %1864 = vmatprep.mubr.f32.mxu0 0.0
    %1865 = vmatmul.mubr.f32.gmra.mxu0 %v1655
    %v1866 = vpop.f32.mrf.mxu0
    %v1867 = vadd.f32 0.0, %v1866
    %v1868 = vpop.f32.mrf.mxu0
    %v1869 = vadd.f32 0.0, %v1868
    %1870 = vdwg.mxu0
    %v1871 = vadd.f32 %v1661, %v1796
    %v1872 = vadd.f32 %v1662, %v1798
    %v1873 = vadd.f32 %v1663, %v1867
    %v1874 = vadd.f32 %v1664, %v1869
    %v1875 = vmul.f32 %v1871, 0.5
    %v1876 = vtanh.pop %v1875
    %v1877 = vmul.f32 %v1876, 0.5
    %v1878 = vadd.f32 %v1877, 0.5
    %v1879 = vmul.f32 %v1872, 0.5
    %v1880 = vtanh.pop %v1879
    %v1881 = vmul.f32 %v1880, 0.5
    %v1882 = vadd.f32 %v1881, 0.5
    %v1883 = vtanh.pop %v1873
    %v1884 = vmul.f32 %v1874, 0.5
    %v1885 = vtanh.pop %v1884
    %v1886 = vmul.f32 %v1885, 0.5
    %v1887 = vadd.f32 %v1886, 0.5
    %v1888 = vmul.f32 %v1882, %v1656
    %v1889 = vmul.f32 %v1878, %v1883
    %v1890 = vadd.f32 %v1888, %v1889
    %v1891 = vtanh.pop %v1890
    %v1892 = vmul.f32 %v1887, %v1891
    %v1893 = vsel %vm1659, 1, 0
    %1894 = vset.pattern.permute.xlu0 0
    %1895 = vperm.xlu0 %1894, %v1893
    %v1896 = vpop.permute.xlu0 %1895
    %vm1897 = vcmp.eq.s32.totalorder %v1896, 1
    %v1898 = vsel %vm1897, %v1892, 0.0
    %s1899 = scalar_lea.vmem [#allocation9], 40
    %1900 = vst [vmem:[%s1899] sm:$0xff] %v1898
    %v1901 = vsel %vm1897, %v1892, %v1655
    %v1902 = vsel %vm1897, %v1890, %v1656
    %s1903 = sadd.s32 %s75, 6
    %v1904 = vstv %s1903
    %vm1905 = vcmp.lt.s32.totalorder %v1904, %v74
    %s1906 = scalar_lea.vmem [#allocation2], 192
    %v1907 = vld [vmem:[%s1906] sm:$0xff]
    %v1908 = vld [vmem:[%s1906 + $0x8] sm:$0xff]
    %v1909 = vld [vmem:[%s1906 + $0x10] sm:$0xff]
    %v1910 = vld [vmem:[%s1906 + $0x18] sm:$0xff]
    %v1911 = vld [vmem:[#allocation8] sm:$0xff]
    %v1912 = vld [vmem:[#allocation8 + $0x8] sm:$0xff]
    %v1913 = vld [vmem:[#allocation8 + $0x10] sm:$0xff]
    %v1914 = vld [vmem:[#allocation8 + $0x18] sm:$0xff]
    %v1915 = vld [vmem:[#allocation8 + $0x20] sm:$0xff]
    %v1916 = vld [vmem:[#allocation8 + $0x28] sm:$0xff]
    %v1917 = vld [vmem:[#allocation8 + $0x30] sm:$0xff]
    %v1918 = vld [vmem:[#allocation8 + $0x38] sm:$0xff]
    %v1919 = vld [vmem:[#allocation8 + $0x40] sm:$0xff]
    %v1920 = vld [vmem:[#allocation8 + $0x48] sm:$0xff]
    %v1921 = vld [vmem:[#allocation8 + $0x50] sm:$0xff]
    %v1922 = vld [vmem:[#allocation8 + $0x58] sm:$0xff]
    %v1923 = vld [vmem:[#allocation8 + $0x60] sm:$0xff]
    %v1924 = vld [vmem:[#allocation8 + $0x68] sm:$0xff]
    %v1925 = vld [vmem:[#allocation8 + $0x70] sm:$0xff]
    %v1926 = vld [vmem:[#allocation8 + $0x78] sm:$0xff]
    %v1927 = vld [vmem:[#allocation8 + $0x80] sm:$0xff]
    %v1928 = vld [vmem:[#allocation8 + $0x88] sm:$0xff]
    %v1929 = vld [vmem:[#allocation8 + $0x90] sm:$0xff]
    %v1930 = vld [vmem:[#allocation8 + $0x98] sm:$0xff]
    %v1931 = vld [vmem:[#allocation8 + $0xa0] sm:$0xff]
    %v1932 = vld [vmem:[#allocation8 + $0xa8] sm:$0xff]
    %v1933 = vld [vmem:[#allocation8 + $0xb0] sm:$0xff]
    %v1934 = vld [vmem:[#allocation8 + $0xb8] sm:$0xff]
    %v1935 = vld [vmem:[#allocation8 + $0xc0] sm:$0xff]
    %v1936 = vld [vmem:[#allocation8 + $0xc8] sm:$0xff]
    %v1937 = vld [vmem:[#allocation8 + $0xd0] sm:$0xff]
    %v1938 = vld [vmem:[#allocation8 + $0xd8] sm:$0xff]
    %v1939 = vld [vmem:[#allocation8 + $0xe0] sm:$0xff]
    %v1940 = vld [vmem:[#allocation8 + $0xe8] sm:$0xff]
    %v1941 = vld [vmem:[#allocation8 + $0xf0] sm:$0xff]
    %v1942 = vld [vmem:[#allocation8 + $0xf8] sm:$0xff]
    %v1943 = vld [vmem:[#allocation8 + $0x100] sm:$0xff]
    %v1944 = vld [vmem:[#allocation8 + $0x108] sm:$0xff]
    %v1945 = vld [vmem:[#allocation8 + $0x110] sm:$0xff]
    %v1946 = vld [vmem:[#allocation8 + $0x118] sm:$0xff]
    %v1947 = vld [vmem:[#allocation8 + $0x120] sm:$0xff]
    %v1948 = vld [vmem:[#allocation8 + $0x128] sm:$0xff]
    %v1949 = vld [vmem:[#allocation8 + $0x130] sm:$0xff]
    %v1950 = vld [vmem:[#allocation8 + $0x138] sm:$0xff]
    %v1951 = vld [vmem:[#allocation8 + $0x140] sm:$0xff]
    %v1952 = vld [vmem:[#allocation8 + $0x148] sm:$0xff]
    %v1953 = vld [vmem:[#allocation8 + $0x150] sm:$0xff]
    %v1954 = vld [vmem:[#allocation8 + $0x158] sm:$0xff]
    %v1955 = vld [vmem:[#allocation8 + $0x160] sm:$0xff]
    %v1956 = vld [vmem:[#allocation8 + $0x168] sm:$0xff]
    %v1957 = vld [vmem:[#allocation8 + $0x170] sm:$0xff]
    %v1958 = vld [vmem:[#allocation8 + $0x178] sm:$0xff]
    %v1959 = vld [vmem:[#allocation8 + $0x180] sm:$0xff]
    %v1960 = vld [vmem:[#allocation8 + $0x188] sm:$0xff]
    %v1961 = vld [vmem:[#allocation8 + $0x190] sm:$0xff]
    %v1962 = vld [vmem:[#allocation8 + $0x198] sm:$0xff]
    %v1963 = vld [vmem:[#allocation8 + $0x1a0] sm:$0xff]
    %v1964 = vld [vmem:[#allocation8 + $0x1a8] sm:$0xff]
    %v1965 = vld [vmem:[#allocation8 + $0x1b0] sm:$0xff]
    %v1966 = vld [vmem:[#allocation8 + $0x1b8] sm:$0xff]
    %v1967 = vld [vmem:[#allocation8 + $0x1c0] sm:$0xff]
    %v1968 = vld [vmem:[#allocation8 + $0x1c8] sm:$0xff]
    %v1969 = vld [vmem:[#allocation8 + $0x1d0] sm:$0xff]
    %v1970 = vld [vmem:[#allocation8 + $0x1d8] sm:$0xff]
    %v1971 = vld [vmem:[#allocation8 + $0x1e0] sm:$0xff]
    %v1972 = vld [vmem:[#allocation8 + $0x1e8] sm:$0xff]
    %v1973 = vld [vmem:[#allocation8 + $0x1f0] sm:$0xff]
    %v1974 = vld [vmem:[#allocation8 + $0x1f8] sm:$0xff]
    %1975 = vmatprep.subr.mxu0 %v1972
    %1976 = vmatpush1.msra.mxu0 %v1971
    %1977 = vmatprep.subr.mxu0 %v1968
    %1978 = vmatpush1.msra.mxu0 %v1967
    %1979 = vmatprep.subr.mxu0 %v1964
    %1980 = vmatpush1.msra.mxu0 %v1963
    %1981 = vmatprep.subr.mxu0 %v1960
    %1982 = vmatpush1.msra.mxu0 %v1959
    %1983 = vmatprep.subr.mxu0 %v1956
    %1984 = vmatpush1.msra.mxu0 %v1955
    %1985 = vmatprep.subr.mxu0 %v1952
    %1986 = vmatpush1.msra.mxu0 %v1951
    %1987 = vmatprep.subr.mxu0 %v1948
    %1988 = vmatpush1.msra.mxu0 %v1947
    %1989 = vmatprep.subr.mxu0 %v1944
    %1990 = vmatpush1.msra.mxu0 %v1943
    %1991 = vmatprep.subr.mxu0 %v1940
    %1992 = vmatpush1.msra.mxu0 %v1939
    %1993 = vmatprep.subr.mxu0 %v1936
    %1994 = vmatpush1.msra.mxu0 %v1935
    %1995 = vmatprep.subr.mxu0 %v1932
    %1996 = vmatpush1.msra.mxu0 %v1931
    %1997 = vmatprep.subr.mxu0 %v1928
    %1998 = vmatpush1.msra.mxu0 %v1927
    %1999 = vmatprep.subr.mxu0 %v1924
    %2000 = vmatpush1.msra.mxu0 %v1923
    %2001 = vmatprep.subr.mxu0 %v1920
    %2002 = vmatpush1.msra.mxu0 %v1919
    %2003 = vmatprep.subr.mxu0 %v1916
    %2004 = vmatpush1.msra.mxu0 %v1915
    %2005 = vmatprep.subr.mxu0 %v1912
    %2006 = vmatpush1.msra.mxu0 %v1911
    %2007 = vmatprep.subr.mxu0 0.0
    %2008 = vmatpush2.msra.mxu0 0.0
    %2009 = vmatprep.subr.mxu0 0.0
    %2010 = vmatpush2.msra.mxu0 0.0
    %2011 = vmatprep.subr.mxu0 0.0
    %2012 = vmatpush2.msra.mxu0 0.0
    %2013 = vmatprep.subr.mxu0 0.0
    %2014 = vmatpush2.msra.mxu0 0.0
    %2015 = vmatprep.subr.mxu0 0.0
    %2016 = vmatpush2.msra.mxu0 0.0
    %2017 = vmatprep.subr.mxu0 0.0
    %2018 = vmatpush2.msra.mxu0 0.0
    %2019 = vmatprep.subr.mxu0 0.0
    %2020 = vmatpush2.msra.mxu0 0.0
    %2021 = vmatprep.subr.mxu0 0.0
    %2022 = vmatpush2.msra.mxu0 0.0
    %2023 = vmatprep.subr.mxu0 0.0
    %2024 = vmatpush2.msra.mxu0 0.0
    %2025 = vmatprep.subr.mxu0 0.0
    %2026 = vmatpush2.msra.mxu0 0.0
    %2027 = vmatprep.subr.mxu0 0.0
    %2028 = vmatpush2.msra.mxu0 0.0
    %2029 = vmatprep.subr.mxu0 0.0
    %2030 = vmatpush2.msra.mxu0 0.0
    %2031 = vmatprep.subr.mxu0 0.0
    %2032 = vmatpush2.msra.mxu0 0.0
    %2033 = vmatprep.subr.mxu0 0.0
    %2034 = vmatpush2.msra.mxu0 0.0
    %2035 = vmatprep.subr.mxu0 0.0
    %2036 = vmatpush2.msra.mxu0 0.0
    %2037 = vmatprep.subr.mxu0 0.0
    %2038 = vmatpush2.msra.mxu0 0.0
    %2039 = vmatprep.mubr.f32.mxu0 0.0
    %2040 = vmatmul.mubr.f32.gmra.mxu0 %v1901
    %v2041 = vpop.f32.mrf.mxu0
    %v2042 = vadd.f32 0.0, %v2041
    %v2043 = vpop.f32.mrf.mxu0
    %v2044 = vadd.f32 0.0, %v2043
    %2045 = vdwg.mxu0
    %2046 = vmatprep.subr.mxu0 %v1974
    %2047 = vmatpush1.msra.mxu0 %v1973
    %2048 = vmatprep.subr.mxu0 %v1970
    %2049 = vmatpush1.msra.mxu0 %v1969
    %2050 = vmatprep.subr.mxu0 %v1966
    %2051 = vmatpush1.msra.mxu0 %v1965
    %2052 = vmatprep.subr.mxu0 %v1962
    %2053 = vmatpush1.msra.mxu0 %v1961
    %2054 = vmatprep.subr.mxu0 %v1958
    %2055 = vmatpush1.msra.mxu0 %v1957
    %2056 = vmatprep.subr.mxu0 %v1954
    %2057 = vmatpush1.msra.mxu0 %v1953
    %2058 = vmatprep.subr.mxu0 %v1950
    %2059 = vmatpush1.msra.mxu0 %v1949
    %2060 = vmatprep.subr.mxu0 %v1946
    %2061 = vmatpush1.msra.mxu0 %v1945
    %2062 = vmatprep.subr.mxu0 %v1942
    %2063 = vmatpush1.msra.mxu0 %v1941
    %2064 = vmatprep.subr.mxu0 %v1938
    %2065 = vmatpush1.msra.mxu0 %v1937
    %2066 = vmatprep.subr.mxu0 %v1934
    %2067 = vmatpush1.msra.mxu0 %v1933
    %2068 = vmatprep.subr.mxu0 %v1930
    %2069 = vmatpush1.msra.mxu0 %v1929
    %2070 = vmatprep.subr.mxu0 %v1926
    %2071 = vmatpush1.msra.mxu0 %v1925
    %2072 = vmatprep.subr.mxu0 %v1922
    %2073 = vmatpush1.msra.mxu0 %v1921
    %2074 = vmatprep.subr.mxu0 %v1918
    %2075 = vmatpush1.msra.mxu0 %v1917
    %2076 = vmatprep.subr.mxu0 %v1914
    %2077 = vmatpush1.msra.mxu0 %v1913
    %2078 = vmatprep.subr.mxu0 0.0
    %2079 = vmatpush2.msra.mxu0 0.0
    %2080 = vmatprep.subr.mxu0 0.0
    %2081 = vmatpush2.msra.mxu0 0.0
    %2082 = vmatprep.subr.mxu0 0.0
    %2083 = vmatpush2.msra.mxu0 0.0
    %2084 = vmatprep.subr.mxu0 0.0
    %2085 = vmatpush2.msra.mxu0 0.0
    %2086 = vmatprep.subr.mxu0 0.0
    %2087 = vmatpush2.msra.mxu0 0.0
    %2088 = vmatprep.subr.mxu0 0.0
    %2089 = vmatpush2.msra.mxu0 0.0
    %2090 = vmatprep.subr.mxu0 0.0
    %2091 = vmatpush2.msra.mxu0 0.0
    %2092 = vmatprep.subr.mxu0 0.0
    %2093 = vmatpush2.msra.mxu0 0.0
    %2094 = vmatprep.subr.mxu0 0.0
    %2095 = vmatpush2.msra.mxu0 0.0
    %2096 = vmatprep.subr.mxu0 0.0
    %2097 = vmatpush2.msra.mxu0 0.0
    %2098 = vmatprep.subr.mxu0 0.0
    %2099 = vmatpush2.msra.mxu0 0.0
    %2100 = vmatprep.subr.mxu0 0.0
    %2101 = vmatpush2.msra.mxu0 0.0
    %2102 = vmatprep.subr.mxu0 0.0
    %2103 = vmatpush2.msra.mxu0 0.0
    %2104 = vmatprep.subr.mxu0 0.0
    %2105 = vmatpush2.msra.mxu0 0.0
    %2106 = vmatprep.subr.mxu0 0.0
    %2107 = vmatpush2.msra.mxu0 0.0
    %2108 = vmatprep.subr.mxu0 0.0
    %2109 = vmatpush2.msra.mxu0 0.0
    %2110 = vmatprep.mubr.f32.mxu0 0.0
    %2111 = vmatmul.mubr.f32.gmra.mxu0 %v1901
    %v2112 = vpop.f32.mrf.mxu0
    %v2113 = vadd.f32 0.0, %v2112
    %v2114 = vpop.f32.mrf.mxu0
    %v2115 = vadd.f32 0.0, %v2114
    %2116 = vdwg.mxu0
    %v2117 = vadd.f32 %v1907, %v2042
    %v2118 = vadd.f32 %v1908, %v2044
    %v2119 = vadd.f32 %v1909, %v2113
    %v2120 = vadd.f32 %v1910, %v2115
    %v2121 = vmul.f32 %v2117, 0.5
    %v2122 = vtanh.pop %v2121
    %v2123 = vmul.f32 %v2122, 0.5
    %v2124 = vadd.f32 %v2123, 0.5
    %v2125 = vmul.f32 %v2118, 0.5
    %v2126 = vtanh.pop %v2125
    %v2127 = vmul.f32 %v2126, 0.5
    %v2128 = vadd.f32 %v2127, 0.5
    %v2129 = vtanh.pop %v2119
    %v2130 = vmul.f32 %v2120, 0.5
    %v2131 = vtanh.pop %v2130
    %v2132 = vmul.f32 %v2131, 0.5
    %v2133 = vadd.f32 %v2132, 0.5
    %v2134 = vmul.f32 %v2128, %v1902
    %v2135 = vmul.f32 %v2124, %v2129
    %v2136 = vadd.f32 %v2134, %v2135
    %v2137 = vtanh.pop %v2136
    %v2138 = vmul.f32 %v2133, %v2137
    %v2139 = vsel %vm1905, 1, 0
    %2140 = vset.pattern.permute.xlu0 0
    %2141 = vperm.xlu0 %2140, %v2139
    %v2142 = vpop.permute.xlu0 %2141
    %vm2143 = vcmp.eq.s32.totalorder %v2142, 1
    %v2144 = vsel %vm2143, %v2138, 0.0
    %s2145 = scalar_lea.vmem [#allocation9], 48
    %2146 = vst [vmem:[%s2145] sm:$0xff] %v2144
    %v2147 = vsel %vm2143, %v2138, %v1901
    %v2148 = vsel %vm2143, %v2136, %v1902
    %s2149 = sadd.s32 %s75, 7
    %v2150 = vstv %s2149
    %vm2151 = vcmp.lt.s32.totalorder %v2150, %v74
    %s2152 = scalar_lea.vmem [#allocation2], 224
    %v2153 = vld [vmem:[%s2152] sm:$0xff]
    %v2154 = vld [vmem:[%s2152 + $0x8] sm:$0xff]
    %v2155 = vld [vmem:[%s2152 + $0x10] sm:$0xff]
    %v2156 = vld [vmem:[%s2152 + $0x18] sm:$0xff]
    %v2157 = vld [vmem:[#allocation8] sm:$0xff]
    %v2158 = vld [vmem:[#allocation8 + $0x8] sm:$0xff]
    %v2159 = vld [vmem:[#allocation8 + $0x10] sm:$0xff]
    %v2160 = vld [vmem:[#allocation8 + $0x18] sm:$0xff]
    %v2161 = vld [vmem:[#allocation8 + $0x20] sm:$0xff]
    %v2162 = vld [vmem:[#allocation8 + $0x28] sm:$0xff]
    %v2163 = vld [vmem:[#allocation8 + $0x30] sm:$0xff]
    %v2164 = vld [vmem:[#allocation8 + $0x38] sm:$0xff]
    %v2165 = vld [vmem:[#allocation8 + $0x40] sm:$0xff]
    %v2166 = vld [vmem:[#allocation8 + $0x48] sm:$0xff]
    %v2167 = vld [vmem:[#allocation8 + $0x50] sm:$0xff]
    %v2168 = vld [vmem:[#allocation8 + $0x58] sm:$0xff]
    %v2169 = vld [vmem:[#allocation8 + $0x60] sm:$0xff]
    %v2170 = vld [vmem:[#allocation8 + $0x68] sm:$0xff]
    %v2171 = vld [vmem:[#allocation8 + $0x70] sm:$0xff]
    %v2172 = vld [vmem:[#allocation8 + $0x78] sm:$0xff]
    %v2173 = vld [vmem:[#allocation8 + $0x80] sm:$0xff]
    %v2174 = vld [vmem:[#allocation8 + $0x88] sm:$0xff]
    %v2175 = vld [vmem:[#allocation8 + $0x90] sm:$0xff]
    %v2176 = vld [vmem:[#allocation8 + $0x98] sm:$0xff]
    %v2177 = vld [vmem:[#allocation8 + $0xa0] sm:$0xff]
    %v2178 = vld [vmem:[#allocation8 + $0xa8] sm:$0xff]
    %v2179 = vld [vmem:[#allocation8 + $0xb0] sm:$0xff]
    %v2180 = vld [vmem:[#allocation8 + $0xb8] sm:$0xff]
    %v2181 = vld [vmem:[#allocation8 + $0xc0] sm:$0xff]
    %v2182 = vld [vmem:[#allocation8 + $0xc8] sm:$0xff]
    %v2183 = vld [vmem:[#allocation8 + $0xd0] sm:$0xff]
    %v2184 = vld [vmem:[#allocation8 + $0xd8] sm:$0xff]
    %v2185 = vld [vmem:[#allocation8 + $0xe0] sm:$0xff]
    %v2186 = vld [vmem:[#allocation8 + $0xe8] sm:$0xff]
    %v2187 = vld [vmem:[#allocation8 + $0xf0] sm:$0xff]
    %v2188 = vld [vmem:[#allocation8 + $0xf8] sm:$0xff]
    %v2189 = vld [vmem:[#allocation8 + $0x100] sm:$0xff]
    %v2190 = vld [vmem:[#allocation8 + $0x108] sm:$0xff]
    %v2191 = vld [vmem:[#allocation8 + $0x110] sm:$0xff]
    %v2192 = vld [vmem:[#allocation8 + $0x118] sm:$0xff]
    %v2193 = vld [vmem:[#allocation8 + $0x120] sm:$0xff]
    %v2194 = vld [vmem:[#allocation8 + $0x128] sm:$0xff]
    %v2195 = vld [vmem:[#allocation8 + $0x130] sm:$0xff]
    %v2196 = vld [vmem:[#allocation8 + $0x138] sm:$0xff]
    %v2197 = vld [vmem:[#allocation8 + $0x140] sm:$0xff]
    %v2198 = vld [vmem:[#allocation8 + $0x148] sm:$0xff]
    %v2199 = vld [vmem:[#allocation8 + $0x150] sm:$0xff]
    %v2200 = vld [vmem:[#allocation8 + $0x158] sm:$0xff]
    %v2201 = vld [vmem:[#allocation8 + $0x160] sm:$0xff]
    %v2202 = vld [vmem:[#allocation8 + $0x168] sm:$0xff]
    %v2203 = vld [vmem:[#allocation8 + $0x170] sm:$0xff]
    %v2204 = vld [vmem:[#allocation8 + $0x178] sm:$0xff]
    %v2205 = vld [vmem:[#allocation8 + $0x180] sm:$0xff]
    %v2206 = vld [vmem:[#allocation8 + $0x188] sm:$0xff]
    %v2207 = vld [vmem:[#allocation8 + $0x190] sm:$0xff]
    %v2208 = vld [vmem:[#allocation8 + $0x198] sm:$0xff]
    %v2209 = vld [vmem:[#allocation8 + $0x1a0] sm:$0xff]
    %v2210 = vld [vmem:[#allocation8 + $0x1a8] sm:$0xff]
    %v2211 = vld [vmem:[#allocation8 + $0x1b0] sm:$0xff]
    %v2212 = vld [vmem:[#allocation8 + $0x1b8] sm:$0xff]
    %v2213 = vld [vmem:[#allocation8 + $0x1c0] sm:$0xff]
    %v2214 = vld [vmem:[#allocation8 + $0x1c8] sm:$0xff]
    %v2215 = vld [vmem:[#allocation8 + $0x1d0] sm:$0xff]
    %v2216 = vld [vmem:[#allocation8 + $0x1d8] sm:$0xff]
    %v2217 = vld [vmem:[#allocation8 + $0x1e0] sm:$0xff]
    %v2218 = vld [vmem:[#allocation8 + $0x1e8] sm:$0xff]
    %v2219 = vld [vmem:[#allocation8 + $0x1f0] sm:$0xff]
    %v2220 = vld [vmem:[#allocation8 + $0x1f8] sm:$0xff]
    %2221 = vmatprep.subr.mxu0 %v2218
    %2222 = vmatpush1.msra.mxu0 %v2217
    %2223 = vmatprep.subr.mxu0 %v2214
    %2224 = vmatpush1.msra.mxu0 %v2213
    %2225 = vmatprep.subr.mxu0 %v2210
    %2226 = vmatpush1.msra.mxu0 %v2209
    %2227 = vmatprep.subr.mxu0 %v2206
    %2228 = vmatpush1.msra.mxu0 %v2205
    %2229 = vmatprep.subr.mxu0 %v2202
    %2230 = vmatpush1.msra.mxu0 %v2201
    %2231 = vmatprep.subr.mxu0 %v2198
    %2232 = vmatpush1.msra.mxu0 %v2197
    %2233 = vmatprep.subr.mxu0 %v2194
    %2234 = vmatpush1.msra.mxu0 %v2193
    %2235 = vmatprep.subr.mxu0 %v2190
    %2236 = vmatpush1.msra.mxu0 %v2189
    %2237 = vmatprep.subr.mxu0 %v2186
    %2238 = vmatpush1.msra.mxu0 %v2185
    %2239 = vmatprep.subr.mxu0 %v2182
    %2240 = vmatpush1.msra.mxu0 %v2181
    %2241 = vmatprep.subr.mxu0 %v2178
    %2242 = vmatpush1.msra.mxu0 %v2177
    %2243 = vmatprep.subr.mxu0 %v2174
    %2244 = vmatpush1.msra.mxu0 %v2173
    %2245 = vmatprep.subr.mxu0 %v2170
    %2246 = vmatpush1.msra.mxu0 %v2169
    %2247 = vmatprep.subr.mxu0 %v2166
    %2248 = vmatpush1.msra.mxu0 %v2165
    %2249 = vmatprep.subr.mxu0 %v2162
    %2250 = vmatpush1.msra.mxu0 %v2161
    %2251 = vmatprep.subr.mxu0 %v2158
    %2252 = vmatpush1.msra.mxu0 %v2157
    %2253 = vmatprep.subr.mxu0 0.0
    %2254 = vmatpush2.msra.mxu0 0.0
    %2255 = vmatprep.subr.mxu0 0.0
    %2256 = vmatpush2.msra.mxu0 0.0
    %2257 = vmatprep.subr.mxu0 0.0
    %2258 = vmatpush2.msra.mxu0 0.0
    %2259 = vmatprep.subr.mxu0 0.0
    %2260 = vmatpush2.msra.mxu0 0.0
    %2261 = vmatprep.subr.mxu0 0.0
    %2262 = vmatpush2.msra.mxu0 0.0
    %2263 = vmatprep.subr.mxu0 0.0
    %2264 = vmatpush2.msra.mxu0 0.0
    %2265 = vmatprep.subr.mxu0 0.0
    %2266 = vmatpush2.msra.mxu0 0.0
    %2267 = vmatprep.subr.mxu0 0.0
    %2268 = vmatpush2.msra.mxu0 0.0
    %2269 = vmatprep.subr.mxu0 0.0
    %2270 = vmatpush2.msra.mxu0 0.0
    %2271 = vmatprep.subr.mxu0 0.0
    %2272 = vmatpush2.msra.mxu0 0.0
    %2273 = vmatprep.subr.mxu0 0.0
    %2274 = vmatpush2.msra.mxu0 0.0
    %2275 = vmatprep.subr.mxu0 0.0
    %2276 = vmatpush2.msra.mxu0 0.0
    %2277 = vmatprep.subr.mxu0 0.0
    %2278 = vmatpush2.msra.mxu0 0.0
    %2279 = vmatprep.subr.mxu0 0.0
    %2280 = vmatpush2.msra.mxu0 0.0
    %2281 = vmatprep.subr.mxu0 0.0
    %2282 = vmatpush2.msra.mxu0 0.0
    %2283 = vmatprep.subr.mxu0 0.0
    %2284 = vmatpush2.msra.mxu0 0.0
    %2285 = vmatprep.mubr.f32.mxu0 0.0
    %2286 = vmatmul.mubr.f32.gmra.mxu0 %v2147
    %v2287 = vpop.f32.mrf.mxu0
    %v2288 = vadd.f32 0.0, %v2287
    %v2289 = vpop.f32.mrf.mxu0
    %v2290 = vadd.f32 0.0, %v2289
    %2291 = vdwg.mxu0
    %2292 = vmatprep.subr.mxu0 %v2220
    %2293 = vmatpush1.msra.mxu0 %v2219
    %2294 = vmatprep.subr.mxu0 %v2216
    %2295 = vmatpush1.msra.mxu0 %v2215
    %2296 = vmatprep.subr.mxu0 %v2212
    %2297 = vmatpush1.msra.mxu0 %v2211
    %2298 = vmatprep.subr.mxu0 %v2208
    %2299 = vmatpush1.msra.mxu0 %v2207
    %2300 = vmatprep.subr.mxu0 %v2204
    %2301 = vmatpush1.msra.mxu0 %v2203
    %2302 = vmatprep.subr.mxu0 %v2200
    %2303 = vmatpush1.msra.mxu0 %v2199
    %2304 = vmatprep.subr.mxu0 %v2196
    %2305 = vmatpush1.msra.mxu0 %v2195
    %2306 = vmatprep.subr.mxu0 %v2192
    %2307 = vmatpush1.msra.mxu0 %v2191
    %2308 = vmatprep.subr.mxu0 %v2188
    %2309 = vmatpush1.msra.mxu0 %v2187
    %2310 = vmatprep.subr.mxu0 %v2184
    %2311 = vmatpush1.msra.mxu0 %v2183
    %2312 = vmatprep.subr.mxu0 %v2180
    %2313 = vmatpush1.msra.mxu0 %v2179
    %2314 = vmatprep.subr.mxu0 %v2176
    %2315 = vmatpush1.msra.mxu0 %v2175
    %2316 = vmatprep.subr.mxu0 %v2172
    %2317 = vmatpush1.msra.mxu0 %v2171
    %2318 = vmatprep.subr.mxu0 %v2168
    %2319 = vmatpush1.msra.mxu0 %v2167
    %2320 = vmatprep.subr.mxu0 %v2164
    %2321 = vmatpush1.msra.mxu0 %v2163
    %2322 = vmatprep.subr.mxu0 %v2160
    %2323 = vmatpush1.msra.mxu0 %v2159
    %2324 = vmatprep.subr.mxu0 0.0
    %2325 = vmatpush2.msra.mxu0 0.0
    %2326 = vmatprep.subr.mxu0 0.0
    %2327 = vmatpush2.msra.mxu0 0.0
    %2328 = vmatprep.subr.mxu0 0.0
    %2329 = vmatpush2.msra.mxu0 0.0
    %2330 = vmatprep.subr.mxu0 0.0
    %2331 = vmatpush2.msra.mxu0 0.0
    %2332 = vmatprep.subr.mxu0 0.0
    %2333 = vmatpush2.msra.mxu0 0.0
    %2334 = vmatprep.subr.mxu0 0.0
    %2335 = vmatpush2.msra.mxu0 0.0
    %2336 = vmatprep.subr.mxu0 0.0
    %2337 = vmatpush2.msra.mxu0 0.0
    %2338 = vmatprep.subr.mxu0 0.0
    %2339 = vmatpush2.msra.mxu0 0.0
    %2340 = vmatprep.subr.mxu0 0.0
    %2341 = vmatpush2.msra.mxu0 0.0
    %2342 = vmatprep.subr.mxu0 0.0
    %2343 = vmatpush2.msra.mxu0 0.0
    %2344 = vmatprep.subr.mxu0 0.0
    %2345 = vmatpush2.msra.mxu0 0.0
    %2346 = vmatprep.subr.mxu0 0.0
    %2347 = vmatpush2.msra.mxu0 0.0
    %2348 = vmatprep.subr.mxu0 0.0
    %2349 = vmatpush2.msra.mxu0 0.0
    %2350 = vmatprep.subr.mxu0 0.0
    %2351 = vmatpush2.msra.mxu0 0.0
    %2352 = vmatprep.subr.mxu0 0.0
    %2353 = vmatpush2.msra.mxu0 0.0
    %2354 = vmatprep.subr.mxu0 0.0
    %2355 = vmatpush2.msra.mxu0 0.0
    %2356 = vmatprep.mubr.f32.mxu0 0.0
    %2357 = vmatmul.mubr.f32.gmra.mxu0 %v2147
    %v2358 = vpop.f32.mrf.mxu0
    %v2359 = vadd.f32 0.0, %v2358
    %v2360 = vpop.f32.mrf.mxu0
    %v2361 = vadd.f32 0.0, %v2360
    %2362 = vdwg.mxu0
    %v2363 = vadd.f32 %v2153, %v2288
    %v2364 = vadd.f32 %v2154, %v2290
    %v2365 = vadd.f32 %v2155, %v2359
    %v2366 = vadd.f32 %v2156, %v2361
    %v2367 = vmul.f32 %v2363, 0.5
    %v2368 = vtanh.pop %v2367
    %v2369 = vmul.f32 %v2368, 0.5
    %v2370 = vadd.f32 %v2369, 0.5
    %v2371 = vmul.f32 %v2364, 0.5
    %v2372 = vtanh.pop %v2371
    %v2373 = vmul.f32 %v2372, 0.5
    %v2374 = vadd.f32 %v2373, 0.5
    %v2375 = vtanh.pop %v2365
    %v2376 = vmul.f32 %v2366, 0.5
    %v2377 = vtanh.pop %v2376
    %v2378 = vmul.f32 %v2377, 0.5
    %v2379 = vadd.f32 %v2378, 0.5
    %v2380 = vmul.f32 %v2374, %v2148
    %v2381 = vmul.f32 %v2370, %v2375
    %v2382 = vadd.f32 %v2380, %v2381
    %v2383 = vtanh.pop %v2382
    %v2384 = vmul.f32 %v2379, %v2383
    %v2385 = vsel %vm2151, 1, 0
    %2386 = vset.pattern.permute.xlu0 0
    %2387 = vperm.xlu0 %2386, %v2385
    %v2388 = vpop.permute.xlu0 %2387
    %vm2389 = vcmp.eq.s32.totalorder %v2388, 1
    %v2390 = vsel %vm2389, %v2384, 0.0
    %s2391 = scalar_lea.vmem [#allocation9], 56
    %2392 = vst [vmem:[%s2391] sm:$0xff] %v2390
    %v2393 = vsel %vm2389, %v2384, %v2147
    %v2394 = vsel %vm2389, %v2382, %v2148
    %2395 = vst [vmem:[#allocation10] sm:$0xff] %v2393
    %2396 = vst [vmem:[#allocation12] sm:$0xff] %v2394
    %v2397 = vld [vmem:[#allocation9] sm:$0xff]
    %v2398 = vld [vmem:[#allocation9 + $0x8] sm:$0xff]
    %v2399 = vld [vmem:[#allocation9 + $0x10] sm:$0xff]
    %v2400 = vld [vmem:[#allocation9 + $0x18] sm:$0xff]
    %v2401 = vld [vmem:[#allocation9 + $0x20] sm:$0xff]
    %v2402 = vld [vmem:[#allocation9 + $0x28] sm:$0xff]
    %v2403 = vld [vmem:[#allocation9 + $0x30] sm:$0xff]
    %v2404 = vld [vmem:[#allocation9 + $0x38] sm:$0xff]
    %s2405 = scalar_lea.vmem [#allocation6], 512
    %v2406 = vld [vmem:[%s2405] sm:$0xff]
    %v2407 = vld [vmem:[%s2405 + $0x8] sm:$0xff]
    %v2408 = vld [vmem:[%s2405 + $0x10] sm:$0xff]
    %v2409 = vld [vmem:[%s2405 + $0x18] sm:$0xff]
    %v2410 = vld [vmem:[%s2405 + $0x20] sm:$0xff]
    %v2411 = vld [vmem:[%s2405 + $0x28] sm:$0xff]
    %v2412 = vld [vmem:[%s2405 + $0x30] sm:$0xff]
    %v2413 = vld [vmem:[%s2405 + $0x38] sm:$0xff]
    %v2414 = vld [vmem:[%s2405 + $0x40] sm:$0xff]
    %v2415 = vld [vmem:[%s2405 + $0x48] sm:$0xff]
    %v2416 = vld [vmem:[%s2405 + $0x50] sm:$0xff]
    %v2417 = vld [vmem:[%s2405 + $0x58] sm:$0xff]
    %v2418 = vld [vmem:[%s2405 + $0x60] sm:$0xff]
    %v2419 = vld [vmem:[%s2405 + $0x68] sm:$0xff]
    %v2420 = vld [vmem:[%s2405 + $0x70] sm:$0xff]
    %v2421 = vld [vmem:[%s2405 + $0x78] sm:$0xff]
    %v2422 = vld [vmem:[%s2405 + $0x80] sm:$0xff]
    %v2423 = vld [vmem:[%s2405 + $0x88] sm:$0xff]
    %v2424 = vld [vmem:[%s2405 + $0x90] sm:$0xff]
    %v2425 = vld [vmem:[%s2405 + $0x98] sm:$0xff]
    %v2426 = vld [vmem:[%s2405 + $0xa0] sm:$0xff]
    %v2427 = vld [vmem:[%s2405 + $0xa8] sm:$0xff]
    %v2428 = vld [vmem:[%s2405 + $0xb0] sm:$0xff]
    %v2429 = vld [vmem:[%s2405 + $0xb8] sm:$0xff]
    %v2430 = vld [vmem:[%s2405 + $0xc0] sm:$0xff]
    %v2431 = vld [vmem:[%s2405 + $0xc8] sm:$0xff]
    %v2432 = vld [vmem:[%s2405 + $0xd0] sm:$0xff]
    %v2433 = vld [vmem:[%s2405 + $0xd8] sm:$0xff]
    %v2434 = vld [vmem:[%s2405 + $0xe0] sm:$0xff]
    %v2435 = vld [vmem:[%s2405 + $0xe8] sm:$0xff]
    %v2436 = vld [vmem:[%s2405 + $0xf0] sm:$0xff]
    %v2437 = vld [vmem:[%s2405 + $0xf8] sm:$0xff]
    %v2438 = vld [vmem:[%s2405 + $0x100] sm:$0xff]
    %v2439 = vld [vmem:[%s2405 + $0x108] sm:$0xff]
    %v2440 = vld [vmem:[%s2405 + $0x110] sm:$0xff]
    %v2441 = vld [vmem:[%s2405 + $0x118] sm:$0xff]
    %v2442 = vld [vmem:[%s2405 + $0x120] sm:$0xff]
    %v2443 = vld [vmem:[%s2405 + $0x128] sm:$0xff]
    %v2444 = vld [vmem:[%s2405 + $0x130] sm:$0xff]
    %v2445 = vld [vmem:[%s2405 + $0x138] sm:$0xff]
    %v2446 = vld [vmem:[%s2405 + $0x140] sm:$0xff]
    %v2447 = vld [vmem:[%s2405 + $0x148] sm:$0xff]
    %v2448 = vld [vmem:[%s2405 + $0x150] sm:$0xff]
    %v2449 = vld [vmem:[%s2405 + $0x158] sm:$0xff]
    %v2450 = vld [vmem:[%s2405 + $0x160] sm:$0xff]
    %v2451 = vld [vmem:[%s2405 + $0x168] sm:$0xff]
    %v2452 = vld [vmem:[%s2405 + $0x170] sm:$0xff]
    %v2453 = vld [vmem:[%s2405 + $0x178] sm:$0xff]
    %v2454 = vld [vmem:[%s2405 + $0x180] sm:$0xff]
    %v2455 = vld [vmem:[%s2405 + $0x188] sm:$0xff]
    %v2456 = vld [vmem:[%s2405 + $0x190] sm:$0xff]
    %v2457 = vld [vmem:[%s2405 + $0x198] sm:$0xff]
    %v2458 = vld [vmem:[%s2405 + $0x1a0] sm:$0xff]
    %v2459 = vld [vmem:[%s2405 + $0x1a8] sm:$0xff]
    %v2460 = vld [vmem:[%s2405 + $0x1b0] sm:$0xff]
    %v2461 = vld [vmem:[%s2405 + $0x1b8] sm:$0xff]
    %v2462 = vld [vmem:[%s2405 + $0x1c0] sm:$0xff]
    %v2463 = vld [vmem:[%s2405 + $0x1c8] sm:$0xff]
    %v2464 = vld [vmem:[%s2405 + $0x1d0] sm:$0xff]
    %v2465 = vld [vmem:[%s2405 + $0x1d8] sm:$0xff]
    %v2466 = vld [vmem:[%s2405 + $0x1e0] sm:$0xff]
    %v2467 = vld [vmem:[%s2405 + $0x1e8] sm:$0xff]
    %v2468 = vld [vmem:[%s2405 + $0x1f0] sm:$0xff]
    %v2469 = vld [vmem:[%s2405 + $0x1f8] sm:$0xff]
    %s2470 = scalar_lea.vmem %s4, 4
    %v2471 = vld [vmem:[%s2470] sm:$0xf]
    %v2473 = vlaneseq
    %v2474 = vshrl.u32 %v2473, 7
    %v2475 = vsub.s32 0, %v2474
    %v2476 = vrot.slane %v2471, %v2475
    %v2477 = vlaneseq
    %v2478 = vshrl.u32 %v2477, 7
    %v2479 = vsub.s32 1, %v2478
    %v2480 = vrot.slane %v2471, %v2479
    %v2481 = vlaneseq
    %v2482 = vshrl.u32 %v2481, 7
    %v2483 = vsub.s32 2, %v2482
    %v2484 = vrot.slane %v2471, %v2483
    %v2485 = vlaneseq
    %v2486 = vshrl.u32 %v2485, 7
    %v2487 = vsub.s32 3, %v2486
    %v2488 = vrot.slane %v2471, %v2487
    %2493 = vmatprep.subr.mxu0 %v2467
    %2494 = vmatpush1.msra.mxu0 %v2466
    %2495 = vmatprep.subr.mxu0 %v2463
    %2496 = vmatpush1.msra.mxu0 %v2462
    %2497 = vmatprep.subr.mxu0 %v2459
    %2498 = vmatpush1.msra.mxu0 %v2458
    %2499 = vmatprep.subr.mxu0 %v2455
    %2500 = vmatpush1.msra.mxu0 %v2454
    %2501 = vmatprep.subr.mxu0 %v2451
    %2502 = vmatpush1.msra.mxu0 %v2450
    %2503 = vmatprep.subr.mxu0 %v2447
    %2504 = vmatpush1.msra.mxu0 %v2446
    %2505 = vmatprep.subr.mxu0 %v2443
    %2506 = vmatpush1.msra.mxu0 %v2442
    %2507 = vmatprep.subr.mxu0 %v2439
    %2508 = vmatpush1.msra.mxu0 %v2438
    %2509 = vmatprep.subr.mxu0 %v2435
    %2510 = vmatpush1.msra.mxu0 %v2434
    %2511 = vmatprep.subr.mxu0 %v2431
    %2512 = vmatpush1.msra.mxu0 %v2430
    %2513 = vmatprep.subr.mxu0 %v2427
    %2514 = vmatpush1.msra.mxu0 %v2426
    %2515 = vmatprep.subr.mxu0 %v2423
    %2516 = vmatpush1.msra.mxu0 %v2422
    %2517 = vmatprep.subr.mxu0 %v2419
    %2518 = vmatpush1.msra.mxu0 %v2418
    %2519 = vmatprep.subr.mxu0 %v2415
    %2520 = vmatpush1.msra.mxu0 %v2414
    %2521 = vmatprep.subr.mxu0 %v2411
    %2522 = vmatpush1.msra.mxu0 %v2410
    %2523 = vmatprep.subr.mxu0 %v2407
    %2524 = vmatpush1.msra.mxu0 %v2406
    %2525 = vmatprep.subr.mxu0 0.0
    %2526 = vmatpush2.msra.mxu0 0.0
    %2527 = vmatprep.subr.mxu0 0.0
    %2528 = vmatpush2.msra.mxu0 0.0
    %2529 = vmatprep.subr.mxu0 0.0
    %2530 = vmatpush2.msra.mxu0 0.0
    %2531 = vmatprep.subr.mxu0 0.0
    %2532 = vmatpush2.msra.mxu0 0.0
    %2533 = vmatprep.subr.mxu0 0.0
    %2534 = vmatpush2.msra.mxu0 0.0
    %2535 = vmatprep.subr.mxu0 0.0
    %2536 = vmatpush2.msra.mxu0 0.0
    %2537 = vmatprep.subr.mxu0 0.0
    %2538 = vmatpush2.msra.mxu0 0.0
    %2539 = vmatprep.subr.mxu0 0.0
    %2540 = vmatpush2.msra.mxu0 0.0
    %2541 = vmatprep.subr.mxu0 0.0
    %2542 = vmatpush2.msra.mxu0 0.0
    %2543 = vmatprep.subr.mxu0 0.0
    %2544 = vmatpush2.msra.mxu0 0.0
    %2545 = vmatprep.subr.mxu0 0.0
    %2546 = vmatpush2.msra.mxu0 0.0
    %2547 = vmatprep.subr.mxu0 0.0
    %2548 = vmatpush2.msra.mxu0 0.0
    %2549 = vmatprep.subr.mxu0 0.0
    %2550 = vmatpush2.msra.mxu0 0.0
    %2551 = vmatprep.subr.mxu0 0.0
    %2552 = vmatpush2.msra.mxu0 0.0
    %2553 = vmatprep.subr.mxu0 0.0
    %2554 = vmatpush2.msra.mxu0 0.0
    %2555 = vmatprep.subr.mxu0 0.0
    %2556 = vmatpush2.msra.mxu0 0.0
    %2557 = vmatprep.mubr.f32.mxu0 0.0
    %2558 = vmatmul.mubr.f32.gmra.mxu0 %v2397
    %v2559 = vpop.f32.mrf.mxu0
    %v2560 = vadd.f32 %v2476, %v2559
    %v2561 = vpop.f32.mrf.mxu0
    %v2562 = vadd.f32 %v2480, %v2561
    %2563 = vmatprep.mubr.f32.mxu0 0.0
    %2564 = vmatmul.mubr.f32.gmra.mxu0 %v2398
    %v2565 = vpop.f32.mrf.mxu0
    %v2566 = vadd.f32 %v2476, %v2565
    %v2567 = vpop.f32.mrf.mxu0
    %v2568 = vadd.f32 %v2480, %v2567
    %2569 = vmatprep.mubr.f32.mxu0 0.0
    %2570 = vmatmul.mubr.f32.gmra.mxu0 %v2399
    %v2571 = vpop.f32.mrf.mxu0
    %v2572 = vadd.f32 %v2476, %v2571
    %v2573 = vpop.f32.mrf.mxu0
    %v2574 = vadd.f32 %v2480, %v2573
    %2575 = vmatprep.mubr.f32.mxu0 0.0
    %2576 = vmatmul.mubr.f32.gmra.mxu0 %v2400
    %v2577 = vpop.f32.mrf.mxu0
    %v2578 = vadd.f32 %v2476, %v2577
    %v2579 = vpop.f32.mrf.mxu0
    %v2580 = vadd.f32 %v2480, %v2579
    %2581 = vmatprep.mubr.f32.mxu0 0.0
    %2582 = vmatmul.mubr.f32.gmra.mxu0 %v2401
    %v2583 = vpop.f32.mrf.mxu0
    %v2584 = vadd.f32 %v2476, %v2583
    %v2585 = vpop.f32.mrf.mxu0
    %v2586 = vadd.f32 %v2480, %v2585
    %2587 = vmatprep.mubr.f32.mxu0 0.0
    %2588 = vmatmul.mubr.f32.gmra.mxu0 %v2402
    %v2589 = vpop.f32.mrf.mxu0
    %v2590 = vadd.f32 %v2476, %v2589
    %v2591 = vpop.f32.mrf.mxu0
    %v2592 = vadd.f32 %v2480, %v2591
    %2593 = vmatprep.mubr.f32.mxu0 0.0
    %2594 = vmatmul.mubr.f32.gmra.mxu0 %v2403
    %v2595 = vpop.f32.mrf.mxu0
    %v2596 = vadd.f32 %v2476, %v2595
    %v2597 = vpop.f32.mrf.mxu0
    %v2598 = vadd.f32 %v2480, %v2597
    %2599 = vmatprep.mubr.f32.mxu0 0.0
    %2600 = vmatmul.mubr.f32.gmra.mxu0 %v2404
    %v2601 = vpop.f32.mrf.mxu0
    %v2602 = vadd.f32 %v2476, %v2601
    %v2603 = vpop.f32.mrf.mxu0
    %v2604 = vadd.f32 %v2480, %v2603
    %2605 = vdwg.mxu0
    %2606 = vmatprep.subr.mxu0 %v2469
    %2607 = vmatpush1.msra.mxu0 %v2468
    %2608 = vmatprep.subr.mxu0 %v2465
    %2609 = vmatpush1.msra.mxu0 %v2464
    %2610 = vmatprep.subr.mxu0 %v2461
    %2611 = vmatpush1.msra.mxu0 %v2460
    %2612 = vmatprep.subr.mxu0 %v2457
    %2613 = vmatpush1.msra.mxu0 %v2456
    %2614 = vmatprep.subr.mxu0 %v2453
    %2615 = vmatpush1.msra.mxu0 %v2452
    %2616 = vmatprep.subr.mxu0 %v2449
    %2617 = vmatpush1.msra.mxu0 %v2448
    %2618 = vmatprep.subr.mxu0 %v2445
    %2619 = vmatpush1.msra.mxu0 %v2444
    %2620 = vmatprep.subr.mxu0 %v2441
    %2621 = vmatpush1.msra.mxu0 %v2440
    %2622 = vmatprep.subr.mxu0 %v2437
    %2623 = vmatpush1.msra.mxu0 %v2436
    %2624 = vmatprep.subr.mxu0 %v2433
    %2625 = vmatpush1.msra.mxu0 %v2432
    %2626 = vmatprep.subr.mxu0 %v2429
    %2627 = vmatpush1.msra.mxu0 %v2428
    %2628 = vmatprep.subr.mxu0 %v2425
    %2629 = vmatpush1.msra.mxu0 %v2424
    %2630 = vmatprep.subr.mxu0 %v2421
    %2631 = vmatpush1.msra.mxu0 %v2420
    %2632 = vmatprep.subr.mxu0 %v2417
    %2633 = vmatpush1.msra.mxu0 %v2416
    %2634 = vmatprep.subr.mxu0 %v2413
    %2635 = vmatpush1.msra.mxu0 %v2412
    %2636 = vmatprep.subr.mxu0 %v2409
    %2637 = vmatpush1.msra.mxu0 %v2408
    %2638 = vmatprep.subr.mxu0 0.0
    %2639 = vmatpush2.msra.mxu0 0.0
    %2640 = vmatprep.subr.mxu0 0.0
    %2641 = vmatpush2.msra.mxu0 0.0
    %2642 = vmatprep.subr.mxu0 0.0
    %2643 = vmatpush2.msra.mxu0 0.0
    %2644 = vmatprep.subr.mxu0 0.0
    %2645 = vmatpush2.msra.mxu0 0.0
    %2646 = vmatprep.subr.mxu0 0.0
    %2647 = vmatpush2.msra.mxu0 0.0
    %2648 = vmatprep.subr.mxu0 0.0
    %2649 = vmatpush2.msra.mxu0 0.0
    %2650 = vmatprep.subr.mxu0 0.0
    %2651 = vmatpush2.msra.mxu0 0.0
    %2652 = vmatprep.subr.mxu0 0.0
    %2653 = vmatpush2.msra.mxu0 0.0
    %2654 = vmatprep.subr.mxu0 0.0
    %2655 = vmatpush2.msra.mxu0 0.0
    %2656 = vmatprep.subr.mxu0 0.0
    %2657 = vmatpush2.msra.mxu0 0.0
    %2658 = vmatprep.subr.mxu0 0.0
    %2659 = vmatpush2.msra.mxu0 0.0
    %2660 = vmatprep.subr.mxu0 0.0
    %2661 = vmatpush2.msra.mxu0 0.0
    %2662 = vmatprep.subr.mxu0 0.0
    %2663 = vmatpush2.msra.mxu0 0.0
    %2664 = vmatprep.subr.mxu0 0.0
    %2665 = vmatpush2.msra.mxu0 0.0
    %2666 = vmatprep.subr.mxu0 0.0
    %2667 = vmatpush2.msra.mxu0 0.0
    %2668 = vmatprep.subr.mxu0 0.0
    %2669 = vmatpush2.msra.mxu0 0.0
    %2670 = vmatprep.mubr.f32.mxu0 0.0
    %2671 = vmatmul.mubr.f32.gmra.mxu0 %v2397
    %v2672 = vpop.f32.mrf.mxu0
    %v2673 = vadd.f32 %v2484, %v2672
    %v2674 = vpop.f32.mrf.mxu0
    %v2675 = vadd.f32 %v2488, %v2674
    %2676 = vmatprep.mubr.f32.mxu0 0.0
    %2677 = vmatmul.mubr.f32.gmra.mxu0 %v2398
    %v2678 = vpop.f32.mrf.mxu0
    %v2679 = vadd.f32 %v2484, %v2678
    %v2680 = vpop.f32.mrf.mxu0
    %v2681 = vadd.f32 %v2488, %v2680
    %2682 = vmatprep.mubr.f32.mxu0 0.0
    %2683 = vmatmul.mubr.f32.gmra.mxu0 %v2399
    %v2684 = vpop.f32.mrf.mxu0
    %v2685 = vadd.f32 %v2484, %v2684
    %v2686 = vpop.f32.mrf.mxu0
    %v2687 = vadd.f32 %v2488, %v2686
    %2688 = vmatprep.mubr.f32.mxu0 0.0
    %2689 = vmatmul.mubr.f32.gmra.mxu0 %v2400
    %v2690 = vpop.f32.mrf.mxu0
    %v2691 = vadd.f32 %v2484, %v2690
    %v2692 = vpop.f32.mrf.mxu0
    %v2693 = vadd.f32 %v2488, %v2692
    %2694 = vmatprep.mubr.f32.mxu0 0.0
    %2695 = vmatmul.mubr.f32.gmra.mxu0 %v2401
    %v2696 = vpop.f32.mrf.mxu0
    %v2697 = vadd.f32 %v2484, %v2696
    %v2698 = vpop.f32.mrf.mxu0
    %v2699 = vadd.f32 %v2488, %v2698
    %2700 = vmatprep.mubr.f32.mxu0 0.0
    %2701 = vmatmul.mubr.f32.gmra.mxu0 %v2402
    %v2702 = vpop.f32.mrf.mxu0
    %v2703 = vadd.f32 %v2484, %v2702
    %v2704 = vpop.f32.mrf.mxu0
    %v2705 = vadd.f32 %v2488, %v2704
    %2706 = vmatprep.mubr.f32.mxu0 0.0
    %2707 = vmatmul.mubr.f32.gmra.mxu0 %v2403
    %v2708 = vpop.f32.mrf.mxu0
    %v2709 = vadd.f32 %v2484, %v2708
    %v2710 = vpop.f32.mrf.mxu0
    %v2711 = vadd.f32 %v2488, %v2710
    %2712 = vmatprep.mubr.f32.mxu0 0.0
    %2713 = vmatmul.mubr.f32.gmra.mxu0 %v2404
    %v2714 = vpop.f32.mrf.mxu0
    %v2715 = vadd.f32 %v2484, %v2714
    %v2716 = vpop.f32.mrf.mxu0
    %v2717 = vadd.f32 %v2488, %v2716
    %2718 = vdwg.mxu0
    %2719 = vst [vmem:[#allocation2] sm:$0xff] %v2560
    %2720 = vst [vmem:[#allocation2 + $0x8] sm:$0xff] %v2562
    %2721 = vst [vmem:[#allocation2 + $0x10] sm:$0xff] %v2673
    %2722 = vst [vmem:[#allocation2 + $0x18] sm:$0xff] %v2675
    %2723 = vst [vmem:[#allocation2 + $0x20] sm:$0xff] %v2566
    %2724 = vst [vmem:[#allocation2 + $0x28] sm:$0xff] %v2568
    %2725 = vst [vmem:[#allocation2 + $0x30] sm:$0xff] %v2679
    %2726 = vst [vmem:[#allocation2 + $0x38] sm:$0xff] %v2681
    %2727 = vst [vmem:[#allocation2 + $0x40] sm:$0xff] %v2572
    %2728 = vst [vmem:[#allocation2 + $0x48] sm:$0xff] %v2574
    %2729 = vst [vmem:[#allocation2 + $0x50] sm:$0xff] %v2685
    %2730 = vst [vmem:[#allocation2 + $0x58] sm:$0xff] %v2687
    %2731 = vst [vmem:[#allocation2 + $0x60] sm:$0xff] %v2578
    %2732 = vst [vmem:[#allocation2 + $0x68] sm:$0xff] %v2580
    %2733 = vst [vmem:[#allocation2 + $0x70] sm:$0xff] %v2691
    %2734 = vst [vmem:[#allocation2 + $0x78] sm:$0xff] %v2693
    %2735 = vst [vmem:[#allocation2 + $0x80] sm:$0xff] %v2584
    %2736 = vst [vmem:[#allocation2 + $0x88] sm:$0xff] %v2586
    %2737 = vst [vmem:[#allocation2 + $0x90] sm:$0xff] %v2697
    %2738 = vst [vmem:[#allocation2 + $0x98] sm:$0xff] %v2699
    %2739 = vst [vmem:[#allocation2 + $0xa0] sm:$0xff] %v2590
    %2740 = vst [vmem:[#allocation2 + $0xa8] sm:$0xff] %v2592
    %2741 = vst [vmem:[#allocation2 + $0xb0] sm:$0xff] %v2703
    %2742 = vst [vmem:[#allocation2 + $0xb8] sm:$0xff] %v2705
    %2743 = vst [vmem:[#allocation2 + $0xc0] sm:$0xff] %v2596
    %2744 = vst [vmem:[#allocation2 + $0xc8] sm:$0xff] %v2598
    %2745 = vst [vmem:[#allocation2 + $0xd0] sm:$0xff] %v2709
    %2746 = vst [vmem:[#allocation2 + $0xd8] sm:$0xff] %v2711
    %2747 = vst [vmem:[#allocation2 + $0xe0] sm:$0xff] %v2602
    %2748 = vst [vmem:[#allocation2 + $0xe8] sm:$0xff] %v2604
    %2749 = vst [vmem:[#allocation2 + $0xf0] sm:$0xff] %v2715
    %2750 = vst [vmem:[#allocation2 + $0xf8] sm:$0xff] %v2717
    %s2751 = scalar_lea.vmem [#allocation10], 8
    %v2752 = vld [vmem:[%s2751] sm:$0xff]
    %s2753 = scalar_lea.vmem [#allocation12], 8
    %v2754 = vld [vmem:[%s2753] sm:$0xff]
    %v2755 = vld [vmem:[#allocation2] sm:$0xff]
    %v2756 = vld [vmem:[#allocation2 + $0x8] sm:$0xff]
    %v2757 = vld [vmem:[#allocation2 + $0x10] sm:$0xff]
    %v2758 = vld [vmem:[#allocation2 + $0x18] sm:$0xff]
    %s2759 = scalar_lea.vmem [#allocation8], 512
    %v2760 = vld [vmem:[%s2759] sm:$0xff]
    %v2761 = vld [vmem:[%s2759 + $0x8] sm:$0xff]
    %v2762 = vld [vmem:[%s2759 + $0x10] sm:$0xff]
    %v2763 = vld [vmem:[%s2759 + $0x18] sm:$0xff]
    %v2764 = vld [vmem:[%s2759 + $0x20] sm:$0xff]
    %v2765 = vld [vmem:[%s2759 + $0x28] sm:$0xff]
    %v2766 = vld [vmem:[%s2759 + $0x30] sm:$0xff]
    %v2767 = vld [vmem:[%s2759 + $0x38] sm:$0xff]
    %v2768 = vld [vmem:[%s2759 + $0x40] sm:$0xff]
    %v2769 = vld [vmem:[%s2759 + $0x48] sm:$0xff]
    %v2770 = vld [vmem:[%s2759 + $0x50] sm:$0xff]
    %v2771 = vld [vmem:[%s2759 + $0x58] sm:$0xff]
    %v2772 = vld [vmem:[%s2759 + $0x60] sm:$0xff]
    %v2773 = vld [vmem:[%s2759 + $0x68] sm:$0xff]
    %v2774 = vld [vmem:[%s2759 + $0x70] sm:$0xff]
    %v2775 = vld [vmem:[%s2759 + $0x78] sm:$0xff]
    %v2776 = vld [vmem:[%s2759 + $0x80] sm:$0xff]
    %v2777 = vld [vmem:[%s2759 + $0x88] sm:$0xff]
    %v2778 = vld [vmem:[%s2759 + $0x90] sm:$0xff]
    %v2779 = vld [vmem:[%s2759 + $0x98] sm:$0xff]
    %v2780 = vld [vmem:[%s2759 + $0xa0] sm:$0xff]
    %v2781 = vld [vmem:[%s2759 + $0xa8] sm:$0xff]
    %v2782 = vld [vmem:[%s2759 + $0xb0] sm:$0xff]
    %v2783 = vld [vmem:[%s2759 + $0xb8] sm:$0xff]
    %v2784 = vld [vmem:[%s2759 + $0xc0] sm:$0xff]
    %v2785 = vld [vmem:[%s2759 + $0xc8] sm:$0xff]
    %v2786 = vld [vmem:[%s2759 + $0xd0] sm:$0xff]
    %v2787 = vld [vmem:[%s2759 + $0xd8] sm:$0xff]
    %v2788 = vld [vmem:[%s2759 + $0xe0] sm:$0xff]
    %v2789 = vld [vmem:[%s2759 + $0xe8] sm:$0xff]
    %v2790 = vld [vmem:[%s2759 + $0xf0] sm:$0xff]
    %v2791 = vld [vmem:[%s2759 + $0xf8] sm:$0xff]
    %v2792 = vld [vmem:[%s2759 + $0x100] sm:$0xff]
    %v2793 = vld [vmem:[%s2759 + $0x108] sm:$0xff]
    %v2794 = vld [vmem:[%s2759 + $0x110] sm:$0xff]
    %v2795 = vld [vmem:[%s2759 + $0x118] sm:$0xff]
    %v2796 = vld [vmem:[%s2759 + $0x120] sm:$0xff]
    %v2797 = vld [vmem:[%s2759 + $0x128] sm:$0xff]
    %v2798 = vld [vmem:[%s2759 + $0x130] sm:$0xff]
    %v2799 = vld [vmem:[%s2759 + $0x138] sm:$0xff]
    %v2800 = vld [vmem:[%s2759 + $0x140] sm:$0xff]
    %v2801 = vld [vmem:[%s2759 + $0x148] sm:$0xff]
    %v2802 = vld [vmem:[%s2759 + $0x150] sm:$0xff]
    %v2803 = vld [vmem:[%s2759 + $0x158] sm:$0xff]
    %v2804 = vld [vmem:[%s2759 + $0x160] sm:$0xff]
    %v2805 = vld [vmem:[%s2759 + $0x168] sm:$0xff]
    %v2806 = vld [vmem:[%s2759 + $0x170] sm:$0xff]
    %v2807 = vld [vmem:[%s2759 + $0x178] sm:$0xff]
    %v2808 = vld [vmem:[%s2759 + $0x180] sm:$0xff]
    %v2809 = vld [vmem:[%s2759 + $0x188] sm:$0xff]
    %v2810 = vld [vmem:[%s2759 + $0x190] sm:$0xff]
    %v2811 = vld [vmem:[%s2759 + $0x198] sm:$0xff]
    %v2812 = vld [vmem:[%s2759 + $0x1a0] sm:$0xff]
    %v2813 = vld [vmem:[%s2759 + $0x1a8] sm:$0xff]
    %v2814 = vld [vmem:[%s2759 + $0x1b0] sm:$0xff]
    %v2815 = vld [vmem:[%s2759 + $0x1b8] sm:$0xff]
    %v2816 = vld [vmem:[%s2759 + $0x1c0] sm:$0xff]
    %v2817 = vld [vmem:[%s2759 + $0x1c8] sm:$0xff]
    %v2818 = vld [vmem:[%s2759 + $0x1d0] sm:$0xff]
    %v2819 = vld [vmem:[%s2759 + $0x1d8] sm:$0xff]
    %v2820 = vld [vmem:[%s2759 + $0x1e0] sm:$0xff]
    %v2821 = vld [vmem:[%s2759 + $0x1e8] sm:$0xff]
    %v2822 = vld [vmem:[%s2759 + $0x1f0] sm:$0xff]
    %v2823 = vld [vmem:[%s2759 + $0x1f8] sm:$0xff]
    %2824 = vmatprep.subr.mxu0 %v2821
    %2825 = vmatpush1.msra.mxu0 %v2820
    %2826 = vmatprep.subr.mxu0 %v2817
    %2827 = vmatpush1.msra.mxu0 %v2816
    %2828 = vmatprep.subr.mxu0 %v2813
    %2829 = vmatpush1.msra.mxu0 %v2812
    %2830 = vmatprep.subr.mxu0 %v2809
    %2831 = vmatpush1.msra.mxu0 %v2808
    %2832 = vmatprep.subr.mxu0 %v2805
    %2833 = vmatpush1.msra.mxu0 %v2804
    %2834 = vmatprep.subr.mxu0 %v2801
    %2835 = vmatpush1.msra.mxu0 %v2800
    %2836 = vmatprep.subr.mxu0 %v2797
    %2837 = vmatpush1.msra.mxu0 %v2796
    %2838 = vmatprep.subr.mxu0 %v2793
    %2839 = vmatpush1.msra.mxu0 %v2792
    %2840 = vmatprep.subr.mxu0 %v2789
    %2841 = vmatpush1.msra.mxu0 %v2788
    %2842 = vmatprep.subr.mxu0 %v2785
    %2843 = vmatpush1.msra.mxu0 %v2784
    %2844 = vmatprep.subr.mxu0 %v2781
    %2845 = vmatpush1.msra.mxu0 %v2780
    %2846 = vmatprep.subr.mxu0 %v2777
    %2847 = vmatpush1.msra.mxu0 %v2776
    %2848 = vmatprep.subr.mxu0 %v2773
    %2849 = vmatpush1.msra.mxu0 %v2772
    %2850 = vmatprep.subr.mxu0 %v2769
    %2851 = vmatpush1.msra.mxu0 %v2768
    %2852 = vmatprep.subr.mxu0 %v2765
    %2853 = vmatpush1.msra.mxu0 %v2764
    %2854 = vmatprep.subr.mxu0 %v2761
    %2855 = vmatpush1.msra.mxu0 %v2760
    %2856 = vmatprep.subr.mxu0 0.0
    %2857 = vmatpush2.msra.mxu0 0.0
    %2858 = vmatprep.subr.mxu0 0.0
    %2859 = vmatpush2.msra.mxu0 0.0
    %2860 = vmatprep.subr.mxu0 0.0
    %2861 = vmatpush2.msra.mxu0 0.0
    %2862 = vmatprep.subr.mxu0 0.0
    %2863 = vmatpush2.msra.mxu0 0.0
    %2864 = vmatprep.subr.mxu0 0.0
    %2865 = vmatpush2.msra.mxu0 0.0
    %2866 = vmatprep.subr.mxu0 0.0
    %2867 = vmatpush2.msra.mxu0 0.0
    %2868 = vmatprep.subr.mxu0 0.0
    %2869 = vmatpush2.msra.mxu0 0.0
    %2870 = vmatprep.subr.mxu0 0.0
    %2871 = vmatpush2.msra.mxu0 0.0
    %2872 = vmatprep.subr.mxu0 0.0
    %2873 = vmatpush2.msra.mxu0 0.0
    %2874 = vmatprep.subr.mxu0 0.0
    %2875 = vmatpush2.msra.mxu0 0.0
    %2876 = vmatprep.subr.mxu0 0.0
    %2877 = vmatpush2.msra.mxu0 0.0
    %2878 = vmatprep.subr.mxu0 0.0
    %2879 = vmatpush2.msra.mxu0 0.0
    %2880 = vmatprep.subr.mxu0 0.0
    %2881 = vmatpush2.msra.mxu0 0.0
    %2882 = vmatprep.subr.mxu0 0.0
    %2883 = vmatpush2.msra.mxu0 0.0
    %2884 = vmatprep.subr.mxu0 0.0
    %2885 = vmatpush2.msra.mxu0 0.0
    %2886 = vmatprep.subr.mxu0 0.0
    %2887 = vmatpush2.msra.mxu0 0.0
    %2888 = vmatprep.mubr.f32.mxu0 0.0
    %2889 = vmatmul.mubr.f32.gmra.mxu0 %v2752
    %v2890 = vpop.f32.mrf.mxu0
    %v2891 = vadd.f32 0.0, %v2890
    %v2892 = vpop.f32.mrf.mxu0
    %v2893 = vadd.f32 0.0, %v2892
    %2894 = vdwg.mxu0
    %2895 = vmatprep.subr.mxu0 %v2823
    %2896 = vmatpush1.msra.mxu0 %v2822
    %2897 = vmatprep.subr.mxu0 %v2819
    %2898 = vmatpush1.msra.mxu0 %v2818
    %2899 = vmatprep.subr.mxu0 %v2815
    %2900 = vmatpush1.msra.mxu0 %v2814
    %2901 = vmatprep.subr.mxu0 %v2811
    %2902 = vmatpush1.msra.mxu0 %v2810
    %2903 = vmatprep.subr.mxu0 %v2807
    %2904 = vmatpush1.msra.mxu0 %v2806
    %2905 = vmatprep.subr.mxu0 %v2803
    %2906 = vmatpush1.msra.mxu0 %v2802
    %2907 = vmatprep.subr.mxu0 %v2799
    %2908 = vmatpush1.msra.mxu0 %v2798
    %2909 = vmatprep.subr.mxu0 %v2795
    %2910 = vmatpush1.msra.mxu0 %v2794
    %2911 = vmatprep.subr.mxu0 %v2791
    %2912 = vmatpush1.msra.mxu0 %v2790
    %2913 = vmatprep.subr.mxu0 %v2787
    %2914 = vmatpush1.msra.mxu0 %v2786
    %2915 = vmatprep.subr.mxu0 %v2783
    %2916 = vmatpush1.msra.mxu0 %v2782
    %2917 = vmatprep.subr.mxu0 %v2779
    %2918 = vmatpush1.msra.mxu0 %v2778
    %2919 = vmatprep.subr.mxu0 %v2775
    %2920 = vmatpush1.msra.mxu0 %v2774
    %2921 = vmatprep.subr.mxu0 %v2771
    %2922 = vmatpush1.msra.mxu0 %v2770
    %2923 = vmatprep.subr.mxu0 %v2767
    %2924 = vmatpush1.msra.mxu0 %v2766
    %2925 = vmatprep.subr.mxu0 %v2763
    %2926 = vmatpush1.msra.mxu0 %v2762
    %2927 = vmatprep.subr.mxu0 0.0
    %2928 = vmatpush2.msra.mxu0 0.0
    %2929 = vmatprep.subr.mxu0 0.0
    %2930 = vmatpush2.msra.mxu0 0.0
    %2931 = vmatprep.subr.mxu0 0.0
    %2932 = vmatpush2.msra.mxu0 0.0
    %2933 = vmatprep.subr.mxu0 0.0
    %2934 = vmatpush2.msra.mxu0 0.0
    %2935 = vmatprep.subr.mxu0 0.0
    %2936 = vmatpush2.msra.mxu0 0.0
    %2937 = vmatprep.subr.mxu0 0.0
    %2938 = vmatpush2.msra.mxu0 0.0
    %2939 = vmatprep.subr.mxu0 0.0
    %2940 = vmatpush2.msra.mxu0 0.0
    %2941 = vmatprep.subr.mxu0 0.0
    %2942 = vmatpush2.msra.mxu0 0.0
    %2943 = vmatprep.subr.mxu0 0.0
    %2944 = vmatpush2.msra.mxu0 0.0
    %2945 = vmatprep.subr.mxu0 0.0
    %2946 = vmatpush2.msra.mxu0 0.0
    %2947 = vmatprep.subr.mxu0 0.0
    %2948 = vmatpush2.msra.mxu0 0.0
    %2949 = vmatprep.subr.mxu0 0.0
    %2950 = vmatpush2.msra.mxu0 0.0
    %2951 = vmatprep.subr.mxu0 0.0
    %2952 = vmatpush2.msra.mxu0 0.0
    %2953 = vmatprep.subr.mxu0 0.0
    %2954 = vmatpush2.msra.mxu0 0.0
    %2955 = vmatprep.subr.mxu0 0.0
    %2956 = vmatpush2.msra.mxu0 0.0
    %2957 = vmatprep.subr.mxu0 0.0
    %2958 = vmatpush2.msra.mxu0 0.0
    %2959 = vmatprep.mubr.f32.mxu0 0.0
    %2960 = vmatmul.mubr.f32.gmra.mxu0 %v2752
    %v2961 = vpop.f32.mrf.mxu0
    %v2962 = vadd.f32 0.0, %v2961
    %v2963 = vpop.f32.mrf.mxu0
    %v2964 = vadd.f32 0.0, %v2963
    %2965 = vdwg.mxu0
    %v2966 = vadd.f32 %v2755, %v2891
    %v2967 = vadd.f32 %v2756, %v2893
    %v2968 = vadd.f32 %v2757, %v2962
    %v2969 = vadd.f32 %v2758, %v2964
    %v2970 = vmul.f32 %v2966, 0.5
    %v2971 = vtanh.pop %v2970
    %v2972 = vmul.f32 %v2971, 0.5
    %v2973 = vadd.f32 %v2972, 0.5
    %v2974 = vmul.f32 %v2967, 0.5
    %v2975 = vtanh.pop %v2974
    %v2976 = vmul.f32 %v2975, 0.5
    %v2977 = vadd.f32 %v2976, 0.5
    %v2978 = vtanh.pop %v2968
    %v2979 = vmul.f32 %v2969, 0.5
    %v2980 = vtanh.pop %v2979
    %v2981 = vmul.f32 %v2980, 0.5
    %v2982 = vadd.f32 %v2981, 0.5
    %v2983 = vmul.f32 %v2977, %v2754
    %v2984 = vmul.f32 %v2973, %v2978
    %v2985 = vadd.f32 %v2983, %v2984
    %v2986 = vtanh.pop %v2985
    %v2987 = vmul.f32 %v2982, %v2986
    %v2988 = vsel %vm668, %v2987, 0.0
    %2989 = vst [vmem:[#allocation9] sm:$0xff] %v2988
    %v2990 = vsel %vm668, %v2987, %v2752
    %v2991 = vsel %vm668, %v2985, %v2754
    %v2992 = vld [vmem:[%s676] sm:$0xff]
    %v2993 = vld [vmem:[%s676 + $0x8] sm:$0xff]
    %v2994 = vld [vmem:[%s676 + $0x10] sm:$0xff]
    %v2995 = vld [vmem:[%s676 + $0x18] sm:$0xff]
    %v2996 = vld [vmem:[%s2759] sm:$0xff]
    %v2997 = vld [vmem:[%s2759 + $0x8] sm:$0xff]
    %v2998 = vld [vmem:[%s2759 + $0x10] sm:$0xff]
    %v2999 = vld [vmem:[%s2759 + $0x18] sm:$0xff]
    %v3000 = vld [vmem:[%s2759 + $0x20] sm:$0xff]
    %v3001 = vld [vmem:[%s2759 + $0x28] sm:$0xff]
    %v3002 = vld [vmem:[%s2759 + $0x30] sm:$0xff]
    %v3003 = vld [vmem:[%s2759 + $0x38] sm:$0xff]
    %v3004 = vld [vmem:[%s2759 + $0x40] sm:$0xff]
    %v3005 = vld [vmem:[%s2759 + $0x48] sm:$0xff]
    %v3006 = vld [vmem:[%s2759 + $0x50] sm:$0xff]
    %v3007 = vld [vmem:[%s2759 + $0x58] sm:$0xff]
    %v3008 = vld [vmem:[%s2759 + $0x60] sm:$0xff]
    %v3009 = vld [vmem:[%s2759 + $0x68] sm:$0xff]
    %v3010 = vld [vmem:[%s2759 + $0x70] sm:$0xff]
    %v3011 = vld [vmem:[%s2759 + $0x78] sm:$0xff]
    %v3012 = vld [vmem:[%s2759 + $0x80] sm:$0xff]
    %v3013 = vld [vmem:[%s2759 + $0x88] sm:$0xff]
    %v3014 = vld [vmem:[%s2759 + $0x90] sm:$0xff]
    %v3015 = vld [vmem:[%s2759 + $0x98] sm:$0xff]
    %v3016 = vld [vmem:[%s2759 + $0xa0] sm:$0xff]
    %v3017 = vld [vmem:[%s2759 + $0xa8] sm:$0xff]
    %v3018 = vld [vmem:[%s2759 + $0xb0] sm:$0xff]
    %v3019 = vld [vmem:[%s2759 + $0xb8] sm:$0xff]
    %v3020 = vld [vmem:[%s2759 + $0xc0] sm:$0xff]
    %v3021 = vld [vmem:[%s2759 + $0xc8] sm:$0xff]
    %v3022 = vld [vmem:[%s2759 + $0xd0] sm:$0xff]
    %v3023 = vld [vmem:[%s2759 + $0xd8] sm:$0xff]
    %v3024 = vld [vmem:[%s2759 + $0xe0] sm:$0xff]
    %v3025 = vld [vmem:[%s2759 + $0xe8] sm:$0xff]
    %v3026 = vld [vmem:[%s2759 + $0xf0] sm:$0xff]
    %v3027 = vld [vmem:[%s2759 + $0xf8] sm:$0xff]
    %v3028 = vld [vmem:[%s2759 + $0x100] sm:$0xff]
    %v3029 = vld [vmem:[%s2759 + $0x108] sm:$0xff]
    %v3030 = vld [vmem:[%s2759 + $0x110] sm:$0xff]
    %v3031 = vld [vmem:[%s2759 + $0x118] sm:$0xff]
    %v3032 = vld [vmem:[%s2759 + $0x120] sm:$0xff]
    %v3033 = vld [vmem:[%s2759 + $0x128] sm:$0xff]
    %v3034 = vld [vmem:[%s2759 + $0x130] sm:$0xff]
    %v3035 = vld [vmem:[%s2759 + $0x138] sm:$0xff]
    %v3036 = vld [vmem:[%s2759 + $0x140] sm:$0xff]
    %v3037 = vld [vmem:[%s2759 + $0x148] sm:$0xff]
    %v3038 = vld [vmem:[%s2759 + $0x150] sm:$0xff]
    %v3039 = vld [vmem:[%s2759 + $0x158] sm:$0xff]
    %v3040 = vld [vmem:[%s2759 + $0x160] sm:$0xff]
    %v3041 = vld [vmem:[%s2759 + $0x168] sm:$0xff]
    %v3042 = vld [vmem:[%s2759 + $0x170] sm:$0xff]
    %v3043 = vld [vmem:[%s2759 + $0x178] sm:$0xff]
    %v3044 = vld [vmem:[%s2759 + $0x180] sm:$0xff]
    %v3045 = vld [vmem:[%s2759 + $0x188] sm:$0xff]
    %v3046 = vld [vmem:[%s2759 + $0x190] sm:$0xff]
    %v3047 = vld [vmem:[%s2759 + $0x198] sm:$0xff]
    %v3048 = vld [vmem:[%s2759 + $0x1a0] sm:$0xff]
    %v3049 = vld [vmem:[%s2759 + $0x1a8] sm:$0xff]
    %v3050 = vld [vmem:[%s2759 + $0x1b0] sm:$0xff]
    %v3051 = vld [vmem:[%s2759 + $0x1b8] sm:$0xff]
    %v3052 = vld [vmem:[%s2759 + $0x1c0] sm:$0xff]
    %v3053 = vld [vmem:[%s2759 + $0x1c8] sm:$0xff]
    %v3054 = vld [vmem:[%s2759 + $0x1d0] sm:$0xff]
    %v3055 = vld [vmem:[%s2759 + $0x1d8] sm:$0xff]
    %v3056 = vld [vmem:[%s2759 + $0x1e0] sm:$0xff]
    %v3057 = vld [vmem:[%s2759 + $0x1e8] sm:$0xff]
    %v3058 = vld [vmem:[%s2759 + $0x1f0] sm:$0xff]
    %v3059 = vld [vmem:[%s2759 + $0x1f8] sm:$0xff]
    %3060 = vmatprep.subr.mxu0 %v3057
    %3061 = vmatpush1.msra.mxu0 %v3056
    %3062 = vmatprep.subr.mxu0 %v3053
    %3063 = vmatpush1.msra.mxu0 %v3052
    %3064 = vmatprep.subr.mxu0 %v3049
    %3065 = vmatpush1.msra.mxu0 %v3048
    %3066 = vmatprep.subr.mxu0 %v3045
    %3067 = vmatpush1.msra.mxu0 %v3044
    %3068 = vmatprep.subr.mxu0 %v3041
    %3069 = vmatpush1.msra.mxu0 %v3040
    %3070 = vmatprep.subr.mxu0 %v3037
    %3071 = vmatpush1.msra.mxu0 %v3036
    %3072 = vmatprep.subr.mxu0 %v3033
    %3073 = vmatpush1.msra.mxu0 %v3032
    %3074 = vmatprep.subr.mxu0 %v3029
    %3075 = vmatpush1.msra.mxu0 %v3028
    %3076 = vmatprep.subr.mxu0 %v3025
    %3077 = vmatpush1.msra.mxu0 %v3024
    %3078 = vmatprep.subr.mxu0 %v3021
    %3079 = vmatpush1.msra.mxu0 %v3020
    %3080 = vmatprep.subr.mxu0 %v3017
    %3081 = vmatpush1.msra.mxu0 %v3016
    %3082 = vmatprep.subr.mxu0 %v3013
    %3083 = vmatpush1.msra.mxu0 %v3012
    %3084 = vmatprep.subr.mxu0 %v3009
    %3085 = vmatpush1.msra.mxu0 %v3008
    %3086 = vmatprep.subr.mxu0 %v3005
    %3087 = vmatpush1.msra.mxu0 %v3004
    %3088 = vmatprep.subr.mxu0 %v3001
    %3089 = vmatpush1.msra.mxu0 %v3000
    %3090 = vmatprep.subr.mxu0 %v2997
    %3091 = vmatpush1.msra.mxu0 %v2996
    %3092 = vmatprep.subr.mxu0 0.0
    %3093 = vmatpush2.msra.mxu0 0.0
    %3094 = vmatprep.subr.mxu0 0.0
    %3095 = vmatpush2.msra.mxu0 0.0
    %3096 = vmatprep.subr.mxu0 0.0
    %3097 = vmatpush2.msra.mxu0 0.0
    %3098 = vmatprep.subr.mxu0 0.0
    %3099 = vmatpush2.msra.mxu0 0.0
    %3100 = vmatprep.subr.mxu0 0.0
    %3101 = vmatpush2.msra.mxu0 0.0
    %3102 = vmatprep.subr.mxu0 0.0
    %3103 = vmatpush2.msra.mxu0 0.0
    %3104 = vmatprep.subr.mxu0 0.0
    %3105 = vmatpush2.msra.mxu0 0.0
    %3106 = vmatprep.subr.mxu0 0.0
    %3107 = vmatpush2.msra.mxu0 0.0
    %3108 = vmatprep.subr.mxu0 0.0
    %3109 = vmatpush2.msra.mxu0 0.0
    %3110 = vmatprep.subr.mxu0 0.0
    %3111 = vmatpush2.msra.mxu0 0.0
    %3112 = vmatprep.subr.mxu0 0.0
    %3113 = vmatpush2.msra.mxu0 0.0
    %3114 = vmatprep.subr.mxu0 0.0
    %3115 = vmatpush2.msra.mxu0 0.0
    %3116 = vmatprep.subr.mxu0 0.0
    %3117 = vmatpush2.msra.mxu0 0.0
    %3118 = vmatprep.subr.mxu0 0.0
    %3119 = vmatpush2.msra.mxu0 0.0
    %3120 = vmatprep.subr.mxu0 0.0
    %3121 = vmatpush2.msra.mxu0 0.0
    %3122 = vmatprep.subr.mxu0 0.0
    %3123 = vmatpush2.msra.mxu0 0.0
    %3124 = vmatprep.mubr.f32.mxu0 0.0
    %3125 = vmatmul.mubr.f32.gmra.mxu0 %v2990
    %v3126 = vpop.f32.mrf.mxu0
    %v3127 = vadd.f32 0.0, %v3126
    %v3128 = vpop.f32.mrf.mxu0
    %v3129 = vadd.f32 0.0, %v3128
    %3130 = vdwg.mxu0
    %3131 = vmatprep.subr.mxu0 %v3059
    %3132 = vmatpush1.msra.mxu0 %v3058
    %3133 = vmatprep.subr.mxu0 %v3055
    %3134 = vmatpush1.msra.mxu0 %v3054
    %3135 = vmatprep.subr.mxu0 %v3051
    %3136 = vmatpush1.msra.mxu0 %v3050
    %3137 = vmatprep.subr.mxu0 %v3047
    %3138 = vmatpush1.msra.mxu0 %v3046
    %3139 = vmatprep.subr.mxu0 %v3043
    %3140 = vmatpush1.msra.mxu0 %v3042
    %3141 = vmatprep.subr.mxu0 %v3039
    %3142 = vmatpush1.msra.mxu0 %v3038
    %3143 = vmatprep.subr.mxu0 %v3035
    %3144 = vmatpush1.msra.mxu0 %v3034
    %3145 = vmatprep.subr.mxu0 %v3031
    %3146 = vmatpush1.msra.mxu0 %v3030
    %3147 = vmatprep.subr.mxu0 %v3027
    %3148 = vmatpush1.msra.mxu0 %v3026
    %3149 = vmatprep.subr.mxu0 %v3023
    %3150 = vmatpush1.msra.mxu0 %v3022
    %3151 = vmatprep.subr.mxu0 %v3019
    %3152 = vmatpush1.msra.mxu0 %v3018
    %3153 = vmatprep.subr.mxu0 %v3015
    %3154 = vmatpush1.msra.mxu0 %v3014
    %3155 = vmatprep.subr.mxu0 %v3011
    %3156 = vmatpush1.msra.mxu0 %v3010
    %3157 = vmatprep.subr.mxu0 %v3007
    %3158 = vmatpush1.msra.mxu0 %v3006
    %3159 = vmatprep.subr.mxu0 %v3003
    %3160 = vmatpush1.msra.mxu0 %v3002
    %3161 = vmatprep.subr.mxu0 %v2999
    %3162 = vmatpush1.msra.mxu0 %v2998
    %3163 = vmatprep.subr.mxu0 0.0
    %3164 = vmatpush2.msra.mxu0 0.0
    %3165 = vmatprep.subr.mxu0 0.0
    %3166 = vmatpush2.msra.mxu0 0.0
    %3167 = vmatprep.subr.mxu0 0.0
    %3168 = vmatpush2.msra.mxu0 0.0
    %3169 = vmatprep.subr.mxu0 0.0
    %3170 = vmatpush2.msra.mxu0 0.0
    %3171 = vmatprep.subr.mxu0 0.0
    %3172 = vmatpush2.msra.mxu0 0.0
    %3173 = vmatprep.subr.mxu0 0.0
    %3174 = vmatpush2.msra.mxu0 0.0
    %3175 = vmatprep.subr.mxu0 0.0
    %3176 = vmatpush2.msra.mxu0 0.0
    %3177 = vmatprep.subr.mxu0 0.0
    %3178 = vmatpush2.msra.mxu0 0.0
    %3179 = vmatprep.subr.mxu0 0.0
    %3180 = vmatpush2.msra.mxu0 0.0
    %3181 = vmatprep.subr.mxu0 0.0
    %3182 = vmatpush2.msra.mxu0 0.0
    %3183 = vmatprep.subr.mxu0 0.0
    %3184 = vmatpush2.msra.mxu0 0.0
    %3185 = vmatprep.subr.mxu0 0.0
    %3186 = vmatpush2.msra.mxu0 0.0
    %3187 = vmatprep.subr.mxu0 0.0
    %3188 = vmatpush2.msra.mxu0 0.0
    %3189 = vmatprep.subr.mxu0 0.0
    %3190 = vmatpush2.msra.mxu0 0.0
    %3191 = vmatprep.subr.mxu0 0.0
    %3192 = vmatpush2.msra.mxu0 0.0
    %3193 = vmatprep.subr.mxu0 0.0
    %3194 = vmatpush2.msra.mxu0 0.0
    %3195 = vmatprep.mubr.f32.mxu0 0.0
    %3196 = vmatmul.mubr.f32.gmra.mxu0 %v2990
    %v3197 = vpop.f32.mrf.mxu0
    %v3198 = vadd.f32 0.0, %v3197
    %v3199 = vpop.f32.mrf.mxu0
    %v3200 = vadd.f32 0.0, %v3199
    %3201 = vdwg.mxu0
    %v3202 = vadd.f32 %v2992, %v3127
    %v3203 = vadd.f32 %v2993, %v3129
    %v3204 = vadd.f32 %v2994, %v3198
    %v3205 = vadd.f32 %v2995, %v3200
    %v3206 = vmul.f32 %v3202, 0.5
    %v3207 = vtanh.pop %v3206
    %v3208 = vmul.f32 %v3207, 0.5
    %v3209 = vadd.f32 %v3208, 0.5
    %v3210 = vmul.f32 %v3203, 0.5
    %v3211 = vtanh.pop %v3210
    %v3212 = vmul.f32 %v3211, 0.5
    %v3213 = vadd.f32 %v3212, 0.5
    %v3214 = vtanh.pop %v3204
    %v3215 = vmul.f32 %v3205, 0.5
    %v3216 = vtanh.pop %v3215
    %v3217 = vmul.f32 %v3216, 0.5
    %v3218 = vadd.f32 %v3217, 0.5
    %v3219 = vmul.f32 %v3213, %v2991
    %v3220 = vmul.f32 %v3209, %v3214
    %v3221 = vadd.f32 %v3219, %v3220
    %v3222 = vtanh.pop %v3221
    %v3223 = vmul.f32 %v3218, %v3222
    %v3224 = vsel %vm913, %v3223, 0.0
    %3225 = vst [vmem:[%s915] sm:$0xff] %v3224
    %v3226 = vsel %vm913, %v3223, %v2990
    %v3227 = vsel %vm913, %v3221, %v2991
    %v3228 = vld [vmem:[%s922] sm:$0xff]
    %v3229 = vld [vmem:[%s922 + $0x8] sm:$0xff]
    %v3230 = vld [vmem:[%s922 + $0x10] sm:$0xff]
    %v3231 = vld [vmem:[%s922 + $0x18] sm:$0xff]
    %v3232 = vld [vmem:[%s2759] sm:$0xff]
    %v3233 = vld [vmem:[%s2759 + $0x8] sm:$0xff]
    %v3234 = vld [vmem:[%s2759 + $0x10] sm:$0xff]
    %v3235 = vld [vmem:[%s2759 + $0x18] sm:$0xff]
    %v3236 = vld [vmem:[%s2759 + $0x20] sm:$0xff]
    %v3237 = vld [vmem:[%s2759 + $0x28] sm:$0xff]
    %v3238 = vld [vmem:[%s2759 + $0x30] sm:$0xff]
    %v3239 = vld [vmem:[%s2759 + $0x38] sm:$0xff]
    %v3240 = vld [vmem:[%s2759 + $0x40] sm:$0xff]
    %v3241 = vld [vmem:[%s2759 + $0x48] sm:$0xff]
    %v3242 = vld [vmem:[%s2759 + $0x50] sm:$0xff]
    %v3243 = vld [vmem:[%s2759 + $0x58] sm:$0xff]
    %v3244 = vld [vmem:[%s2759 + $0x60] sm:$0xff]
    %v3245 = vld [vmem:[%s2759 + $0x68] sm:$0xff]
    %v3246 = vld [vmem:[%s2759 + $0x70] sm:$0xff]
    %v3247 = vld [vmem:[%s2759 + $0x78] sm:$0xff]
    %v3248 = vld [vmem:[%s2759 + $0x80] sm:$0xff]
    %v3249 = vld [vmem:[%s2759 + $0x88] sm:$0xff]
    %v3250 = vld [vmem:[%s2759 + $0x90] sm:$0xff]
    %v3251 = vld [vmem:[%s2759 + $0x98] sm:$0xff]
    %v3252 = vld [vmem:[%s2759 + $0xa0] sm:$0xff]
    %v3253 = vld [vmem:[%s2759 + $0xa8] sm:$0xff]
    %v3254 = vld [vmem:[%s2759 + $0xb0] sm:$0xff]
    %v3255 = vld [vmem:[%s2759 + $0xb8] sm:$0xff]
    %v3256 = vld [vmem:[%s2759 + $0xc0] sm:$0xff]
    %v3257 = vld [vmem:[%s2759 + $0xc8] sm:$0xff]
    %v3258 = vld [vmem:[%s2759 + $0xd0] sm:$0xff]
    %v3259 = vld [vmem:[%s2759 + $0xd8] sm:$0xff]
    %v3260 = vld [vmem:[%s2759 + $0xe0] sm:$0xff]
    %v3261 = vld [vmem:[%s2759 + $0xe8] sm:$0xff]
    %v3262 = vld [vmem:[%s2759 + $0xf0] sm:$0xff]
    %v3263 = vld [vmem:[%s2759 + $0xf8] sm:$0xff]
    %v3264 = vld [vmem:[%s2759 + $0x100] sm:$0xff]
    %v3265 = vld [vmem:[%s2759 + $0x108] sm:$0xff]
    %v3266 = vld [vmem:[%s2759 + $0x110] sm:$0xff]
    %v3267 = vld [vmem:[%s2759 + $0x118] sm:$0xff]
    %v3268 = vld [vmem:[%s2759 + $0x120] sm:$0xff]
    %v3269 = vld [vmem:[%s2759 + $0x128] sm:$0xff]
    %v3270 = vld [vmem:[%s2759 + $0x130] sm:$0xff]
    %v3271 = vld [vmem:[%s2759 + $0x138] sm:$0xff]
    %v3272 = vld [vmem:[%s2759 + $0x140] sm:$0xff]
    %v3273 = vld [vmem:[%s2759 + $0x148] sm:$0xff]
    %v3274 = vld [vmem:[%s2759 + $0x150] sm:$0xff]
    %v3275 = vld [vmem:[%s2759 + $0x158] sm:$0xff]
    %v3276 = vld [vmem:[%s2759 + $0x160] sm:$0xff]
    %v3277 = vld [vmem:[%s2759 + $0x168] sm:$0xff]
    %v3278 = vld [vmem:[%s2759 + $0x170] sm:$0xff]
    %v3279 = vld [vmem:[%s2759 + $0x178] sm:$0xff]
    %v3280 = vld [vmem:[%s2759 + $0x180] sm:$0xff]
    %v3281 = vld [vmem:[%s2759 + $0x188] sm:$0xff]
    %v3282 = vld [vmem:[%s2759 + $0x190] sm:$0xff]
    %v3283 = vld [vmem:[%s2759 + $0x198] sm:$0xff]
    %v3284 = vld [vmem:[%s2759 + $0x1a0] sm:$0xff]
    %v3285 = vld [vmem:[%s2759 + $0x1a8] sm:$0xff]
    %v3286 = vld [vmem:[%s2759 + $0x1b0] sm:$0xff]
    %v3287 = vld [vmem:[%s2759 + $0x1b8] sm:$0xff]
    %v3288 = vld [vmem:[%s2759 + $0x1c0] sm:$0xff]
    %v3289 = vld [vmem:[%s2759 + $0x1c8] sm:$0xff]
    %v3290 = vld [vmem:[%s2759 + $0x1d0] sm:$0xff]
    %v3291 = vld [vmem:[%s2759 + $0x1d8] sm:$0xff]
    %v3292 = vld [vmem:[%s2759 + $0x1e0] sm:$0xff]
    %v3293 = vld [vmem:[%s2759 + $0x1e8] sm:$0xff]
    %v3294 = vld [vmem:[%s2759 + $0x1f0] sm:$0xff]
    %v3295 = vld [vmem:[%s2759 + $0x1f8] sm:$0xff]
    %3296 = vmatprep.subr.mxu0 %v3293
    %3297 = vmatpush1.msra.mxu0 %v3292
    %3298 = vmatprep.subr.mxu0 %v3289
    %3299 = vmatpush1.msra.mxu0 %v3288
    %3300 = vmatprep.subr.mxu0 %v3285
    %3301 = vmatpush1.msra.mxu0 %v3284
    %3302 = vmatprep.subr.mxu0 %v3281
    %3303 = vmatpush1.msra.mxu0 %v3280
    %3304 = vmatprep.subr.mxu0 %v3277
    %3305 = vmatpush1.msra.mxu0 %v3276
    %3306 = vmatprep.subr.mxu0 %v3273
    %3307 = vmatpush1.msra.mxu0 %v3272
    %3308 = vmatprep.subr.mxu0 %v3269
    %3309 = vmatpush1.msra.mxu0 %v3268
    %3310 = vmatprep.subr.mxu0 %v3265
    %3311 = vmatpush1.msra.mxu0 %v3264
    %3312 = vmatprep.subr.mxu0 %v3261
    %3313 = vmatpush1.msra.mxu0 %v3260
    %3314 = vmatprep.subr.mxu0 %v3257
    %3315 = vmatpush1.msra.mxu0 %v3256
    %3316 = vmatprep.subr.mxu0 %v3253
    %3317 = vmatpush1.msra.mxu0 %v3252
    %3318 = vmatprep.subr.mxu0 %v3249
    %3319 = vmatpush1.msra.mxu0 %v3248
    %3320 = vmatprep.subr.mxu0 %v3245
    %3321 = vmatpush1.msra.mxu0 %v3244
    %3322 = vmatprep.subr.mxu0 %v3241
    %3323 = vmatpush1.msra.mxu0 %v3240
    %3324 = vmatprep.subr.mxu0 %v3237
    %3325 = vmatpush1.msra.mxu0 %v3236
    %3326 = vmatprep.subr.mxu0 %v3233
    %3327 = vmatpush1.msra.mxu0 %v3232
    %3328 = vmatprep.subr.mxu0 0.0
    %3329 = vmatpush2.msra.mxu0 0.0
    %3330 = vmatprep.subr.mxu0 0.0
    %3331 = vmatpush2.msra.mxu0 0.0
    %3332 = vmatprep.subr.mxu0 0.0
    %3333 = vmatpush2.msra.mxu0 0.0
    %3334 = vmatprep.subr.mxu0 0.0
    %3335 = vmatpush2.msra.mxu0 0.0
    %3336 = vmatprep.subr.mxu0 0.0
    %3337 = vmatpush2.msra.mxu0 0.0
    %3338 = vmatprep.subr.mxu0 0.0
    %3339 = vmatpush2.msra.mxu0 0.0
    %3340 = vmatprep.subr.mxu0 0.0
    %3341 = vmatpush2.msra.mxu0 0.0
    %3342 = vmatprep.subr.mxu0 0.0
    %3343 = vmatpush2.msra.mxu0 0.0
    %3344 = vmatprep.subr.mxu0 0.0
    %3345 = vmatpush2.msra.mxu0 0.0
    %3346 = vmatprep.subr.mxu0 0.0
    %3347 = vmatpush2.msra.mxu0 0.0
    %3348 = vmatprep.subr.mxu0 0.0
    %3349 = vmatpush2.msra.mxu0 0.0
    %3350 = vmatprep.subr.mxu0 0.0
    %3351 = vmatpush2.msra.mxu0 0.0
    %3352 = vmatprep.subr.mxu0 0.0
    %3353 = vmatpush2.msra.mxu0 0.0
    %3354 = vmatprep.subr.mxu0 0.0
    %3355 = vmatpush2.msra.mxu0 0.0
    %3356 = vmatprep.subr.mxu0 0.0
    %3357 = vmatpush2.msra.mxu0 0.0
    %3358 = vmatprep.subr.mxu0 0.0
    %3359 = vmatpush2.msra.mxu0 0.0
    %3360 = vmatprep.mubr.f32.mxu0 0.0
    %3361 = vmatmul.mubr.f32.gmra.mxu0 %v3226
    %v3362 = vpop.f32.mrf.mxu0
    %v3363 = vadd.f32 0.0, %v3362
    %v3364 = vpop.f32.mrf.mxu0
    %v3365 = vadd.f32 0.0, %v3364
    %3366 = vdwg.mxu0
    %3367 = vmatprep.subr.mxu0 %v3295
    %3368 = vmatpush1.msra.mxu0 %v3294
    %3369 = vmatprep.subr.mxu0 %v3291
    %3370 = vmatpush1.msra.mxu0 %v3290
    %3371 = vmatprep.subr.mxu0 %v3287
    %3372 = vmatpush1.msra.mxu0 %v3286
    %3373 = vmatprep.subr.mxu0 %v3283
    %3374 = vmatpush1.msra.mxu0 %v3282
    %3375 = vmatprep.subr.mxu0 %v3279
    %3376 = vmatpush1.msra.mxu0 %v3278
    %3377 = vmatprep.subr.mxu0 %v3275
    %3378 = vmatpush1.msra.mxu0 %v3274
    %3379 = vmatprep.subr.mxu0 %v3271
    %3380 = vmatpush1.msra.mxu0 %v3270
    %3381 = vmatprep.subr.mxu0 %v3267
    %3382 = vmatpush1.msra.mxu0 %v3266
    %3383 = vmatprep.subr.mxu0 %v3263
    %3384 = vmatpush1.msra.mxu0 %v3262
    %3385 = vmatprep.subr.mxu0 %v3259
    %3386 = vmatpush1.msra.mxu0 %v3258
    %3387 = vmatprep.subr.mxu0 %v3255
    %3388 = vmatpush1.msra.mxu0 %v3254
    %3389 = vmatprep.subr.mxu0 %v3251
    %3390 = vmatpush1.msra.mxu0 %v3250
    %3391 = vmatprep.subr.mxu0 %v3247
    %3392 = vmatpush1.msra.mxu0 %v3246
    %3393 = vmatprep.subr.mxu0 %v3243
    %3394 = vmatpush1.msra.mxu0 %v3242
    %3395 = vmatprep.subr.mxu0 %v3239
    %3396 = vmatpush1.msra.mxu0 %v3238
    %3397 = vmatprep.subr.mxu0 %v3235
    %3398 = vmatpush1.msra.mxu0 %v3234
    %3399 = vmatprep.subr.mxu0 0.0
    %3400 = vmatpush2.msra.mxu0 0.0
    %3401 = vmatprep.subr.mxu0 0.0
    %3402 = vmatpush2.msra.mxu0 0.0
    %3403 = vmatprep.subr.mxu0 0.0
    %3404 = vmatpush2.msra.mxu0 0.0
    %3405 = vmatprep.subr.mxu0 0.0
    %3406 = vmatpush2.msra.mxu0 0.0
    %3407 = vmatprep.subr.mxu0 0.0
    %3408 = vmatpush2.msra.mxu0 0.0
    %3409 = vmatprep.subr.mxu0 0.0
    %3410 = vmatpush2.msra.mxu0 0.0
    %3411 = vmatprep.subr.mxu0 0.0
    %3412 = vmatpush2.msra.mxu0 0.0
    %3413 = vmatprep.subr.mxu0 0.0
    %3414 = vmatpush2.msra.mxu0 0.0
    %3415 = vmatprep.subr.mxu0 0.0
    %3416 = vmatpush2.msra.mxu0 0.0
    %3417 = vmatprep.subr.mxu0 0.0
    %3418 = vmatpush2.msra.mxu0 0.0
    %3419 = vmatprep.subr.mxu0 0.0
    %3420 = vmatpush2.msra.mxu0 0.0
    %3421 = vmatprep.subr.mxu0 0.0
    %3422 = vmatpush2.msra.mxu0 0.0
    %3423 = vmatprep.subr.mxu0 0.0
    %3424 = vmatpush2.msra.mxu0 0.0
    %3425 = vmatprep.subr.mxu0 0.0
    %3426 = vmatpush2.msra.mxu0 0.0
    %3427 = vmatprep.subr.mxu0 0.0
    %3428 = vmatpush2.msra.mxu0 0.0
    %3429 = vmatprep.subr.mxu0 0.0
    %3430 = vmatpush2.msra.mxu0 0.0
    %3431 = vmatprep.mubr.f32.mxu0 0.0
    %3432 = vmatmul.mubr.f32.gmra.mxu0 %v3226
    %v3433 = vpop.f32.mrf.mxu0
    %v3434 = vadd.f32 0.0, %v3433
    %v3435 = vpop.f32.mrf.mxu0
    %v3436 = vadd.f32 0.0, %v3435
    %3437 = vdwg.mxu0
    %v3438 = vadd.f32 %v3228, %v3363
    %v3439 = vadd.f32 %v3229, %v3365
    %v3440 = vadd.f32 %v3230, %v3434
    %v3441 = vadd.f32 %v3231, %v3436
    %v3442 = vmul.f32 %v3438, 0.5
    %v3443 = vtanh.pop %v3442
    %v3444 = vmul.f32 %v3443, 0.5
    %v3445 = vadd.f32 %v3444, 0.5
    %v3446 = vmul.f32 %v3439, 0.5
    %v3447 = vtanh.pop %v3446
    %v3448 = vmul.f32 %v3447, 0.5
    %v3449 = vadd.f32 %v3448, 0.5
    %v3450 = vtanh.pop %v3440
    %v3451 = vmul.f32 %v3441, 0.5
    %v3452 = vtanh.pop %v3451
    %v3453 = vmul.f32 %v3452, 0.5
    %v3454 = vadd.f32 %v3453, 0.5
    %v3455 = vmul.f32 %v3449, %v3227
    %v3456 = vmul.f32 %v3445, %v3450
    %v3457 = vadd.f32 %v3455, %v3456
    %v3458 = vtanh.pop %v3457
    %v3459 = vmul.f32 %v3454, %v3458
    %v3460 = vsel %vm1159, %v3459, 0.0
    %3461 = vst [vmem:[%s1161] sm:$0xff] %v3460
    %v3462 = vsel %vm1159, %v3459, %v3226
    %v3463 = vsel %vm1159, %v3457, %v3227
    %v3464 = vld [vmem:[%s1168] sm:$0xff]
    %v3465 = vld [vmem:[%s1168 + $0x8] sm:$0xff]
    %v3466 = vld [vmem:[%s1168 + $0x10] sm:$0xff]
    %v3467 = vld [vmem:[%s1168 + $0x18] sm:$0xff]
    %v3468 = vld [vmem:[%s2759] sm:$0xff]
    %v3469 = vld [vmem:[%s2759 + $0x8] sm:$0xff]
    %v3470 = vld [vmem:[%s2759 + $0x10] sm:$0xff]
    %v3471 = vld [vmem:[%s2759 + $0x18] sm:$0xff]
    %v3472 = vld [vmem:[%s2759 + $0x20] sm:$0xff]
    %v3473 = vld [vmem:[%s2759 + $0x28] sm:$0xff]
    %v3474 = vld [vmem:[%s2759 + $0x30] sm:$0xff]
    %v3475 = vld [vmem:[%s2759 + $0x38] sm:$0xff]
    %v3476 = vld [vmem:[%s2759 + $0x40] sm:$0xff]
    %v3477 = vld [vmem:[%s2759 + $0x48] sm:$0xff]
    %v3478 = vld [vmem:[%s2759 + $0x50] sm:$0xff]
    %v3479 = vld [vmem:[%s2759 + $0x58] sm:$0xff]
    %v3480 = vld [vmem:[%s2759 + $0x60] sm:$0xff]
    %v3481 = vld [vmem:[%s2759 + $0x68] sm:$0xff]
    %v3482 = vld [vmem:[%s2759 + $0x70] sm:$0xff]
    %v3483 = vld [vmem:[%s2759 + $0x78] sm:$0xff]
    %v3484 = vld [vmem:[%s2759 + $0x80] sm:$0xff]
    %v3485 = vld [vmem:[%s2759 + $0x88] sm:$0xff]
    %v3486 = vld [vmem:[%s2759 + $0x90] sm:$0xff]
    %v3487 = vld [vmem:[%s2759 + $0x98] sm:$0xff]
    %v3488 = vld [vmem:[%s2759 + $0xa0] sm:$0xff]
    %v3489 = vld [vmem:[%s2759 + $0xa8] sm:$0xff]
    %v3490 = vld [vmem:[%s2759 + $0xb0] sm:$0xff]
    %v3491 = vld [vmem:[%s2759 + $0xb8] sm:$0xff]
    %v3492 = vld [vmem:[%s2759 + $0xc0] sm:$0xff]
    %v3493 = vld [vmem:[%s2759 + $0xc8] sm:$0xff]
    %v3494 = vld [vmem:[%s2759 + $0xd0] sm:$0xff]
    %v3495 = vld [vmem:[%s2759 + $0xd8] sm:$0xff]
    %v3496 = vld [vmem:[%s2759 + $0xe0] sm:$0xff]
    %v3497 = vld [vmem:[%s2759 + $0xe8] sm:$0xff]
    %v3498 = vld [vmem:[%s2759 + $0xf0] sm:$0xff]
    %v3499 = vld [vmem:[%s2759 + $0xf8] sm:$0xff]
    %v3500 = vld [vmem:[%s2759 + $0x100] sm:$0xff]
    %v3501 = vld [vmem:[%s2759 + $0x108] sm:$0xff]
    %v3502 = vld [vmem:[%s2759 + $0x110] sm:$0xff]
    %v3503 = vld [vmem:[%s2759 + $0x118] sm:$0xff]
    %v3504 = vld [vmem:[%s2759 + $0x120] sm:$0xff]
    %v3505 = vld [vmem:[%s2759 + $0x128] sm:$0xff]
    %v3506 = vld [vmem:[%s2759 + $0x130] sm:$0xff]
    %v3507 = vld [vmem:[%s2759 + $0x138] sm:$0xff]
    %v3508 = vld [vmem:[%s2759 + $0x140] sm:$0xff]
    %v3509 = vld [vmem:[%s2759 + $0x148] sm:$0xff]
    %v3510 = vld [vmem:[%s2759 + $0x150] sm:$0xff]
    %v3511 = vld [vmem:[%s2759 + $0x158] sm:$0xff]
    %v3512 = vld [vmem:[%s2759 + $0x160] sm:$0xff]
    %v3513 = vld [vmem:[%s2759 + $0x168] sm:$0xff]
    %v3514 = vld [vmem:[%s2759 + $0x170] sm:$0xff]
    %v3515 = vld [vmem:[%s2759 + $0x178] sm:$0xff]
    %v3516 = vld [vmem:[%s2759 + $0x180] sm:$0xff]
    %v3517 = vld [vmem:[%s2759 + $0x188] sm:$0xff]
    %v3518 = vld [vmem:[%s2759 + $0x190] sm:$0xff]
    %v3519 = vld [vmem:[%s2759 + $0x198] sm:$0xff]
    %v3520 = vld [vmem:[%s2759 + $0x1a0] sm:$0xff]
    %v3521 = vld [vmem:[%s2759 + $0x1a8] sm:$0xff]
    %v3522 = vld [vmem:[%s2759 + $0x1b0] sm:$0xff]
    %v3523 = vld [vmem:[%s2759 + $0x1b8] sm:$0xff]
    %v3524 = vld [vmem:[%s2759 + $0x1c0] sm:$0xff]
    %v3525 = vld [vmem:[%s2759 + $0x1c8] sm:$0xff]
    %v3526 = vld [vmem:[%s2759 + $0x1d0] sm:$0xff]
    %v3527 = vld [vmem:[%s2759 + $0x1d8] sm:$0xff]
    %v3528 = vld [vmem:[%s2759 + $0x1e0] sm:$0xff]
    %v3529 = vld [vmem:[%s2759 + $0x1e8] sm:$0xff]
    %v3530 = vld [vmem:[%s2759 + $0x1f0] sm:$0xff]
    %v3531 = vld [vmem:[%s2759 + $0x1f8] sm:$0xff]
    %3532 = vmatprep.subr.mxu0 %v3529
    %3533 = vmatpush1.msra.mxu0 %v3528
    %3534 = vmatprep.subr.mxu0 %v3525
    %3535 = vmatpush1.msra.mxu0 %v3524
    %3536 = vmatprep.subr.mxu0 %v3521
    %3537 = vmatpush1.msra.mxu0 %v3520
    %3538 = vmatprep.subr.mxu0 %v3517
    %3539 = vmatpush1.msra.mxu0 %v3516
    %3540 = vmatprep.subr.mxu0 %v3513
    %3541 = vmatpush1.msra.mxu0 %v3512
    %3542 = vmatprep.subr.mxu0 %v3509
    %3543 = vmatpush1.msra.mxu0 %v3508
    %3544 = vmatprep.subr.mxu0 %v3505
    %3545 = vmatpush1.msra.mxu0 %v3504
    %3546 = vmatprep.subr.mxu0 %v3501
    %3547 = vmatpush1.msra.mxu0 %v3500
    %3548 = vmatprep.subr.mxu0 %v3497
    %3549 = vmatpush1.msra.mxu0 %v3496
    %3550 = vmatprep.subr.mxu0 %v3493
    %3551 = vmatpush1.msra.mxu0 %v3492
    %3552 = vmatprep.subr.mxu0 %v3489
    %3553 = vmatpush1.msra.mxu0 %v3488
    %3554 = vmatprep.subr.mxu0 %v3485
    %3555 = vmatpush1.msra.mxu0 %v3484
    %3556 = vmatprep.subr.mxu0 %v3481
    %3557 = vmatpush1.msra.mxu0 %v3480
    %3558 = vmatprep.subr.mxu0 %v3477
    %3559 = vmatpush1.msra.mxu0 %v3476
    %3560 = vmatprep.subr.mxu0 %v3473
    %3561 = vmatpush1.msra.mxu0 %v3472
    %3562 = vmatprep.subr.mxu0 %v3469
    %3563 = vmatpush1.msra.mxu0 %v3468
    %3564 = vmatprep.subr.mxu0 0.0
    %3565 = vmatpush2.msra.mxu0 0.0
    %3566 = vmatprep.subr.mxu0 0.0
    %3567 = vmatpush2.msra.mxu0 0.0
    %3568 = vmatprep.subr.mxu0 0.0
    %3569 = vmatpush2.msra.mxu0 0.0
    %3570 = vmatprep.subr.mxu0 0.0
    %3571 = vmatpush2.msra.mxu0 0.0
    %3572 = vmatprep.subr.mxu0 0.0
    %3573 = vmatpush2.msra.mxu0 0.0
    %3574 = vmatprep.subr.mxu0 0.0
    %3575 = vmatpush2.msra.mxu0 0.0
    %3576 = vmatprep.subr.mxu0 0.0
    %3577 = vmatpush2.msra.mxu0 0.0
    %3578 = vmatprep.subr.mxu0 0.0
    %3579 = vmatpush2.msra.mxu0 0.0
    %3580 = vmatprep.subr.mxu0 0.0
    %3581 = vmatpush2.msra.mxu0 0.0
    %3582 = vmatprep.subr.mxu0 0.0
    %3583 = vmatpush2.msra.mxu0 0.0
    %3584 = vmatprep.subr.mxu0 0.0
    %3585 = vmatpush2.msra.mxu0 0.0
    %3586 = vmatprep.subr.mxu0 0.0
    %3587 = vmatpush2.msra.mxu0 0.0
    %3588 = vmatprep.subr.mxu0 0.0
    %3589 = vmatpush2.msra.mxu0 0.0
    %3590 = vmatprep.subr.mxu0 0.0
    %3591 = vmatpush2.msra.mxu0 0.0
    %3592 = vmatprep.subr.mxu0 0.0
    %3593 = vmatpush2.msra.mxu0 0.0
    %3594 = vmatprep.subr.mxu0 0.0
    %3595 = vmatpush2.msra.mxu0 0.0
    %3596 = vmatprep.mubr.f32.mxu0 0.0
    %3597 = vmatmul.mubr.f32.gmra.mxu0 %v3462
    %v3598 = vpop.f32.mrf.mxu0
    %v3599 = vadd.f32 0.0, %v3598
    %v3600 = vpop.f32.mrf.mxu0
    %v3601 = vadd.f32 0.0, %v3600
    %3602 = vdwg.mxu0
    %3603 = vmatprep.subr.mxu0 %v3531
    %3604 = vmatpush1.msra.mxu0 %v3530
    %3605 = vmatprep.subr.mxu0 %v3527
    %3606 = vmatpush1.msra.mxu0 %v3526
    %3607 = vmatprep.subr.mxu0 %v3523
    %3608 = vmatpush1.msra.mxu0 %v3522
    %3609 = vmatprep.subr.mxu0 %v3519
    %3610 = vmatpush1.msra.mxu0 %v3518
    %3611 = vmatprep.subr.mxu0 %v3515
    %3612 = vmatpush1.msra.mxu0 %v3514
    %3613 = vmatprep.subr.mxu0 %v3511
    %3614 = vmatpush1.msra.mxu0 %v3510
    %3615 = vmatprep.subr.mxu0 %v3507
    %3616 = vmatpush1.msra.mxu0 %v3506
    %3617 = vmatprep.subr.mxu0 %v3503
    %3618 = vmatpush1.msra.mxu0 %v3502
    %3619 = vmatprep.subr.mxu0 %v3499
    %3620 = vmatpush1.msra.mxu0 %v3498
    %3621 = vmatprep.subr.mxu0 %v3495
    %3622 = vmatpush1.msra.mxu0 %v3494
    %3623 = vmatprep.subr.mxu0 %v3491
    %3624 = vmatpush1.msra.mxu0 %v3490
    %3625 = vmatprep.subr.mxu0 %v3487
    %3626 = vmatpush1.msra.mxu0 %v3486
    %3627 = vmatprep.subr.mxu0 %v3483
    %3628 = vmatpush1.msra.mxu0 %v3482
    %3629 = vmatprep.subr.mxu0 %v3479
    %3630 = vmatpush1.msra.mxu0 %v3478
    %3631 = vmatprep.subr.mxu0 %v3475
    %3632 = vmatpush1.msra.mxu0 %v3474
    %3633 = vmatprep.subr.mxu0 %v3471
    %3634 = vmatpush1.msra.mxu0 %v3470
    %3635 = vmatprep.subr.mxu0 0.0
    %3636 = vmatpush2.msra.mxu0 0.0
    %3637 = vmatprep.subr.mxu0 0.0
    %3638 = vmatpush2.msra.mxu0 0.0
    %3639 = vmatprep.subr.mxu0 0.0
    %3640 = vmatpush2.msra.mxu0 0.0
    %3641 = vmatprep.subr.mxu0 0.0
    %3642 = vmatpush2.msra.mxu0 0.0
    %3643 = vmatprep.subr.mxu0 0.0
    %3644 = vmatpush2.msra.mxu0 0.0
    %3645 = vmatprep.subr.mxu0 0.0
    %3646 = vmatpush2.msra.mxu0 0.0
    %3647 = vmatprep.subr.mxu0 0.0
    %3648 = vmatpush2.msra.mxu0 0.0
    %3649 = vmatprep.subr.mxu0 0.0
    %3650 = vmatpush2.msra.mxu0 0.0
    %3651 = vmatprep.subr.mxu0 0.0
    %3652 = vmatpush2.msra.mxu0 0.0
    %3653 = vmatprep.subr.mxu0 0.0
    %3654 = vmatpush2.msra.mxu0 0.0
    %3655 = vmatprep.subr.mxu0 0.0
    %3656 = vmatpush2.msra.mxu0 0.0
    %3657 = vmatprep.subr.mxu0 0.0
    %3658 = vmatpush2.msra.mxu0 0.0
    %3659 = vmatprep.subr.mxu0 0.0
    %3660 = vmatpush2.msra.mxu0 0.0
    %3661 = vmatprep.subr.mxu0 0.0
    %3662 = vmatpush2.msra.mxu0 0.0
    %3663 = vmatprep.subr.mxu0 0.0
    %3664 = vmatpush2.msra.mxu0 0.0
    %3665 = vmatprep.subr.mxu0 0.0
    %3666 = vmatpush2.msra.mxu0 0.0
    %3667 = vmatprep.mubr.f32.mxu0 0.0
    %3668 = vmatmul.mubr.f32.gmra.mxu0 %v3462
    %v3669 = vpop.f32.mrf.mxu0
    %v3670 = vadd.f32 0.0, %v3669
    %v3671 = vpop.f32.mrf.mxu0
    %v3672 = vadd.f32 0.0, %v3671
    %3673 = vdwg.mxu0
    %v3674 = vadd.f32 %v3464, %v3599
    %v3675 = vadd.f32 %v3465, %v3601
    %v3676 = vadd.f32 %v3466, %v3670
    %v3677 = vadd.f32 %v3467, %v3672
    %v3678 = vmul.f32 %v3674, 0.5
    %v3679 = vtanh.pop %v3678
    %v3680 = vmul.f32 %v3679, 0.5
    %v3681 = vadd.f32 %v3680, 0.5
    %v3682 = vmul.f32 %v3675, 0.5
    %v3683 = vtanh.pop %v3682
    %v3684 = vmul.f32 %v3683, 0.5
    %v3685 = vadd.f32 %v3684, 0.5
    %v3686 = vtanh.pop %v3676
    %v3687 = vmul.f32 %v3677, 0.5
    %v3688 = vtanh.pop %v3687
    %v3689 = vmul.f32 %v3688, 0.5
    %v3690 = vadd.f32 %v3689, 0.5
    %v3691 = vmul.f32 %v3685, %v3463
    %v3692 = vmul.f32 %v3681, %v3686
    %v3693 = vadd.f32 %v3691, %v3692
    %v3694 = vtanh.pop %v3693
    %v3695 = vmul.f32 %v3690, %v3694
    %v3696 = vsel %vm1405, %v3695, 0.0
    %3697 = vst [vmem:[%s1407] sm:$0xff] %v3696
    %v3698 = vsel %vm1405, %v3695, %v3462
    %v3699 = vsel %vm1405, %v3693, %v3463
    %v3700 = vld [vmem:[%s1414] sm:$0xff]
    %v3701 = vld [vmem:[%s1414 + $0x8] sm:$0xff]
    %v3702 = vld [vmem:[%s1414 + $0x10] sm:$0xff]
    %v3703 = vld [vmem:[%s1414 + $0x18] sm:$0xff]
    %v3704 = vld [vmem:[%s2759] sm:$0xff]
    %v3705 = vld [vmem:[%s2759 + $0x8] sm:$0xff]
    %v3706 = vld [vmem:[%s2759 + $0x10] sm:$0xff]
    %v3707 = vld [vmem:[%s2759 + $0x18] sm:$0xff]
    %v3708 = vld [vmem:[%s2759 + $0x20] sm:$0xff]
    %v3709 = vld [vmem:[%s2759 + $0x28] sm:$0xff]
    %v3710 = vld [vmem:[%s2759 + $0x30] sm:$0xff]
    %v3711 = vld [vmem:[%s2759 + $0x38] sm:$0xff]
    %v3712 = vld [vmem:[%s2759 + $0x40] sm:$0xff]
    %v3713 = vld [vmem:[%s2759 + $0x48] sm:$0xff]
    %v3714 = vld [vmem:[%s2759 + $0x50] sm:$0xff]
    %v3715 = vld [vmem:[%s2759 + $0x58] sm:$0xff]
    %v3716 = vld [vmem:[%s2759 + $0x60] sm:$0xff]
    %v3717 = vld [vmem:[%s2759 + $0x68] sm:$0xff]
    %v3718 = vld [vmem:[%s2759 + $0x70] sm:$0xff]
    %v3719 = vld [vmem:[%s2759 + $0x78] sm:$0xff]
    %v3720 = vld [vmem:[%s2759 + $0x80] sm:$0xff]
    %v3721 = vld [vmem:[%s2759 + $0x88] sm:$0xff]
    %v3722 = vld [vmem:[%s2759 + $0x90] sm:$0xff]
    %v3723 = vld [vmem:[%s2759 + $0x98] sm:$0xff]
    %v3724 = vld [vmem:[%s2759 + $0xa0] sm:$0xff]
    %v3725 = vld [vmem:[%s2759 + $0xa8] sm:$0xff]
    %v3726 = vld [vmem:[%s2759 + $0xb0] sm:$0xff]
    %v3727 = vld [vmem:[%s2759 + $0xb8] sm:$0xff]
    %v3728 = vld [vmem:[%s2759 + $0xc0] sm:$0xff]
    %v3729 = vld [vmem:[%s2759 + $0xc8] sm:$0xff]
    %v3730 = vld [vmem:[%s2759 + $0xd0] sm:$0xff]
    %v3731 = vld [vmem:[%s2759 + $0xd8] sm:$0xff]
    %v3732 = vld [vmem:[%s2759 + $0xe0] sm:$0xff]
    %v3733 = vld [vmem:[%s2759 + $0xe8] sm:$0xff]
    %v3734 = vld [vmem:[%s2759 + $0xf0] sm:$0xff]
    %v3735 = vld [vmem:[%s2759 + $0xf8] sm:$0xff]
    %v3736 = vld [vmem:[%s2759 + $0x100] sm:$0xff]
    %v3737 = vld [vmem:[%s2759 + $0x108] sm:$0xff]
    %v3738 = vld [vmem:[%s2759 + $0x110] sm:$0xff]
    %v3739 = vld [vmem:[%s2759 + $0x118] sm:$0xff]
    %v3740 = vld [vmem:[%s2759 + $0x120] sm:$0xff]
    %v3741 = vld [vmem:[%s2759 + $0x128] sm:$0xff]
    %v3742 = vld [vmem:[%s2759 + $0x130] sm:$0xff]
    %v3743 = vld [vmem:[%s2759 + $0x138] sm:$0xff]
    %v3744 = vld [vmem:[%s2759 + $0x140] sm:$0xff]
    %v3745 = vld [vmem:[%s2759 + $0x148] sm:$0xff]
    %v3746 = vld [vmem:[%s2759 + $0x150] sm:$0xff]
    %v3747 = vld [vmem:[%s2759 + $0x158] sm:$0xff]
    %v3748 = vld [vmem:[%s2759 + $0x160] sm:$0xff]
    %v3749 = vld [vmem:[%s2759 + $0x168] sm:$0xff]
    %v3750 = vld [vmem:[%s2759 + $0x170] sm:$0xff]
    %v3751 = vld [vmem:[%s2759 + $0x178] sm:$0xff]
    %v3752 = vld [vmem:[%s2759 + $0x180] sm:$0xff]
    %v3753 = vld [vmem:[%s2759 + $0x188] sm:$0xff]
    %v3754 = vld [vmem:[%s2759 + $0x190] sm:$0xff]
    %v3755 = vld [vmem:[%s2759 + $0x198] sm:$0xff]
    %v3756 = vld [vmem:[%s2759 + $0x1a0] sm:$0xff]
    %v3757 = vld [vmem:[%s2759 + $0x1a8] sm:$0xff]
    %v3758 = vld [vmem:[%s2759 + $0x1b0] sm:$0xff]
    %v3759 = vld [vmem:[%s2759 + $0x1b8] sm:$0xff]
    %v3760 = vld [vmem:[%s2759 + $0x1c0] sm:$0xff]
    %v3761 = vld [vmem:[%s2759 + $0x1c8] sm:$0xff]
    %v3762 = vld [vmem:[%s2759 + $0x1d0] sm:$0xff]
    %v3763 = vld [vmem:[%s2759 + $0x1d8] sm:$0xff]
    %v3764 = vld [vmem:[%s2759 + $0x1e0] sm:$0xff]
    %v3765 = vld [vmem:[%s2759 + $0x1e8] sm:$0xff]
    %v3766 = vld [vmem:[%s2759 + $0x1f0] sm:$0xff]
    %v3767 = vld [vmem:[%s2759 + $0x1f8] sm:$0xff]
    %3768 = vmatprep.subr.mxu0 %v3765
    %3769 = vmatpush1.msra.mxu0 %v3764
    %3770 = vmatprep.subr.mxu0 %v3761
    %3771 = vmatpush1.msra.mxu0 %v3760
    %3772 = vmatprep.subr.mxu0 %v3757
    %3773 = vmatpush1.msra.mxu0 %v3756
    %3774 = vmatprep.subr.mxu0 %v3753
    %3775 = vmatpush1.msra.mxu0 %v3752
    %3776 = vmatprep.subr.mxu0 %v3749
    %3777 = vmatpush1.msra.mxu0 %v3748
    %3778 = vmatprep.subr.mxu0 %v3745
    %3779 = vmatpush1.msra.mxu0 %v3744
    %3780 = vmatprep.subr.mxu0 %v3741
    %3781 = vmatpush1.msra.mxu0 %v3740
    %3782 = vmatprep.subr.mxu0 %v3737
    %3783 = vmatpush1.msra.mxu0 %v3736
    %3784 = vmatprep.subr.mxu0 %v3733
    %3785 = vmatpush1.msra.mxu0 %v3732
    %3786 = vmatprep.subr.mxu0 %v3729
    %3787 = vmatpush1.msra.mxu0 %v3728
    %3788 = vmatprep.subr.mxu0 %v3725
    %3789 = vmatpush1.msra.mxu0 %v3724
    %3790 = vmatprep.subr.mxu0 %v3721
    %3791 = vmatpush1.msra.mxu0 %v3720
    %3792 = vmatprep.subr.mxu0 %v3717
    %3793 = vmatpush1.msra.mxu0 %v3716
    %3794 = vmatprep.subr.mxu0 %v3713
    %3795 = vmatpush1.msra.mxu0 %v3712
    %3796 = vmatprep.subr.mxu0 %v3709
    %3797 = vmatpush1.msra.mxu0 %v3708
    %3798 = vmatprep.subr.mxu0 %v3705
    %3799 = vmatpush1.msra.mxu0 %v3704
    %3800 = vmatprep.subr.mxu0 0.0
    %3801 = vmatpush2.msra.mxu0 0.0
    %3802 = vmatprep.subr.mxu0 0.0
    %3803 = vmatpush2.msra.mxu0 0.0
    %3804 = vmatprep.subr.mxu0 0.0
    %3805 = vmatpush2.msra.mxu0 0.0
    %3806 = vmatprep.subr.mxu0 0.0
    %3807 = vmatpush2.msra.mxu0 0.0
    %3808 = vmatprep.subr.mxu0 0.0
    %3809 = vmatpush2.msra.mxu0 0.0
    %3810 = vmatprep.subr.mxu0 0.0
    %3811 = vmatpush2.msra.mxu0 0.0
    %3812 = vmatprep.subr.mxu0 0.0
    %3813 = vmatpush2.msra.mxu0 0.0
    %3814 = vmatprep.subr.mxu0 0.0
    %3815 = vmatpush2.msra.mxu0 0.0
    %3816 = vmatprep.subr.mxu0 0.0
    %3817 = vmatpush2.msra.mxu0 0.0
    %3818 = vmatprep.subr.mxu0 0.0
    %3819 = vmatpush2.msra.mxu0 0.0
    %3820 = vmatprep.subr.mxu0 0.0
    %3821 = vmatpush2.msra.mxu0 0.0
    %3822 = vmatprep.subr.mxu0 0.0
    %3823 = vmatpush2.msra.mxu0 0.0
    %3824 = vmatprep.subr.mxu0 0.0
    %3825 = vmatpush2.msra.mxu0 0.0
    %3826 = vmatprep.subr.mxu0 0.0
    %3827 = vmatpush2.msra.mxu0 0.0
    %3828 = vmatprep.subr.mxu0 0.0
    %3829 = vmatpush2.msra.mxu0 0.0
    %3830 = vmatprep.subr.mxu0 0.0
    %3831 = vmatpush2.msra.mxu0 0.0
    %3832 = vmatprep.mubr.f32.mxu0 0.0
    %3833 = vmatmul.mubr.f32.gmra.mxu0 %v3698
    %v3834 = vpop.f32.mrf.mxu0
    %v3835 = vadd.f32 0.0, %v3834
    %v3836 = vpop.f32.mrf.mxu0
    %v3837 = vadd.f32 0.0, %v3836
    %3838 = vdwg.mxu0
    %3839 = vmatprep.subr.mxu0 %v3767
    %3840 = vmatpush1.msra.mxu0 %v3766
    %3841 = vmatprep.subr.mxu0 %v3763
    %3842 = vmatpush1.msra.mxu0 %v3762
    %3843 = vmatprep.subr.mxu0 %v3759
    %3844 = vmatpush1.msra.mxu0 %v3758
    %3845 = vmatprep.subr.mxu0 %v3755
    %3846 = vmatpush1.msra.mxu0 %v3754
    %3847 = vmatprep.subr.mxu0 %v3751
    %3848 = vmatpush1.msra.mxu0 %v3750
    %3849 = vmatprep.subr.mxu0 %v3747
    %3850 = vmatpush1.msra.mxu0 %v3746
    %3851 = vmatprep.subr.mxu0 %v3743
    %3852 = vmatpush1.msra.mxu0 %v3742
    %3853 = vmatprep.subr.mxu0 %v3739
    %3854 = vmatpush1.msra.mxu0 %v3738
    %3855 = vmatprep.subr.mxu0 %v3735
    %3856 = vmatpush1.msra.mxu0 %v3734
    %3857 = vmatprep.subr.mxu0 %v3731
    %3858 = vmatpush1.msra.mxu0 %v3730
    %3859 = vmatprep.subr.mxu0 %v3727
    %3860 = vmatpush1.msra.mxu0 %v3726
    %3861 = vmatprep.subr.mxu0 %v3723
    %3862 = vmatpush1.msra.mxu0 %v3722
    %3863 = vmatprep.subr.mxu0 %v3719
    %3864 = vmatpush1.msra.mxu0 %v3718
    %3865 = vmatprep.subr.mxu0 %v3715
    %3866 = vmatpush1.msra.mxu0 %v3714
    %3867 = vmatprep.subr.mxu0 %v3711
    %3868 = vmatpush1.msra.mxu0 %v3710
    %3869 = vmatprep.subr.mxu0 %v3707
    %3870 = vmatpush1.msra.mxu0 %v3706
    %3871 = vmatprep.subr.mxu0 0.0
    %3872 = vmatpush2.msra.mxu0 0.0
    %3873 = vmatprep.subr.mxu0 0.0
    %3874 = vmatpush2.msra.mxu0 0.0
    %3875 = vmatprep.subr.mxu0 0.0
    %3876 = vmatpush2.msra.mxu0 0.0
    %3877 = vmatprep.subr.mxu0 0.0
    %3878 = vmatpush2.msra.mxu0 0.0
    %3879 = vmatprep.subr.mxu0 0.0
    %3880 = vmatpush2.msra.mxu0 0.0
    %3881 = vmatprep.subr.mxu0 0.0
    %3882 = vmatpush2.msra.mxu0 0.0
    %3883 = vmatprep.subr.mxu0 0.0
    %3884 = vmatpush2.msra.mxu0 0.0
    %3885 = vmatprep.subr.mxu0 0.0
    %3886 = vmatpush2.msra.mxu0 0.0
    %3887 = vmatprep.subr.mxu0 0.0
    %3888 = vmatpush2.msra.mxu0 0.0
    %3889 = vmatprep.subr.mxu0 0.0
    %3890 = vmatpush2.msra.mxu0 0.0
    %3891 = vmatprep.subr.mxu0 0.0
    %3892 = vmatpush2.msra.mxu0 0.0
    %3893 = vmatprep.subr.mxu0 0.0
    %3894 = vmatpush2.msra.mxu0 0.0
    %3895 = vmatprep.subr.mxu0 0.0
    %3896 = vmatpush2.msra.mxu0 0.0
    %3897 = vmatprep.subr.mxu0 0.0
    %3898 = vmatpush2.msra.mxu0 0.0
    %3899 = vmatprep.subr.mxu0 0.0
    %3900 = vmatpush2.msra.mxu0 0.0
    %3901 = vmatprep.subr.mxu0 0.0
    %3902 = vmatpush2.msra.mxu0 0.0
    %3903 = vmatprep.mubr.f32.mxu0 0.0
    %3904 = vmatmul.mubr.f32.gmra.mxu0 %v3698
    %v3905 = vpop.f32.mrf.mxu0
    %v3906 = vadd.f32 0.0, %v3905
    %v3907 = vpop.f32.mrf.mxu0
    %v3908 = vadd.f32 0.0, %v3907
    %3909 = vdwg.mxu0
    %v3910 = vadd.f32 %v3700, %v3835
    %v3911 = vadd.f32 %v3701, %v3837
    %v3912 = vadd.f32 %v3702, %v3906
    %v3913 = vadd.f32 %v3703, %v3908
    %v3914 = vmul.f32 %v3910, 0.5
    %v3915 = vtanh.pop %v3914
    %v3916 = vmul.f32 %v3915, 0.5
    %v3917 = vadd.f32 %v3916, 0.5
    %v3918 = vmul.f32 %v3911, 0.5
    %v3919 = vtanh.pop %v3918
    %v3920 = vmul.f32 %v3919, 0.5
    %v3921 = vadd.f32 %v3920, 0.5
    %v3922 = vtanh.pop %v3912
    %v3923 = vmul.f32 %v3913, 0.5
    %v3924 = vtanh.pop %v3923
    %v3925 = vmul.f32 %v3924, 0.5
    %v3926 = vadd.f32 %v3925, 0.5
    %v3927 = vmul.f32 %v3921, %v3699
    %v3928 = vmul.f32 %v3917, %v3922
    %v3929 = vadd.f32 %v3927, %v3928
    %v3930 = vtanh.pop %v3929
    %v3931 = vmul.f32 %v3926, %v3930
    %v3932 = vsel %vm1651, %v3931, 0.0
    %3933 = vst [vmem:[%s1653] sm:$0xff] %v3932
    %v3934 = vsel %vm1651, %v3931, %v3698
    %v3935 = vsel %vm1651, %v3929, %v3699
    %v3936 = vld [vmem:[%s1660] sm:$0xff]
    %v3937 = vld [vmem:[%s1660 + $0x8] sm:$0xff]
    %v3938 = vld [vmem:[%s1660 + $0x10] sm:$0xff]
    %v3939 = vld [vmem:[%s1660 + $0x18] sm:$0xff]
    %v3940 = vld [vmem:[%s2759] sm:$0xff]
    %v3941 = vld [vmem:[%s2759 + $0x8] sm:$0xff]
    %v3942 = vld [vmem:[%s2759 + $0x10] sm:$0xff]
    %v3943 = vld [vmem:[%s2759 + $0x18] sm:$0xff]
    %v3944 = vld [vmem:[%s2759 + $0x20] sm:$0xff]
    %v3945 = vld [vmem:[%s2759 + $0x28] sm:$0xff]
    %v3946 = vld [vmem:[%s2759 + $0x30] sm:$0xff]
    %v3947 = vld [vmem:[%s2759 + $0x38] sm:$0xff]
    %v3948 = vld [vmem:[%s2759 + $0x40] sm:$0xff]
    %v3949 = vld [vmem:[%s2759 + $0x48] sm:$0xff]
    %v3950 = vld [vmem:[%s2759 + $0x50] sm:$0xff]
    %v3951 = vld [vmem:[%s2759 + $0x58] sm:$0xff]
    %v3952 = vld [vmem:[%s2759 + $0x60] sm:$0xff]
    %v3953 = vld [vmem:[%s2759 + $0x68] sm:$0xff]
    %v3954 = vld [vmem:[%s2759 + $0x70] sm:$0xff]
    %v3955 = vld [vmem:[%s2759 + $0x78] sm:$0xff]
    %v3956 = vld [vmem:[%s2759 + $0x80] sm:$0xff]
    %v3957 = vld [vmem:[%s2759 + $0x88] sm:$0xff]
    %v3958 = vld [vmem:[%s2759 + $0x90] sm:$0xff]
    %v3959 = vld [vmem:[%s2759 + $0x98] sm:$0xff]
    %v3960 = vld [vmem:[%s2759 + $0xa0] sm:$0xff]
    %v3961 = vld [vmem:[%s2759 + $0xa8] sm:$0xff]
    %v3962 = vld [vmem:[%s2759 + $0xb0] sm:$0xff]
    %v3963 = vld [vmem:[%s2759 + $0xb8] sm:$0xff]
    %v3964 = vld [vmem:[%s2759 + $0xc0] sm:$0xff]
    %v3965 = vld [vmem:[%s2759 + $0xc8] sm:$0xff]
    %v3966 = vld [vmem:[%s2759 + $0xd0] sm:$0xff]
    %v3967 = vld [vmem:[%s2759 + $0xd8] sm:$0xff]
    %v3968 = vld [vmem:[%s2759 + $0xe0] sm:$0xff]
    %v3969 = vld [vmem:[%s2759 + $0xe8] sm:$0xff]
    %v3970 = vld [vmem:[%s2759 + $0xf0] sm:$0xff]
    %v3971 = vld [vmem:[%s2759 + $0xf8] sm:$0xff]
    %v3972 = vld [vmem:[%s2759 + $0x100] sm:$0xff]
    %v3973 = vld [vmem:[%s2759 + $0x108] sm:$0xff]
    %v3974 = vld [vmem:[%s2759 + $0x110] sm:$0xff]
    %v3975 = vld [vmem:[%s2759 + $0x118] sm:$0xff]
    %v3976 = vld [vmem:[%s2759 + $0x120] sm:$0xff]
    %v3977 = vld [vmem:[%s2759 + $0x128] sm:$0xff]
    %v3978 = vld [vmem:[%s2759 + $0x130] sm:$0xff]
    %v3979 = vld [vmem:[%s2759 + $0x138] sm:$0xff]
    %v3980 = vld [vmem:[%s2759 + $0x140] sm:$0xff]
    %v3981 = vld [vmem:[%s2759 + $0x148] sm:$0xff]
    %v3982 = vld [vmem:[%s2759 + $0x150] sm:$0xff]
    %v3983 = vld [vmem:[%s2759 + $0x158] sm:$0xff]
    %v3984 = vld [vmem:[%s2759 + $0x160] sm:$0xff]
    %v3985 = vld [vmem:[%s2759 + $0x168] sm:$0xff]
    %v3986 = vld [vmem:[%s2759 + $0x170] sm:$0xff]
    %v3987 = vld [vmem:[%s2759 + $0x178] sm:$0xff]
    %v3988 = vld [vmem:[%s2759 + $0x180] sm:$0xff]
    %v3989 = vld [vmem:[%s2759 + $0x188] sm:$0xff]
    %v3990 = vld [vmem:[%s2759 + $0x190] sm:$0xff]
    %v3991 = vld [vmem:[%s2759 + $0x198] sm:$0xff]
    %v3992 = vld [vmem:[%s2759 + $0x1a0] sm:$0xff]
    %v3993 = vld [vmem:[%s2759 + $0x1a8] sm:$0xff]
    %v3994 = vld [vmem:[%s2759 + $0x1b0] sm:$0xff]
    %v3995 = vld [vmem:[%s2759 + $0x1b8] sm:$0xff]
    %v3996 = vld [vmem:[%s2759 + $0x1c0] sm:$0xff]
    %v3997 = vld [vmem:[%s2759 + $0x1c8] sm:$0xff]
    %v3998 = vld [vmem:[%s2759 + $0x1d0] sm:$0xff]
    %v3999 = vld [vmem:[%s2759 + $0x1d8] sm:$0xff]
    %v4000 = vld [vmem:[%s2759 + $0x1e0] sm:$0xff]
    %v4001 = vld [vmem:[%s2759 + $0x1e8] sm:$0xff]
    %v4002 = vld [vmem:[%s2759 + $0x1f0] sm:$0xff]
    %v4003 = vld [vmem:[%s2759 + $0x1f8] sm:$0xff]
    %4004 = vmatprep.subr.mxu0 %v4001
    %4005 = vmatpush1.msra.mxu0 %v4000
    %4006 = vmatprep.subr.mxu0 %v3997
    %4007 = vmatpush1.msra.mxu0 %v3996
    %4008 = vmatprep.subr.mxu0 %v3993
    %4009 = vmatpush1.msra.mxu0 %v3992
    %4010 = vmatprep.subr.mxu0 %v3989
    %4011 = vmatpush1.msra.mxu0 %v3988
    %4012 = vmatprep.subr.mxu0 %v3985
    %4013 = vmatpush1.msra.mxu0 %v3984
    %4014 = vmatprep.subr.mxu0 %v3981
    %4015 = vmatpush1.msra.mxu0 %v3980
    %4016 = vmatprep.subr.mxu0 %v3977
    %4017 = vmatpush1.msra.mxu0 %v3976
    %4018 = vmatprep.subr.mxu0 %v3973
    %4019 = vmatpush1.msra.mxu0 %v3972
    %4020 = vmatprep.subr.mxu0 %v3969
    %4021 = vmatpush1.msra.mxu0 %v3968
    %4022 = vmatprep.subr.mxu0 %v3965
    %4023 = vmatpush1.msra.mxu0 %v3964
    %4024 = vmatprep.subr.mxu0 %v3961
    %4025 = vmatpush1.msra.mxu0 %v3960
    %4026 = vmatprep.subr.mxu0 %v3957
    %4027 = vmatpush1.msra.mxu0 %v3956
    %4028 = vmatprep.subr.mxu0 %v3953
    %4029 = vmatpush1.msra.mxu0 %v3952
    %4030 = vmatprep.subr.mxu0 %v3949
    %4031 = vmatpush1.msra.mxu0 %v3948
    %4032 = vmatprep.subr.mxu0 %v3945
    %4033 = vmatpush1.msra.mxu0 %v3944
    %4034 = vmatprep.subr.mxu0 %v3941
    %4035 = vmatpush1.msra.mxu0 %v3940
    %4036 = vmatprep.subr.mxu0 0.0
    %4037 = vmatpush2.msra.mxu0 0.0
    %4038 = vmatprep.subr.mxu0 0.0
    %4039 = vmatpush2.msra.mxu0 0.0
    %4040 = vmatprep.subr.mxu0 0.0
    %4041 = vmatpush2.msra.mxu0 0.0
    %4042 = vmatprep.subr.mxu0 0.0
    %4043 = vmatpush2.msra.mxu0 0.0
    %4044 = vmatprep.subr.mxu0 0.0
    %4045 = vmatpush2.msra.mxu0 0.0
    %4046 = vmatprep.subr.mxu0 0.0
    %4047 = vmatpush2.msra.mxu0 0.0
    %4048 = vmatprep.subr.mxu0 0.0
    %4049 = vmatpush2.msra.mxu0 0.0
    %4050 = vmatprep.subr.mxu0 0.0
    %4051 = vmatpush2.msra.mxu0 0.0
    %4052 = vmatprep.subr.mxu0 0.0
    %4053 = vmatpush2.msra.mxu0 0.0
    %4054 = vmatprep.subr.mxu0 0.0
    %4055 = vmatpush2.msra.mxu0 0.0
    %4056 = vmatprep.subr.mxu0 0.0
    %4057 = vmatpush2.msra.mxu0 0.0
    %4058 = vmatprep.subr.mxu0 0.0
    %4059 = vmatpush2.msra.mxu0 0.0
    %4060 = vmatprep.subr.mxu0 0.0
    %4061 = vmatpush2.msra.mxu0 0.0
    %4062 = vmatprep.subr.mxu0 0.0
    %4063 = vmatpush2.msra.mxu0 0.0
    %4064 = vmatprep.subr.mxu0 0.0
    %4065 = vmatpush2.msra.mxu0 0.0
    %4066 = vmatprep.subr.mxu0 0.0
    %4067 = vmatpush2.msra.mxu0 0.0
    %4068 = vmatprep.mubr.f32.mxu0 0.0
    %4069 = vmatmul.mubr.f32.gmra.mxu0 %v3934
    %v4070 = vpop.f32.mrf.mxu0
    %v4071 = vadd.f32 0.0, %v4070
    %v4072 = vpop.f32.mrf.mxu0
    %v4073 = vadd.f32 0.0, %v4072
    %4074 = vdwg.mxu0
    %4075 = vmatprep.subr.mxu0 %v4003
    %4076 = vmatpush1.msra.mxu0 %v4002
    %4077 = vmatprep.subr.mxu0 %v3999
    %4078 = vmatpush1.msra.mxu0 %v3998
    %4079 = vmatprep.subr.mxu0 %v3995
    %4080 = vmatpush1.msra.mxu0 %v3994
    %4081 = vmatprep.subr.mxu0 %v3991
    %4082 = vmatpush1.msra.mxu0 %v3990
    %4083 = vmatprep.subr.mxu0 %v3987
    %4084 = vmatpush1.msra.mxu0 %v3986
    %4085 = vmatprep.subr.mxu0 %v3983
    %4086 = vmatpush1.msra.mxu0 %v3982
    %4087 = vmatprep.subr.mxu0 %v3979
    %4088 = vmatpush1.msra.mxu0 %v3978
    %4089 = vmatprep.subr.mxu0 %v3975
    %4090 = vmatpush1.msra.mxu0 %v3974
    %4091 = vmatprep.subr.mxu0 %v3971
    %4092 = vmatpush1.msra.mxu0 %v3970
    %4093 = vmatprep.subr.mxu0 %v3967
    %4094 = vmatpush1.msra.mxu0 %v3966
    %4095 = vmatprep.subr.mxu0 %v3963
    %4096 = vmatpush1.msra.mxu0 %v3962
    %4097 = vmatprep.subr.mxu0 %v3959
    %4098 = vmatpush1.msra.mxu0 %v3958
    %4099 = vmatprep.subr.mxu0 %v3955
    %4100 = vmatpush1.msra.mxu0 %v3954
    %4101 = vmatprep.subr.mxu0 %v3951
    %4102 = vmatpush1.msra.mxu0 %v3950
    %4103 = vmatprep.subr.mxu0 %v3947
    %4104 = vmatpush1.msra.mxu0 %v3946
    %4105 = vmatprep.subr.mxu0 %v3943
    %4106 = vmatpush1.msra.mxu0 %v3942
    %4107 = vmatprep.subr.mxu0 0.0
    %4108 = vmatpush2.msra.mxu0 0.0
    %4109 = vmatprep.subr.mxu0 0.0
    %4110 = vmatpush2.msra.mxu0 0.0
    %4111 = vmatprep.subr.mxu0 0.0
    %4112 = vmatpush2.msra.mxu0 0.0
    %4113 = vmatprep.subr.mxu0 0.0
    %4114 = vmatpush2.msra.mxu0 0.0
    %4115 = vmatprep.subr.mxu0 0.0
    %4116 = vmatpush2.msra.mxu0 0.0
    %4117 = vmatprep.subr.mxu0 0.0
    %4118 = vmatpush2.msra.mxu0 0.0
    %4119 = vmatprep.subr.mxu0 0.0
    %4120 = vmatpush2.msra.mxu0 0.0
    %4121 = vmatprep.subr.mxu0 0.0
    %4122 = vmatpush2.msra.mxu0 0.0
    %4123 = vmatprep.subr.mxu0 0.0
    %4124 = vmatpush2.msra.mxu0 0.0
    %4125 = vmatprep.subr.mxu0 0.0
    %4126 = vmatpush2.msra.mxu0 0.0
    %4127 = vmatprep.subr.mxu0 0.0
    %4128 = vmatpush2.msra.mxu0 0.0
    %4129 = vmatprep.subr.mxu0 0.0
    %4130 = vmatpush2.msra.mxu0 0.0
    %4131 = vmatprep.subr.mxu0 0.0
    %4132 = vmatpush2.msra.mxu0 0.0
    %4133 = vmatprep.subr.mxu0 0.0
    %4134 = vmatpush2.msra.mxu0 0.0
    %4135 = vmatprep.subr.mxu0 0.0
    %4136 = vmatpush2.msra.mxu0 0.0
    %4137 = vmatprep.subr.mxu0 0.0
    %4138 = vmatpush2.msra.mxu0 0.0
    %4139 = vmatprep.mubr.f32.mxu0 0.0
    %4140 = vmatmul.mubr.f32.gmra.mxu0 %v3934
    %v4141 = vpop.f32.mrf.mxu0
    %v4142 = vadd.f32 0.0, %v4141
    %v4143 = vpop.f32.mrf.mxu0
    %v4144 = vadd.f32 0.0, %v4143
    %4145 = vdwg.mxu0
    %v4146 = vadd.f32 %v3936, %v4071
    %v4147 = vadd.f32 %v3937, %v4073
    %v4148 = vadd.f32 %v3938, %v4142
    %v4149 = vadd.f32 %v3939, %v4144
    %v4150 = vmul.f32 %v4146, 0.5
    %v4151 = vtanh.pop %v4150
    %v4152 = vmul.f32 %v4151, 0.5
    %v4153 = vadd.f32 %v4152, 0.5
    %v4154 = vmul.f32 %v4147, 0.5
    %v4155 = vtanh.pop %v4154
    %v4156 = vmul.f32 %v4155, 0.5
    %v4157 = vadd.f32 %v4156, 0.5
    %v4158 = vtanh.pop %v4148
    %v4159 = vmul.f32 %v4149, 0.5
    %v4160 = vtanh.pop %v4159
    %v4161 = vmul.f32 %v4160, 0.5
    %v4162 = vadd.f32 %v4161, 0.5
    %v4163 = vmul.f32 %v4157, %v3935
    %v4164 = vmul.f32 %v4153, %v4158
    %v4165 = vadd.f32 %v4163, %v4164
    %v4166 = vtanh.pop %v4165
    %v4167 = vmul.f32 %v4162, %v4166
    %v4168 = vsel %vm1897, %v4167, 0.0
    %4169 = vst [vmem:[%s1899] sm:$0xff] %v4168
    %v4170 = vsel %vm1897, %v4167, %v3934
    %v4171 = vsel %vm1897, %v4165, %v3935
    %v4172 = vld [vmem:[%s1906] sm:$0xff]
    %v4173 = vld [vmem:[%s1906 + $0x8] sm:$0xff]
    %v4174 = vld [vmem:[%s1906 + $0x10] sm:$0xff]
    %v4175 = vld [vmem:[%s1906 + $0x18] sm:$0xff]
    %v4176 = vld [vmem:[%s2759] sm:$0xff]
    %v4177 = vld [vmem:[%s2759 + $0x8] sm:$0xff]
    %v4178 = vld [vmem:[%s2759 + $0x10] sm:$0xff]
    %v4179 = vld [vmem:[%s2759 + $0x18] sm:$0xff]
    %v4180 = vld [vmem:[%s2759 + $0x20] sm:$0xff]
    %v4181 = vld [vmem:[%s2759 + $0x28] sm:$0xff]
    %v4182 = vld [vmem:[%s2759 + $0x30] sm:$0xff]
    %v4183 = vld [vmem:[%s2759 + $0x38] sm:$0xff]
    %v4184 = vld [vmem:[%s2759 + $0x40] sm:$0xff]
    %v4185 = vld [vmem:[%s2759 + $0x48] sm:$0xff]
    %v4186 = vld [vmem:[%s2759 + $0x50] sm:$0xff]
    %v4187 = vld [vmem:[%s2759 + $0x58] sm:$0xff]
    %v4188 = vld [vmem:[%s2759 + $0x60] sm:$0xff]
    %v4189 = vld [vmem:[%s2759 + $0x68] sm:$0xff]
    %v4190 = vld [vmem:[%s2759 + $0x70] sm:$0xff]
    %v4191 = vld [vmem:[%s2759 + $0x78] sm:$0xff]
    %v4192 = vld [vmem:[%s2759 + $0x80] sm:$0xff]
    %v4193 = vld [vmem:[%s2759 + $0x88] sm:$0xff]
    %v4194 = vld [vmem:[%s2759 + $0x90] sm:$0xff]
    %v4195 = vld [vmem:[%s2759 + $0x98] sm:$0xff]
    %v4196 = vld [vmem:[%s2759 + $0xa0] sm:$0xff]
    %v4197 = vld [vmem:[%s2759 + $0xa8] sm:$0xff]
    %v4198 = vld [vmem:[%s2759 + $0xb0] sm:$0xff]
    %v4199 = vld [vmem:[%s2759 + $0xb8] sm:$0xff]
    %v4200 = vld [vmem:[%s2759 + $0xc0] sm:$0xff]
    %v4201 = vld [vmem:[%s2759 + $0xc8] sm:$0xff]
    %v4202 = vld [vmem:[%s2759 + $0xd0] sm:$0xff]
    %v4203 = vld [vmem:[%s2759 + $0xd8] sm:$0xff]
    %v4204 = vld [vmem:[%s2759 + $0xe0] sm:$0xff]
    %v4205 = vld [vmem:[%s2759 + $0xe8] sm:$0xff]
    %v4206 = vld [vmem:[%s2759 + $0xf0] sm:$0xff]
    %v4207 = vld [vmem:[%s2759 + $0xf8] sm:$0xff]
    %v4208 = vld [vmem:[%s2759 + $0x100] sm:$0xff]
    %v4209 = vld [vmem:[%s2759 + $0x108] sm:$0xff]
    %v4210 = vld [vmem:[%s2759 + $0x110] sm:$0xff]
    %v4211 = vld [vmem:[%s2759 + $0x118] sm:$0xff]
    %v4212 = vld [vmem:[%s2759 + $0x120] sm:$0xff]
    %v4213 = vld [vmem:[%s2759 + $0x128] sm:$0xff]
    %v4214 = vld [vmem:[%s2759 + $0x130] sm:$0xff]
    %v4215 = vld [vmem:[%s2759 + $0x138] sm:$0xff]
    %v4216 = vld [vmem:[%s2759 + $0x140] sm:$0xff]
    %v4217 = vld [vmem:[%s2759 + $0x148] sm:$0xff]
    %v4218 = vld [vmem:[%s2759 + $0x150] sm:$0xff]
    %v4219 = vld [vmem:[%s2759 + $0x158] sm:$0xff]
    %v4220 = vld [vmem:[%s2759 + $0x160] sm:$0xff]
    %v4221 = vld [vmem:[%s2759 + $0x168] sm:$0xff]
    %v4222 = vld [vmem:[%s2759 + $0x170] sm:$0xff]
    %v4223 = vld [vmem:[%s2759 + $0x178] sm:$0xff]
    %v4224 = vld [vmem:[%s2759 + $0x180] sm:$0xff]
    %v4225 = vld [vmem:[%s2759 + $0x188] sm:$0xff]
    %v4226 = vld [vmem:[%s2759 + $0x190] sm:$0xff]
    %v4227 = vld [vmem:[%s2759 + $0x198] sm:$0xff]
    %v4228 = vld [vmem:[%s2759 + $0x1a0] sm:$0xff]
    %v4229 = vld [vmem:[%s2759 + $0x1a8] sm:$0xff]
    %v4230 = vld [vmem:[%s2759 + $0x1b0] sm:$0xff]
    %v4231 = vld [vmem:[%s2759 + $0x1b8] sm:$0xff]
    %v4232 = vld [vmem:[%s2759 + $0x1c0] sm:$0xff]
    %v4233 = vld [vmem:[%s2759 + $0x1c8] sm:$0xff]
    %v4234 = vld [vmem:[%s2759 + $0x1d0] sm:$0xff]
    %v4235 = vld [vmem:[%s2759 + $0x1d8] sm:$0xff]
    %v4236 = vld [vmem:[%s2759 + $0x1e0] sm:$0xff]
    %v4237 = vld [vmem:[%s2759 + $0x1e8] sm:$0xff]
    %v4238 = vld [vmem:[%s2759 + $0x1f0] sm:$0xff]
    %v4239 = vld [vmem:[%s2759 + $0x1f8] sm:$0xff]
    %4240 = vmatprep.subr.mxu0 %v4237
    %4241 = vmatpush1.msra.mxu0 %v4236
    %4242 = vmatprep.subr.mxu0 %v4233
    %4243 = vmatpush1.msra.mxu0 %v4232
    %4244 = vmatprep.subr.mxu0 %v4229
    %4245 = vmatpush1.msra.mxu0 %v4228
    %4246 = vmatprep.subr.mxu0 %v4225
    %4247 = vmatpush1.msra.mxu0 %v4224
    %4248 = vmatprep.subr.mxu0 %v4221
    %4249 = vmatpush1.msra.mxu0 %v4220
    %4250 = vmatprep.subr.mxu0 %v4217
    %4251 = vmatpush1.msra.mxu0 %v4216
    %4252 = vmatprep.subr.mxu0 %v4213
    %4253 = vmatpush1.msra.mxu0 %v4212
    %4254 = vmatprep.subr.mxu0 %v4209
    %4255 = vmatpush1.msra.mxu0 %v4208
    %4256 = vmatprep.subr.mxu0 %v4205
    %4257 = vmatpush1.msra.mxu0 %v4204
    %4258 = vmatprep.subr.mxu0 %v4201
    %4259 = vmatpush1.msra.mxu0 %v4200
    %4260 = vmatprep.subr.mxu0 %v4197
    %4261 = vmatpush1.msra.mxu0 %v4196
    %4262 = vmatprep.subr.mxu0 %v4193
    %4263 = vmatpush1.msra.mxu0 %v4192
    %4264 = vmatprep.subr.mxu0 %v4189
    %4265 = vmatpush1.msra.mxu0 %v4188
    %4266 = vmatprep.subr.mxu0 %v4185
    %4267 = vmatpush1.msra.mxu0 %v4184
    %4268 = vmatprep.subr.mxu0 %v4181
    %4269 = vmatpush1.msra.mxu0 %v4180
    %4270 = vmatprep.subr.mxu0 %v4177
    %4271 = vmatpush1.msra.mxu0 %v4176
    %4272 = vmatprep.subr.mxu0 0.0
    %4273 = vmatpush2.msra.mxu0 0.0
    %4274 = vmatprep.subr.mxu0 0.0
    %4275 = vmatpush2.msra.mxu0 0.0
    %4276 = vmatprep.subr.mxu0 0.0
    %4277 = vmatpush2.msra.mxu0 0.0
    %4278 = vmatprep.subr.mxu0 0.0
    %4279 = vmatpush2.msra.mxu0 0.0
    %4280 = vmatprep.subr.mxu0 0.0
    %4281 = vmatpush2.msra.mxu0 0.0
    %4282 = vmatprep.subr.mxu0 0.0
    %4283 = vmatpush2.msra.mxu0 0.0
    %4284 = vmatprep.subr.mxu0 0.0
    %4285 = vmatpush2.msra.mxu0 0.0
    %4286 = vmatprep.subr.mxu0 0.0
    %4287 = vmatpush2.msra.mxu0 0.0
    %4288 = vmatprep.subr.mxu0 0.0
    %4289 = vmatpush2.msra.mxu0 0.0
    %4290 = vmatprep.subr.mxu0 0.0
    %4291 = vmatpush2.msra.mxu0 0.0
    %4292 = vmatprep.subr.mxu0 0.0
    %4293 = vmatpush2.msra.mxu0 0.0
    %4294 = vmatprep.subr.mxu0 0.0
    %4295 = vmatpush2.msra.mxu0 0.0
    %4296 = vmatprep.subr.mxu0 0.0
    %4297 = vmatpush2.msra.mxu0 0.0
    %4298 = vmatprep.subr.mxu0 0.0
    %4299 = vmatpush2.msra.mxu0 0.0
    %4300 = vmatprep.subr.mxu0 0.0
    %4301 = vmatpush2.msra.mxu0 0.0
    %4302 = vmatprep.subr.mxu0 0.0
    %4303 = vmatpush2.msra.mxu0 0.0
    %4304 = vmatprep.mubr.f32.mxu0 0.0
    %4305 = vmatmul.mubr.f32.gmra.mxu0 %v4170
    %v4306 = vpop.f32.mrf.mxu0
    %v4307 = vadd.f32 0.0, %v4306
    %v4308 = vpop.f32.mrf.mxu0
    %v4309 = vadd.f32 0.0, %v4308
    %4310 = vdwg.mxu0
    %4311 = vmatprep.subr.mxu0 %v4239
    %4312 = vmatpush1.msra.mxu0 %v4238
    %4313 = vmatprep.subr.mxu0 %v4235
    %4314 = vmatpush1.msra.mxu0 %v4234
    %4315 = vmatprep.subr.mxu0 %v4231
    %4316 = vmatpush1.msra.mxu0 %v4230
    %4317 = vmatprep.subr.mxu0 %v4227
    %4318 = vmatpush1.msra.mxu0 %v4226
    %4319 = vmatprep.subr.mxu0 %v4223
    %4320 = vmatpush1.msra.mxu0 %v4222
    %4321 = vmatprep.subr.mxu0 %v4219
    %4322 = vmatpush1.msra.mxu0 %v4218
    %4323 = vmatprep.subr.mxu0 %v4215
    %4324 = vmatpush1.msra.mxu0 %v4214
    %4325 = vmatprep.subr.mxu0 %v4211
    %4326 = vmatpush1.msra.mxu0 %v4210
    %4327 = vmatprep.subr.mxu0 %v4207
    %4328 = vmatpush1.msra.mxu0 %v4206
    %4329 = vmatprep.subr.mxu0 %v4203
    %4330 = vmatpush1.msra.mxu0 %v4202
    %4331 = vmatprep.subr.mxu0 %v4199
    %4332 = vmatpush1.msra.mxu0 %v4198
    %4333 = vmatprep.subr.mxu0 %v4195
    %4334 = vmatpush1.msra.mxu0 %v4194
    %4335 = vmatprep.subr.mxu0 %v4191
    %4336 = vmatpush1.msra.mxu0 %v4190
    %4337 = vmatprep.subr.mxu0 %v4187
    %4338 = vmatpush1.msra.mxu0 %v4186
    %4339 = vmatprep.subr.mxu0 %v4183
    %4340 = vmatpush1.msra.mxu0 %v4182
    %4341 = vmatprep.subr.mxu0 %v4179
    %4342 = vmatpush1.msra.mxu0 %v4178
    %4343 = vmatprep.subr.mxu0 0.0
    %4344 = vmatpush2.msra.mxu0 0.0
    %4345 = vmatprep.subr.mxu0 0.0
    %4346 = vmatpush2.msra.mxu0 0.0
    %4347 = vmatprep.subr.mxu0 0.0
    %4348 = vmatpush2.msra.mxu0 0.0
    %4349 = vmatprep.subr.mxu0 0.0
    %4350 = vmatpush2.msra.mxu0 0.0
    %4351 = vmatprep.subr.mxu0 0.0
    %4352 = vmatpush2.msra.mxu0 0.0
    %4353 = vmatprep.subr.mxu0 0.0
    %4354 = vmatpush2.msra.mxu0 0.0
    %4355 = vmatprep.subr.mxu0 0.0
    %4356 = vmatpush2.msra.mxu0 0.0
    %4357 = vmatprep.subr.mxu0 0.0
    %4358 = vmatpush2.msra.mxu0 0.0
    %4359 = vmatprep.subr.mxu0 0.0
    %4360 = vmatpush2.msra.mxu0 0.0
    %4361 = vmatprep.subr.mxu0 0.0
    %4362 = vmatpush2.msra.mxu0 0.0
    %4363 = vmatprep.subr.mxu0 0.0
    %4364 = vmatpush2.msra.mxu0 0.0
    %4365 = vmatprep.subr.mxu0 0.0
    %4366 = vmatpush2.msra.mxu0 0.0
    %4367 = vmatprep.subr.mxu0 0.0
    %4368 = vmatpush2.msra.mxu0 0.0
    %4369 = vmatprep.subr.mxu0 0.0
    %4370 = vmatpush2.msra.mxu0 0.0
    %4371 = vmatprep.subr.mxu0 0.0
    %4372 = vmatpush2.msra.mxu0 0.0
    %4373 = vmatprep.subr.mxu0 0.0
    %4374 = vmatpush2.msra.mxu0 0.0
    %4375 = vmatprep.mubr.f32.mxu0 0.0
    %4376 = vmatmul.mubr.f32.gmra.mxu0 %v4170
    %v4377 = vpop.f32.mrf.mxu0
    %v4378 = vadd.f32 0.0, %v4377
    %v4379 = vpop.f32.mrf.mxu0
    %v4380 = vadd.f32 0.0, %v4379
    %4381 = vdwg.mxu0
    %v4382 = vadd.f32 %v4172, %v4307
    %v4383 = vadd.f32 %v4173, %v4309
    %v4384 = vadd.f32 %v4174, %v4378
    %v4385 = vadd.f32 %v4175, %v4380
    %v4386 = vmul.f32 %v4382, 0.5
    %v4387 = vtanh.pop %v4386
    %v4388 = vmul.f32 %v4387, 0.5
    %v4389 = vadd.f32 %v4388, 0.5
    %v4390 = vmul.f32 %v4383, 0.5
    %v4391 = vtanh.pop %v4390
    %v4392 = vmul.f32 %v4391, 0.5
    %v4393 = vadd.f32 %v4392, 0.5
    %v4394 = vtanh.pop %v4384
    %v4395 = vmul.f32 %v4385, 0.5
    %v4396 = vtanh.pop %v4395
    %v4397 = vmul.f32 %v4396, 0.5
    %v4398 = vadd.f32 %v4397, 0.5
    %v4399 = vmul.f32 %v4393, %v4171
    %v4400 = vmul.f32 %v4389, %v4394
    %v4401 = vadd.f32 %v4399, %v4400
    %v4402 = vtanh.pop %v4401
    %v4403 = vmul.f32 %v4398, %v4402
    %v4404 = vsel %vm2143, %v4403, 0.0
    %4405 = vst [vmem:[%s2145] sm:$0xff] %v4404
    %v4406 = vsel %vm2143, %v4403, %v4170
    %v4407 = vsel %vm2143, %v4401, %v4171
    %v4408 = vld [vmem:[%s2152] sm:$0xff]
    %v4409 = vld [vmem:[%s2152 + $0x8] sm:$0xff]
    %v4410 = vld [vmem:[%s2152 + $0x10] sm:$0xff]
    %v4411 = vld [vmem:[%s2152 + $0x18] sm:$0xff]
    %v4412 = vld [vmem:[%s2759] sm:$0xff]
    %v4413 = vld [vmem:[%s2759 + $0x8] sm:$0xff]
    %v4414 = vld [vmem:[%s2759 + $0x10] sm:$0xff]
    %v4415 = vld [vmem:[%s2759 + $0x18] sm:$0xff]
    %v4416 = vld [vmem:[%s2759 + $0x20] sm:$0xff]
    %v4417 = vld [vmem:[%s2759 + $0x28] sm:$0xff]
    %v4418 = vld [vmem:[%s2759 + $0x30] sm:$0xff]
    %v4419 = vld [vmem:[%s2759 + $0x38] sm:$0xff]
    %v4420 = vld [vmem:[%s2759 + $0x40] sm:$0xff]
    %v4421 = vld [vmem:[%s2759 + $0x48] sm:$0xff]
    %v4422 = vld [vmem:[%s2759 + $0x50] sm:$0xff]
    %v4423 = vld [vmem:[%s2759 + $0x58] sm:$0xff]
    %v4424 = vld [vmem:[%s2759 + $0x60] sm:$0xff]
    %v4425 = vld [vmem:[%s2759 + $0x68] sm:$0xff]
    %v4426 = vld [vmem:[%s2759 + $0x70] sm:$0xff]
    %v4427 = vld [vmem:[%s2759 + $0x78] sm:$0xff]
    %v4428 = vld [vmem:[%s2759 + $0x80] sm:$0xff]
    %v4429 = vld [vmem:[%s2759 + $0x88] sm:$0xff]
    %v4430 = vld [vmem:[%s2759 + $0x90] sm:$0xff]
    %v4431 = vld [vmem:[%s2759 + $0x98] sm:$0xff]
    %v4432 = vld [vmem:[%s2759 + $0xa0] sm:$0xff]
    %v4433 = vld [vmem:[%s2759 + $0xa8] sm:$0xff]
    %v4434 = vld [vmem:[%s2759 + $0xb0] sm:$0xff]
    %v4435 = vld [vmem:[%s2759 + $0xb8] sm:$0xff]
    %v4436 = vld [vmem:[%s2759 + $0xc0] sm:$0xff]
    %v4437 = vld [vmem:[%s2759 + $0xc8] sm:$0xff]
    %v4438 = vld [vmem:[%s2759 + $0xd0] sm:$0xff]
    %v4439 = vld [vmem:[%s2759 + $0xd8] sm:$0xff]
    %v4440 = vld [vmem:[%s2759 + $0xe0] sm:$0xff]
    %v4441 = vld [vmem:[%s2759 + $0xe8] sm:$0xff]
    %v4442 = vld [vmem:[%s2759 + $0xf0] sm:$0xff]
    %v4443 = vld [vmem:[%s2759 + $0xf8] sm:$0xff]
    %v4444 = vld [vmem:[%s2759 + $0x100] sm:$0xff]
    %v4445 = vld [vmem:[%s2759 + $0x108] sm:$0xff]
    %v4446 = vld [vmem:[%s2759 + $0x110] sm:$0xff]
    %v4447 = vld [vmem:[%s2759 + $0x118] sm:$0xff]
    %v4448 = vld [vmem:[%s2759 + $0x120] sm:$0xff]
    %v4449 = vld [vmem:[%s2759 + $0x128] sm:$0xff]
    %v4450 = vld [vmem:[%s2759 + $0x130] sm:$0xff]
    %v4451 = vld [vmem:[%s2759 + $0x138] sm:$0xff]
    %v4452 = vld [vmem:[%s2759 + $0x140] sm:$0xff]
    %v4453 = vld [vmem:[%s2759 + $0x148] sm:$0xff]
    %v4454 = vld [vmem:[%s2759 + $0x150] sm:$0xff]
    %v4455 = vld [vmem:[%s2759 + $0x158] sm:$0xff]
    %v4456 = vld [vmem:[%s2759 + $0x160] sm:$0xff]
    %v4457 = vld [vmem:[%s2759 + $0x168] sm:$0xff]
    %v4458 = vld [vmem:[%s2759 + $0x170] sm:$0xff]
    %v4459 = vld [vmem:[%s2759 + $0x178] sm:$0xff]
    %v4460 = vld [vmem:[%s2759 + $0x180] sm:$0xff]
    %v4461 = vld [vmem:[%s2759 + $0x188] sm:$0xff]
    %v4462 = vld [vmem:[%s2759 + $0x190] sm:$0xff]
    %v4463 = vld [vmem:[%s2759 + $0x198] sm:$0xff]
    %v4464 = vld [vmem:[%s2759 + $0x1a0] sm:$0xff]
    %v4465 = vld [vmem:[%s2759 + $0x1a8] sm:$0xff]
    %v4466 = vld [vmem:[%s2759 + $0x1b0] sm:$0xff]
    %v4467 = vld [vmem:[%s2759 + $0x1b8] sm:$0xff]
    %v4468 = vld [vmem:[%s2759 + $0x1c0] sm:$0xff]
    %v4469 = vld [vmem:[%s2759 + $0x1c8] sm:$0xff]
    %v4470 = vld [vmem:[%s2759 + $0x1d0] sm:$0xff]
    %v4471 = vld [vmem:[%s2759 + $0x1d8] sm:$0xff]
    %v4472 = vld [vmem:[%s2759 + $0x1e0] sm:$0xff]
    %v4473 = vld [vmem:[%s2759 + $0x1e8] sm:$0xff]
    %v4474 = vld [vmem:[%s2759 + $0x1f0] sm:$0xff]
    %v4475 = vld [vmem:[%s2759 + $0x1f8] sm:$0xff]
    %4476 = vmatprep.subr.mxu0 %v4473
    %4477 = vmatpush1.msra.mxu0 %v4472
    %4478 = vmatprep.subr.mxu0 %v4469
    %4479 = vmatpush1.msra.mxu0 %v4468
    %4480 = vmatprep.subr.mxu0 %v4465
    %4481 = vmatpush1.msra.mxu0 %v4464
    %4482 = vmatprep.subr.mxu0 %v4461
    %4483 = vmatpush1.msra.mxu0 %v4460
    %4484 = vmatprep.subr.mxu0 %v4457
    %4485 = vmatpush1.msra.mxu0 %v4456
    %4486 = vmatprep.subr.mxu0 %v4453
    %4487 = vmatpush1.msra.mxu0 %v4452
    %4488 = vmatprep.subr.mxu0 %v4449
    %4489 = vmatpush1.msra.mxu0 %v4448
    %4490 = vmatprep.subr.mxu0 %v4445
    %4491 = vmatpush1.msra.mxu0 %v4444
    %4492 = vmatprep.subr.mxu0 %v4441
    %4493 = vmatpush1.msra.mxu0 %v4440
    %4494 = vmatprep.subr.mxu0 %v4437
    %4495 = vmatpush1.msra.mxu0 %v4436
    %4496 = vmatprep.subr.mxu0 %v4433
    %4497 = vmatpush1.msra.mxu0 %v4432
    %4498 = vmatprep.subr.mxu0 %v4429
    %4499 = vmatpush1.msra.mxu0 %v4428
    %4500 = vmatprep.subr.mxu0 %v4425
    %4501 = vmatpush1.msra.mxu0 %v4424
    %4502 = vmatprep.subr.mxu0 %v4421
    %4503 = vmatpush1.msra.mxu0 %v4420
    %4504 = vmatprep.subr.mxu0 %v4417
    %4505 = vmatpush1.msra.mxu0 %v4416
    %4506 = vmatprep.subr.mxu0 %v4413
    %4507 = vmatpush1.msra.mxu0 %v4412
    %4508 = vmatprep.subr.mxu0 0.0
    %4509 = vmatpush2.msra.mxu0 0.0
    %4510 = vmatprep.subr.mxu0 0.0
    %4511 = vmatpush2.msra.mxu0 0.0
    %4512 = vmatprep.subr.mxu0 0.0
    %4513 = vmatpush2.msra.mxu0 0.0
    %4514 = vmatprep.subr.mxu0 0.0
    %4515 = vmatpush2.msra.mxu0 0.0
    %4516 = vmatprep.subr.mxu0 0.0
    %4517 = vmatpush2.msra.mxu0 0.0
    %4518 = vmatprep.subr.mxu0 0.0
    %4519 = vmatpush2.msra.mxu0 0.0
    %4520 = vmatprep.subr.mxu0 0.0
    %4521 = vmatpush2.msra.mxu0 0.0
    %4522 = vmatprep.subr.mxu0 0.0
    %4523 = vmatpush2.msra.mxu0 0.0
    %4524 = vmatprep.subr.mxu0 0.0
    %4525 = vmatpush2.msra.mxu0 0.0
    %4526 = vmatprep.subr.mxu0 0.0
    %4527 = vmatpush2.msra.mxu0 0.0
    %4528 = vmatprep.subr.mxu0 0.0
    %4529 = vmatpush2.msra.mxu0 0.0
    %4530 = vmatprep.subr.mxu0 0.0
    %4531 = vmatpush2.msra.mxu0 0.0
    %4532 = vmatprep.subr.mxu0 0.0
    %4533 = vmatpush2.msra.mxu0 0.0
    %4534 = vmatprep.subr.mxu0 0.0
    %4535 = vmatpush2.msra.mxu0 0.0
    %4536 = vmatprep.subr.mxu0 0.0
    %4537 = vmatpush2.msra.mxu0 0.0
    %4538 = vmatprep.subr.mxu0 0.0
    %4539 = vmatpush2.msra.mxu0 0.0
    %4540 = vmatprep.mubr.f32.mxu0 0.0
    %4541 = vmatmul.mubr.f32.gmra.mxu0 %v4406
    %v4542 = vpop.f32.mrf.mxu0
    %v4543 = vadd.f32 0.0, %v4542
    %v4544 = vpop.f32.mrf.mxu0
    %v4545 = vadd.f32 0.0, %v4544
    %4546 = vdwg.mxu0
    %4547 = vmatprep.subr.mxu0 %v4475
    %4548 = vmatpush1.msra.mxu0 %v4474
    %4549 = vmatprep.subr.mxu0 %v4471
    %4550 = vmatpush1.msra.mxu0 %v4470
    %4551 = vmatprep.subr.mxu0 %v4467
    %4552 = vmatpush1.msra.mxu0 %v4466
    %4553 = vmatprep.subr.mxu0 %v4463
    %4554 = vmatpush1.msra.mxu0 %v4462
    %4555 = vmatprep.subr.mxu0 %v4459
    %4556 = vmatpush1.msra.mxu0 %v4458
    %4557 = vmatprep.subr.mxu0 %v4455
    %4558 = vmatpush1.msra.mxu0 %v4454
    %4559 = vmatprep.subr.mxu0 %v4451
    %4560 = vmatpush1.msra.mxu0 %v4450
    %4561 = vmatprep.subr.mxu0 %v4447
    %4562 = vmatpush1.msra.mxu0 %v4446
    %4563 = vmatprep.subr.mxu0 %v4443
    %4564 = vmatpush1.msra.mxu0 %v4442
    %4565 = vmatprep.subr.mxu0 %v4439
    %4566 = vmatpush1.msra.mxu0 %v4438
    %4567 = vmatprep.subr.mxu0 %v4435
    %4568 = vmatpush1.msra.mxu0 %v4434
    %4569 = vmatprep.subr.mxu0 %v4431
    %4570 = vmatpush1.msra.mxu0 %v4430
    %4571 = vmatprep.subr.mxu0 %v4427
    %4572 = vmatpush1.msra.mxu0 %v4426
    %4573 = vmatprep.subr.mxu0 %v4423
    %4574 = vmatpush1.msra.mxu0 %v4422
    %4575 = vmatprep.subr.mxu0 %v4419
    %4576 = vmatpush1.msra.mxu0 %v4418
    %4577 = vmatprep.subr.mxu0 %v4415
    %4578 = vmatpush1.msra.mxu0 %v4414
    %4579 = vmatprep.subr.mxu0 0.0
    %4580 = vmatpush2.msra.mxu0 0.0
    %4581 = vmatprep.subr.mxu0 0.0
    %4582 = vmatpush2.msra.mxu0 0.0
    %4583 = vmatprep.subr.mxu0 0.0
    %4584 = vmatpush2.msra.mxu0 0.0
    %4585 = vmatprep.subr.mxu0 0.0
    %4586 = vmatpush2.msra.mxu0 0.0
    %4587 = vmatprep.subr.mxu0 0.0
    %4588 = vmatpush2.msra.mxu0 0.0
    %4589 = vmatprep.subr.mxu0 0.0
    %4590 = vmatpush2.msra.mxu0 0.0
    %4591 = vmatprep.subr.mxu0 0.0
    %4592 = vmatpush2.msra.mxu0 0.0
    %4593 = vmatprep.subr.mxu0 0.0
    %4594 = vmatpush2.msra.mxu0 0.0
    %4595 = vmatprep.subr.mxu0 0.0
    %4596 = vmatpush2.msra.mxu0 0.0
    %4597 = vmatprep.subr.mxu0 0.0
    %4598 = vmatpush2.msra.mxu0 0.0
    %4599 = vmatprep.subr.mxu0 0.0
    %4600 = vmatpush2.msra.mxu0 0.0
    %4601 = vmatprep.subr.mxu0 0.0
    %4602 = vmatpush2.msra.mxu0 0.0
    %4603 = vmatprep.subr.mxu0 0.0
    %4604 = vmatpush2.msra.mxu0 0.0
    %4605 = vmatprep.subr.mxu0 0.0
    %4606 = vmatpush2.msra.mxu0 0.0
    %4607 = vmatprep.subr.mxu0 0.0
    %4608 = vmatpush2.msra.mxu0 0.0
    %4609 = vmatprep.subr.mxu0 0.0
    %4610 = vmatpush2.msra.mxu0 0.0
    %4611 = vmatprep.mubr.f32.mxu0 0.0
    %4612 = vmatmul.mubr.f32.gmra.mxu0 %v4406
    %v4613 = vpop.f32.mrf.mxu0
    %v4614 = vadd.f32 0.0, %v4613
    %v4615 = vpop.f32.mrf.mxu0
    %v4616 = vadd.f32 0.0, %v4615
    %4617 = vdwg.mxu0
    %v4618 = vadd.f32 %v4408, %v4543
    %v4619 = vadd.f32 %v4409, %v4545
    %v4620 = vadd.f32 %v4410, %v4614
    %v4621 = vadd.f32 %v4411, %v4616
    %v4622 = vmul.f32 %v4618, 0.5
    %v4623 = vtanh.pop %v4622
    %v4624 = vmul.f32 %v4623, 0.5
    %v4625 = vadd.f32 %v4624, 0.5
    %v4626 = vmul.f32 %v4619, 0.5
    %v4627 = vtanh.pop %v4626
    %v4628 = vmul.f32 %v4627, 0.5
    %v4629 = vadd.f32 %v4628, 0.5
    %v4630 = vtanh.pop %v4620
    %v4631 = vmul.f32 %v4621, 0.5
    %v4632 = vtanh.pop %v4631
    %v4633 = vmul.f32 %v4632, 0.5
    %v4634 = vadd.f32 %v4633, 0.5
    %v4635 = vmul.f32 %v4629, %v4407
    %v4636 = vmul.f32 %v4625, %v4630
    %v4637 = vadd.f32 %v4635, %v4636
    %v4638 = vtanh.pop %v4637
    %v4639 = vmul.f32 %v4634, %v4638
    %v4640 = vsel %vm2389, %v4639, 0.0
    %4641 = vst [vmem:[%s2391] sm:$0xff] %v4640
    %v4642 = vsel %vm2389, %v4639, %v4406
    %v4643 = vsel %vm2389, %v4637, %v4407
    %4644 = vst [vmem:[%s2751] sm:$0xff] %v4642
    %4645 = vst [vmem:[%s2753] sm:$0xff] %v4643
    // Predicated region
    $region38: #{tpu_custom_call.1} parent=1 // pred_check
      _
    $region39: #{tpu_custom_call.1} parent=1 // pred_check_branch
      %4647 = sbr.rel (0) target = $region41
    $region40: #{tpu_custom_call.1} parent=1 // pred_region
      %s4649 = ssub.s32 1024, 1024
      %4650 = vsyncadd [#allocation5], %s4649
      %s4651 = sshll.u32 [#allocation9], 4
      %s4652 = int_to_ptr.vmem [resolvable:$true] %s4651
      %4657 = dma.vmem_to_hbm [thread:$0]  %s4652, 1024, %s5, [#allocation5], 128, 128, 8
    $region41: #{tpu_custom_call.1} parent=1 // pred_fallthru
      _
    // Predicated region
    $region42: #{tpu_custom_call.1} parent=1 // pred_check
      _
    $region43: #{tpu_custom_call.1} parent=1 // pred_check_branch
      %4659 = sbr.rel (0) target = $region45
    $region44: #{tpu_custom_call.1} parent=1 // pred_region
      %s4661 = ssub.s32 256, 256
      %4662 = vsyncadd [#allocation11], %s4661
      %s4663 = sshll.u32 [#allocation10], 4
      %s4664 = int_to_ptr.vmem [resolvable:$true] %s4663
      %4669 = dma.vmem_to_hbm [thread:$0]  %s4664, 256, %s6, [#allocation11], 128, 128, 8
    $region45: #{tpu_custom_call.1} parent=1 // pred_fallthru
      _
    // Predicated region
    $region46: #{tpu_custom_call.1} parent=1 // pred_check
      _
    $region47: #{tpu_custom_call.1} parent=1 // pred_check_branch
      %4671 = sbr.rel (0) target = $region49
    $region48: #{tpu_custom_call.1} parent=1 // pred_region
      %s4673 = ssub.s32 256, 256
      %4674 = vsyncadd [#allocation11], %s4673
      %s4675 = sshll.u32 [#allocation12], 4
      %s4676 = int_to_ptr.vmem [resolvable:$true] %s4675
      %4681 = dma.vmem_to_hbm [thread:$0]  %s4676, 256, %s7, [#allocation11], 128, 128, 8
    $region49: #{tpu_custom_call.1} parent=1 // pred_fallthru
      _
    // Predicated region
    $region50: #{tpu_custom_call.1} parent=1 // pred_check
      _
    $region51: #{tpu_custom_call.1} parent=1 // pred_check_branch
      %4683 = sbr.rel (0) target = $region53
    $region52: #{tpu_custom_call.1} parent=1 // pred_region
      %4684 = dma.done [#allocation5], 1024
    $region53: #{tpu_custom_call.1} parent=1 // pred_fallthru
      _
    // Predicated region
    $region54: #{tpu_custom_call.1} parent=1 // pred_check
      _
    $region55: #{tpu_custom_call.1} parent=1 // pred_check_branch
      %4686 = sbr.rel (0) target = $region57
    $region56: #{tpu_custom_call.1} parent=1 // pred_region
      %4687 = dma.done [#allocation11], 256
    $region57: #{tpu_custom_call.1} parent=1 // pred_fallthru
      _
    // Predicated region
    $region58: #{tpu_custom_call.1} parent=1 // pred_check
      _
    $region59: #{tpu_custom_call.1} parent=1 // pred_check_branch
      %4689 = sbr.rel (0) target = $region61
    $region60: #{tpu_custom_call.1} parent=1 // pred_region
      %4690 = dma.done [#allocation11], 256
    $region61: #{tpu_custom_call.1} parent=1 // pred_fallthru
      _
    %4691 = vsyncpa [#allocation4], 1
    %4692 = vsyncpa [#allocation7], 1
    %4693 = vsyncpa [#allocation5], 1
    %4694 = vsyncpa [#allocation11], 1

</llo_original>
